<compile_context>
chip_gen: v5e
topology: v5e:2x2
jax: 0.10.0
libtpu: 0.0.40
codegen_flags: <defaults>
</compile_context>

<pallas_src>
import math

import jax
import jax.numpy as jnp
from jax.experimental import pallas as pl
from jax.experimental.pallas import tpu as pltpu

BN_EPS_CONV = 1e-3   # Ultralytics Conv BN eps (see TODO above)
BN_EPS_IRMB = 1e-6   # get_norm('bn_2d') eps in the reference code

# Set to jnp.bfloat16 for ~2x MXU throughput / halved operand traffic
# (relax the test tolerance if you do — intentional precision tradeoff).
MATMUL_DTYPE = jnp.float32

# Safe explicit scoped-VMEM limit on v5e / v6e / v7x.
VMEM_LIMIT = 32 * 1024 * 1024


def _round_up(x, m):
    return ((x + m - 1) // m) * m


def _pick_tm(M, row_bytes, tm_cap=1024, budget=6 << 20):
    """Row-tile size for the 1x1-conv kernels: as big as a ~6 MiB double-buffered
    budget allows (keeps v7x's 64 MiB VMEM and v5e's default scoped limit happy)."""
    tm = min(tm_cap, max(8, budget // max(row_bytes, 1)))
    tm = max(8, (tm // 8) * 8)
    return min(tm, _round_up(M, 8))


def fold_bn(gamma, beta, mean, var, eps):
    s = gamma / jnp.sqrt(var + eps)
    return s, beta - mean * s


def _apply_act(act, y):
    if act == "none":
        return y
    if act == "relu":
        return jnp.maximum(y, 0.0)
    if act == "silu":
        return y * jax.nn.sigmoid(y)
    raise ValueError(act)


# ---------------------------------------------------------------------------
# 1x1-conv kernels (row-tiled MXU matmuls; BN already folded into W / bias)
# ---------------------------------------------------------------------------
def _pw_pair_kernel(act_a, act_b):
    def kernel(x_ref, wa_ref, ba_ref, wb_ref, bb_ref, ya_ref, yb_ref):
        x = x_ref[...].astype(MATMUL_DTYPE)
        ya = jnp.dot(x, wa_ref[...].astype(MATMUL_DTYPE),
                     preferred_element_type=jnp.float32) + ba_ref[...]
        yb = jnp.dot(x, wb_ref[...].astype(MATMUL_DTYPE),
                     preferred_element_type=jnp.float32) + bb_ref[...]
        ya_ref[...] = _apply_act(act_a, ya).astype(ya_ref.dtype)
        yb_ref[...] = _apply_act(act_b, yb).astype(yb_ref.dtype)
    return kernel


def pointwise_pair(x2d, wa, ba, wb, bb, acts):
    """Two fused 1x1 convs sharing one read of x.  x2d: (M, Cin)."""
    M, cin = x2d.shape
    ca, cb = wa.shape[1], wb.shape[1]
    tm = _pick_tm(M, (cin + ca + cb) * 4 * 2)
    out = pl.pallas_call(
        _pw_pair_kernel(*acts),
        grid=(pl.cdiv(M, tm),),
        in_specs=[
            pl.BlockSpec((tm, cin), lambda i: (i, 0)),
            pl.BlockSpec((cin, ca), lambda i: (0, 0)),
            pl.BlockSpec((1, ca), lambda i: (0, 0)),
            pl.BlockSpec((cin, cb), lambda i: (0, 0)),
            pl.BlockSpec((1, cb), lambda i: (0, 0)),
        ],
        out_specs=[
            pl.BlockSpec((tm, ca), lambda i: (i, 0)),
            pl.BlockSpec((tm, cb), lambda i: (i, 0)),
        ],
        out_shape=[
            jax.ShapeDtypeStruct((M, ca), x2d.dtype),
            jax.ShapeDtypeStruct((M, cb), x2d.dtype),
        ],
        compiler_params=pltpu.CompilerParams(
            dimension_semantics=("parallel",), vmem_limit_bytes=VMEM_LIMIT),
    )(x2d, wa, ba, wb, bb)
    return out[0], out[1]


def _pw_res_kernel():
    def kernel(x_ref, w_ref, r_ref, o_ref):
        x = x_ref[...].astype(MATMUL_DTYPE)
        y = jnp.dot(x, w_ref[...].astype(MATMUL_DTYPE),
                    preferred_element_type=jnp.float32)
        o_ref[...] = (y + r_ref[...].astype(jnp.float32)).astype(o_ref.dtype)
    return kernel


def pointwise_residual(x2d, w, res2d):
    """y = x @ w + res (bias-free proj fused with the iRMB shortcut)."""
    M, cin = x2d.shape
    cout = w.shape[1]
    tm = _pick_tm(M, (cin + 2 * cout) * 4 * 2)
    return pl.pallas_call(
        _pw_res_kernel(),
        grid=(pl.cdiv(M, tm),),
        in_specs=[
            pl.BlockSpec((tm, cin), lambda i: (i, 0)),
            pl.BlockSpec((cin, cout), lambda i: (0, 0)),
            pl.BlockSpec((tm, cout), lambda i: (i, 0)),
        ],
        out_specs=pl.BlockSpec((tm, cout), lambda i: (i, 0)),
        out_shape=jax.ShapeDtypeStruct((M, cout), x2d.dtype),
        compiler_params=pltpu.CompilerParams(
            dimension_semantics=("parallel",), vmem_limit_bytes=VMEM_LIMIT),
    )(x2d, w, res2d)


def _pw_concat_kernel(act):
    def kernel(a_ref, b_ref, wa_ref, wb_ref, bias_ref, o_ref):
        a = a_ref[...].astype(MATMUL_DTYPE)
        b = b_ref[...].astype(MATMUL_DTYPE)
        y = (jnp.dot(a, wa_ref[...].astype(MATMUL_DTYPE),
                     preferred_element_type=jnp.float32)
             + jnp.dot(b, wb_ref[...].astype(MATMUL_DTYPE),
                       preferred_element_type=jnp.float32)
             + bias_ref[...])
        o_ref[...] = _apply_act(act, y).astype(o_ref.dtype)
    return kernel


def pointwise_concat(a2d, b2d, wa, wb, bias, act):
    """cv3(concat(a, b)) == a @ Wa + b @ Wb + bias — concat never materialized."""
    M, ca_in = a2d.shape
    _, cb_in = b2d.shape
    cout = wa.shape[1]
    tm = _pick_tm(M, (ca_in + cb_in + cout) * 4 * 2)
    return pl.pallas_call(
        _pw_concat_kernel(act),
        grid=(pl.cdiv(M, tm),),
        in_specs=[
            pl.BlockSpec((tm, ca_in), lambda i: (i, 0)),
            pl.BlockSpec((tm, cb_in), lambda i: (i, 0)),
            pl.BlockSpec((ca_in, cout), lambda i: (0, 0)),
            pl.BlockSpec((cb_in, cout), lambda i: (0, 0)),
            pl.BlockSpec((1, cout), lambda i: (0, 0)),
        ],
        out_specs=pl.BlockSpec((tm, cout), lambda i: (i, 0)),
        out_shape=jax.ShapeDtypeStruct((M, cout), a2d.dtype),
        compiler_params=pltpu.CompilerParams(
            dimension_semantics=("parallel",), vmem_limit_bytes=VMEM_LIMIT),
    )(a2d, b2d, wa, wb, bias)


# ---------------------------------------------------------------------------
# Fused windowed attention: per grid step handle Gb windows:
#   qk / v 1x1 projections (MXU) -> per-head batched softmax(q k^T) v
# Scale is folded into the q half of wqk.  q/k/v never touch HBM.
# ---------------------------------------------------------------------------
def _win_attn_kernel(gb, T, c, heads, dh):
    def kernel(x_ref, wqk_ref, wv_ref, o_ref, qk_scr, v_scr):
        wqk = wqk_ref[...].astype(MATMUL_DTYPE)      # (c, 2c) — q half pre-scaled
        wv = wv_ref[...].astype(MATMUL_DTYPE)        # (c, c)
        # Fused qk / v projections: per-window 2D MXU matmuls staged in VMEM scratch.
        for g in range(gb):
            xg = x_ref[g].astype(MATMUL_DTYPE)       # (T, c)
            qk_scr[g] = jnp.dot(xg, wqk, preferred_element_type=jnp.float32)
            v_scr[g] = jnp.maximum(
                jnp.dot(xg, wv, preferred_element_type=jnp.float32), 0.0)
        # Windows-batched attention, one head at a time (static lane slices).
        for h in range(heads):
            q = qk_scr[:, :, h * dh:(h + 1) * dh]            # (gb, T, dh)
            k = qk_scr[:, :, c + h * dh:c + (h + 1) * dh]    # (gb, T, dh)
            v = v_scr[:, :, h * dh:(h + 1) * dh]             # (gb, T, dh)
            s = jnp.einsum('gtd,gsd->gts',
                           q.astype(MATMUL_DTYPE), k.astype(MATMUL_DTYPE),
                           preferred_element_type=jnp.float32)       # (gb, T, T)
            s = s - jnp.max(s, axis=-1, keepdims=True)
            p = jnp.exp(s)
            p = p * pl.reciprocal(jnp.sum(p, axis=-1, keepdims=True), approx=True)
            o = jnp.einsum('gts,gsd->gtd',
                           p.astype(MATMUL_DTYPE), v.astype(MATMUL_DTYPE),
                           preferred_element_type=jnp.float32)       # (gb, T, dh)
            o_ref[:, :, h * dh:(h + 1) * dh] = o.astype(o_ref.dtype)
    return kernel


def windowed_attention(xw, wqk, wv, heads, dh, gb=16):
    """xw: (G, T, c) window-partitioned, already normalized.  Returns (G, T, c)."""
    G, T, c = xw.shape
    gb = int(min(gb, G))
    return pl.pallas_call(
        _win_attn_kernel(gb, T, c, heads, dh),
        grid=(pl.cdiv(G, gb),),
        in_specs=[
            pl.BlockSpec((gb, T, c), lambda i: (i, 0, 0)),
            pl.BlockSpec((c, 2 * c), lambda i: (0, 0)),
            pl.BlockSpec((c, c), lambda i: (0, 0)),
        ],
        out_specs=pl.BlockSpec((gb, T, c), lambda i: (i, 0, 0)),
        out_shape=jax.ShapeDtypeStruct((G, T, c), xw.dtype),
        scratch_shapes=[
            pltpu.VMEM((gb, T, 2 * c), jnp.float32),
            pltpu.VMEM((gb, T, c), jnp.float32),
        ],
        compiler_params=pltpu.CompilerParams(
            dimension_semantics=("parallel",), vmem_limit_bytes=VMEM_LIMIT),
    )(xw, wqk, wv)


# ---------------------------------------------------------------------------
# Depthwise 3x3 conv + folded BN + SiLU + residual, fused.
# Channel-tiled grid; the three W-shifted (sublane) views are hoisted once.
# ---------------------------------------------------------------------------
def _dw_kernel(H, W):
    def kernel(xp_ref, w_ref, b_ref, o_ref):
        xp = xp_ref[0].astype(jnp.float32)                   # (H+2, W+2, Cb), halo = 0
        Cb = xp.shape[-1]
        # Hoist the 3 W-shifts (sublane relayouts) and reuse across ky (H-shifts are
        # along the untiled leading axis and cost nothing).
        cols = [xp[:, kx:kx + W, :] for kx in range(3)]       # each (H+2, W, Cb)
        acc = jnp.zeros((H, W, Cb), jnp.float32)
        for ky in range(3):
            for kx in range(3):
                wk = w_ref[ky, kx].reshape(1, 1, Cb)
                acc = acc + cols[kx][ky:ky + H, :, :] * wk
        y = acc + b_ref[...].reshape(1, 1, Cb)
        y = y * jax.nn.sigmoid(y)                             # SiLU
        # iRMB: x = x + conv_local(x)
        o_ref[0] = (y + cols[1][1:H + 1, :, :]).astype(o_ref.dtype)
    return kernel


def dwconv_bn_silu_res(x_nhwc, w_dw, bias):
    """x: (N,H,W,C); w_dw: (3,3,1,C) (BN scale folded); bias: (1,C)."""
    N, H, W, C = x_nhwc.shape
    Cb = 128 if (C % 128 == 0 and C > 128) else C
    # TODO(synk): drop this XLA-side halo pad by over-fetching rows in the kernel.
    xp = jnp.pad(x_nhwc, ((0, 0), (1, 1), (1, 1), (0, 0)))
    return pl.pallas_call(
        _dw_kernel(H, W),
        grid=(N, C // Cb),
        in_specs=[
            pl.BlockSpec((1, H + 2, W + 2, Cb), lambda n, ci: (n, 0, 0, ci)),
            pl.BlockSpec((3, 3, 1, Cb), lambda n, ci: (0, 0, 0, ci)),
            pl.BlockSpec((1, Cb), lambda n, ci: (0, ci)),
        ],
        out_specs=pl.BlockSpec((1, H, W, Cb), lambda n, ci: (n, 0, 0, ci)),
        out_shape=jax.ShapeDtypeStruct((N, H, W, C), x_nhwc.dtype),
        compiler_params=pltpu.CompilerParams(
            dimension_semantics=("parallel", "parallel"),
            vmem_limit_bytes=VMEM_LIMIT),
    )(xp, w_dw, bias)


# ---------------------------------------------------------------------------
# iRMB forward (Pallas path), operating on flattened NHWC rows (M, C)
# ---------------------------------------------------------------------------
def irmb_forward(p, x2d, N, H, W, window_size=7):
    c = x2d.shape[1]
    dh = p["dim_head"]
    assert c % dh == 0
    heads = c // dh
    scale = dh ** (-0.5)

    ws = window_size
    pad_b = (ws - H % ws) % ws
    pad_r = (ws - W % ws) % ws
    Hp, Wp = H + pad_b, W + pad_r
    n1, n2 = Hp // ws, Wp // ws
    G, T = N * n1 * n2, ws * ws

    # Input BN (eval) as a cheap elementwise op XLA fuses into the single window
    # partition copy below.  Padded positions are exactly 0 post-norm, matching the
    # reference (q = k = 0, v = relu(0) = 0 there).
    sn, bn_ = fold_bn(*p["norm_bn"], eps=BN_EPS_IRMB)
    xn = (x2d * sn[None, :] + bn_[None, :]).reshape(N, H, W, c)
    xn = jnp.pad(xn, ((0, 0), (0, pad_b), (0, pad_r), (0, 0)))

    # EMO strided window partition: H = (h1 n1), W = (w1 n2); window g = (n,i1,i2),
    # in-window position t = h1*ws + w1.  ONE XLA transpose of the c-channel tensor
    # (q/k/v and the attention output no longer round-trip HBM in window layout).
    xw = (xn.reshape(N, ws, n1, ws, n2, c)
            .transpose(0, 2, 4, 1, 3, 5)
            .reshape(G, T, c))

    # Fold the softmax scale into the q half of the qk projection weights.
    col_scale = jnp.concatenate([jnp.full((c,), scale, jnp.float32),
                                 jnp.ones((c,), jnp.float32)])
    wqk = p["qk_w"] * col_scale[None, :]

    ow = windowed_attention(xw, wqk, p["v_w"], heads, dh)

    # Inverse window partition + crop back to (N, H, W, c).
    o = (ow.reshape(N, n1, n2, ws, ws, c)
           .transpose(0, 3, 1, 4, 2, 5)
           .reshape(N, Hp, Wp, c))
    x_spa = o[:, :H, :W, :]

    # conv_local: depthwise 3x3 + BN + SiLU, with residual add.
    sdw, bdw = fold_bn(*p["dw_bn"], eps=BN_EPS_IRMB)
    w_dw = (p["dw_w"] * sdw[None, None, :]).reshape(3, 3, 1, c)
    x_loc = dwconv_bn_silu_res(x_spa, w_dw, bdw.reshape(1, -1))

    # proj (1x1, bias-free, no norm/act) fused with the iRMB shortcut add.
    return pointwise_residual(x_loc.reshape(N * H * W, c), p["proj_w"], x2d)


# ---------------------------------------------------------------------------
# C3_RMB forward (Pallas path).  Input / output are NCHW like the PyTorch module.
# ---------------------------------------------------------------------------
def c3_rmb_forward(params, x_nchw, window_size=7):
    N, C1, H, W = x_nchw.shape
    c_ = params["cv1_w"].shape[1]
    c2 = params["cv3_w"].shape[1]

    x2d = jnp.transpose(x_nchw, (0, 2, 3, 1)).reshape(N * H * W, C1)

    # cv1 & cv2 (Conv 1x1 + BN + SiLU), fused into one kernel (one read of x).
    s1, b1 = fold_bn(*params["cv1_bn"], eps=BN_EPS_CONV)
    s2, b2 = fold_bn(*params["cv2_bn"], eps=BN_EPS_CONV)
    y1, y2 = pointwise_pair(
        x2d,
        params["cv1_w"] * s1[None, :], b1.reshape(1, -1),
        params["cv2_w"] * s2[None, :], b2.reshape(1, -1),
        acts=("silu", "silu"))

    # n repeated iRMB blocks on the cv1 branch.
    h = y1
    for blk in params["m"]:
        h = irmb_forward(blk, h, N, H, W, window_size)

    # cv3 on the channel concat, fused as a split-weight dual matmul + BN + SiLU.
    s3, b3 = fold_bn(*params["cv3_bn"], eps=BN_EPS_CONV)
    w3 = params["cv3_w"] * s3[None, :]
    out2d = pointwise_concat(h, y2, w3[:c_], w3[c_:], b3.reshape(1, -1), act="silu")

    out = out2d.reshape(N, H, W, c2)
    return jnp.transpose(out, (0, 3, 1, 2))


# ---------------------------------------------------------------------------
# Parameter construction
# ---------------------------------------------------------------------------
def init_params(key, c1, c2, n=1, dim_head=8, e=0.5):
    c_ = int(c2 * e)
    assert c_ % dim_head == 0, "dim should be divisible by num_heads"
    ks = iter(jax.random.split(key, 64))

    def conv_w(cin, cout):
        return jax.random.normal(next(ks), (cin, cout), jnp.float32) / math.sqrt(cin)

    def bn_params(c):
        return (1.0 + 0.1 * jax.random.normal(next(ks), (c,), jnp.float32),   # gamma
                0.1 * jax.random.normal(next(ks), (c,), jnp.float32),         # beta
                0.1 * jax.random.normal(next(ks), (c,), jnp.float32),         # running mean
                1.0 + jax.nn.softplus(jax.random.normal(next(ks), (c,), jnp.float32)))  # var > 0

    params = {
        "cv1_w": conv_w(c1, c_), "cv1_bn": bn_params(c_),
        "cv2_w": conv_w(c1, c_), "cv2_bn": bn_params(c_),
        "cv3_w": conv_w(2 * c_, c2), "cv3_bn": bn_params(c2),
        "m": [],
    }
    for _ in range(n):
        params["m"].append({
            "dim_head": dim_head,
            "norm_bn": bn_params(c_),
            "qk_w": conv_w(c_, 2 * c_),
            "v_w": conv_w(c_, c_),
            "dw_w": 0.3 * jax.random.normal(next(ks), (3, 3, c_), jnp.float32),
            "dw_bn": bn_params(c_),
            "proj_w": conv_w(c_, c_),
        })
    return params


# ---------------------------------------------------------------------------
# Pure-JAX reference (direct transcription of the PyTorch forward, eval mode)
# ---------------------------------------------------------------------------
def _ref_bn(x, bn_p, eps):
    g, b, m, v = bn_p
    inv = g / jnp.sqrt(v + eps)
    return (x - m[None, :, None, None]) * inv[None, :, None, None] + b[None, :, None, None]


def _ref_conv1x1(x, w):  # x: (B,C,H,W), w: (Cin,Cout)
    return jnp.einsum("bchw,cd->bdhw", x, w)


def _ref_silu(x):
    return x * jax.nn.sigmoid(x)


def _reference_irmb(p, x, window_size=7):
    B, C, H, W = x.shape
    dh = p["dim_head"]
    heads = C // dh
    scale = dh ** (-0.5)
    shortcut = x

    xn = _ref_bn(x, p["norm_bn"], eps=BN_EPS_IRMB)
    ws = window_size
    pad_b = (ws - H % ws) % ws
    pad_r = (ws - W % ws) % ws
    Hp, Wp = H + pad_b, W + pad_r
    n1, n2 = Hp // ws, Wp // ws
    xp = jnp.pad(xn, ((0, 0), (0, 0), (0, pad_b), (0, pad_r)))
    # 'b c (h1 n1) (w1 n2) -> (b n1 n2) c h1 w1'
    xw = xp.reshape(B, C, ws, n1, ws, n2)
    xw = jnp.transpose(xw, (0, 3, 5, 1, 2, 4)).reshape(B * n1 * n2, C, ws, ws)
    bq = B * n1 * n2

    qk = _ref_conv1x1(xw, p["qk_w"])                                   # (bq, 2C, ws, ws)
    qk = qk.reshape(bq, 2, heads, dh, ws, ws)
    qk = jnp.transpose(qk, (1, 0, 2, 4, 5, 3)).reshape(2, bq, heads, ws * ws, dh)
    q, k = qk[0], qk[1]
    attn = jax.nn.softmax(jnp.einsum("bhtd,bhsd->bhts", q, k) * scale, axis=-1)

    v = jax.nn.relu(_ref_conv1x1(xw, p["v_w"]))
    v = v.reshape(bq, heads, dh, ws, ws)
    v = jnp.transpose(v, (0, 1, 3, 4, 2)).reshape(bq, heads, ws * ws, dh)

    xs = jnp.einsum("bhts,bhsd->bhtd", attn, v)
    xs = xs.reshape(bq, heads, ws, ws, dh)
    xs = jnp.transpose(xs, (0, 1, 4, 2, 3)).reshape(bq, C, ws, ws)
    # '(b n1 n2) c h1 w1 -> b c (h1 n1) (w1 n2)'
    xs = xs.reshape(B, n1, n2, C, ws, ws)
    xs = jnp.transpose(xs, (0, 3, 4, 1, 5, 2)).reshape(B, C, Hp, Wp)
    xs = xs[:, :, :H, :W]

    # conv_local (depthwise 3x3) + BN + SiLU, residual add
    w_oihw = jnp.transpose(p["dw_w"], (2, 0, 1))[:, None, :, :]        # (C,1,3,3)
    y = jax.lax.conv_general_dilated(
        xs, w_oihw, (1, 1), "SAME", feature_group_count=C,
        dimension_numbers=("NCHW", "OIHW", "NCHW"),
        precision=jax.lax.Precision.HIGHEST)
    y = _ref_silu(_ref_bn(y, p["dw_bn"], eps=BN_EPS_IRMB))
    x2 = xs + y

    x3 = _ref_conv1x1(x2, p["proj_w"])
    return shortcut + x3


def _reference_forward(params, x_nchw, window_size=7):
    def conv_module(x, w, bn_p):
        return _ref_silu(_ref_bn(_ref_conv1x1(x, w), bn_p, eps=BN_EPS_CONV))

    y1 = conv_module(x_nchw, params["cv1_w"], params["cv1_bn"])
    y2 = conv_module(x_nchw, params["cv2_w"], params["cv2_bn"])
    h = y1
    for p in params["m"]:
        h = _reference_irmb(p, h, window_size)
    cat = jnp.concatenate([h, y2], axis=1)
    return conv_module(cat, params["cv3_w"], params["cv3_bn"])


if __name__ == "__main__":
    jax.config.update("jax_default_matmul_precision", "highest")

    key = jax.random.PRNGKey(0)
    k_x, k_p = jax.random.split(key)

    N, C1, C2, H, W = 2, 32, 32, 16, 16
    DIM_HEAD = 8                    # c_ = 16 -> 2 heads of 8
    x = jax.random.normal(k_x, (N, C1, H, W), jnp.float32)
    params = init_params(k_p, C1, C2, n=1, dim_head=DIM_HEAD, e=0.5)

    out = c3_rmb_forward(params, x)
    out = jax.block_until_ready(out)

    ref = _reference_forward(params, x)
    assert out.shape == (N, C2, H, W)
    err = float(jnp.max(jnp.abs(out - ref)))
    # 2e-3 tolerance: the EUP approximate reciprocal in the softmax is an intentional
    # (tiny) precision tradeoff vs. the Precision.HIGHEST f32 reference.
    assert jnp.allclose(out, ref, atol=2e-3, rtol=2e-3), f"max abs err = {err}"
    print("KERNEL_OK")
</pallas_src>

<mosaic_0001>
module attributes {stable_mosaic.version = 11 : i64} {
  func.func @kernel(%arg0: i32, %arg1: memref<512x32xf32, #tpu.memory_space<vmem>>, %arg2: memref<32x16xf32, #tpu.memory_space<vmem>>, %arg3: memref<1x16xf32, #tpu.memory_space<vmem>>, %arg4: memref<32x16xf32, #tpu.memory_space<vmem>>, %arg5: memref<1x16xf32, #tpu.memory_space<vmem>>, %arg6: memref<512x16xf32, #tpu.memory_space<vmem>>, %arg7: memref<512x16xf32, #tpu.memory_space<vmem>>) attributes {dimension_semantics = [#tpu.dimension_semantics<parallel>], iteration_bounds = array<i64: 1>, scalar_prefetch = 0 : i64, scratch_operands = 0 : i64, tpu.core_type = #tpu.core_type<tc>, window_params = [{transform_indices = @transform_0, window_bounds = array<i64: 512, 32>}, {pipeline_mode = #tpu.pipeline_mode<synchronous>, transform_indices = @transform_1, window_bounds = array<i64: 32, 16>}, {pipeline_mode = #tpu.pipeline_mode<synchronous>, transform_indices = @transform_2, window_bounds = array<i64: 1, 16>}, {pipeline_mode = #tpu.pipeline_mode<synchronous>, transform_indices = @transform_3, window_bounds = array<i64: 32, 16>}, {pipeline_mode = #tpu.pipeline_mode<synchronous>, transform_indices = @transform_4, window_bounds = array<i64: 1, 16>}, {transform_indices = @transform_5, window_bounds = array<i64: 512, 16>}, {transform_indices = @transform_6, window_bounds = array<i64: 512, 16>}]} {
    %c0 = arith.constant 0 : index
    %c0_0 = arith.constant 0 : index
    %0 = vector.load %arg1[%c0, %c0_0] : memref<512x32xf32, #tpu.memory_space<vmem>>, vector<512x32xf32>
    %c0_1 = arith.constant 0 : index
    %c0_2 = arith.constant 0 : index
    %1 = vector.load %arg2[%c0_1, %c0_2] : memref<32x16xf32, #tpu.memory_space<vmem>>, vector<32x16xf32>
    %cst = arith.constant dense<0.000000e+00> : vector<512x16xf32>
    %2 = tpu.matmul %0, %1, %cst {dimension_numbers = #tpu.dot_dimension_numbers<[1], [0], [0], [1], [0, 0, 1, 1], [], []>, precision = #tpu.contract_precision<fp32>} : vector<512x32xf32>, vector<32x16xf32>, vector<512x16xf32> -> vector<512x16xf32>
    %c0_3 = arith.constant 0 : index
    %c0_4 = arith.constant 0 : index
    %3 = vector.load %arg3[%c0_3, %c0_4] : memref<1x16xf32, #tpu.memory_space<vmem>>, vector<1x16xf32>
    %4 = vector.broadcast %3 : vector<1x16xf32> to vector<512x16xf32>
    %5 = arith.addf %2, %4 : vector<512x16xf32>
    %c0_5 = arith.constant 0 : index
    %c0_6 = arith.constant 0 : index
    %6 = vector.load %arg4[%c0_5, %c0_6] : memref<32x16xf32, #tpu.memory_space<vmem>>, vector<32x16xf32>
    %cst_7 = arith.constant dense<0.000000e+00> : vector<512x16xf32>
    %7 = tpu.matmul %0, %6, %cst_7 {dimension_numbers = #tpu.dot_dimension_numbers<[1], [0], [0], [1], [0, 0, 1, 1], [], []>, precision = #tpu.contract_precision<fp32>} : vector<512x32xf32>, vector<32x16xf32>, vector<512x16xf32> -> vector<512x16xf32>
    %c0_8 = arith.constant 0 : index
    %c0_9 = arith.constant 0 : index
    %8 = vector.load %arg5[%c0_8, %c0_9] : memref<1x16xf32, #tpu.memory_space<vmem>>, vector<1x16xf32>
    %9 = vector.broadcast %8 : vector<1x16xf32> to vector<512x16xf32>
    %10 = arith.addf %7, %9 : vector<512x16xf32>
    %11 = arith.negf %5 : vector<512x16xf32>
    %12 = math.exp %11 : vector<512x16xf32>
    %cst_10 = arith.constant 1.000000e+00 : f32
    %13 = vector.broadcast %cst_10 : f32 to vector<512x16xf32>
    %14 = arith.addf %13, %12 : vector<512x16xf32>
    %15 = arith.divf %13, %14 : vector<512x16xf32>
    %16 = arith.mulf %5, %15 : vector<512x16xf32>
    %c0_11 = arith.constant 0 : index
    %c0_12 = arith.constant 0 : index
    %17 = vector.load %arg6[%c0_11, %c0_12] : memref<512x16xf32, #tpu.memory_space<vmem>>, vector<512x16xf32>
    tpu.vector_store %arg6[%c0_11, %c0_12], %16 {strides = array<i32>} : memref<512x16xf32, #tpu.memory_space<vmem>>, vector<512x16xf32>,
    %18 = arith.negf %10 : vector<512x16xf32>
    %19 = math.exp %18 : vector<512x16xf32>
    %cst_13 = arith.constant 1.000000e+00 : f32
    %20 = vector.broadcast %cst_13 : f32 to vector<512x16xf32>
    %21 = arith.addf %20, %19 : vector<512x16xf32>
    %22 = arith.divf %20, %21 : vector<512x16xf32>
    %23 = arith.mulf %10, %22 : vector<512x16xf32>
    %c0_14 = arith.constant 0 : index
    %c0_15 = arith.constant 0 : index
    %24 = vector.load %arg7[%c0_14, %c0_15] : memref<512x16xf32, #tpu.memory_space<vmem>>, vector<512x16xf32>
    tpu.vector_store %arg7[%c0_14, %c0_15], %23 {strides = array<i32>} : memref<512x16xf32, #tpu.memory_space<vmem>>, vector<512x16xf32>,
    return
  }
  func.func @transform_0(%arg0: i32) -> (i32, i32) {
    %c0_i32 = arith.constant 0 : i32
    %c0_i32_0 = arith.constant 0 : i32
    return %arg0, %c0_i32 : i32, i32
  }
  func.func @transform_1(%arg0: i32) -> (i32, i32) {
    %c0_i32 = arith.constant 0 : i32
    %c0_i32_0 = arith.constant 0 : i32
    %c0_i32_1 = arith.constant 0 : i32
    return %c0_i32, %c0_i32_0 : i32, i32
  }
  func.func @transform_2(%arg0: i32) -> (i32, i32) {
    %c0_i32 = arith.constant 0 : i32
    %c0_i32_0 = arith.constant 0 : i32
    %c0_i32_1 = arith.constant 0 : i32
    return %c0_i32, %c0_i32_0 : i32, i32
  }
  func.func @transform_3(%arg0: i32) -> (i32, i32) {
    %c0_i32 = arith.constant 0 : i32
    %c0_i32_0 = arith.constant 0 : i32
    %c0_i32_1 = arith.constant 0 : i32
    return %c0_i32, %c0_i32_0 : i32, i32
  }
  func.func @transform_4(%arg0: i32) -> (i32, i32) {
    %c0_i32 = arith.constant 0 : i32
    %c0_i32_0 = arith.constant 0 : i32
    %c0_i32_1 = arith.constant 0 : i32
    return %c0_i32, %c0_i32_0 : i32, i32
  }
  func.func @transform_5(%arg0: i32) -> (i32, i32) {
    %c0_i32 = arith.constant 0 : i32
    %c0_i32_0 = arith.constant 0 : i32
    return %arg0, %c0_i32 : i32, i32
  }
  func.func @transform_6(%arg0: i32) -> (i32, i32) {
    %c0_i32 = arith.constant 0 : i32
    %c0_i32_0 = arith.constant 0 : i32
    return %arg0, %c0_i32 : i32, i32
  }
}

</mosaic_0001>

<llo_original>
// kernel: tpu_custom_call.1
$region0: #{tpu_custom_call.1}
  #allocation0 [shape = 'u32[]', space=smem, size = 0x4, offset = 0x4, fixed_abs, tag = 'smem constant byte address 0x4 - core index']
  #allocation1 [shape = 'u32[72,128]{1,0:T(1,128)}', space=vmem, size = 0x9000, scoped, tag = 'internal scratch']
  %s0 = inlined_call_operand.vmem [shape: f32[512,32], index: 0, kind: input, shape index: {}]
  %s1 = inlined_call_operand.vmem [shape: f32[32,16], index: 1, kind: input, shape index: {}]
  %s2 = inlined_call_operand.vmem [shape: f32[1,16], index: 2, kind: input, shape index: {}]
  %s3 = inlined_call_operand.vmem [shape: f32[32,16], index: 3, kind: input, shape index: {}]
  %s4 = inlined_call_operand.vmem [shape: f32[1,16], index: 4, kind: input, shape index: {}]
  %s5 = inlined_call_operand.vmem [shape: f32[512,16], index: 5, kind: output, shape index: {0}]
  %s6 = inlined_call_operand.vmem [shape: f32[512,16], index: 6, kind: output, shape index: {1}]
  %7 = xla_tuple %s5, %s6
  %s8 = sld [smem:[#allocation0]]
  $region38: #{tpu_custom_call.1} parent=0
    _
  %s10 = ssub.s32 1, %s8
  %s11 = scalar_select 0, %s10, %s8
  // Predicated region
  $region2: #{tpu_custom_call.1} parent=0 // pred_check
    _
  $region3: #{tpu_custom_call.1} parent=0 // pred_check_branch
    %13 = sbr.rel (0) target = $region5
  $region4: #{tpu_custom_call.1} parent=0 // pred_region
    _
  $region5: #{tpu_custom_call.1} parent=0 // pred_fallthru
    _
  // Predicated region
  $region6: #{tpu_custom_call.1} parent=0 // pred_check
    _
  $region7: #{tpu_custom_call.1} parent=0 // pred_check_branch
    %15 = sbr.rel (0) target = $region9
  $region8: #{tpu_custom_call.1} parent=0 // pred_region
    _
  $region9: #{tpu_custom_call.1} parent=0 // pred_fallthru
    _
  // Predicated region
  $region10: #{tpu_custom_call.1} parent=0 // pred_check
    _
  $region11: #{tpu_custom_call.1} parent=0 // pred_check_branch
    %17 = sbr.rel (0) target = $region13
  $region12: #{tpu_custom_call.1} parent=0 // pred_region
    _
  $region13: #{tpu_custom_call.1} parent=0 // pred_fallthru
    _
  // Predicated region
  $region14: #{tpu_custom_call.1} parent=0 // pred_check
    _
  $region15: #{tpu_custom_call.1} parent=0 // pred_check_branch
    %19 = sbr.rel (0) target = $region17
  $region16: #{tpu_custom_call.1} parent=0 // pred_region
    _
  $region17: #{tpu_custom_call.1} parent=0 // pred_fallthru
    _
  // Predicated region
  $region18: #{tpu_custom_call.1} parent=0 // pred_check
    _
  $region19: #{tpu_custom_call.1} parent=0 // pred_check_branch
    %21 = sbr.rel (0) target = $region21
  $region20: #{tpu_custom_call.1} parent=0 // pred_region
    _
  $region21: #{tpu_custom_call.1} parent=0 // pred_fallthru
    _
  %v22 = vld [vmem:[%s0] sm:$0xff]
  %v23 = vld [vmem:[%s0 + $0x8] sm:$0xff]
  %v24 = vld [vmem:[%s0 + $0x10] sm:$0xff]
  %v25 = vld [vmem:[%s0 + $0x18] sm:$0xff]
  %v26 = vld [vmem:[%s0 + $0x20] sm:$0xff]
  %v27 = vld [vmem:[%s0 + $0x28] sm:$0xff]
  %v28 = vld [vmem:[%s0 + $0x30] sm:$0xff]
  %v29 = vld [vmem:[%s0 + $0x38] sm:$0xff]
  %v30 = vld [vmem:[%s0 + $0x40] sm:$0xff]
  %v31 = vld [vmem:[%s0 + $0x48] sm:$0xff]
  %v32 = vld [vmem:[%s0 + $0x50] sm:$0xff]
  %v33 = vld [vmem:[%s0 + $0x58] sm:$0xff]
  %v34 = vld [vmem:[%s0 + $0x60] sm:$0xff]
  %v35 = vld [vmem:[%s0 + $0x68] sm:$0xff]
  %v36 = vld [vmem:[%s0 + $0x70] sm:$0xff]
  %v37 = vld [vmem:[%s0 + $0x78] sm:$0xff]
  %v38 = vld [vmem:[%s0 + $0x80] sm:$0xff]
  %v39 = vld [vmem:[%s0 + $0x88] sm:$0xff]
  %v40 = vld [vmem:[%s0 + $0x90] sm:$0xff]
  %v41 = vld [vmem:[%s0 + $0x98] sm:$0xff]
  %v42 = vld [vmem:[%s0 + $0xa0] sm:$0xff]
  %v43 = vld [vmem:[%s0 + $0xa8] sm:$0xff]
  %v44 = vld [vmem:[%s0 + $0xb0] sm:$0xff]
  %v45 = vld [vmem:[%s0 + $0xb8] sm:$0xff]
  %v46 = vld [vmem:[%s0 + $0xc0] sm:$0xff]
  %v47 = vld [vmem:[%s0 + $0xc8] sm:$0xff]
  %v48 = vld [vmem:[%s0 + $0xd0] sm:$0xff]
  %v49 = vld [vmem:[%s0 + $0xd8] sm:$0xff]
  %v50 = vld [vmem:[%s0 + $0xe0] sm:$0xff]
  %v51 = vld [vmem:[%s0 + $0xe8] sm:$0xff]
  %v52 = vld [vmem:[%s0 + $0xf0] sm:$0xff]
  %v53 = vld [vmem:[%s0 + $0xf8] sm:$0xff]
  %v54 = vld [vmem:[%s0 + $0x100] sm:$0xff]
  %v55 = vld [vmem:[%s0 + $0x108] sm:$0xff]
  %v56 = vld [vmem:[%s0 + $0x110] sm:$0xff]
  %v57 = vld [vmem:[%s0 + $0x118] sm:$0xff]
  %v58 = vld [vmem:[%s0 + $0x120] sm:$0xff]
  %v59 = vld [vmem:[%s0 + $0x128] sm:$0xff]
  %v60 = vld [vmem:[%s0 + $0x130] sm:$0xff]
  %v61 = vld [vmem:[%s0 + $0x138] sm:$0xff]
  %v62 = vld [vmem:[%s0 + $0x140] sm:$0xff]
  %v63 = vld [vmem:[%s0 + $0x148] sm:$0xff]
  %v64 = vld [vmem:[%s0 + $0x150] sm:$0xff]
  %v65 = vld [vmem:[%s0 + $0x158] sm:$0xff]
  %v66 = vld [vmem:[%s0 + $0x160] sm:$0xff]
  %v67 = vld [vmem:[%s0 + $0x168] sm:$0xff]
  %v68 = vld [vmem:[%s0 + $0x170] sm:$0xff]
  %v69 = vld [vmem:[%s0 + $0x178] sm:$0xff]
  %v70 = vld [vmem:[%s0 + $0x180] sm:$0xff]
  %v71 = vld [vmem:[%s0 + $0x188] sm:$0xff]
  %v72 = vld [vmem:[%s0 + $0x190] sm:$0xff]
  %v73 = vld [vmem:[%s0 + $0x198] sm:$0xff]
  %v74 = vld [vmem:[%s0 + $0x1a0] sm:$0xff]
  %v75 = vld [vmem:[%s0 + $0x1a8] sm:$0xff]
  %v76 = vld [vmem:[%s0 + $0x1b0] sm:$0xff]
  %v77 = vld [vmem:[%s0 + $0x1b8] sm:$0xff]
  %v78 = vld [vmem:[%s0 + $0x1c0] sm:$0xff]
  %v79 = vld [vmem:[%s0 + $0x1c8] sm:$0xff]
  %v80 = vld [vmem:[%s0 + $0x1d0] sm:$0xff]
  %v81 = vld [vmem:[%s0 + $0x1d8] sm:$0xff]
  %v82 = vld [vmem:[%s0 + $0x1e0] sm:$0xff]
  %v83 = vld [vmem:[%s0 + $0x1e8] sm:$0xff]
  %v84 = vld [vmem:[%s0 + $0x1f0] sm:$0xff]
  %v85 = vld [vmem:[%s0 + $0x1f8] sm:$0xff]
  %v86 = vld [vmem:[%s1] sm:$0xff]
  %v87 = vld [vmem:[%s1 + $0x8] sm:$0xff]
  %v88 = vld [vmem:[%s1 + $0x10] sm:$0xff]
  %v89 = vld [vmem:[%s1 + $0x18] sm:$0xff]
  %v90 = vld [vmem:[%s2] sm:$0x1]
  %v92 = vperm.slane %v90, 0
  %vm94 = vcmask 261120
  %v96 = vsel %vm94, %v22, 0
  %v99 = vsel %vm94, %v23, 0
  %v102 = vsel %vm94, %v24, 0
  %v105 = vsel %vm94, %v25, 0
  %v108 = vsel %vm94, %v26, 0
  %v111 = vsel %vm94, %v27, 0
  %v114 = vsel %vm94, %v28, 0
  %v117 = vsel %vm94, %v29, 0
  %v120 = vsel %vm94, %v30, 0
  %v123 = vsel %vm94, %v31, 0
  %v126 = vsel %vm94, %v32, 0
  %v129 = vsel %vm94, %v33, 0
  %v132 = vsel %vm94, %v34, 0
  %v135 = vsel %vm94, %v35, 0
  %v138 = vsel %vm94, %v36, 0
  %v141 = vsel %vm94, %v37, 0
  %v144 = vsel %vm94, %v38, 0
  %v147 = vsel %vm94, %v39, 0
  %v150 = vsel %vm94, %v40, 0
  %v153 = vsel %vm94, %v41, 0
  %v156 = vsel %vm94, %v42, 0
  %v159 = vsel %vm94, %v43, 0
  %v162 = vsel %vm94, %v44, 0
  %v165 = vsel %vm94, %v45, 0
  %v168 = vsel %vm94, %v46, 0
  %v171 = vsel %vm94, %v47, 0
  %v174 = vsel %vm94, %v48, 0
  %v177 = vsel %vm94, %v49, 0
  %v180 = vsel %vm94, %v50, 0
  %v183 = vsel %vm94, %v51, 0
  %v186 = vsel %vm94, %v52, 0
  %v189 = vsel %vm94, %v53, 0
  %v192 = vsel %vm94, %v54, 0
  %v195 = vsel %vm94, %v55, 0
  %v198 = vsel %vm94, %v56, 0
  %v201 = vsel %vm94, %v57, 0
  %v204 = vsel %vm94, %v58, 0
  %v207 = vsel %vm94, %v59, 0
  %v210 = vsel %vm94, %v60, 0
  %v213 = vsel %vm94, %v61, 0
  %v216 = vsel %vm94, %v62, 0
  %v219 = vsel %vm94, %v63, 0
  %v222 = vsel %vm94, %v64, 0
  %v225 = vsel %vm94, %v65, 0
  %v228 = vsel %vm94, %v66, 0
  %v231 = vsel %vm94, %v67, 0
  %v234 = vsel %vm94, %v68, 0
  %v237 = vsel %vm94, %v69, 0
  %v240 = vsel %vm94, %v70, 0
  %v243 = vsel %vm94, %v71, 0
  %v246 = vsel %vm94, %v72, 0
  %v249 = vsel %vm94, %v73, 0
  %v252 = vsel %vm94, %v74, 0
  %v255 = vsel %vm94, %v75, 0
  %v258 = vsel %vm94, %v76, 0
  %v261 = vsel %vm94, %v77, 0
  %v264 = vsel %vm94, %v78, 0
  %v267 = vsel %vm94, %v79, 0
  %v270 = vsel %vm94, %v80, 0
  %v273 = vsel %vm94, %v81, 0
  %v276 = vsel %vm94, %v82, 0
  %v279 = vsel %vm94, %v83, 0
  %v282 = vsel %vm94, %v84, 0
  %v285 = vsel %vm94, %v85, 0
  %287 = vmatpush.msra.mxu0 0.0
  %288 = vmatpush.msra.mxu0 0.0
  %289 = vmatpush.msra.mxu0 0.0
  %290 = vmatpush.msra.mxu0 0.0
  %291 = vmatpush.msra.mxu0 0.0
  %292 = vmatpush.msra.mxu0 0.0
  %293 = vmatpush.msra.mxu0 0.0
  %294 = vmatpush.msra.mxu0 0.0
  %295 = vmatpush.msra.mxu0 0.0
  %296 = vmatpush.msra.mxu0 0.0
  %297 = vmatpush.msra.mxu0 0.0
  %298 = vmatpush.msra.mxu0 0.0
  %v299 = vand.u32 %v89, 4294901760
  %300 = vmatpush.msra.mxu0 %v299
  %v301 = vand.u32 %v88, 4294901760
  %302 = vmatpush.msra.mxu0 %v301
  %v303 = vand.u32 %v87, 4294901760
  %304 = vmatpush.msra.mxu0 %v303
  %v305 = vand.u32 %v86, 4294901760
  %306 = vmatpush.msra.mxu0 %v305
  %v307 = vand.u32 %v96, 4294901760
  %v308 = vsub.f32 %v96, %v307
  %v309 = vand.u32 %v308, 4294901760
  %v310 = vsub.f32 %v308, %v309
  %v311 = vand.u32 %v310, 4294901760
  %312 = vmatmul.f32.gmra.mxu0 %v311
  %v313 = vpop.f32.mrf.mxu0
  %v314 = vadd.f32 %v92, %v313
  %v315 = vand.u32 %v99, 4294901760
  %v316 = vsub.f32 %v99, %v315
  %v317 = vand.u32 %v316, 4294901760
  %v318 = vsub.f32 %v316, %v317
  %v319 = vand.u32 %v318, 4294901760
  %320 = vmatmul.f32.gmra.mxu0 %v319
  %v321 = vpop.f32.mrf.mxu0
  %v322 = vadd.f32 %v92, %v321
  %v323 = vand.u32 %v102, 4294901760
  %v324 = vsub.f32 %v102, %v323
  %v325 = vand.u32 %v324, 4294901760
  %v326 = vsub.f32 %v324, %v325
  %v327 = vand.u32 %v326, 4294901760
  %328 = vmatmul.f32.gmra.mxu0 %v327
  %v329 = vpop.f32.mrf.mxu0
  %v330 = vadd.f32 %v92, %v329
  %v331 = vand.u32 %v105, 4294901760
  %v332 = vsub.f32 %v105, %v331
  %v333 = vand.u32 %v332, 4294901760
  %v334 = vsub.f32 %v332, %v333
  %v335 = vand.u32 %v334, 4294901760
  %336 = vmatmul.f32.gmra.mxu0 %v335
  %v337 = vpop.f32.mrf.mxu0
  %v338 = vadd.f32 %v92, %v337
  %v339 = vand.u32 %v108, 4294901760
  %v340 = vsub.f32 %v108, %v339
  %v341 = vand.u32 %v340, 4294901760
  %v342 = vsub.f32 %v340, %v341
  %v343 = vand.u32 %v342, 4294901760
  %344 = vmatmul.f32.gmra.mxu0 %v343
  %v345 = vpop.f32.mrf.mxu0
  %v346 = vadd.f32 %v92, %v345
  %v347 = vand.u32 %v111, 4294901760
  %v348 = vsub.f32 %v111, %v347
  %v349 = vand.u32 %v348, 4294901760
  %v350 = vsub.f32 %v348, %v349
  %v351 = vand.u32 %v350, 4294901760
  %352 = vmatmul.f32.gmra.mxu0 %v351
  %v353 = vpop.f32.mrf.mxu0
  %v354 = vadd.f32 %v92, %v353
  %v355 = vand.u32 %v114, 4294901760
  %v356 = vsub.f32 %v114, %v355
  %v357 = vand.u32 %v356, 4294901760
  %v358 = vsub.f32 %v356, %v357
  %v359 = vand.u32 %v358, 4294901760
  %360 = vmatmul.f32.gmra.mxu0 %v359
  %v361 = vpop.f32.mrf.mxu0
  %v362 = vadd.f32 %v92, %v361
  %v363 = vand.u32 %v117, 4294901760
  %v364 = vsub.f32 %v117, %v363
  %v365 = vand.u32 %v364, 4294901760
  %v366 = vsub.f32 %v364, %v365
  %v367 = vand.u32 %v366, 4294901760
  %368 = vmatmul.f32.gmra.mxu0 %v367
  %v369 = vpop.f32.mrf.mxu0
  %v370 = vadd.f32 %v92, %v369
  %v371 = vand.u32 %v120, 4294901760
  %v372 = vsub.f32 %v120, %v371
  %v373 = vand.u32 %v372, 4294901760
  %v374 = vsub.f32 %v372, %v373
  %v375 = vand.u32 %v374, 4294901760
  %376 = vmatmul.f32.gmra.mxu0 %v375
  %v377 = vpop.f32.mrf.mxu0
  %v378 = vadd.f32 %v92, %v377
  %v379 = vand.u32 %v123, 4294901760
  %v380 = vsub.f32 %v123, %v379
  %v381 = vand.u32 %v380, 4294901760
  %v382 = vsub.f32 %v380, %v381
  %v383 = vand.u32 %v382, 4294901760
  %384 = vmatmul.f32.gmra.mxu0 %v383
  %v385 = vpop.f32.mrf.mxu0
  %v386 = vadd.f32 %v92, %v385
  %v387 = vand.u32 %v126, 4294901760
  %v388 = vsub.f32 %v126, %v387
  %v389 = vand.u32 %v388, 4294901760
  %v390 = vsub.f32 %v388, %v389
  %v391 = vand.u32 %v390, 4294901760
  %392 = vmatmul.f32.gmra.mxu0 %v391
  %v393 = vpop.f32.mrf.mxu0
  %v394 = vadd.f32 %v92, %v393
  %v395 = vand.u32 %v129, 4294901760
  %v396 = vsub.f32 %v129, %v395
  %v397 = vand.u32 %v396, 4294901760
  %v398 = vsub.f32 %v396, %v397
  %v399 = vand.u32 %v398, 4294901760
  %400 = vmatmul.f32.gmra.mxu0 %v399
  %v401 = vpop.f32.mrf.mxu0
  %v402 = vadd.f32 %v92, %v401
  %v403 = vand.u32 %v132, 4294901760
  %v404 = vsub.f32 %v132, %v403
  %v405 = vand.u32 %v404, 4294901760
  %v406 = vsub.f32 %v404, %v405
  %v407 = vand.u32 %v406, 4294901760
  %408 = vmatmul.f32.gmra.mxu0 %v407
  %v409 = vpop.f32.mrf.mxu0
  %v410 = vadd.f32 %v92, %v409
  %v411 = vand.u32 %v135, 4294901760
  %v412 = vsub.f32 %v135, %v411
  %v413 = vand.u32 %v412, 4294901760
  %v414 = vsub.f32 %v412, %v413
  %v415 = vand.u32 %v414, 4294901760
  %416 = vmatmul.f32.gmra.mxu0 %v415
  %v417 = vpop.f32.mrf.mxu0
  %v418 = vadd.f32 %v92, %v417
  %v419 = vand.u32 %v138, 4294901760
  %v420 = vsub.f32 %v138, %v419
  %v421 = vand.u32 %v420, 4294901760
  %v422 = vsub.f32 %v420, %v421
  %v423 = vand.u32 %v422, 4294901760
  %424 = vmatmul.f32.gmra.mxu0 %v423
  %v425 = vpop.f32.mrf.mxu0
  %v426 = vadd.f32 %v92, %v425
  %v427 = vand.u32 %v141, 4294901760
  %v428 = vsub.f32 %v141, %v427
  %v429 = vand.u32 %v428, 4294901760
  %v430 = vsub.f32 %v428, %v429
  %v431 = vand.u32 %v430, 4294901760
  %432 = vmatmul.f32.gmra.mxu0 %v431
  %v433 = vpop.f32.mrf.mxu0
  %v434 = vadd.f32 %v92, %v433
  %v435 = vand.u32 %v144, 4294901760
  %v436 = vsub.f32 %v144, %v435
  %v437 = vand.u32 %v436, 4294901760
  %v438 = vsub.f32 %v436, %v437
  %v439 = vand.u32 %v438, 4294901760
  %440 = vmatmul.f32.gmra.mxu0 %v439
  %v441 = vpop.f32.mrf.mxu0
  %v442 = vadd.f32 %v92, %v441
  %v443 = vand.u32 %v147, 4294901760
  %v444 = vsub.f32 %v147, %v443
  %v445 = vand.u32 %v444, 4294901760
  %v446 = vsub.f32 %v444, %v445
  %v447 = vand.u32 %v446, 4294901760
  %448 = vmatmul.f32.gmra.mxu0 %v447
  %v449 = vpop.f32.mrf.mxu0
  %v450 = vadd.f32 %v92, %v449
  %v451 = vand.u32 %v150, 4294901760
  %v452 = vsub.f32 %v150, %v451
  %v453 = vand.u32 %v452, 4294901760
  %v454 = vsub.f32 %v452, %v453
  %v455 = vand.u32 %v454, 4294901760
  %456 = vmatmul.f32.gmra.mxu0 %v455
  %v457 = vpop.f32.mrf.mxu0
  %v458 = vadd.f32 %v92, %v457
  %v459 = vand.u32 %v153, 4294901760
  %v460 = vsub.f32 %v153, %v459
  %v461 = vand.u32 %v460, 4294901760
  %v462 = vsub.f32 %v460, %v461
  %v463 = vand.u32 %v462, 4294901760
  %464 = vmatmul.f32.gmra.mxu0 %v463
  %v465 = vpop.f32.mrf.mxu0
  %v466 = vadd.f32 %v92, %v465
  %v467 = vand.u32 %v156, 4294901760
  %v468 = vsub.f32 %v156, %v467
  %v469 = vand.u32 %v468, 4294901760
  %v470 = vsub.f32 %v468, %v469
  %v471 = vand.u32 %v470, 4294901760
  %472 = vmatmul.f32.gmra.mxu0 %v471
  %v473 = vpop.f32.mrf.mxu0
  %v474 = vadd.f32 %v92, %v473
  %v475 = vand.u32 %v159, 4294901760
  %v476 = vsub.f32 %v159, %v475
  %v477 = vand.u32 %v476, 4294901760
  %v478 = vsub.f32 %v476, %v477
  %v479 = vand.u32 %v478, 4294901760
  %480 = vmatmul.f32.gmra.mxu0 %v479
  %v481 = vpop.f32.mrf.mxu0
  %v482 = vadd.f32 %v92, %v481
  %v483 = vand.u32 %v162, 4294901760
  %v484 = vsub.f32 %v162, %v483
  %v485 = vand.u32 %v484, 4294901760
  %v486 = vsub.f32 %v484, %v485
  %v487 = vand.u32 %v486, 4294901760
  %488 = vmatmul.f32.gmra.mxu0 %v487
  %v489 = vpop.f32.mrf.mxu0
  %v490 = vadd.f32 %v92, %v489
  %v491 = vand.u32 %v165, 4294901760
  %v492 = vsub.f32 %v165, %v491
  %v493 = vand.u32 %v492, 4294901760
  %v494 = vsub.f32 %v492, %v493
  %v495 = vand.u32 %v494, 4294901760
  %496 = vmatmul.f32.gmra.mxu0 %v495
  %v497 = vpop.f32.mrf.mxu0
  %v498 = vadd.f32 %v92, %v497
  %v499 = vand.u32 %v168, 4294901760
  %v500 = vsub.f32 %v168, %v499
  %v501 = vand.u32 %v500, 4294901760
  %v502 = vsub.f32 %v500, %v501
  %v503 = vand.u32 %v502, 4294901760
  %504 = vmatmul.f32.gmra.mxu0 %v503
  %v505 = vpop.f32.mrf.mxu0
  %v506 = vadd.f32 %v92, %v505
  %v507 = vand.u32 %v171, 4294901760
  %v508 = vsub.f32 %v171, %v507
  %v509 = vand.u32 %v508, 4294901760
  %v510 = vsub.f32 %v508, %v509
  %v511 = vand.u32 %v510, 4294901760
  %512 = vmatmul.f32.gmra.mxu0 %v511
  %v513 = vpop.f32.mrf.mxu0
  %v514 = vadd.f32 %v92, %v513
  %v515 = vand.u32 %v174, 4294901760
  %v516 = vsub.f32 %v174, %v515
  %v517 = vand.u32 %v516, 4294901760
  %v518 = vsub.f32 %v516, %v517
  %v519 = vand.u32 %v518, 4294901760
  %520 = vmatmul.f32.gmra.mxu0 %v519
  %v521 = vpop.f32.mrf.mxu0
  %v522 = vadd.f32 %v92, %v521
  %v523 = vand.u32 %v177, 4294901760
  %v524 = vsub.f32 %v177, %v523
  %v525 = vand.u32 %v524, 4294901760
  %v526 = vsub.f32 %v524, %v525
  %v527 = vand.u32 %v526, 4294901760
  %528 = vmatmul.f32.gmra.mxu0 %v527
  %v529 = vpop.f32.mrf.mxu0
  %v530 = vadd.f32 %v92, %v529
  %v531 = vand.u32 %v180, 4294901760
  %v532 = vsub.f32 %v180, %v531
  %v533 = vand.u32 %v532, 4294901760
  %v534 = vsub.f32 %v532, %v533
  %v535 = vand.u32 %v534, 4294901760
  %536 = vmatmul.f32.gmra.mxu0 %v535
  %v537 = vpop.f32.mrf.mxu0
  %v538 = vadd.f32 %v92, %v537
  %v539 = vand.u32 %v183, 4294901760
  %v540 = vsub.f32 %v183, %v539
  %v541 = vand.u32 %v540, 4294901760
  %v542 = vsub.f32 %v540, %v541
  %v543 = vand.u32 %v542, 4294901760
  %544 = vmatmul.f32.gmra.mxu0 %v543
  %v545 = vpop.f32.mrf.mxu0
  %v546 = vadd.f32 %v92, %v545
  %v547 = vand.u32 %v186, 4294901760
  %v548 = vsub.f32 %v186, %v547
  %v549 = vand.u32 %v548, 4294901760
  %v550 = vsub.f32 %v548, %v549
  %v551 = vand.u32 %v550, 4294901760
  %552 = vmatmul.f32.gmra.mxu0 %v551
  %v553 = vpop.f32.mrf.mxu0
  %v554 = vadd.f32 %v92, %v553
  %v555 = vand.u32 %v189, 4294901760
  %v556 = vsub.f32 %v189, %v555
  %v557 = vand.u32 %v556, 4294901760
  %v558 = vsub.f32 %v556, %v557
  %v559 = vand.u32 %v558, 4294901760
  %560 = vmatmul.f32.gmra.mxu0 %v559
  %v561 = vpop.f32.mrf.mxu0
  %v562 = vadd.f32 %v92, %v561
  %v563 = vand.u32 %v192, 4294901760
  %v564 = vsub.f32 %v192, %v563
  %v565 = vand.u32 %v564, 4294901760
  %v566 = vsub.f32 %v564, %v565
  %v567 = vand.u32 %v566, 4294901760
  %568 = vmatmul.f32.gmra.mxu0 %v567
  %v569 = vpop.f32.mrf.mxu0
  %v570 = vadd.f32 %v92, %v569
  %v571 = vand.u32 %v195, 4294901760
  %v572 = vsub.f32 %v195, %v571
  %v573 = vand.u32 %v572, 4294901760
  %v574 = vsub.f32 %v572, %v573
  %v575 = vand.u32 %v574, 4294901760
  %576 = vmatmul.f32.gmra.mxu0 %v575
  %v577 = vpop.f32.mrf.mxu0
  %v578 = vadd.f32 %v92, %v577
  %v579 = vand.u32 %v198, 4294901760
  %v580 = vsub.f32 %v198, %v579
  %v581 = vand.u32 %v580, 4294901760
  %v582 = vsub.f32 %v580, %v581
  %v583 = vand.u32 %v582, 4294901760
  %584 = vmatmul.f32.gmra.mxu0 %v583
  %v585 = vpop.f32.mrf.mxu0
  %v586 = vadd.f32 %v92, %v585
  %v587 = vand.u32 %v201, 4294901760
  %v588 = vsub.f32 %v201, %v587
  %v589 = vand.u32 %v588, 4294901760
  %v590 = vsub.f32 %v588, %v589
  %v591 = vand.u32 %v590, 4294901760
  %592 = vmatmul.f32.gmra.mxu0 %v591
  %v593 = vpop.f32.mrf.mxu0
  %v594 = vadd.f32 %v92, %v593
  %v595 = vand.u32 %v204, 4294901760
  %v596 = vsub.f32 %v204, %v595
  %v597 = vand.u32 %v596, 4294901760
  %v598 = vsub.f32 %v596, %v597
  %v599 = vand.u32 %v598, 4294901760
  %600 = vmatmul.f32.gmra.mxu0 %v599
  %v601 = vpop.f32.mrf.mxu0
  %v602 = vadd.f32 %v92, %v601
  %v603 = vand.u32 %v207, 4294901760
  %v604 = vsub.f32 %v207, %v603
  %v605 = vand.u32 %v604, 4294901760
  %v606 = vsub.f32 %v604, %v605
  %v607 = vand.u32 %v606, 4294901760
  %608 = vmatmul.f32.gmra.mxu0 %v607
  %v609 = vpop.f32.mrf.mxu0
  %v610 = vadd.f32 %v92, %v609
  %v611 = vand.u32 %v210, 4294901760
  %v612 = vsub.f32 %v210, %v611
  %v613 = vand.u32 %v612, 4294901760
  %v614 = vsub.f32 %v612, %v613
  %v615 = vand.u32 %v614, 4294901760
  %616 = vmatmul.f32.gmra.mxu0 %v615
  %v617 = vpop.f32.mrf.mxu0
  %v618 = vadd.f32 %v92, %v617
  %v619 = vand.u32 %v213, 4294901760
  %v620 = vsub.f32 %v213, %v619
  %v621 = vand.u32 %v620, 4294901760
  %v622 = vsub.f32 %v620, %v621
  %v623 = vand.u32 %v622, 4294901760
  %624 = vmatmul.f32.gmra.mxu0 %v623
  %v625 = vpop.f32.mrf.mxu0
  %v626 = vadd.f32 %v92, %v625
  %v627 = vand.u32 %v216, 4294901760
  %v628 = vsub.f32 %v216, %v627
  %v629 = vand.u32 %v628, 4294901760
  %v630 = vsub.f32 %v628, %v629
  %v631 = vand.u32 %v630, 4294901760
  %632 = vmatmul.f32.gmra.mxu0 %v631
  %v633 = vpop.f32.mrf.mxu0
  %v634 = vadd.f32 %v92, %v633
  %v635 = vand.u32 %v219, 4294901760
  %v636 = vsub.f32 %v219, %v635
  %v637 = vand.u32 %v636, 4294901760
  %v638 = vsub.f32 %v636, %v637
  %v639 = vand.u32 %v638, 4294901760
  %640 = vmatmul.f32.gmra.mxu0 %v639
  %v641 = vpop.f32.mrf.mxu0
  %v642 = vadd.f32 %v92, %v641
  %v643 = vand.u32 %v222, 4294901760
  %v644 = vsub.f32 %v222, %v643
  %v645 = vand.u32 %v644, 4294901760
  %v646 = vsub.f32 %v644, %v645
  %v647 = vand.u32 %v646, 4294901760
  %648 = vmatmul.f32.gmra.mxu0 %v647
  %v649 = vpop.f32.mrf.mxu0
  %v650 = vadd.f32 %v92, %v649
  %v651 = vand.u32 %v225, 4294901760
  %v652 = vsub.f32 %v225, %v651
  %v653 = vand.u32 %v652, 4294901760
  %v654 = vsub.f32 %v652, %v653
  %v655 = vand.u32 %v654, 4294901760
  %656 = vmatmul.f32.gmra.mxu0 %v655
  %v657 = vpop.f32.mrf.mxu0
  %v658 = vadd.f32 %v92, %v657
  %v659 = vand.u32 %v228, 4294901760
  %v660 = vsub.f32 %v228, %v659
  %v661 = vand.u32 %v660, 4294901760
  %v662 = vsub.f32 %v660, %v661
  %v663 = vand.u32 %v662, 4294901760
  %664 = vmatmul.f32.gmra.mxu0 %v663
  %v665 = vpop.f32.mrf.mxu0
  %v666 = vadd.f32 %v92, %v665
  %v667 = vand.u32 %v231, 4294901760
  %v668 = vsub.f32 %v231, %v667
  %v669 = vand.u32 %v668, 4294901760
  %v670 = vsub.f32 %v668, %v669
  %v671 = vand.u32 %v670, 4294901760
  %672 = vmatmul.f32.gmra.mxu0 %v671
  %v673 = vpop.f32.mrf.mxu0
  %v674 = vadd.f32 %v92, %v673
  %v675 = vand.u32 %v234, 4294901760
  %v676 = vsub.f32 %v234, %v675
  %v677 = vand.u32 %v676, 4294901760
  %v678 = vsub.f32 %v676, %v677
  %v679 = vand.u32 %v678, 4294901760
  %680 = vmatmul.f32.gmra.mxu0 %v679
  %v681 = vpop.f32.mrf.mxu0
  %v682 = vadd.f32 %v92, %v681
  %v683 = vand.u32 %v237, 4294901760
  %v684 = vsub.f32 %v237, %v683
  %v685 = vand.u32 %v684, 4294901760
  %v686 = vsub.f32 %v684, %v685
  %v687 = vand.u32 %v686, 4294901760
  %688 = vmatmul.f32.gmra.mxu0 %v687
  %v689 = vpop.f32.mrf.mxu0
  %v690 = vadd.f32 %v92, %v689
  %v691 = vand.u32 %v240, 4294901760
  %v692 = vsub.f32 %v240, %v691
  %v693 = vand.u32 %v692, 4294901760
  %v694 = vsub.f32 %v692, %v693
  %v695 = vand.u32 %v694, 4294901760
  %696 = vmatmul.f32.gmra.mxu0 %v695
  %v697 = vpop.f32.mrf.mxu0
  %v698 = vadd.f32 %v92, %v697
  %v699 = vand.u32 %v243, 4294901760
  %v700 = vsub.f32 %v243, %v699
  %v701 = vand.u32 %v700, 4294901760
  %v702 = vsub.f32 %v700, %v701
  %v703 = vand.u32 %v702, 4294901760
  %704 = vmatmul.f32.gmra.mxu0 %v703
  %v705 = vpop.f32.mrf.mxu0
  %v706 = vadd.f32 %v92, %v705
  %v707 = vand.u32 %v246, 4294901760
  %v708 = vsub.f32 %v246, %v707
  %v709 = vand.u32 %v708, 4294901760
  %v710 = vsub.f32 %v708, %v709
  %v711 = vand.u32 %v710, 4294901760
  %712 = vmatmul.f32.gmra.mxu0 %v711
  %v713 = vpop.f32.mrf.mxu0
  %v714 = vadd.f32 %v92, %v713
  %v715 = vand.u32 %v249, 4294901760
  %v716 = vsub.f32 %v249, %v715
  %v717 = vand.u32 %v716, 4294901760
  %v718 = vsub.f32 %v716, %v717
  %v719 = vand.u32 %v718, 4294901760
  %720 = vmatmul.f32.gmra.mxu0 %v719
  %v721 = vpop.f32.mrf.mxu0
  %v722 = vadd.f32 %v92, %v721
  %v723 = vand.u32 %v252, 4294901760
  %v724 = vsub.f32 %v252, %v723
  %v725 = vand.u32 %v724, 4294901760
  %v726 = vsub.f32 %v724, %v725
  %v727 = vand.u32 %v726, 4294901760
  %728 = vmatmul.f32.gmra.mxu0 %v727
  %v729 = vpop.f32.mrf.mxu0
  %v730 = vadd.f32 %v92, %v729
  %v731 = vand.u32 %v255, 4294901760
  %v732 = vsub.f32 %v255, %v731
  %v733 = vand.u32 %v732, 4294901760
  %v734 = vsub.f32 %v732, %v733
  %v735 = vand.u32 %v734, 4294901760
  %736 = vmatmul.f32.gmra.mxu0 %v735
  %v737 = vpop.f32.mrf.mxu0
  %v738 = vadd.f32 %v92, %v737
  %v739 = vand.u32 %v258, 4294901760
  %v740 = vsub.f32 %v258, %v739
  %v741 = vand.u32 %v740, 4294901760
  %v742 = vsub.f32 %v740, %v741
  %v743 = vand.u32 %v742, 4294901760
  %744 = vmatmul.f32.gmra.mxu0 %v743
  %v745 = vpop.f32.mrf.mxu0
  %v746 = vadd.f32 %v92, %v745
  %v747 = vand.u32 %v261, 4294901760
  %v748 = vsub.f32 %v261, %v747
  %v749 = vand.u32 %v748, 4294901760
  %v750 = vsub.f32 %v748, %v749
  %v751 = vand.u32 %v750, 4294901760
  %752 = vmatmul.f32.gmra.mxu0 %v751
  %v753 = vpop.f32.mrf.mxu0
  %v754 = vadd.f32 %v92, %v753
  %v755 = vand.u32 %v264, 4294901760
  %v756 = vsub.f32 %v264, %v755
  %v757 = vand.u32 %v756, 4294901760
  %v758 = vsub.f32 %v756, %v757
  %v759 = vand.u32 %v758, 4294901760
  %760 = vmatmul.f32.gmra.mxu0 %v759
  %v761 = vpop.f32.mrf.mxu0
  %v762 = vadd.f32 %v92, %v761
  %v763 = vand.u32 %v267, 4294901760
  %v764 = vsub.f32 %v267, %v763
  %v765 = vand.u32 %v764, 4294901760
  %v766 = vsub.f32 %v764, %v765
  %v767 = vand.u32 %v766, 4294901760
  %768 = vmatmul.f32.gmra.mxu0 %v767
  %v769 = vpop.f32.mrf.mxu0
  %v770 = vadd.f32 %v92, %v769
  %v771 = vand.u32 %v270, 4294901760
  %v772 = vsub.f32 %v270, %v771
  %v773 = vand.u32 %v772, 4294901760
  %v774 = vsub.f32 %v772, %v773
  %v775 = vand.u32 %v774, 4294901760
  %776 = vmatmul.f32.gmra.mxu0 %v775
  %v777 = vpop.f32.mrf.mxu0
  %v778 = vadd.f32 %v92, %v777
  %v779 = vand.u32 %v273, 4294901760
  %v780 = vsub.f32 %v273, %v779
  %v781 = vand.u32 %v780, 4294901760
  %v782 = vsub.f32 %v780, %v781
  %v783 = vand.u32 %v782, 4294901760
  %784 = vmatmul.f32.gmra.mxu0 %v783
  %v785 = vpop.f32.mrf.mxu0
  %v786 = vadd.f32 %v92, %v785
  %v787 = vand.u32 %v276, 4294901760
  %v788 = vsub.f32 %v276, %v787
  %v789 = vand.u32 %v788, 4294901760
  %v790 = vsub.f32 %v788, %v789
  %v791 = vand.u32 %v790, 4294901760
  %792 = vmatmul.f32.gmra.mxu0 %v791
  %v793 = vpop.f32.mrf.mxu0
  %v794 = vadd.f32 %v92, %v793
  %v795 = vand.u32 %v279, 4294901760
  %v796 = vsub.f32 %v279, %v795
  %v797 = vand.u32 %v796, 4294901760
  %v798 = vsub.f32 %v796, %v797
  %v799 = vand.u32 %v798, 4294901760
  %800 = vmatmul.f32.gmra.mxu0 %v799
  %v801 = vpop.f32.mrf.mxu0
  %v802 = vadd.f32 %v92, %v801
  %v803 = vand.u32 %v282, 4294901760
  %v804 = vsub.f32 %v282, %v803
  %v805 = vand.u32 %v804, 4294901760
  %v806 = vsub.f32 %v804, %v805
  %v807 = vand.u32 %v806, 4294901760
  %808 = vmatmul.f32.gmra.mxu0 %v807
  %v809 = vpop.f32.mrf.mxu0
  %v810 = vadd.f32 %v92, %v809
  %v811 = vand.u32 %v285, 4294901760
  %v812 = vsub.f32 %v285, %v811
  %v813 = vand.u32 %v812, 4294901760
  %v814 = vsub.f32 %v812, %v813
  %v815 = vand.u32 %v814, 4294901760
  %816 = vmatmul.f32.gmra.mxu0 %v815
  %v817 = vpop.f32.mrf.mxu0
  %v818 = vadd.f32 %v92, %v817
  %819 = vdwg.mxu0
  %820 = vmatpush.msra.mxu0 0.0
  %821 = vmatpush.msra.mxu0 0.0
  %822 = vmatpush.msra.mxu0 0.0
  %823 = vmatpush.msra.mxu0 0.0
  %824 = vmatpush.msra.mxu0 0.0
  %825 = vmatpush.msra.mxu0 0.0
  %826 = vmatpush.msra.mxu0 0.0
  %827 = vmatpush.msra.mxu0 0.0
  %828 = vmatpush.msra.mxu0 0.0
  %829 = vmatpush.msra.mxu0 0.0
  %830 = vmatpush.msra.mxu0 0.0
  %831 = vmatpush.msra.mxu0 0.0
  %v832 = vand.u32 %v89, 4294901760
  %v833 = vsub.f32 %v89, %v832
  %v834 = vand.u32 %v833, 4294901760
  %v835 = vsub.f32 %v833, %v834
  %v836 = vand.u32 %v835, 4294901760
  %837 = vmatpush.msra.mxu0 %v836
  %v838 = vand.u32 %v88, 4294901760
  %v839 = vsub.f32 %v88, %v838
  %v840 = vand.u32 %v839, 4294901760
  %v841 = vsub.f32 %v839, %v840
  %v842 = vand.u32 %v841, 4294901760
  %843 = vmatpush.msra.mxu0 %v842
  %v844 = vand.u32 %v87, 4294901760
  %v845 = vsub.f32 %v87, %v844
  %v846 = vand.u32 %v845, 4294901760
  %v847 = vsub.f32 %v845, %v846
  %v848 = vand.u32 %v847, 4294901760
  %849 = vmatpush.msra.mxu0 %v848
  %v850 = vand.u32 %v86, 4294901760
  %v851 = vsub.f32 %v86, %v850
  %v852 = vand.u32 %v851, 4294901760
  %v853 = vsub.f32 %v851, %v852
  %v854 = vand.u32 %v853, 4294901760
  %855 = vmatpush.msra.mxu0 %v854
  %v856 = vand.u32 %v96, 4294901760
  %857 = vmatmul.f32.gmra.mxu0 %v856
  %v858 = vpop.f32.mrf.mxu0
  %v859 = vadd.f32 %v314, %v858
  %v860 = vand.u32 %v99, 4294901760
  %861 = vmatmul.f32.gmra.mxu0 %v860
  %v862 = vpop.f32.mrf.mxu0
  %v863 = vadd.f32 %v322, %v862
  %v864 = vand.u32 %v102, 4294901760
  %865 = vmatmul.f32.gmra.mxu0 %v864
  %v866 = vpop.f32.mrf.mxu0
  %v867 = vadd.f32 %v330, %v866
  %v868 = vand.u32 %v105, 4294901760
  %869 = vmatmul.f32.gmra.mxu0 %v868
  %v870 = vpop.f32.mrf.mxu0
  %v871 = vadd.f32 %v338, %v870
  %v872 = vand.u32 %v108, 4294901760
  %873 = vmatmul.f32.gmra.mxu0 %v872
  %v874 = vpop.f32.mrf.mxu0
  %v875 = vadd.f32 %v346, %v874
  %v876 = vand.u32 %v111, 4294901760
  %877 = vmatmul.f32.gmra.mxu0 %v876
  %v878 = vpop.f32.mrf.mxu0
  %v879 = vadd.f32 %v354, %v878
  %v880 = vand.u32 %v114, 4294901760
  %881 = vmatmul.f32.gmra.mxu0 %v880
  %v882 = vpop.f32.mrf.mxu0
  %v883 = vadd.f32 %v362, %v882
  %v884 = vand.u32 %v117, 4294901760
  %885 = vmatmul.f32.gmra.mxu0 %v884
  %v886 = vpop.f32.mrf.mxu0
  %v887 = vadd.f32 %v370, %v886
  %v888 = vand.u32 %v120, 4294901760
  %889 = vmatmul.f32.gmra.mxu0 %v888
  %v890 = vpop.f32.mrf.mxu0
  %v891 = vadd.f32 %v378, %v890
  %v892 = vand.u32 %v123, 4294901760
  %893 = vmatmul.f32.gmra.mxu0 %v892
  %v894 = vpop.f32.mrf.mxu0
  %v895 = vadd.f32 %v386, %v894
  %v896 = vand.u32 %v126, 4294901760
  %897 = vmatmul.f32.gmra.mxu0 %v896
  %v898 = vpop.f32.mrf.mxu0
  %v899 = vadd.f32 %v394, %v898
  %v900 = vand.u32 %v129, 4294901760
  %901 = vmatmul.f32.gmra.mxu0 %v900
  %v902 = vpop.f32.mrf.mxu0
  %v903 = vadd.f32 %v402, %v902
  %v904 = vand.u32 %v132, 4294901760
  %905 = vmatmul.f32.gmra.mxu0 %v904
  %v906 = vpop.f32.mrf.mxu0
  %v907 = vadd.f32 %v410, %v906
  %v908 = vand.u32 %v135, 4294901760
  %909 = vmatmul.f32.gmra.mxu0 %v908
  %v910 = vpop.f32.mrf.mxu0
  %v911 = vadd.f32 %v418, %v910
  %v912 = vand.u32 %v138, 4294901760
  %913 = vmatmul.f32.gmra.mxu0 %v912
  %v914 = vpop.f32.mrf.mxu0
  %v915 = vadd.f32 %v426, %v914
  %v916 = vand.u32 %v141, 4294901760
  %917 = vmatmul.f32.gmra.mxu0 %v916
  %v918 = vpop.f32.mrf.mxu0
  %v919 = vadd.f32 %v434, %v918
  %v920 = vand.u32 %v144, 4294901760
  %921 = vmatmul.f32.gmra.mxu0 %v920
  %v922 = vpop.f32.mrf.mxu0
  %v923 = vadd.f32 %v442, %v922
  %v924 = vand.u32 %v147, 4294901760
  %925 = vmatmul.f32.gmra.mxu0 %v924
  %v926 = vpop.f32.mrf.mxu0
  %v927 = vadd.f32 %v450, %v926
  %v928 = vand.u32 %v150, 4294901760
  %929 = vmatmul.f32.gmra.mxu0 %v928
  %v930 = vpop.f32.mrf.mxu0
  %v931 = vadd.f32 %v458, %v930
  %v932 = vand.u32 %v153, 4294901760
  %933 = vmatmul.f32.gmra.mxu0 %v932
  %v934 = vpop.f32.mrf.mxu0
  %v935 = vadd.f32 %v466, %v934
  %v936 = vand.u32 %v156, 4294901760
  %937 = vmatmul.f32.gmra.mxu0 %v936
  %v938 = vpop.f32.mrf.mxu0
  %v939 = vadd.f32 %v474, %v938
  %v940 = vand.u32 %v159, 4294901760
  %941 = vmatmul.f32.gmra.mxu0 %v940
  %v942 = vpop.f32.mrf.mxu0
  %v943 = vadd.f32 %v482, %v942
  %v944 = vand.u32 %v162, 4294901760
  %945 = vmatmul.f32.gmra.mxu0 %v944
  %v946 = vpop.f32.mrf.mxu0
  %v947 = vadd.f32 %v490, %v946
  %v948 = vand.u32 %v165, 4294901760
  %949 = vmatmul.f32.gmra.mxu0 %v948
  %v950 = vpop.f32.mrf.mxu0
  %v951 = vadd.f32 %v498, %v950
  %v952 = vand.u32 %v168, 4294901760
  %953 = vmatmul.f32.gmra.mxu0 %v952
  %v954 = vpop.f32.mrf.mxu0
  %v955 = vadd.f32 %v506, %v954
  %v956 = vand.u32 %v171, 4294901760
  %957 = vmatmul.f32.gmra.mxu0 %v956
  %v958 = vpop.f32.mrf.mxu0
  %v959 = vadd.f32 %v514, %v958
  %v960 = vand.u32 %v174, 4294901760
  %961 = vmatmul.f32.gmra.mxu0 %v960
  %v962 = vpop.f32.mrf.mxu0
  %v963 = vadd.f32 %v522, %v962
  %v964 = vand.u32 %v177, 4294901760
  %965 = vmatmul.f32.gmra.mxu0 %v964
  %v966 = vpop.f32.mrf.mxu0
  %v967 = vadd.f32 %v530, %v966
  %v968 = vand.u32 %v180, 4294901760
  %969 = vmatmul.f32.gmra.mxu0 %v968
  %v970 = vpop.f32.mrf.mxu0
  %v971 = vadd.f32 %v538, %v970
  %v972 = vand.u32 %v183, 4294901760
  %973 = vmatmul.f32.gmra.mxu0 %v972
  %v974 = vpop.f32.mrf.mxu0
  %v975 = vadd.f32 %v546, %v974
  %v976 = vand.u32 %v186, 4294901760
  %977 = vmatmul.f32.gmra.mxu0 %v976
  %v978 = vpop.f32.mrf.mxu0
  %v979 = vadd.f32 %v554, %v978
  %v980 = vand.u32 %v189, 4294901760
  %981 = vmatmul.f32.gmra.mxu0 %v980
  %v982 = vpop.f32.mrf.mxu0
  %v983 = vadd.f32 %v562, %v982
  %v984 = vand.u32 %v192, 4294901760
  %985 = vmatmul.f32.gmra.mxu0 %v984
  %v986 = vpop.f32.mrf.mxu0
  %v987 = vadd.f32 %v570, %v986
  %v988 = vand.u32 %v195, 4294901760
  %989 = vmatmul.f32.gmra.mxu0 %v988
  %v990 = vpop.f32.mrf.mxu0
  %v991 = vadd.f32 %v578, %v990
  %v992 = vand.u32 %v198, 4294901760
  %993 = vmatmul.f32.gmra.mxu0 %v992
  %v994 = vpop.f32.mrf.mxu0
  %v995 = vadd.f32 %v586, %v994
  %v996 = vand.u32 %v201, 4294901760
  %997 = vmatmul.f32.gmra.mxu0 %v996
  %v998 = vpop.f32.mrf.mxu0
  %v999 = vadd.f32 %v594, %v998
  %v1000 = vand.u32 %v204, 4294901760
  %1001 = vmatmul.f32.gmra.mxu0 %v1000
  %v1002 = vpop.f32.mrf.mxu0
  %v1003 = vadd.f32 %v602, %v1002
  %v1004 = vand.u32 %v207, 4294901760
  %1005 = vmatmul.f32.gmra.mxu0 %v1004
  %v1006 = vpop.f32.mrf.mxu0
  %v1007 = vadd.f32 %v610, %v1006
  %v1008 = vand.u32 %v210, 4294901760
  %1009 = vmatmul.f32.gmra.mxu0 %v1008
  %v1010 = vpop.f32.mrf.mxu0
  %v1011 = vadd.f32 %v618, %v1010
  %v1012 = vand.u32 %v213, 4294901760
  %1013 = vmatmul.f32.gmra.mxu0 %v1012
  %v1014 = vpop.f32.mrf.mxu0
  %v1015 = vadd.f32 %v626, %v1014
  %v1016 = vand.u32 %v216, 4294901760
  %1017 = vmatmul.f32.gmra.mxu0 %v1016
  %v1018 = vpop.f32.mrf.mxu0
  %v1019 = vadd.f32 %v634, %v1018
  %v1020 = vand.u32 %v219, 4294901760
  %1021 = vmatmul.f32.gmra.mxu0 %v1020
  %v1022 = vpop.f32.mrf.mxu0
  %v1023 = vadd.f32 %v642, %v1022
  %v1024 = vand.u32 %v222, 4294901760
  %1025 = vmatmul.f32.gmra.mxu0 %v1024
  %v1026 = vpop.f32.mrf.mxu0
  %v1027 = vadd.f32 %v650, %v1026
  %v1028 = vand.u32 %v225, 4294901760
  %1029 = vmatmul.f32.gmra.mxu0 %v1028
  %v1030 = vpop.f32.mrf.mxu0
  %v1031 = vadd.f32 %v658, %v1030
  %v1032 = vand.u32 %v228, 4294901760
  %1033 = vmatmul.f32.gmra.mxu0 %v1032
  %v1034 = vpop.f32.mrf.mxu0
  %v1035 = vadd.f32 %v666, %v1034
  %v1036 = vand.u32 %v231, 4294901760
  %1037 = vmatmul.f32.gmra.mxu0 %v1036
  %v1038 = vpop.f32.mrf.mxu0
  %v1039 = vadd.f32 %v674, %v1038
  %v1040 = vand.u32 %v234, 4294901760
  %1041 = vmatmul.f32.gmra.mxu0 %v1040
  %v1042 = vpop.f32.mrf.mxu0
  %v1043 = vadd.f32 %v682, %v1042
  %v1044 = vand.u32 %v237, 4294901760
  %1045 = vmatmul.f32.gmra.mxu0 %v1044
  %v1046 = vpop.f32.mrf.mxu0
  %v1047 = vadd.f32 %v690, %v1046
  %v1048 = vand.u32 %v240, 4294901760
  %1049 = vmatmul.f32.gmra.mxu0 %v1048
  %v1050 = vpop.f32.mrf.mxu0
  %v1051 = vadd.f32 %v698, %v1050
  %v1052 = vand.u32 %v243, 4294901760
  %1053 = vmatmul.f32.gmra.mxu0 %v1052
  %v1054 = vpop.f32.mrf.mxu0
  %v1055 = vadd.f32 %v706, %v1054
  %v1056 = vand.u32 %v246, 4294901760
  %1057 = vmatmul.f32.gmra.mxu0 %v1056
  %v1058 = vpop.f32.mrf.mxu0
  %v1059 = vadd.f32 %v714, %v1058
  %v1060 = vand.u32 %v249, 4294901760
  %1061 = vmatmul.f32.gmra.mxu0 %v1060
  %v1062 = vpop.f32.mrf.mxu0
  %v1063 = vadd.f32 %v722, %v1062
  %v1064 = vand.u32 %v252, 4294901760
  %1065 = vmatmul.f32.gmra.mxu0 %v1064
  %v1066 = vpop.f32.mrf.mxu0
  %v1067 = vadd.f32 %v730, %v1066
  %v1068 = vand.u32 %v255, 4294901760
  %1069 = vmatmul.f32.gmra.mxu0 %v1068
  %v1070 = vpop.f32.mrf.mxu0
  %v1071 = vadd.f32 %v738, %v1070
  %v1072 = vand.u32 %v258, 4294901760
  %1073 = vmatmul.f32.gmra.mxu0 %v1072
  %v1074 = vpop.f32.mrf.mxu0
  %v1075 = vadd.f32 %v746, %v1074
  %v1076 = vand.u32 %v261, 4294901760
  %1077 = vmatmul.f32.gmra.mxu0 %v1076
  %v1078 = vpop.f32.mrf.mxu0
  %v1079 = vadd.f32 %v754, %v1078
  %v1080 = vand.u32 %v264, 4294901760
  %1081 = vmatmul.f32.gmra.mxu0 %v1080
  %v1082 = vpop.f32.mrf.mxu0
  %v1083 = vadd.f32 %v762, %v1082
  %v1084 = vand.u32 %v267, 4294901760
  %1085 = vmatmul.f32.gmra.mxu0 %v1084
  %v1086 = vpop.f32.mrf.mxu0
  %v1087 = vadd.f32 %v770, %v1086
  %v1088 = vand.u32 %v270, 4294901760
  %1089 = vmatmul.f32.gmra.mxu0 %v1088
  %v1090 = vpop.f32.mrf.mxu0
  %v1091 = vadd.f32 %v778, %v1090
  %v1092 = vand.u32 %v273, 4294901760
  %1093 = vmatmul.f32.gmra.mxu0 %v1092
  %v1094 = vpop.f32.mrf.mxu0
  %v1095 = vadd.f32 %v786, %v1094
  %v1096 = vand.u32 %v276, 4294901760
  %1097 = vmatmul.f32.gmra.mxu0 %v1096
  %v1098 = vpop.f32.mrf.mxu0
  %v1099 = vadd.f32 %v794, %v1098
  %v1100 = vand.u32 %v279, 4294901760
  %1101 = vmatmul.f32.gmra.mxu0 %v1100
  %v1102 = vpop.f32.mrf.mxu0
  %v1103 = vadd.f32 %v802, %v1102
  %v1104 = vand.u32 %v282, 4294901760
  %1105 = vmatmul.f32.gmra.mxu0 %v1104
  %v1106 = vpop.f32.mrf.mxu0
  %v1107 = vadd.f32 %v810, %v1106
  %v1108 = vand.u32 %v285, 4294901760
  %1109 = vmatmul.f32.gmra.mxu0 %v1108
  %v1110 = vpop.f32.mrf.mxu0
  %v1111 = vadd.f32 %v818, %v1110
  %1112 = vdwg.mxu0
  %1113 = vmatpush.msra.mxu0 0.0
  %1114 = vmatpush.msra.mxu0 0.0
  %1115 = vmatpush.msra.mxu0 0.0
  %1116 = vmatpush.msra.mxu0 0.0
  %1117 = vmatpush.msra.mxu0 0.0
  %1118 = vmatpush.msra.mxu0 0.0
  %1119 = vmatpush.msra.mxu0 0.0
  %1120 = vmatpush.msra.mxu0 0.0
  %1121 = vmatpush.msra.mxu0 0.0
  %1122 = vmatpush.msra.mxu0 0.0
  %1123 = vmatpush.msra.mxu0 0.0
  %1124 = vmatpush.msra.mxu0 0.0
  %v1125 = vand.u32 %v89, 4294901760
  %v1126 = vsub.f32 %v89, %v1125
  %1127 = vmatpush.msra.mxu0 %v1126
  %v1128 = vand.u32 %v88, 4294901760
  %v1129 = vsub.f32 %v88, %v1128
  %1130 = vmatpush.msra.mxu0 %v1129
  %v1131 = vand.u32 %v87, 4294901760
  %v1132 = vsub.f32 %v87, %v1131
  %1133 = vmatpush.msra.mxu0 %v1132
  %v1134 = vand.u32 %v86, 4294901760
  %v1135 = vsub.f32 %v86, %v1134
  %1136 = vmatpush.msra.mxu0 %v1135
  %v1137 = vand.u32 %v96, 4294901760
  %v1138 = vsub.f32 %v96, %v1137
  %1139 = vmatmul.f32.gmra.mxu0 %v1138
  %v1140 = vpop.f32.mrf.mxu0
  %v1141 = vadd.f32 %v859, %v1140
  %v1142 = vand.u32 %v99, 4294901760
  %v1143 = vsub.f32 %v99, %v1142
  %1144 = vmatmul.f32.gmra.mxu0 %v1143
  %v1145 = vpop.f32.mrf.mxu0
  %v1146 = vadd.f32 %v863, %v1145
  %v1147 = vand.u32 %v102, 4294901760
  %v1148 = vsub.f32 %v102, %v1147
  %1149 = vmatmul.f32.gmra.mxu0 %v1148
  %v1150 = vpop.f32.mrf.mxu0
  %v1151 = vadd.f32 %v867, %v1150
  %v1152 = vand.u32 %v105, 4294901760
  %v1153 = vsub.f32 %v105, %v1152
  %1154 = vmatmul.f32.gmra.mxu0 %v1153
  %v1155 = vpop.f32.mrf.mxu0
  %v1156 = vadd.f32 %v871, %v1155
  %v1157 = vand.u32 %v108, 4294901760
  %v1158 = vsub.f32 %v108, %v1157
  %1159 = vmatmul.f32.gmra.mxu0 %v1158
  %v1160 = vpop.f32.mrf.mxu0
  %v1161 = vadd.f32 %v875, %v1160
  %v1162 = vand.u32 %v111, 4294901760
  %v1163 = vsub.f32 %v111, %v1162
  %1164 = vmatmul.f32.gmra.mxu0 %v1163
  %v1165 = vpop.f32.mrf.mxu0
  %v1166 = vadd.f32 %v879, %v1165
  %v1167 = vand.u32 %v114, 4294901760
  %v1168 = vsub.f32 %v114, %v1167
  %1169 = vmatmul.f32.gmra.mxu0 %v1168
  %v1170 = vpop.f32.mrf.mxu0
  %v1171 = vadd.f32 %v883, %v1170
  %v1172 = vand.u32 %v117, 4294901760
  %v1173 = vsub.f32 %v117, %v1172
  %1174 = vmatmul.f32.gmra.mxu0 %v1173
  %v1175 = vpop.f32.mrf.mxu0
  %v1176 = vadd.f32 %v887, %v1175
  %v1177 = vand.u32 %v120, 4294901760
  %v1178 = vsub.f32 %v120, %v1177
  %1179 = vmatmul.f32.gmra.mxu0 %v1178
  %v1180 = vpop.f32.mrf.mxu0
  %v1181 = vadd.f32 %v891, %v1180
  %v1182 = vand.u32 %v123, 4294901760
  %v1183 = vsub.f32 %v123, %v1182
  %1184 = vmatmul.f32.gmra.mxu0 %v1183
  %v1185 = vpop.f32.mrf.mxu0
  %v1186 = vadd.f32 %v895, %v1185
  %v1187 = vand.u32 %v126, 4294901760
  %v1188 = vsub.f32 %v126, %v1187
  %1189 = vmatmul.f32.gmra.mxu0 %v1188
  %v1190 = vpop.f32.mrf.mxu0
  %v1191 = vadd.f32 %v899, %v1190
  %v1192 = vand.u32 %v129, 4294901760
  %v1193 = vsub.f32 %v129, %v1192
  %1194 = vmatmul.f32.gmra.mxu0 %v1193
  %v1195 = vpop.f32.mrf.mxu0
  %v1196 = vadd.f32 %v903, %v1195
  %v1197 = vand.u32 %v132, 4294901760
  %v1198 = vsub.f32 %v132, %v1197
  %1199 = vmatmul.f32.gmra.mxu0 %v1198
  %v1200 = vpop.f32.mrf.mxu0
  %v1201 = vadd.f32 %v907, %v1200
  %v1202 = vand.u32 %v135, 4294901760
  %v1203 = vsub.f32 %v135, %v1202
  %1204 = vmatmul.f32.gmra.mxu0 %v1203
  %v1205 = vpop.f32.mrf.mxu0
  %v1206 = vadd.f32 %v911, %v1205
  %v1207 = vand.u32 %v138, 4294901760
  %v1208 = vsub.f32 %v138, %v1207
  %1209 = vmatmul.f32.gmra.mxu0 %v1208
  %v1210 = vpop.f32.mrf.mxu0
  %v1211 = vadd.f32 %v915, %v1210
  %v1212 = vand.u32 %v141, 4294901760
  %v1213 = vsub.f32 %v141, %v1212
  %1214 = vmatmul.f32.gmra.mxu0 %v1213
  %v1215 = vpop.f32.mrf.mxu0
  %v1216 = vadd.f32 %v919, %v1215
  %v1217 = vand.u32 %v144, 4294901760
  %v1218 = vsub.f32 %v144, %v1217
  %1219 = vmatmul.f32.gmra.mxu0 %v1218
  %v1220 = vpop.f32.mrf.mxu0
  %v1221 = vadd.f32 %v923, %v1220
  %v1222 = vand.u32 %v147, 4294901760
  %v1223 = vsub.f32 %v147, %v1222
  %1224 = vmatmul.f32.gmra.mxu0 %v1223
  %v1225 = vpop.f32.mrf.mxu0
  %v1226 = vadd.f32 %v927, %v1225
  %v1227 = vand.u32 %v150, 4294901760
  %v1228 = vsub.f32 %v150, %v1227
  %1229 = vmatmul.f32.gmra.mxu0 %v1228
  %v1230 = vpop.f32.mrf.mxu0
  %v1231 = vadd.f32 %v931, %v1230
  %v1232 = vand.u32 %v153, 4294901760
  %v1233 = vsub.f32 %v153, %v1232
  %1234 = vmatmul.f32.gmra.mxu0 %v1233
  %v1235 = vpop.f32.mrf.mxu0
  %v1236 = vadd.f32 %v935, %v1235
  %v1237 = vand.u32 %v156, 4294901760
  %v1238 = vsub.f32 %v156, %v1237
  %1239 = vmatmul.f32.gmra.mxu0 %v1238
  %v1240 = vpop.f32.mrf.mxu0
  %v1241 = vadd.f32 %v939, %v1240
  %v1242 = vand.u32 %v159, 4294901760
  %v1243 = vsub.f32 %v159, %v1242
  %1244 = vmatmul.f32.gmra.mxu0 %v1243
  %v1245 = vpop.f32.mrf.mxu0
  %v1246 = vadd.f32 %v943, %v1245
  %v1247 = vand.u32 %v162, 4294901760
  %v1248 = vsub.f32 %v162, %v1247
  %1249 = vmatmul.f32.gmra.mxu0 %v1248
  %v1250 = vpop.f32.mrf.mxu0
  %v1251 = vadd.f32 %v947, %v1250
  %v1252 = vand.u32 %v165, 4294901760
  %v1253 = vsub.f32 %v165, %v1252
  %1254 = vmatmul.f32.gmra.mxu0 %v1253
  %v1255 = vpop.f32.mrf.mxu0
  %v1256 = vadd.f32 %v951, %v1255
  %v1257 = vand.u32 %v168, 4294901760
  %v1258 = vsub.f32 %v168, %v1257
  %1259 = vmatmul.f32.gmra.mxu0 %v1258
  %v1260 = vpop.f32.mrf.mxu0
  %v1261 = vadd.f32 %v955, %v1260
  %v1262 = vand.u32 %v171, 4294901760
  %v1263 = vsub.f32 %v171, %v1262
  %1264 = vmatmul.f32.gmra.mxu0 %v1263
  %v1265 = vpop.f32.mrf.mxu0
  %v1266 = vadd.f32 %v959, %v1265
  %v1267 = vand.u32 %v174, 4294901760
  %v1268 = vsub.f32 %v174, %v1267
  %1269 = vmatmul.f32.gmra.mxu0 %v1268
  %v1270 = vpop.f32.mrf.mxu0
  %v1271 = vadd.f32 %v963, %v1270
  %v1272 = vand.u32 %v177, 4294901760
  %v1273 = vsub.f32 %v177, %v1272
  %1274 = vmatmul.f32.gmra.mxu0 %v1273
  %v1275 = vpop.f32.mrf.mxu0
  %v1276 = vadd.f32 %v967, %v1275
  %v1277 = vand.u32 %v180, 4294901760
  %v1278 = vsub.f32 %v180, %v1277
  %1279 = vmatmul.f32.gmra.mxu0 %v1278
  %v1280 = vpop.f32.mrf.mxu0
  %v1281 = vadd.f32 %v971, %v1280
  %v1282 = vand.u32 %v183, 4294901760
  %v1283 = vsub.f32 %v183, %v1282
  %1284 = vmatmul.f32.gmra.mxu0 %v1283
  %v1285 = vpop.f32.mrf.mxu0
  %v1286 = vadd.f32 %v975, %v1285
  %v1287 = vand.u32 %v186, 4294901760
  %v1288 = vsub.f32 %v186, %v1287
  %1289 = vmatmul.f32.gmra.mxu0 %v1288
  %v1290 = vpop.f32.mrf.mxu0
  %v1291 = vadd.f32 %v979, %v1290
  %v1292 = vand.u32 %v189, 4294901760
  %v1293 = vsub.f32 %v189, %v1292
  %1294 = vmatmul.f32.gmra.mxu0 %v1293
  %v1295 = vpop.f32.mrf.mxu0
  %v1296 = vadd.f32 %v983, %v1295
  %v1297 = vand.u32 %v192, 4294901760
  %v1298 = vsub.f32 %v192, %v1297
  %1299 = vmatmul.f32.gmra.mxu0 %v1298
  %v1300 = vpop.f32.mrf.mxu0
  %v1301 = vadd.f32 %v987, %v1300
  %v1302 = vand.u32 %v195, 4294901760
  %v1303 = vsub.f32 %v195, %v1302
  %1304 = vmatmul.f32.gmra.mxu0 %v1303
  %v1305 = vpop.f32.mrf.mxu0
  %v1306 = vadd.f32 %v991, %v1305
  %v1307 = vand.u32 %v198, 4294901760
  %v1308 = vsub.f32 %v198, %v1307
  %1309 = vmatmul.f32.gmra.mxu0 %v1308
  %v1310 = vpop.f32.mrf.mxu0
  %v1311 = vadd.f32 %v995, %v1310
  %v1312 = vand.u32 %v201, 4294901760
  %v1313 = vsub.f32 %v201, %v1312
  %1314 = vmatmul.f32.gmra.mxu0 %v1313
  %v1315 = vpop.f32.mrf.mxu0
  %v1316 = vadd.f32 %v999, %v1315
  %v1317 = vand.u32 %v204, 4294901760
  %v1318 = vsub.f32 %v204, %v1317
  %1319 = vmatmul.f32.gmra.mxu0 %v1318
  %v1320 = vpop.f32.mrf.mxu0
  %v1321 = vadd.f32 %v1003, %v1320
  %v1322 = vand.u32 %v207, 4294901760
  %v1323 = vsub.f32 %v207, %v1322
  %1324 = vmatmul.f32.gmra.mxu0 %v1323
  %v1325 = vpop.f32.mrf.mxu0
  %v1326 = vadd.f32 %v1007, %v1325
  %v1327 = vand.u32 %v210, 4294901760
  %v1328 = vsub.f32 %v210, %v1327
  %1329 = vmatmul.f32.gmra.mxu0 %v1328
  %v1330 = vpop.f32.mrf.mxu0
  %v1331 = vadd.f32 %v1011, %v1330
  %v1332 = vand.u32 %v213, 4294901760
  %v1333 = vsub.f32 %v213, %v1332
  %1334 = vmatmul.f32.gmra.mxu0 %v1333
  %v1335 = vpop.f32.mrf.mxu0
  %v1336 = vadd.f32 %v1015, %v1335
  %v1337 = vand.u32 %v216, 4294901760
  %v1338 = vsub.f32 %v216, %v1337
  %1339 = vmatmul.f32.gmra.mxu0 %v1338
  %v1340 = vpop.f32.mrf.mxu0
  %v1341 = vadd.f32 %v1019, %v1340
  %v1342 = vand.u32 %v219, 4294901760
  %v1343 = vsub.f32 %v219, %v1342
  %1344 = vmatmul.f32.gmra.mxu0 %v1343
  %v1345 = vpop.f32.mrf.mxu0
  %v1346 = vadd.f32 %v1023, %v1345
  %v1347 = vand.u32 %v222, 4294901760
  %v1348 = vsub.f32 %v222, %v1347
  %1349 = vmatmul.f32.gmra.mxu0 %v1348
  %v1350 = vpop.f32.mrf.mxu0
  %v1351 = vadd.f32 %v1027, %v1350
  %v1352 = vand.u32 %v225, 4294901760
  %v1353 = vsub.f32 %v225, %v1352
  %1354 = vmatmul.f32.gmra.mxu0 %v1353
  %v1355 = vpop.f32.mrf.mxu0
  %v1356 = vadd.f32 %v1031, %v1355
  %v1357 = vand.u32 %v228, 4294901760
  %v1358 = vsub.f32 %v228, %v1357
  %1359 = vmatmul.f32.gmra.mxu0 %v1358
  %v1360 = vpop.f32.mrf.mxu0
  %v1361 = vadd.f32 %v1035, %v1360
  %v1362 = vand.u32 %v231, 4294901760
  %v1363 = vsub.f32 %v231, %v1362
  %1364 = vmatmul.f32.gmra.mxu0 %v1363
  %v1365 = vpop.f32.mrf.mxu0
  %v1366 = vadd.f32 %v1039, %v1365
  %v1367 = vand.u32 %v234, 4294901760
  %v1368 = vsub.f32 %v234, %v1367
  %1369 = vmatmul.f32.gmra.mxu0 %v1368
  %v1370 = vpop.f32.mrf.mxu0
  %v1371 = vadd.f32 %v1043, %v1370
  %v1372 = vand.u32 %v237, 4294901760
  %v1373 = vsub.f32 %v237, %v1372
  %1374 = vmatmul.f32.gmra.mxu0 %v1373
  %v1375 = vpop.f32.mrf.mxu0
  %v1376 = vadd.f32 %v1047, %v1375
  %v1377 = vand.u32 %v240, 4294901760
  %v1378 = vsub.f32 %v240, %v1377
  %1379 = vmatmul.f32.gmra.mxu0 %v1378
  %v1380 = vpop.f32.mrf.mxu0
  %v1381 = vadd.f32 %v1051, %v1380
  %v1382 = vand.u32 %v243, 4294901760
  %v1383 = vsub.f32 %v243, %v1382
  %1384 = vmatmul.f32.gmra.mxu0 %v1383
  %v1385 = vpop.f32.mrf.mxu0
  %v1386 = vadd.f32 %v1055, %v1385
  %v1387 = vand.u32 %v246, 4294901760
  %v1388 = vsub.f32 %v246, %v1387
  %1389 = vmatmul.f32.gmra.mxu0 %v1388
  %v1390 = vpop.f32.mrf.mxu0
  %v1391 = vadd.f32 %v1059, %v1390
  %v1392 = vand.u32 %v249, 4294901760
  %v1393 = vsub.f32 %v249, %v1392
  %1394 = vmatmul.f32.gmra.mxu0 %v1393
  %v1395 = vpop.f32.mrf.mxu0
  %v1396 = vadd.f32 %v1063, %v1395
  %v1397 = vand.u32 %v252, 4294901760
  %v1398 = vsub.f32 %v252, %v1397
  %1399 = vmatmul.f32.gmra.mxu0 %v1398
  %v1400 = vpop.f32.mrf.mxu0
  %v1401 = vadd.f32 %v1067, %v1400
  %v1402 = vand.u32 %v255, 4294901760
  %v1403 = vsub.f32 %v255, %v1402
  %1404 = vmatmul.f32.gmra.mxu0 %v1403
  %v1405 = vpop.f32.mrf.mxu0
  %v1406 = vadd.f32 %v1071, %v1405
  %v1407 = vand.u32 %v258, 4294901760
  %v1408 = vsub.f32 %v258, %v1407
  %1409 = vmatmul.f32.gmra.mxu0 %v1408
  %v1410 = vpop.f32.mrf.mxu0
  %v1411 = vadd.f32 %v1075, %v1410
  %v1412 = vand.u32 %v261, 4294901760
  %v1413 = vsub.f32 %v261, %v1412
  %1414 = vmatmul.f32.gmra.mxu0 %v1413
  %v1415 = vpop.f32.mrf.mxu0
  %v1416 = vadd.f32 %v1079, %v1415
  %v1417 = vand.u32 %v264, 4294901760
  %v1418 = vsub.f32 %v264, %v1417
  %1419 = vmatmul.f32.gmra.mxu0 %v1418
  %v1420 = vpop.f32.mrf.mxu0
  %v1421 = vadd.f32 %v1083, %v1420
  %v1422 = vand.u32 %v267, 4294901760
  %v1423 = vsub.f32 %v267, %v1422
  %1424 = vmatmul.f32.gmra.mxu0 %v1423
  %v1425 = vpop.f32.mrf.mxu0
  %v1426 = vadd.f32 %v1087, %v1425
  %v1427 = vand.u32 %v270, 4294901760
  %v1428 = vsub.f32 %v270, %v1427
  %1429 = vmatmul.f32.gmra.mxu0 %v1428
  %v1430 = vpop.f32.mrf.mxu0
  %v1431 = vadd.f32 %v1091, %v1430
  %v1432 = vand.u32 %v273, 4294901760
  %v1433 = vsub.f32 %v273, %v1432
  %1434 = vmatmul.f32.gmra.mxu0 %v1433
  %v1435 = vpop.f32.mrf.mxu0
  %v1436 = vadd.f32 %v1095, %v1435
  %v1437 = vand.u32 %v276, 4294901760
  %v1438 = vsub.f32 %v276, %v1437
  %1439 = vmatmul.f32.gmra.mxu0 %v1438
  %v1440 = vpop.f32.mrf.mxu0
  %v1441 = vadd.f32 %v1099, %v1440
  %v1442 = vand.u32 %v279, 4294901760
  %v1443 = vsub.f32 %v279, %v1442
  %1444 = vmatmul.f32.gmra.mxu0 %v1443
  %v1445 = vpop.f32.mrf.mxu0
  %v1446 = vadd.f32 %v1103, %v1445
  %v1447 = vand.u32 %v282, 4294901760
  %v1448 = vsub.f32 %v282, %v1447
  %1449 = vmatmul.f32.gmra.mxu0 %v1448
  %v1450 = vpop.f32.mrf.mxu0
  %v1451 = vadd.f32 %v1107, %v1450
  %v1452 = vand.u32 %v285, 4294901760
  %v1453 = vsub.f32 %v285, %v1452
  %1454 = vmatmul.f32.gmra.mxu0 %v1453
  %v1455 = vpop.f32.mrf.mxu0
  %v1456 = vadd.f32 %v1111, %v1455
  %1457 = vdwg.mxu0
  %1458 = vmatpush.msra.mxu0 0.0
  %1459 = vmatpush.msra.mxu0 0.0
  %1460 = vmatpush.msra.mxu0 0.0
  %1461 = vmatpush.msra.mxu0 0.0
  %1462 = vmatpush.msra.mxu0 0.0
  %1463 = vmatpush.msra.mxu0 0.0
  %1464 = vmatpush.msra.mxu0 0.0
  %1465 = vmatpush.msra.mxu0 0.0
  %1466 = vmatpush.msra.mxu0 0.0
  %1467 = vmatpush.msra.mxu0 0.0
  %1468 = vmatpush.msra.mxu0 0.0
  %1469 = vmatpush.msra.mxu0 0.0
  %v1470 = vand.u32 %v89, 4294901760
  %1471 = vmatpush.msra.mxu0 %v1470
  %v1472 = vand.u32 %v88, 4294901760
  %1473 = vmatpush.msra.mxu0 %v1472
  %v1474 = vand.u32 %v87, 4294901760
  %1475 = vmatpush.msra.mxu0 %v1474
  %v1476 = vand.u32 %v86, 4294901760
  %1477 = vmatpush.msra.mxu0 %v1476
  %v1478 = vand.u32 %v96, 4294901760
  %v1479 = vsub.f32 %v96, %v1478
  %v1480 = vand.u32 %v1479, 4294901760
  %1481 = vmatmul.f32.gmra.mxu0 %v1480
  %v1482 = vpop.f32.mrf.mxu0
  %v1483 = vadd.f32 %v1141, %v1482
  %v1484 = vand.u32 %v99, 4294901760
  %v1485 = vsub.f32 %v99, %v1484
  %v1486 = vand.u32 %v1485, 4294901760
  %1487 = vmatmul.f32.gmra.mxu0 %v1486
  %v1488 = vpop.f32.mrf.mxu0
  %v1489 = vadd.f32 %v1146, %v1488
  %v1490 = vand.u32 %v102, 4294901760
  %v1491 = vsub.f32 %v102, %v1490
  %v1492 = vand.u32 %v1491, 4294901760
  %1493 = vmatmul.f32.gmra.mxu0 %v1492
  %v1494 = vpop.f32.mrf.mxu0
  %v1495 = vadd.f32 %v1151, %v1494
  %v1496 = vand.u32 %v105, 4294901760
  %v1497 = vsub.f32 %v105, %v1496
  %v1498 = vand.u32 %v1497, 4294901760
  %1499 = vmatmul.f32.gmra.mxu0 %v1498
  %v1500 = vpop.f32.mrf.mxu0
  %v1501 = vadd.f32 %v1156, %v1500
  %v1502 = vand.u32 %v108, 4294901760
  %v1503 = vsub.f32 %v108, %v1502
  %v1504 = vand.u32 %v1503, 4294901760
  %1505 = vmatmul.f32.gmra.mxu0 %v1504
  %v1506 = vpop.f32.mrf.mxu0
  %v1507 = vadd.f32 %v1161, %v1506
  %v1508 = vand.u32 %v111, 4294901760
  %v1509 = vsub.f32 %v111, %v1508
  %v1510 = vand.u32 %v1509, 4294901760
  %1511 = vmatmul.f32.gmra.mxu0 %v1510
  %v1512 = vpop.f32.mrf.mxu0
  %v1513 = vadd.f32 %v1166, %v1512
  %v1514 = vand.u32 %v114, 4294901760
  %v1515 = vsub.f32 %v114, %v1514
  %v1516 = vand.u32 %v1515, 4294901760
  %1517 = vmatmul.f32.gmra.mxu0 %v1516
  %v1518 = vpop.f32.mrf.mxu0
  %v1519 = vadd.f32 %v1171, %v1518
  %v1520 = vand.u32 %v117, 4294901760
  %v1521 = vsub.f32 %v117, %v1520
  %v1522 = vand.u32 %v1521, 4294901760
  %1523 = vmatmul.f32.gmra.mxu0 %v1522
  %v1524 = vpop.f32.mrf.mxu0
  %v1525 = vadd.f32 %v1176, %v1524
  %v1526 = vand.u32 %v120, 4294901760
  %v1527 = vsub.f32 %v120, %v1526
  %v1528 = vand.u32 %v1527, 4294901760
  %1529 = vmatmul.f32.gmra.mxu0 %v1528
  %v1530 = vpop.f32.mrf.mxu0
  %v1531 = vadd.f32 %v1181, %v1530
  %v1532 = vand.u32 %v123, 4294901760
  %v1533 = vsub.f32 %v123, %v1532
  %v1534 = vand.u32 %v1533, 4294901760
  %1535 = vmatmul.f32.gmra.mxu0 %v1534
  %v1536 = vpop.f32.mrf.mxu0
  %v1537 = vadd.f32 %v1186, %v1536
  %v1538 = vand.u32 %v126, 4294901760
  %v1539 = vsub.f32 %v126, %v1538
  %v1540 = vand.u32 %v1539, 4294901760
  %1541 = vmatmul.f32.gmra.mxu0 %v1540
  %v1542 = vpop.f32.mrf.mxu0
  %v1543 = vadd.f32 %v1191, %v1542
  %v1544 = vand.u32 %v129, 4294901760
  %v1545 = vsub.f32 %v129, %v1544
  %v1546 = vand.u32 %v1545, 4294901760
  %1547 = vmatmul.f32.gmra.mxu0 %v1546
  %v1548 = vpop.f32.mrf.mxu0
  %v1549 = vadd.f32 %v1196, %v1548
  %v1550 = vand.u32 %v132, 4294901760
  %v1551 = vsub.f32 %v132, %v1550
  %v1552 = vand.u32 %v1551, 4294901760
  %1553 = vmatmul.f32.gmra.mxu0 %v1552
  %v1554 = vpop.f32.mrf.mxu0
  %v1555 = vadd.f32 %v1201, %v1554
  %v1556 = vand.u32 %v135, 4294901760
  %v1557 = vsub.f32 %v135, %v1556
  %v1558 = vand.u32 %v1557, 4294901760
  %1559 = vmatmul.f32.gmra.mxu0 %v1558
  %v1560 = vpop.f32.mrf.mxu0
  %v1561 = vadd.f32 %v1206, %v1560
  %v1562 = vand.u32 %v138, 4294901760
  %v1563 = vsub.f32 %v138, %v1562
  %v1564 = vand.u32 %v1563, 4294901760
  %1565 = vmatmul.f32.gmra.mxu0 %v1564
  %v1566 = vpop.f32.mrf.mxu0
  %v1567 = vadd.f32 %v1211, %v1566
  %v1568 = vand.u32 %v141, 4294901760
  %v1569 = vsub.f32 %v141, %v1568
  %v1570 = vand.u32 %v1569, 4294901760
  %1571 = vmatmul.f32.gmra.mxu0 %v1570
  %v1572 = vpop.f32.mrf.mxu0
  %v1573 = vadd.f32 %v1216, %v1572
  %v1574 = vand.u32 %v144, 4294901760
  %v1575 = vsub.f32 %v144, %v1574
  %v1576 = vand.u32 %v1575, 4294901760
  %1577 = vmatmul.f32.gmra.mxu0 %v1576
  %v1578 = vpop.f32.mrf.mxu0
  %v1579 = vadd.f32 %v1221, %v1578
  %v1580 = vand.u32 %v147, 4294901760
  %v1581 = vsub.f32 %v147, %v1580
  %v1582 = vand.u32 %v1581, 4294901760
  %1583 = vmatmul.f32.gmra.mxu0 %v1582
  %v1584 = vpop.f32.mrf.mxu0
  %v1585 = vadd.f32 %v1226, %v1584
  %v1586 = vand.u32 %v150, 4294901760
  %v1587 = vsub.f32 %v150, %v1586
  %v1588 = vand.u32 %v1587, 4294901760
  %1589 = vmatmul.f32.gmra.mxu0 %v1588
  %v1590 = vpop.f32.mrf.mxu0
  %v1591 = vadd.f32 %v1231, %v1590
  %v1592 = vand.u32 %v153, 4294901760
  %v1593 = vsub.f32 %v153, %v1592
  %v1594 = vand.u32 %v1593, 4294901760
  %1595 = vmatmul.f32.gmra.mxu0 %v1594
  %v1596 = vpop.f32.mrf.mxu0
  %v1597 = vadd.f32 %v1236, %v1596
  %v1598 = vand.u32 %v156, 4294901760
  %v1599 = vsub.f32 %v156, %v1598
  %v1600 = vand.u32 %v1599, 4294901760
  %1601 = vmatmul.f32.gmra.mxu0 %v1600
  %v1602 = vpop.f32.mrf.mxu0
  %v1603 = vadd.f32 %v1241, %v1602
  %v1604 = vand.u32 %v159, 4294901760
  %v1605 = vsub.f32 %v159, %v1604
  %v1606 = vand.u32 %v1605, 4294901760
  %1607 = vmatmul.f32.gmra.mxu0 %v1606
  %v1608 = vpop.f32.mrf.mxu0
  %v1609 = vadd.f32 %v1246, %v1608
  %v1610 = vand.u32 %v162, 4294901760
  %v1611 = vsub.f32 %v162, %v1610
  %v1612 = vand.u32 %v1611, 4294901760
  %1613 = vmatmul.f32.gmra.mxu0 %v1612
  %v1614 = vpop.f32.mrf.mxu0
  %v1615 = vadd.f32 %v1251, %v1614
  %v1616 = vand.u32 %v165, 4294901760
  %v1617 = vsub.f32 %v165, %v1616
  %v1618 = vand.u32 %v1617, 4294901760
  %1619 = vmatmul.f32.gmra.mxu0 %v1618
  %v1620 = vpop.f32.mrf.mxu0
  %v1621 = vadd.f32 %v1256, %v1620
  %v1622 = vand.u32 %v168, 4294901760
  %v1623 = vsub.f32 %v168, %v1622
  %v1624 = vand.u32 %v1623, 4294901760
  %1625 = vmatmul.f32.gmra.mxu0 %v1624
  %v1626 = vpop.f32.mrf.mxu0
  %v1627 = vadd.f32 %v1261, %v1626
  %v1628 = vand.u32 %v171, 4294901760
  %v1629 = vsub.f32 %v171, %v1628
  %v1630 = vand.u32 %v1629, 4294901760
  %1631 = vmatmul.f32.gmra.mxu0 %v1630
  %v1632 = vpop.f32.mrf.mxu0
  %v1633 = vadd.f32 %v1266, %v1632
  %v1634 = vand.u32 %v174, 4294901760
  %v1635 = vsub.f32 %v174, %v1634
  %v1636 = vand.u32 %v1635, 4294901760
  %1637 = vmatmul.f32.gmra.mxu0 %v1636
  %v1638 = vpop.f32.mrf.mxu0
  %v1639 = vadd.f32 %v1271, %v1638
  %v1640 = vand.u32 %v177, 4294901760
  %v1641 = vsub.f32 %v177, %v1640
  %v1642 = vand.u32 %v1641, 4294901760
  %1643 = vmatmul.f32.gmra.mxu0 %v1642
  %v1644 = vpop.f32.mrf.mxu0
  %v1645 = vadd.f32 %v1276, %v1644
  %v1646 = vand.u32 %v180, 4294901760
  %v1647 = vsub.f32 %v180, %v1646
  %v1648 = vand.u32 %v1647, 4294901760
  %1649 = vmatmul.f32.gmra.mxu0 %v1648
  %v1650 = vpop.f32.mrf.mxu0
  %v1651 = vadd.f32 %v1281, %v1650
  %v1652 = vand.u32 %v183, 4294901760
  %v1653 = vsub.f32 %v183, %v1652
  %v1654 = vand.u32 %v1653, 4294901760
  %1655 = vmatmul.f32.gmra.mxu0 %v1654
  %v1656 = vpop.f32.mrf.mxu0
  %v1657 = vadd.f32 %v1286, %v1656
  %v1658 = vand.u32 %v186, 4294901760
  %v1659 = vsub.f32 %v186, %v1658
  %v1660 = vand.u32 %v1659, 4294901760
  %1661 = vmatmul.f32.gmra.mxu0 %v1660
  %v1662 = vpop.f32.mrf.mxu0
  %v1663 = vadd.f32 %v1291, %v1662
  %v1664 = vand.u32 %v189, 4294901760
  %v1665 = vsub.f32 %v189, %v1664
  %v1666 = vand.u32 %v1665, 4294901760
  %1667 = vmatmul.f32.gmra.mxu0 %v1666
  %v1668 = vpop.f32.mrf.mxu0
  %v1669 = vadd.f32 %v1296, %v1668
  %v1670 = vand.u32 %v192, 4294901760
  %v1671 = vsub.f32 %v192, %v1670
  %v1672 = vand.u32 %v1671, 4294901760
  %1673 = vmatmul.f32.gmra.mxu0 %v1672
  %v1674 = vpop.f32.mrf.mxu0
  %v1675 = vadd.f32 %v1301, %v1674
  %v1676 = vand.u32 %v195, 4294901760
  %v1677 = vsub.f32 %v195, %v1676
  %v1678 = vand.u32 %v1677, 4294901760
  %1679 = vmatmul.f32.gmra.mxu0 %v1678
  %v1680 = vpop.f32.mrf.mxu0
  %v1681 = vadd.f32 %v1306, %v1680
  %v1682 = vand.u32 %v198, 4294901760
  %v1683 = vsub.f32 %v198, %v1682
  %v1684 = vand.u32 %v1683, 4294901760
  %1685 = vmatmul.f32.gmra.mxu0 %v1684
  %v1686 = vpop.f32.mrf.mxu0
  %v1687 = vadd.f32 %v1311, %v1686
  %v1688 = vand.u32 %v201, 4294901760
  %v1689 = vsub.f32 %v201, %v1688
  %v1690 = vand.u32 %v1689, 4294901760
  %1691 = vmatmul.f32.gmra.mxu0 %v1690
  %v1692 = vpop.f32.mrf.mxu0
  %v1693 = vadd.f32 %v1316, %v1692
  %v1694 = vand.u32 %v204, 4294901760
  %v1695 = vsub.f32 %v204, %v1694
  %v1696 = vand.u32 %v1695, 4294901760
  %1697 = vmatmul.f32.gmra.mxu0 %v1696
  %v1698 = vpop.f32.mrf.mxu0
  %v1699 = vadd.f32 %v1321, %v1698
  %v1700 = vand.u32 %v207, 4294901760
  %v1701 = vsub.f32 %v207, %v1700
  %v1702 = vand.u32 %v1701, 4294901760
  %1703 = vmatmul.f32.gmra.mxu0 %v1702
  %v1704 = vpop.f32.mrf.mxu0
  %v1705 = vadd.f32 %v1326, %v1704
  %v1706 = vand.u32 %v210, 4294901760
  %v1707 = vsub.f32 %v210, %v1706
  %v1708 = vand.u32 %v1707, 4294901760
  %1709 = vmatmul.f32.gmra.mxu0 %v1708
  %v1710 = vpop.f32.mrf.mxu0
  %v1711 = vadd.f32 %v1331, %v1710
  %v1712 = vand.u32 %v213, 4294901760
  %v1713 = vsub.f32 %v213, %v1712
  %v1714 = vand.u32 %v1713, 4294901760
  %1715 = vmatmul.f32.gmra.mxu0 %v1714
  %v1716 = vpop.f32.mrf.mxu0
  %v1717 = vadd.f32 %v1336, %v1716
  %v1718 = vand.u32 %v216, 4294901760
  %v1719 = vsub.f32 %v216, %v1718
  %v1720 = vand.u32 %v1719, 4294901760
  %1721 = vmatmul.f32.gmra.mxu0 %v1720
  %v1722 = vpop.f32.mrf.mxu0
  %v1723 = vadd.f32 %v1341, %v1722
  %v1724 = vand.u32 %v219, 4294901760
  %v1725 = vsub.f32 %v219, %v1724
  %v1726 = vand.u32 %v1725, 4294901760
  %1727 = vmatmul.f32.gmra.mxu0 %v1726
  %v1728 = vpop.f32.mrf.mxu0
  %v1729 = vadd.f32 %v1346, %v1728
  %v1730 = vand.u32 %v222, 4294901760
  %v1731 = vsub.f32 %v222, %v1730
  %v1732 = vand.u32 %v1731, 4294901760
  %1733 = vmatmul.f32.gmra.mxu0 %v1732
  %v1734 = vpop.f32.mrf.mxu0
  %v1735 = vadd.f32 %v1351, %v1734
  %v1736 = vand.u32 %v225, 4294901760
  %v1737 = vsub.f32 %v225, %v1736
  %v1738 = vand.u32 %v1737, 4294901760
  %1739 = vmatmul.f32.gmra.mxu0 %v1738
  %v1740 = vpop.f32.mrf.mxu0
  %v1741 = vadd.f32 %v1356, %v1740
  %v1742 = vand.u32 %v228, 4294901760
  %v1743 = vsub.f32 %v228, %v1742
  %v1744 = vand.u32 %v1743, 4294901760
  %1745 = vmatmul.f32.gmra.mxu0 %v1744
  %v1746 = vpop.f32.mrf.mxu0
  %v1747 = vadd.f32 %v1361, %v1746
  %v1748 = vand.u32 %v231, 4294901760
  %v1749 = vsub.f32 %v231, %v1748
  %v1750 = vand.u32 %v1749, 4294901760
  %1751 = vmatmul.f32.gmra.mxu0 %v1750
  %v1752 = vpop.f32.mrf.mxu0
  %v1753 = vadd.f32 %v1366, %v1752
  %v1754 = vand.u32 %v234, 4294901760
  %v1755 = vsub.f32 %v234, %v1754
  %v1756 = vand.u32 %v1755, 4294901760
  %1757 = vmatmul.f32.gmra.mxu0 %v1756
  %v1758 = vpop.f32.mrf.mxu0
  %v1759 = vadd.f32 %v1371, %v1758
  %v1760 = vand.u32 %v237, 4294901760
  %v1761 = vsub.f32 %v237, %v1760
  %v1762 = vand.u32 %v1761, 4294901760
  %1763 = vmatmul.f32.gmra.mxu0 %v1762
  %v1764 = vpop.f32.mrf.mxu0
  %v1765 = vadd.f32 %v1376, %v1764
  %v1766 = vand.u32 %v240, 4294901760
  %v1767 = vsub.f32 %v240, %v1766
  %v1768 = vand.u32 %v1767, 4294901760
  %1769 = vmatmul.f32.gmra.mxu0 %v1768
  %v1770 = vpop.f32.mrf.mxu0
  %v1771 = vadd.f32 %v1381, %v1770
  %v1772 = vand.u32 %v243, 4294901760
  %v1773 = vsub.f32 %v243, %v1772
  %v1774 = vand.u32 %v1773, 4294901760
  %1775 = vmatmul.f32.gmra.mxu0 %v1774
  %v1776 = vpop.f32.mrf.mxu0
  %v1777 = vadd.f32 %v1386, %v1776
  %v1778 = vand.u32 %v246, 4294901760
  %v1779 = vsub.f32 %v246, %v1778
  %v1780 = vand.u32 %v1779, 4294901760
  %1781 = vmatmul.f32.gmra.mxu0 %v1780
  %v1782 = vpop.f32.mrf.mxu0
  %v1783 = vadd.f32 %v1391, %v1782
  %v1784 = vand.u32 %v249, 4294901760
  %v1785 = vsub.f32 %v249, %v1784
  %v1786 = vand.u32 %v1785, 4294901760
  %1787 = vmatmul.f32.gmra.mxu0 %v1786
  %v1788 = vpop.f32.mrf.mxu0
  %v1789 = vadd.f32 %v1396, %v1788
  %v1790 = vand.u32 %v252, 4294901760
  %v1791 = vsub.f32 %v252, %v1790
  %v1792 = vand.u32 %v1791, 4294901760
  %1793 = vmatmul.f32.gmra.mxu0 %v1792
  %v1794 = vpop.f32.mrf.mxu0
  %v1795 = vadd.f32 %v1401, %v1794
  %v1796 = vand.u32 %v255, 4294901760
  %v1797 = vsub.f32 %v255, %v1796
  %v1798 = vand.u32 %v1797, 4294901760
  %1799 = vmatmul.f32.gmra.mxu0 %v1798
  %v1800 = vpop.f32.mrf.mxu0
  %v1801 = vadd.f32 %v1406, %v1800
  %v1802 = vand.u32 %v258, 4294901760
  %v1803 = vsub.f32 %v258, %v1802
  %v1804 = vand.u32 %v1803, 4294901760
  %1805 = vmatmul.f32.gmra.mxu0 %v1804
  %v1806 = vpop.f32.mrf.mxu0
  %v1807 = vadd.f32 %v1411, %v1806
  %v1808 = vand.u32 %v261, 4294901760
  %v1809 = vsub.f32 %v261, %v1808
  %v1810 = vand.u32 %v1809, 4294901760
  %1811 = vmatmul.f32.gmra.mxu0 %v1810
  %v1812 = vpop.f32.mrf.mxu0
  %v1813 = vadd.f32 %v1416, %v1812
  %v1814 = vand.u32 %v264, 4294901760
  %v1815 = vsub.f32 %v264, %v1814
  %v1816 = vand.u32 %v1815, 4294901760
  %1817 = vmatmul.f32.gmra.mxu0 %v1816
  %v1818 = vpop.f32.mrf.mxu0
  %v1819 = vadd.f32 %v1421, %v1818
  %v1820 = vand.u32 %v267, 4294901760
  %v1821 = vsub.f32 %v267, %v1820
  %v1822 = vand.u32 %v1821, 4294901760
  %1823 = vmatmul.f32.gmra.mxu0 %v1822
  %v1824 = vpop.f32.mrf.mxu0
  %v1825 = vadd.f32 %v1426, %v1824
  %v1826 = vand.u32 %v270, 4294901760
  %v1827 = vsub.f32 %v270, %v1826
  %v1828 = vand.u32 %v1827, 4294901760
  %1829 = vmatmul.f32.gmra.mxu0 %v1828
  %v1830 = vpop.f32.mrf.mxu0
  %v1831 = vadd.f32 %v1431, %v1830
  %v1832 = vand.u32 %v273, 4294901760
  %v1833 = vsub.f32 %v273, %v1832
  %v1834 = vand.u32 %v1833, 4294901760
  %1835 = vmatmul.f32.gmra.mxu0 %v1834
  %v1836 = vpop.f32.mrf.mxu0
  %v1837 = vadd.f32 %v1436, %v1836
  %v1838 = vand.u32 %v276, 4294901760
  %v1839 = vsub.f32 %v276, %v1838
  %v1840 = vand.u32 %v1839, 4294901760
  %1841 = vmatmul.f32.gmra.mxu0 %v1840
  %v1842 = vpop.f32.mrf.mxu0
  %v1843 = vadd.f32 %v1441, %v1842
  %v1844 = vand.u32 %v279, 4294901760
  %v1845 = vsub.f32 %v279, %v1844
  %v1846 = vand.u32 %v1845, 4294901760
  %1847 = vmatmul.f32.gmra.mxu0 %v1846
  %v1848 = vpop.f32.mrf.mxu0
  %v1849 = vadd.f32 %v1446, %v1848
  %v1850 = vand.u32 %v282, 4294901760
  %v1851 = vsub.f32 %v282, %v1850
  %v1852 = vand.u32 %v1851, 4294901760
  %1853 = vmatmul.f32.gmra.mxu0 %v1852
  %v1854 = vpop.f32.mrf.mxu0
  %v1855 = vadd.f32 %v1451, %v1854
  %v1856 = vand.u32 %v285, 4294901760
  %v1857 = vsub.f32 %v285, %v1856
  %v1858 = vand.u32 %v1857, 4294901760
  %1859 = vmatmul.f32.gmra.mxu0 %v1858
  %v1860 = vpop.f32.mrf.mxu0
  %v1861 = vadd.f32 %v1456, %v1860
  %1862 = vdwg.mxu0
  %1863 = vmatpush.msra.mxu0 0.0
  %1864 = vmatpush.msra.mxu0 0.0
  %1865 = vmatpush.msra.mxu0 0.0
  %1866 = vmatpush.msra.mxu0 0.0
  %1867 = vmatpush.msra.mxu0 0.0
  %1868 = vmatpush.msra.mxu0 0.0
  %1869 = vmatpush.msra.mxu0 0.0
  %1870 = vmatpush.msra.mxu0 0.0
  %1871 = vmatpush.msra.mxu0 0.0
  %1872 = vmatpush.msra.mxu0 0.0
  %1873 = vmatpush.msra.mxu0 0.0
  %1874 = vmatpush.msra.mxu0 0.0
  %v1875 = vand.u32 %v89, 4294901760
  %v1876 = vsub.f32 %v89, %v1875
  %v1877 = vand.u32 %v1876, 4294901760
  %1878 = vmatpush.msra.mxu0 %v1877
  %v1879 = vand.u32 %v88, 4294901760
  %v1880 = vsub.f32 %v88, %v1879
  %v1881 = vand.u32 %v1880, 4294901760
  %1882 = vmatpush.msra.mxu0 %v1881
  %v1883 = vand.u32 %v87, 4294901760
  %v1884 = vsub.f32 %v87, %v1883
  %v1885 = vand.u32 %v1884, 4294901760
  %1886 = vmatpush.msra.mxu0 %v1885
  %v1887 = vand.u32 %v86, 4294901760
  %v1888 = vsub.f32 %v86, %v1887
  %v1889 = vand.u32 %v1888, 4294901760
  %1890 = vmatpush.msra.mxu0 %v1889
  %v1891 = vand.u32 %v96, 4294901760
  %1892 = vmatmul.f32.gmra.mxu0 %v1891
  %v1893 = vpop.f32.mrf.mxu0
  %v1894 = vadd.f32 %v1483, %v1893
  %v1895 = vand.u32 %v99, 4294901760
  %1896 = vmatmul.f32.gmra.mxu0 %v1895
  %v1897 = vpop.f32.mrf.mxu0
  %v1898 = vadd.f32 %v1489, %v1897
  %v1899 = vand.u32 %v102, 4294901760
  %1900 = vmatmul.f32.gmra.mxu0 %v1899
  %v1901 = vpop.f32.mrf.mxu0
  %v1902 = vadd.f32 %v1495, %v1901
  %v1903 = vand.u32 %v105, 4294901760
  %1904 = vmatmul.f32.gmra.mxu0 %v1903
  %v1905 = vpop.f32.mrf.mxu0
  %v1906 = vadd.f32 %v1501, %v1905
  %v1907 = vand.u32 %v108, 4294901760
  %1908 = vmatmul.f32.gmra.mxu0 %v1907
  %v1909 = vpop.f32.mrf.mxu0
  %v1910 = vadd.f32 %v1507, %v1909
  %v1911 = vand.u32 %v111, 4294901760
  %1912 = vmatmul.f32.gmra.mxu0 %v1911
  %v1913 = vpop.f32.mrf.mxu0
  %v1914 = vadd.f32 %v1513, %v1913
  %v1915 = vand.u32 %v114, 4294901760
  %1916 = vmatmul.f32.gmra.mxu0 %v1915
  %v1917 = vpop.f32.mrf.mxu0
  %v1918 = vadd.f32 %v1519, %v1917
  %v1919 = vand.u32 %v117, 4294901760
  %1920 = vmatmul.f32.gmra.mxu0 %v1919
  %v1921 = vpop.f32.mrf.mxu0
  %v1922 = vadd.f32 %v1525, %v1921
  %v1923 = vand.u32 %v120, 4294901760
  %1924 = vmatmul.f32.gmra.mxu0 %v1923
  %v1925 = vpop.f32.mrf.mxu0
  %v1926 = vadd.f32 %v1531, %v1925
  %v1927 = vand.u32 %v123, 4294901760
  %1928 = vmatmul.f32.gmra.mxu0 %v1927
  %v1929 = vpop.f32.mrf.mxu0
  %v1930 = vadd.f32 %v1537, %v1929
  %v1931 = vand.u32 %v126, 4294901760
  %1932 = vmatmul.f32.gmra.mxu0 %v1931
  %v1933 = vpop.f32.mrf.mxu0
  %v1934 = vadd.f32 %v1543, %v1933
  %v1935 = vand.u32 %v129, 4294901760
  %1936 = vmatmul.f32.gmra.mxu0 %v1935
  %v1937 = vpop.f32.mrf.mxu0
  %v1938 = vadd.f32 %v1549, %v1937
  %v1939 = vand.u32 %v132, 4294901760
  %1940 = vmatmul.f32.gmra.mxu0 %v1939
  %v1941 = vpop.f32.mrf.mxu0
  %v1942 = vadd.f32 %v1555, %v1941
  %v1943 = vand.u32 %v135, 4294901760
  %1944 = vmatmul.f32.gmra.mxu0 %v1943
  %v1945 = vpop.f32.mrf.mxu0
  %v1946 = vadd.f32 %v1561, %v1945
  %v1947 = vand.u32 %v138, 4294901760
  %1948 = vmatmul.f32.gmra.mxu0 %v1947
  %v1949 = vpop.f32.mrf.mxu0
  %v1950 = vadd.f32 %v1567, %v1949
  %v1951 = vand.u32 %v141, 4294901760
  %1952 = vmatmul.f32.gmra.mxu0 %v1951
  %v1953 = vpop.f32.mrf.mxu0
  %v1954 = vadd.f32 %v1573, %v1953
  %v1955 = vand.u32 %v144, 4294901760
  %1956 = vmatmul.f32.gmra.mxu0 %v1955
  %v1957 = vpop.f32.mrf.mxu0
  %v1958 = vadd.f32 %v1579, %v1957
  %v1959 = vand.u32 %v147, 4294901760
  %1960 = vmatmul.f32.gmra.mxu0 %v1959
  %v1961 = vpop.f32.mrf.mxu0
  %v1962 = vadd.f32 %v1585, %v1961
  %v1963 = vand.u32 %v150, 4294901760
  %1964 = vmatmul.f32.gmra.mxu0 %v1963
  %v1965 = vpop.f32.mrf.mxu0
  %v1966 = vadd.f32 %v1591, %v1965
  %v1967 = vand.u32 %v153, 4294901760
  %1968 = vmatmul.f32.gmra.mxu0 %v1967
  %v1969 = vpop.f32.mrf.mxu0
  %v1970 = vadd.f32 %v1597, %v1969
  %v1971 = vand.u32 %v156, 4294901760
  %1972 = vmatmul.f32.gmra.mxu0 %v1971
  %v1973 = vpop.f32.mrf.mxu0
  %v1974 = vadd.f32 %v1603, %v1973
  %v1975 = vand.u32 %v159, 4294901760
  %1976 = vmatmul.f32.gmra.mxu0 %v1975
  %v1977 = vpop.f32.mrf.mxu0
  %v1978 = vadd.f32 %v1609, %v1977
  %v1979 = vand.u32 %v162, 4294901760
  %1980 = vmatmul.f32.gmra.mxu0 %v1979
  %v1981 = vpop.f32.mrf.mxu0
  %v1982 = vadd.f32 %v1615, %v1981
  %v1983 = vand.u32 %v165, 4294901760
  %1984 = vmatmul.f32.gmra.mxu0 %v1983
  %v1985 = vpop.f32.mrf.mxu0
  %v1986 = vadd.f32 %v1621, %v1985
  %v1987 = vand.u32 %v168, 4294901760
  %1988 = vmatmul.f32.gmra.mxu0 %v1987
  %v1989 = vpop.f32.mrf.mxu0
  %v1990 = vadd.f32 %v1627, %v1989
  %v1991 = vand.u32 %v171, 4294901760
  %1992 = vmatmul.f32.gmra.mxu0 %v1991
  %v1993 = vpop.f32.mrf.mxu0
  %v1994 = vadd.f32 %v1633, %v1993
  %v1995 = vand.u32 %v174, 4294901760
  %1996 = vmatmul.f32.gmra.mxu0 %v1995
  %v1997 = vpop.f32.mrf.mxu0
  %v1998 = vadd.f32 %v1639, %v1997
  %v1999 = vand.u32 %v177, 4294901760
  %2000 = vmatmul.f32.gmra.mxu0 %v1999
  %v2001 = vpop.f32.mrf.mxu0
  %v2002 = vadd.f32 %v1645, %v2001
  %v2003 = vand.u32 %v180, 4294901760
  %2004 = vmatmul.f32.gmra.mxu0 %v2003
  %v2005 = vpop.f32.mrf.mxu0
  %v2006 = vadd.f32 %v1651, %v2005
  %v2007 = vand.u32 %v183, 4294901760
  %2008 = vmatmul.f32.gmra.mxu0 %v2007
  %v2009 = vpop.f32.mrf.mxu0
  %v2010 = vadd.f32 %v1657, %v2009
  %v2011 = vand.u32 %v186, 4294901760
  %2012 = vmatmul.f32.gmra.mxu0 %v2011
  %v2013 = vpop.f32.mrf.mxu0
  %v2014 = vadd.f32 %v1663, %v2013
  %v2015 = vand.u32 %v189, 4294901760
  %2016 = vmatmul.f32.gmra.mxu0 %v2015
  %v2017 = vpop.f32.mrf.mxu0
  %v2018 = vadd.f32 %v1669, %v2017
  %v2019 = vand.u32 %v192, 4294901760
  %2020 = vmatmul.f32.gmra.mxu0 %v2019
  %v2021 = vpop.f32.mrf.mxu0
  %v2022 = vadd.f32 %v1675, %v2021
  %v2023 = vand.u32 %v195, 4294901760
  %2024 = vmatmul.f32.gmra.mxu0 %v2023
  %v2025 = vpop.f32.mrf.mxu0
  %v2026 = vadd.f32 %v1681, %v2025
  %v2027 = vand.u32 %v198, 4294901760
  %2028 = vmatmul.f32.gmra.mxu0 %v2027
  %v2029 = vpop.f32.mrf.mxu0
  %v2030 = vadd.f32 %v1687, %v2029
  %v2031 = vand.u32 %v201, 4294901760
  %2032 = vmatmul.f32.gmra.mxu0 %v2031
  %v2033 = vpop.f32.mrf.mxu0
  %v2034 = vadd.f32 %v1693, %v2033
  %v2035 = vand.u32 %v204, 4294901760
  %2036 = vmatmul.f32.gmra.mxu0 %v2035
  %v2037 = vpop.f32.mrf.mxu0
  %v2038 = vadd.f32 %v1699, %v2037
  %v2039 = vand.u32 %v207, 4294901760
  %2040 = vmatmul.f32.gmra.mxu0 %v2039
  %v2041 = vpop.f32.mrf.mxu0
  %v2042 = vadd.f32 %v1705, %v2041
  %v2043 = vand.u32 %v210, 4294901760
  %2044 = vmatmul.f32.gmra.mxu0 %v2043
  %v2045 = vpop.f32.mrf.mxu0
  %v2046 = vadd.f32 %v1711, %v2045
  %v2047 = vand.u32 %v213, 4294901760
  %2048 = vmatmul.f32.gmra.mxu0 %v2047
  %v2049 = vpop.f32.mrf.mxu0
  %v2050 = vadd.f32 %v1717, %v2049
  %v2051 = vand.u32 %v216, 4294901760
  %2052 = vmatmul.f32.gmra.mxu0 %v2051
  %v2053 = vpop.f32.mrf.mxu0
  %v2054 = vadd.f32 %v1723, %v2053
  %v2055 = vand.u32 %v219, 4294901760
  %2056 = vmatmul.f32.gmra.mxu0 %v2055
  %v2057 = vpop.f32.mrf.mxu0
  %v2058 = vadd.f32 %v1729, %v2057
  %v2059 = vand.u32 %v222, 4294901760
  %2060 = vmatmul.f32.gmra.mxu0 %v2059
  %v2061 = vpop.f32.mrf.mxu0
  %v2062 = vadd.f32 %v1735, %v2061
  %v2063 = vand.u32 %v225, 4294901760
  %2064 = vmatmul.f32.gmra.mxu0 %v2063
  %v2065 = vpop.f32.mrf.mxu0
  %v2066 = vadd.f32 %v1741, %v2065
  %v2067 = vand.u32 %v228, 4294901760
  %2068 = vmatmul.f32.gmra.mxu0 %v2067
  %v2069 = vpop.f32.mrf.mxu0
  %v2070 = vadd.f32 %v1747, %v2069
  %v2071 = vand.u32 %v231, 4294901760
  %2072 = vmatmul.f32.gmra.mxu0 %v2071
  %v2073 = vpop.f32.mrf.mxu0
  %v2074 = vadd.f32 %v1753, %v2073
  %v2075 = vand.u32 %v234, 4294901760
  %2076 = vmatmul.f32.gmra.mxu0 %v2075
  %v2077 = vpop.f32.mrf.mxu0
  %v2078 = vadd.f32 %v1759, %v2077
  %v2079 = vand.u32 %v237, 4294901760
  %2080 = vmatmul.f32.gmra.mxu0 %v2079
  %v2081 = vpop.f32.mrf.mxu0
  %v2082 = vadd.f32 %v1765, %v2081
  %v2083 = vand.u32 %v240, 4294901760
  %2084 = vmatmul.f32.gmra.mxu0 %v2083
  %v2085 = vpop.f32.mrf.mxu0
  %v2086 = vadd.f32 %v1771, %v2085
  %v2087 = vand.u32 %v243, 4294901760
  %2088 = vmatmul.f32.gmra.mxu0 %v2087
  %v2089 = vpop.f32.mrf.mxu0
  %v2090 = vadd.f32 %v1777, %v2089
  %v2091 = vand.u32 %v246, 4294901760
  %2092 = vmatmul.f32.gmra.mxu0 %v2091
  %v2093 = vpop.f32.mrf.mxu0
  %v2094 = vadd.f32 %v1783, %v2093
  %v2095 = vand.u32 %v249, 4294901760
  %2096 = vmatmul.f32.gmra.mxu0 %v2095
  %v2097 = vpop.f32.mrf.mxu0
  %v2098 = vadd.f32 %v1789, %v2097
  %v2099 = vand.u32 %v252, 4294901760
  %2100 = vmatmul.f32.gmra.mxu0 %v2099
  %v2101 = vpop.f32.mrf.mxu0
  %v2102 = vadd.f32 %v1795, %v2101
  %v2103 = vand.u32 %v255, 4294901760
  %2104 = vmatmul.f32.gmra.mxu0 %v2103
  %v2105 = vpop.f32.mrf.mxu0
  %v2106 = vadd.f32 %v1801, %v2105
  %v2107 = vand.u32 %v258, 4294901760
  %2108 = vmatmul.f32.gmra.mxu0 %v2107
  %v2109 = vpop.f32.mrf.mxu0
  %v2110 = vadd.f32 %v1807, %v2109
  %v2111 = vand.u32 %v261, 4294901760
  %2112 = vmatmul.f32.gmra.mxu0 %v2111
  %v2113 = vpop.f32.mrf.mxu0
  %v2114 = vadd.f32 %v1813, %v2113
  %v2115 = vand.u32 %v264, 4294901760
  %2116 = vmatmul.f32.gmra.mxu0 %v2115
  %v2117 = vpop.f32.mrf.mxu0
  %v2118 = vadd.f32 %v1819, %v2117
  %v2119 = vand.u32 %v267, 4294901760
  %2120 = vmatmul.f32.gmra.mxu0 %v2119
  %v2121 = vpop.f32.mrf.mxu0
  %v2122 = vadd.f32 %v1825, %v2121
  %v2123 = vand.u32 %v270, 4294901760
  %2124 = vmatmul.f32.gmra.mxu0 %v2123
  %v2125 = vpop.f32.mrf.mxu0
  %v2126 = vadd.f32 %v1831, %v2125
  %v2127 = vand.u32 %v273, 4294901760
  %2128 = vmatmul.f32.gmra.mxu0 %v2127
  %v2129 = vpop.f32.mrf.mxu0
  %v2130 = vadd.f32 %v1837, %v2129
  %v2131 = vand.u32 %v276, 4294901760
  %2132 = vmatmul.f32.gmra.mxu0 %v2131
  %v2133 = vpop.f32.mrf.mxu0
  %v2134 = vadd.f32 %v1843, %v2133
  %v2135 = vand.u32 %v279, 4294901760
  %2136 = vmatmul.f32.gmra.mxu0 %v2135
  %v2137 = vpop.f32.mrf.mxu0
  %v2138 = vadd.f32 %v1849, %v2137
  %v2139 = vand.u32 %v282, 4294901760
  %2140 = vmatmul.f32.gmra.mxu0 %v2139
  %v2141 = vpop.f32.mrf.mxu0
  %v2142 = vadd.f32 %v1855, %v2141
  %v2143 = vand.u32 %v285, 4294901760
  %2144 = vmatmul.f32.gmra.mxu0 %v2143
  %v2145 = vpop.f32.mrf.mxu0
  %v2146 = vadd.f32 %v1861, %v2145
  %2147 = vdwg.mxu0
  %2148 = vmatpush.msra.mxu0 0.0
  %2149 = vmatpush.msra.mxu0 0.0
  %2150 = vmatpush.msra.mxu0 0.0
  %2151 = vmatpush.msra.mxu0 0.0
  %2152 = vmatpush.msra.mxu0 0.0
  %2153 = vmatpush.msra.mxu0 0.0
  %2154 = vmatpush.msra.mxu0 0.0
  %2155 = vmatpush.msra.mxu0 0.0
  %2156 = vmatpush.msra.mxu0 0.0
  %2157 = vmatpush.msra.mxu0 0.0
  %2158 = vmatpush.msra.mxu0 0.0
  %2159 = vmatpush.msra.mxu0 0.0
  %v2160 = vand.u32 %v89, 4294901760
  %2161 = vmatpush.msra.mxu0 %v2160
  %v2162 = vand.u32 %v88, 4294901760
  %2163 = vmatpush.msra.mxu0 %v2162
  %v2164 = vand.u32 %v87, 4294901760
  %2165 = vmatpush.msra.mxu0 %v2164
  %v2166 = vand.u32 %v86, 4294901760
  %2167 = vmatpush.msra.mxu0 %v2166
  %v2168 = vand.u32 %v96, 4294901760
  %2169 = vmatmul.f32.gmra.mxu0 %v2168
  %v2170 = vpop.f32.mrf.mxu0
  %v2171 = vadd.f32 %v1894, %v2170
  %v2172 = vand.u32 %v99, 4294901760
  %2173 = vmatmul.f32.gmra.mxu0 %v2172
  %v2174 = vpop.f32.mrf.mxu0
  %v2175 = vadd.f32 %v1898, %v2174
  %v2176 = vand.u32 %v102, 4294901760
  %2177 = vmatmul.f32.gmra.mxu0 %v2176
  %v2178 = vpop.f32.mrf.mxu0
  %v2179 = vadd.f32 %v1902, %v2178
  %v2180 = vand.u32 %v105, 4294901760
  %2181 = vmatmul.f32.gmra.mxu0 %v2180
  %v2182 = vpop.f32.mrf.mxu0
  %v2183 = vadd.f32 %v1906, %v2182
  %v2184 = vand.u32 %v108, 4294901760
  %2185 = vmatmul.f32.gmra.mxu0 %v2184
  %v2186 = vpop.f32.mrf.mxu0
  %v2187 = vadd.f32 %v1910, %v2186
  %v2188 = vand.u32 %v111, 4294901760
  %2189 = vmatmul.f32.gmra.mxu0 %v2188
  %v2190 = vpop.f32.mrf.mxu0
  %v2191 = vadd.f32 %v1914, %v2190
  %v2192 = vand.u32 %v114, 4294901760
  %2193 = vmatmul.f32.gmra.mxu0 %v2192
  %v2194 = vpop.f32.mrf.mxu0
  %v2195 = vadd.f32 %v1918, %v2194
  %v2196 = vand.u32 %v117, 4294901760
  %2197 = vmatmul.f32.gmra.mxu0 %v2196
  %v2198 = vpop.f32.mrf.mxu0
  %v2199 = vadd.f32 %v1922, %v2198
  %v2200 = vand.u32 %v120, 4294901760
  %2201 = vmatmul.f32.gmra.mxu0 %v2200
  %v2202 = vpop.f32.mrf.mxu0
  %v2203 = vadd.f32 %v1926, %v2202
  %v2204 = vand.u32 %v123, 4294901760
  %2205 = vmatmul.f32.gmra.mxu0 %v2204
  %v2206 = vpop.f32.mrf.mxu0
  %v2207 = vadd.f32 %v1930, %v2206
  %v2208 = vand.u32 %v126, 4294901760
  %2209 = vmatmul.f32.gmra.mxu0 %v2208
  %v2210 = vpop.f32.mrf.mxu0
  %v2211 = vadd.f32 %v1934, %v2210
  %v2212 = vand.u32 %v129, 4294901760
  %2213 = vmatmul.f32.gmra.mxu0 %v2212
  %v2214 = vpop.f32.mrf.mxu0
  %v2215 = vadd.f32 %v1938, %v2214
  %v2216 = vand.u32 %v132, 4294901760
  %2217 = vmatmul.f32.gmra.mxu0 %v2216
  %v2218 = vpop.f32.mrf.mxu0
  %v2219 = vadd.f32 %v1942, %v2218
  %v2220 = vand.u32 %v135, 4294901760
  %2221 = vmatmul.f32.gmra.mxu0 %v2220
  %v2222 = vpop.f32.mrf.mxu0
  %v2223 = vadd.f32 %v1946, %v2222
  %v2224 = vand.u32 %v138, 4294901760
  %2225 = vmatmul.f32.gmra.mxu0 %v2224
  %v2226 = vpop.f32.mrf.mxu0
  %v2227 = vadd.f32 %v1950, %v2226
  %v2228 = vand.u32 %v141, 4294901760
  %2229 = vmatmul.f32.gmra.mxu0 %v2228
  %v2230 = vpop.f32.mrf.mxu0
  %v2231 = vadd.f32 %v1954, %v2230
  %v2232 = vand.u32 %v144, 4294901760
  %2233 = vmatmul.f32.gmra.mxu0 %v2232
  %v2234 = vpop.f32.mrf.mxu0
  %v2235 = vadd.f32 %v1958, %v2234
  %v2236 = vand.u32 %v147, 4294901760
  %2237 = vmatmul.f32.gmra.mxu0 %v2236
  %v2238 = vpop.f32.mrf.mxu0
  %v2239 = vadd.f32 %v1962, %v2238
  %v2240 = vand.u32 %v150, 4294901760
  %2241 = vmatmul.f32.gmra.mxu0 %v2240
  %v2242 = vpop.f32.mrf.mxu0
  %v2243 = vadd.f32 %v1966, %v2242
  %v2244 = vand.u32 %v153, 4294901760
  %2245 = vmatmul.f32.gmra.mxu0 %v2244
  %v2246 = vpop.f32.mrf.mxu0
  %v2247 = vadd.f32 %v1970, %v2246
  %v2248 = vand.u32 %v156, 4294901760
  %2249 = vmatmul.f32.gmra.mxu0 %v2248
  %v2250 = vpop.f32.mrf.mxu0
  %v2251 = vadd.f32 %v1974, %v2250
  %v2252 = vand.u32 %v159, 4294901760
  %2253 = vmatmul.f32.gmra.mxu0 %v2252
  %v2254 = vpop.f32.mrf.mxu0
  %v2255 = vadd.f32 %v1978, %v2254
  %v2256 = vand.u32 %v162, 4294901760
  %2257 = vmatmul.f32.gmra.mxu0 %v2256
  %v2258 = vpop.f32.mrf.mxu0
  %v2259 = vadd.f32 %v1982, %v2258
  %v2260 = vand.u32 %v165, 4294901760
  %2261 = vmatmul.f32.gmra.mxu0 %v2260
  %v2262 = vpop.f32.mrf.mxu0
  %v2263 = vadd.f32 %v1986, %v2262
  %v2264 = vand.u32 %v168, 4294901760
  %2265 = vmatmul.f32.gmra.mxu0 %v2264
  %v2266 = vpop.f32.mrf.mxu0
  %v2267 = vadd.f32 %v1990, %v2266
  %v2268 = vand.u32 %v171, 4294901760
  %2269 = vmatmul.f32.gmra.mxu0 %v2268
  %v2270 = vpop.f32.mrf.mxu0
  %v2271 = vadd.f32 %v1994, %v2270
  %v2272 = vand.u32 %v174, 4294901760
  %2273 = vmatmul.f32.gmra.mxu0 %v2272
  %v2274 = vpop.f32.mrf.mxu0
  %v2275 = vadd.f32 %v1998, %v2274
  %v2276 = vand.u32 %v177, 4294901760
  %2277 = vmatmul.f32.gmra.mxu0 %v2276
  %v2278 = vpop.f32.mrf.mxu0
  %v2279 = vadd.f32 %v2002, %v2278
  %v2280 = vand.u32 %v180, 4294901760
  %2281 = vmatmul.f32.gmra.mxu0 %v2280
  %v2282 = vpop.f32.mrf.mxu0
  %v2283 = vadd.f32 %v2006, %v2282
  %v2284 = vand.u32 %v183, 4294901760
  %2285 = vmatmul.f32.gmra.mxu0 %v2284
  %v2286 = vpop.f32.mrf.mxu0
  %v2287 = vadd.f32 %v2010, %v2286
  %v2288 = vand.u32 %v186, 4294901760
  %2289 = vmatmul.f32.gmra.mxu0 %v2288
  %v2290 = vpop.f32.mrf.mxu0
  %v2291 = vadd.f32 %v2014, %v2290
  %v2292 = vand.u32 %v189, 4294901760
  %2293 = vmatmul.f32.gmra.mxu0 %v2292
  %v2294 = vpop.f32.mrf.mxu0
  %v2295 = vadd.f32 %v2018, %v2294
  %v2296 = vand.u32 %v192, 4294901760
  %2297 = vmatmul.f32.gmra.mxu0 %v2296
  %v2298 = vpop.f32.mrf.mxu0
  %v2299 = vadd.f32 %v2022, %v2298
  %v2300 = vand.u32 %v195, 4294901760
  %2301 = vmatmul.f32.gmra.mxu0 %v2300
  %v2302 = vpop.f32.mrf.mxu0
  %v2303 = vadd.f32 %v2026, %v2302
  %v2304 = vand.u32 %v198, 4294901760
  %2305 = vmatmul.f32.gmra.mxu0 %v2304
  %v2306 = vpop.f32.mrf.mxu0
  %v2307 = vadd.f32 %v2030, %v2306
  %v2308 = vand.u32 %v201, 4294901760
  %2309 = vmatmul.f32.gmra.mxu0 %v2308
  %v2310 = vpop.f32.mrf.mxu0
  %v2311 = vadd.f32 %v2034, %v2310
  %v2312 = vand.u32 %v204, 4294901760
  %2313 = vmatmul.f32.gmra.mxu0 %v2312
  %v2314 = vpop.f32.mrf.mxu0
  %v2315 = vadd.f32 %v2038, %v2314
  %v2316 = vand.u32 %v207, 4294901760
  %2317 = vmatmul.f32.gmra.mxu0 %v2316
  %v2318 = vpop.f32.mrf.mxu0
  %v2319 = vadd.f32 %v2042, %v2318
  %v2320 = vand.u32 %v210, 4294901760
  %2321 = vmatmul.f32.gmra.mxu0 %v2320
  %v2322 = vpop.f32.mrf.mxu0
  %v2323 = vadd.f32 %v2046, %v2322
  %v2324 = vand.u32 %v213, 4294901760
  %2325 = vmatmul.f32.gmra.mxu0 %v2324
  %v2326 = vpop.f32.mrf.mxu0
  %v2327 = vadd.f32 %v2050, %v2326
  %v2328 = vand.u32 %v216, 4294901760
  %2329 = vmatmul.f32.gmra.mxu0 %v2328
  %v2330 = vpop.f32.mrf.mxu0
  %v2331 = vadd.f32 %v2054, %v2330
  %v2332 = vand.u32 %v219, 4294901760
  %2333 = vmatmul.f32.gmra.mxu0 %v2332
  %v2334 = vpop.f32.mrf.mxu0
  %v2335 = vadd.f32 %v2058, %v2334
  %v2336 = vand.u32 %v222, 4294901760
  %2337 = vmatmul.f32.gmra.mxu0 %v2336
  %v2338 = vpop.f32.mrf.mxu0
  %v2339 = vadd.f32 %v2062, %v2338
  %v2340 = vand.u32 %v225, 4294901760
  %2341 = vmatmul.f32.gmra.mxu0 %v2340
  %v2342 = vpop.f32.mrf.mxu0
  %v2343 = vadd.f32 %v2066, %v2342
  %v2344 = vand.u32 %v228, 4294901760
  %2345 = vmatmul.f32.gmra.mxu0 %v2344
  %v2346 = vpop.f32.mrf.mxu0
  %v2347 = vadd.f32 %v2070, %v2346
  %v2348 = vand.u32 %v231, 4294901760
  %2349 = vmatmul.f32.gmra.mxu0 %v2348
  %v2350 = vpop.f32.mrf.mxu0
  %v2351 = vadd.f32 %v2074, %v2350
  %v2352 = vand.u32 %v234, 4294901760
  %2353 = vmatmul.f32.gmra.mxu0 %v2352
  %v2354 = vpop.f32.mrf.mxu0
  %v2355 = vadd.f32 %v2078, %v2354
  %v2356 = vand.u32 %v237, 4294901760
  %2357 = vmatmul.f32.gmra.mxu0 %v2356
  %v2358 = vpop.f32.mrf.mxu0
  %v2359 = vadd.f32 %v2082, %v2358
  %v2360 = vand.u32 %v240, 4294901760
  %2361 = vmatmul.f32.gmra.mxu0 %v2360
  %v2362 = vpop.f32.mrf.mxu0
  %v2363 = vadd.f32 %v2086, %v2362
  %v2364 = vand.u32 %v243, 4294901760
  %2365 = vmatmul.f32.gmra.mxu0 %v2364
  %v2366 = vpop.f32.mrf.mxu0
  %v2367 = vadd.f32 %v2090, %v2366
  %v2368 = vand.u32 %v246, 4294901760
  %2369 = vmatmul.f32.gmra.mxu0 %v2368
  %v2370 = vpop.f32.mrf.mxu0
  %v2371 = vadd.f32 %v2094, %v2370
  %v2372 = vand.u32 %v249, 4294901760
  %2373 = vmatmul.f32.gmra.mxu0 %v2372
  %v2374 = vpop.f32.mrf.mxu0
  %v2375 = vadd.f32 %v2098, %v2374
  %v2376 = vand.u32 %v252, 4294901760
  %2377 = vmatmul.f32.gmra.mxu0 %v2376
  %v2378 = vpop.f32.mrf.mxu0
  %v2379 = vadd.f32 %v2102, %v2378
  %v2380 = vand.u32 %v255, 4294901760
  %2381 = vmatmul.f32.gmra.mxu0 %v2380
  %v2382 = vpop.f32.mrf.mxu0
  %v2383 = vadd.f32 %v2106, %v2382
  %v2384 = vand.u32 %v258, 4294901760
  %2385 = vmatmul.f32.gmra.mxu0 %v2384
  %v2386 = vpop.f32.mrf.mxu0
  %v2387 = vadd.f32 %v2110, %v2386
  %v2388 = vand.u32 %v261, 4294901760
  %2389 = vmatmul.f32.gmra.mxu0 %v2388
  %v2390 = vpop.f32.mrf.mxu0
  %v2391 = vadd.f32 %v2114, %v2390
  %v2392 = vand.u32 %v264, 4294901760
  %2393 = vmatmul.f32.gmra.mxu0 %v2392
  %v2394 = vpop.f32.mrf.mxu0
  %v2395 = vadd.f32 %v2118, %v2394
  %v2396 = vand.u32 %v267, 4294901760
  %2397 = vmatmul.f32.gmra.mxu0 %v2396
  %v2398 = vpop.f32.mrf.mxu0
  %v2399 = vadd.f32 %v2122, %v2398
  %v2400 = vand.u32 %v270, 4294901760
  %2401 = vmatmul.f32.gmra.mxu0 %v2400
  %v2402 = vpop.f32.mrf.mxu0
  %v2403 = vadd.f32 %v2126, %v2402
  %v2404 = vand.u32 %v273, 4294901760
  %2405 = vmatmul.f32.gmra.mxu0 %v2404
  %v2406 = vpop.f32.mrf.mxu0
  %v2407 = vadd.f32 %v2130, %v2406
  %v2408 = vand.u32 %v276, 4294901760
  %2409 = vmatmul.f32.gmra.mxu0 %v2408
  %v2410 = vpop.f32.mrf.mxu0
  %v2411 = vadd.f32 %v2134, %v2410
  %v2412 = vand.u32 %v279, 4294901760
  %2413 = vmatmul.f32.gmra.mxu0 %v2412
  %v2414 = vpop.f32.mrf.mxu0
  %v2415 = vadd.f32 %v2138, %v2414
  %v2416 = vand.u32 %v282, 4294901760
  %2417 = vmatmul.f32.gmra.mxu0 %v2416
  %v2418 = vpop.f32.mrf.mxu0
  %v2419 = vadd.f32 %v2142, %v2418
  %v2420 = vand.u32 %v285, 4294901760
  %2421 = vmatmul.f32.gmra.mxu0 %v2420
  %v2422 = vpop.f32.mrf.mxu0
  %v2423 = vadd.f32 %v2146, %v2422
  %2424 = vdwg.mxu0
  %v2425 = vld [vmem:[%s3] sm:$0xff]
  %v2426 = vld [vmem:[%s3 + $0x8] sm:$0xff]
  %v2427 = vld [vmem:[%s3 + $0x10] sm:$0xff]
  %v2428 = vld [vmem:[%s3 + $0x18] sm:$0xff]
  %v2429 = vld [vmem:[%s4] sm:$0x1]
  %v2431 = vperm.slane %v2429, 0
  %2433 = vmatpush.msra.mxu0 0.0
  %2434 = vmatpush.msra.mxu0 0.0
  %2435 = vmatpush.msra.mxu0 0.0
  %2436 = vmatpush.msra.mxu0 0.0
  %2437 = vmatpush.msra.mxu0 0.0
  %2438 = vmatpush.msra.mxu0 0.0
  %2439 = vmatpush.msra.mxu0 0.0
  %2440 = vmatpush.msra.mxu0 0.0
  %2441 = vmatpush.msra.mxu0 0.0
  %2442 = vmatpush.msra.mxu0 0.0
  %2443 = vmatpush.msra.mxu0 0.0
  %2444 = vmatpush.msra.mxu0 0.0
  %v2445 = vand.u32 %v2428, 4294901760
  %2446 = vmatpush.msra.mxu0 %v2445
  %v2447 = vand.u32 %v2427, 4294901760
  %2448 = vmatpush.msra.mxu0 %v2447
  %v2449 = vand.u32 %v2426, 4294901760
  %2450 = vmatpush.msra.mxu0 %v2449
  %v2451 = vand.u32 %v2425, 4294901760
  %2452 = vmatpush.msra.mxu0 %v2451
  %v2453 = vand.u32 %v96, 4294901760
  %v2454 = vsub.f32 %v96, %v2453
  %v2455 = vand.u32 %v2454, 4294901760
  %v2456 = vsub.f32 %v2454, %v2455
  %v2457 = vand.u32 %v2456, 4294901760
  %2458 = vmatmul.f32.gmra.mxu0 %v2457
  %v2459 = vpop.f32.mrf.mxu0
  %v2460 = vadd.f32 %v2431, %v2459
  %v2461 = vand.u32 %v99, 4294901760
  %v2462 = vsub.f32 %v99, %v2461
  %v2463 = vand.u32 %v2462, 4294901760
  %v2464 = vsub.f32 %v2462, %v2463
  %v2465 = vand.u32 %v2464, 4294901760
  %2466 = vmatmul.f32.gmra.mxu0 %v2465
  %v2467 = vpop.f32.mrf.mxu0
  %v2468 = vadd.f32 %v2431, %v2467
  %v2469 = vand.u32 %v102, 4294901760
  %v2470 = vsub.f32 %v102, %v2469
  %v2471 = vand.u32 %v2470, 4294901760
  %v2472 = vsub.f32 %v2470, %v2471
  %v2473 = vand.u32 %v2472, 4294901760
  %2474 = vmatmul.f32.gmra.mxu0 %v2473
  %v2475 = vpop.f32.mrf.mxu0
  %v2476 = vadd.f32 %v2431, %v2475
  %v2477 = vand.u32 %v105, 4294901760
  %v2478 = vsub.f32 %v105, %v2477
  %v2479 = vand.u32 %v2478, 4294901760
  %v2480 = vsub.f32 %v2478, %v2479
  %v2481 = vand.u32 %v2480, 4294901760
  %2482 = vmatmul.f32.gmra.mxu0 %v2481
  %v2483 = vpop.f32.mrf.mxu0
  %v2484 = vadd.f32 %v2431, %v2483
  %v2485 = vand.u32 %v108, 4294901760
  %v2486 = vsub.f32 %v108, %v2485
  %v2487 = vand.u32 %v2486, 4294901760
  %v2488 = vsub.f32 %v2486, %v2487
  %v2489 = vand.u32 %v2488, 4294901760
  %2490 = vmatmul.f32.gmra.mxu0 %v2489
  %v2491 = vpop.f32.mrf.mxu0
  %v2492 = vadd.f32 %v2431, %v2491
  %v2493 = vand.u32 %v111, 4294901760
  %v2494 = vsub.f32 %v111, %v2493
  %v2495 = vand.u32 %v2494, 4294901760
  %v2496 = vsub.f32 %v2494, %v2495
  %v2497 = vand.u32 %v2496, 4294901760
  %2498 = vmatmul.f32.gmra.mxu0 %v2497
  %v2499 = vpop.f32.mrf.mxu0
  %v2500 = vadd.f32 %v2431, %v2499
  %v2501 = vand.u32 %v114, 4294901760
  %v2502 = vsub.f32 %v114, %v2501
  %v2503 = vand.u32 %v2502, 4294901760
  %v2504 = vsub.f32 %v2502, %v2503
  %v2505 = vand.u32 %v2504, 4294901760
  %2506 = vmatmul.f32.gmra.mxu0 %v2505
  %v2507 = vpop.f32.mrf.mxu0
  %v2508 = vadd.f32 %v2431, %v2507
  %v2509 = vand.u32 %v117, 4294901760
  %v2510 = vsub.f32 %v117, %v2509
  %v2511 = vand.u32 %v2510, 4294901760
  %v2512 = vsub.f32 %v2510, %v2511
  %v2513 = vand.u32 %v2512, 4294901760
  %2514 = vmatmul.f32.gmra.mxu0 %v2513
  %v2515 = vpop.f32.mrf.mxu0
  %v2516 = vadd.f32 %v2431, %v2515
  %v2517 = vand.u32 %v120, 4294901760
  %v2518 = vsub.f32 %v120, %v2517
  %v2519 = vand.u32 %v2518, 4294901760
  %v2520 = vsub.f32 %v2518, %v2519
  %v2521 = vand.u32 %v2520, 4294901760
  %2522 = vmatmul.f32.gmra.mxu0 %v2521
  %v2523 = vpop.f32.mrf.mxu0
  %v2524 = vadd.f32 %v2431, %v2523
  %v2525 = vand.u32 %v123, 4294901760
  %v2526 = vsub.f32 %v123, %v2525
  %v2527 = vand.u32 %v2526, 4294901760
  %v2528 = vsub.f32 %v2526, %v2527
  %v2529 = vand.u32 %v2528, 4294901760
  %2530 = vmatmul.f32.gmra.mxu0 %v2529
  %v2531 = vpop.f32.mrf.mxu0
  %v2532 = vadd.f32 %v2431, %v2531
  %v2533 = vand.u32 %v126, 4294901760
  %v2534 = vsub.f32 %v126, %v2533
  %v2535 = vand.u32 %v2534, 4294901760
  %v2536 = vsub.f32 %v2534, %v2535
  %v2537 = vand.u32 %v2536, 4294901760
  %2538 = vmatmul.f32.gmra.mxu0 %v2537
  %v2539 = vpop.f32.mrf.mxu0
  %v2540 = vadd.f32 %v2431, %v2539
  %v2541 = vand.u32 %v129, 4294901760
  %v2542 = vsub.f32 %v129, %v2541
  %v2543 = vand.u32 %v2542, 4294901760
  %v2544 = vsub.f32 %v2542, %v2543
  %v2545 = vand.u32 %v2544, 4294901760
  %2546 = vmatmul.f32.gmra.mxu0 %v2545
  %v2547 = vpop.f32.mrf.mxu0
  %v2548 = vadd.f32 %v2431, %v2547
  %v2549 = vand.u32 %v132, 4294901760
  %v2550 = vsub.f32 %v132, %v2549
  %v2551 = vand.u32 %v2550, 4294901760
  %v2552 = vsub.f32 %v2550, %v2551
  %v2553 = vand.u32 %v2552, 4294901760
  %2554 = vmatmul.f32.gmra.mxu0 %v2553
  %v2555 = vpop.f32.mrf.mxu0
  %v2556 = vadd.f32 %v2431, %v2555
  %v2557 = vand.u32 %v135, 4294901760
  %v2558 = vsub.f32 %v135, %v2557
  %v2559 = vand.u32 %v2558, 4294901760
  %v2560 = vsub.f32 %v2558, %v2559
  %v2561 = vand.u32 %v2560, 4294901760
  %2562 = vmatmul.f32.gmra.mxu0 %v2561
  %v2563 = vpop.f32.mrf.mxu0
  %v2564 = vadd.f32 %v2431, %v2563
  %v2565 = vand.u32 %v138, 4294901760
  %v2566 = vsub.f32 %v138, %v2565
  %v2567 = vand.u32 %v2566, 4294901760
  %v2568 = vsub.f32 %v2566, %v2567
  %v2569 = vand.u32 %v2568, 4294901760
  %2570 = vmatmul.f32.gmra.mxu0 %v2569
  %v2571 = vpop.f32.mrf.mxu0
  %v2572 = vadd.f32 %v2431, %v2571
  %v2573 = vand.u32 %v141, 4294901760
  %v2574 = vsub.f32 %v141, %v2573
  %v2575 = vand.u32 %v2574, 4294901760
  %v2576 = vsub.f32 %v2574, %v2575
  %v2577 = vand.u32 %v2576, 4294901760
  %2578 = vmatmul.f32.gmra.mxu0 %v2577
  %v2579 = vpop.f32.mrf.mxu0
  %v2580 = vadd.f32 %v2431, %v2579
  %v2581 = vand.u32 %v144, 4294901760
  %v2582 = vsub.f32 %v144, %v2581
  %v2583 = vand.u32 %v2582, 4294901760
  %v2584 = vsub.f32 %v2582, %v2583
  %v2585 = vand.u32 %v2584, 4294901760
  %2586 = vmatmul.f32.gmra.mxu0 %v2585
  %v2587 = vpop.f32.mrf.mxu0
  %v2588 = vadd.f32 %v2431, %v2587
  %v2589 = vand.u32 %v147, 4294901760
  %v2590 = vsub.f32 %v147, %v2589
  %v2591 = vand.u32 %v2590, 4294901760
  %v2592 = vsub.f32 %v2590, %v2591
  %v2593 = vand.u32 %v2592, 4294901760
  %2594 = vmatmul.f32.gmra.mxu0 %v2593
  %v2595 = vpop.f32.mrf.mxu0
  %v2596 = vadd.f32 %v2431, %v2595
  %v2597 = vand.u32 %v150, 4294901760
  %v2598 = vsub.f32 %v150, %v2597
  %v2599 = vand.u32 %v2598, 4294901760
  %v2600 = vsub.f32 %v2598, %v2599
  %v2601 = vand.u32 %v2600, 4294901760
  %2602 = vmatmul.f32.gmra.mxu0 %v2601
  %v2603 = vpop.f32.mrf.mxu0
  %v2604 = vadd.f32 %v2431, %v2603
  %v2605 = vand.u32 %v153, 4294901760
  %v2606 = vsub.f32 %v153, %v2605
  %v2607 = vand.u32 %v2606, 4294901760
  %v2608 = vsub.f32 %v2606, %v2607
  %v2609 = vand.u32 %v2608, 4294901760
  %2610 = vmatmul.f32.gmra.mxu0 %v2609
  %v2611 = vpop.f32.mrf.mxu0
  %v2612 = vadd.f32 %v2431, %v2611
  %v2613 = vand.u32 %v156, 4294901760
  %v2614 = vsub.f32 %v156, %v2613
  %v2615 = vand.u32 %v2614, 4294901760
  %v2616 = vsub.f32 %v2614, %v2615
  %v2617 = vand.u32 %v2616, 4294901760
  %2618 = vmatmul.f32.gmra.mxu0 %v2617
  %v2619 = vpop.f32.mrf.mxu0
  %v2620 = vadd.f32 %v2431, %v2619
  %v2621 = vand.u32 %v159, 4294901760
  %v2622 = vsub.f32 %v159, %v2621
  %v2623 = vand.u32 %v2622, 4294901760
  %v2624 = vsub.f32 %v2622, %v2623
  %v2625 = vand.u32 %v2624, 4294901760
  %2626 = vmatmul.f32.gmra.mxu0 %v2625
  %v2627 = vpop.f32.mrf.mxu0
  %v2628 = vadd.f32 %v2431, %v2627
  %v2629 = vand.u32 %v162, 4294901760
  %v2630 = vsub.f32 %v162, %v2629
  %v2631 = vand.u32 %v2630, 4294901760
  %v2632 = vsub.f32 %v2630, %v2631
  %v2633 = vand.u32 %v2632, 4294901760
  %2634 = vmatmul.f32.gmra.mxu0 %v2633
  %v2635 = vpop.f32.mrf.mxu0
  %v2636 = vadd.f32 %v2431, %v2635
  %v2637 = vand.u32 %v165, 4294901760
  %v2638 = vsub.f32 %v165, %v2637
  %v2639 = vand.u32 %v2638, 4294901760
  %v2640 = vsub.f32 %v2638, %v2639
  %v2641 = vand.u32 %v2640, 4294901760
  %2642 = vmatmul.f32.gmra.mxu0 %v2641
  %v2643 = vpop.f32.mrf.mxu0
  %v2644 = vadd.f32 %v2431, %v2643
  %v2645 = vand.u32 %v168, 4294901760
  %v2646 = vsub.f32 %v168, %v2645
  %v2647 = vand.u32 %v2646, 4294901760
  %v2648 = vsub.f32 %v2646, %v2647
  %v2649 = vand.u32 %v2648, 4294901760
  %2650 = vmatmul.f32.gmra.mxu0 %v2649
  %v2651 = vpop.f32.mrf.mxu0
  %v2652 = vadd.f32 %v2431, %v2651
  %v2653 = vand.u32 %v171, 4294901760
  %v2654 = vsub.f32 %v171, %v2653
  %v2655 = vand.u32 %v2654, 4294901760
  %v2656 = vsub.f32 %v2654, %v2655
  %v2657 = vand.u32 %v2656, 4294901760
  %2658 = vmatmul.f32.gmra.mxu0 %v2657
  %v2659 = vpop.f32.mrf.mxu0
  %v2660 = vadd.f32 %v2431, %v2659
  %v2661 = vand.u32 %v174, 4294901760
  %v2662 = vsub.f32 %v174, %v2661
  %v2663 = vand.u32 %v2662, 4294901760
  %v2664 = vsub.f32 %v2662, %v2663
  %v2665 = vand.u32 %v2664, 4294901760
  %2666 = vmatmul.f32.gmra.mxu0 %v2665
  %v2667 = vpop.f32.mrf.mxu0
  %v2668 = vadd.f32 %v2431, %v2667
  %v2669 = vand.u32 %v177, 4294901760
  %v2670 = vsub.f32 %v177, %v2669
  %v2671 = vand.u32 %v2670, 4294901760
  %v2672 = vsub.f32 %v2670, %v2671
  %v2673 = vand.u32 %v2672, 4294901760
  %2674 = vmatmul.f32.gmra.mxu0 %v2673
  %v2675 = vpop.f32.mrf.mxu0
  %v2676 = vadd.f32 %v2431, %v2675
  %v2677 = vand.u32 %v180, 4294901760
  %v2678 = vsub.f32 %v180, %v2677
  %v2679 = vand.u32 %v2678, 4294901760
  %v2680 = vsub.f32 %v2678, %v2679
  %v2681 = vand.u32 %v2680, 4294901760
  %2682 = vmatmul.f32.gmra.mxu0 %v2681
  %v2683 = vpop.f32.mrf.mxu0
  %v2684 = vadd.f32 %v2431, %v2683
  %v2685 = vand.u32 %v183, 4294901760
  %v2686 = vsub.f32 %v183, %v2685
  %v2687 = vand.u32 %v2686, 4294901760
  %v2688 = vsub.f32 %v2686, %v2687
  %v2689 = vand.u32 %v2688, 4294901760
  %2690 = vmatmul.f32.gmra.mxu0 %v2689
  %v2691 = vpop.f32.mrf.mxu0
  %v2692 = vadd.f32 %v2431, %v2691
  %v2693 = vand.u32 %v186, 4294901760
  %v2694 = vsub.f32 %v186, %v2693
  %v2695 = vand.u32 %v2694, 4294901760
  %v2696 = vsub.f32 %v2694, %v2695
  %v2697 = vand.u32 %v2696, 4294901760
  %2698 = vmatmul.f32.gmra.mxu0 %v2697
  %v2699 = vpop.f32.mrf.mxu0
  %v2700 = vadd.f32 %v2431, %v2699
  %v2701 = vand.u32 %v189, 4294901760
  %v2702 = vsub.f32 %v189, %v2701
  %v2703 = vand.u32 %v2702, 4294901760
  %v2704 = vsub.f32 %v2702, %v2703
  %v2705 = vand.u32 %v2704, 4294901760
  %2706 = vmatmul.f32.gmra.mxu0 %v2705
  %v2707 = vpop.f32.mrf.mxu0
  %v2708 = vadd.f32 %v2431, %v2707
  %v2709 = vand.u32 %v192, 4294901760
  %v2710 = vsub.f32 %v192, %v2709
  %v2711 = vand.u32 %v2710, 4294901760
  %v2712 = vsub.f32 %v2710, %v2711
  %v2713 = vand.u32 %v2712, 4294901760
  %2714 = vmatmul.f32.gmra.mxu0 %v2713
  %v2715 = vpop.f32.mrf.mxu0
  %v2716 = vadd.f32 %v2431, %v2715
  %v2717 = vand.u32 %v195, 4294901760
  %v2718 = vsub.f32 %v195, %v2717
  %v2719 = vand.u32 %v2718, 4294901760
  %v2720 = vsub.f32 %v2718, %v2719
  %v2721 = vand.u32 %v2720, 4294901760
  %2722 = vmatmul.f32.gmra.mxu0 %v2721
  %v2723 = vpop.f32.mrf.mxu0
  %v2724 = vadd.f32 %v2431, %v2723
  %v2725 = vand.u32 %v198, 4294901760
  %v2726 = vsub.f32 %v198, %v2725
  %v2727 = vand.u32 %v2726, 4294901760
  %v2728 = vsub.f32 %v2726, %v2727
  %v2729 = vand.u32 %v2728, 4294901760
  %2730 = vmatmul.f32.gmra.mxu0 %v2729
  %v2731 = vpop.f32.mrf.mxu0
  %v2732 = vadd.f32 %v2431, %v2731
  %v2733 = vand.u32 %v201, 4294901760
  %v2734 = vsub.f32 %v201, %v2733
  %v2735 = vand.u32 %v2734, 4294901760
  %v2736 = vsub.f32 %v2734, %v2735
  %v2737 = vand.u32 %v2736, 4294901760
  %2738 = vmatmul.f32.gmra.mxu0 %v2737
  %v2739 = vpop.f32.mrf.mxu0
  %v2740 = vadd.f32 %v2431, %v2739
  %v2741 = vand.u32 %v204, 4294901760
  %v2742 = vsub.f32 %v204, %v2741
  %v2743 = vand.u32 %v2742, 4294901760
  %v2744 = vsub.f32 %v2742, %v2743
  %v2745 = vand.u32 %v2744, 4294901760
  %2746 = vmatmul.f32.gmra.mxu0 %v2745
  %v2747 = vpop.f32.mrf.mxu0
  %v2748 = vadd.f32 %v2431, %v2747
  %v2749 = vand.u32 %v207, 4294901760
  %v2750 = vsub.f32 %v207, %v2749
  %v2751 = vand.u32 %v2750, 4294901760
  %v2752 = vsub.f32 %v2750, %v2751
  %v2753 = vand.u32 %v2752, 4294901760
  %2754 = vmatmul.f32.gmra.mxu0 %v2753
  %v2755 = vpop.f32.mrf.mxu0
  %v2756 = vadd.f32 %v2431, %v2755
  %v2757 = vand.u32 %v210, 4294901760
  %v2758 = vsub.f32 %v210, %v2757
  %v2759 = vand.u32 %v2758, 4294901760
  %v2760 = vsub.f32 %v2758, %v2759
  %v2761 = vand.u32 %v2760, 4294901760
  %2762 = vmatmul.f32.gmra.mxu0 %v2761
  %v2763 = vpop.f32.mrf.mxu0
  %v2764 = vadd.f32 %v2431, %v2763
  %v2765 = vand.u32 %v213, 4294901760
  %v2766 = vsub.f32 %v213, %v2765
  %v2767 = vand.u32 %v2766, 4294901760
  %v2768 = vsub.f32 %v2766, %v2767
  %v2769 = vand.u32 %v2768, 4294901760
  %2770 = vmatmul.f32.gmra.mxu0 %v2769
  %v2771 = vpop.f32.mrf.mxu0
  %v2772 = vadd.f32 %v2431, %v2771
  %v2773 = vand.u32 %v216, 4294901760
  %v2774 = vsub.f32 %v216, %v2773
  %v2775 = vand.u32 %v2774, 4294901760
  %v2776 = vsub.f32 %v2774, %v2775
  %v2777 = vand.u32 %v2776, 4294901760
  %2778 = vmatmul.f32.gmra.mxu0 %v2777
  %v2779 = vpop.f32.mrf.mxu0
  %v2780 = vadd.f32 %v2431, %v2779
  %v2781 = vand.u32 %v219, 4294901760
  %v2782 = vsub.f32 %v219, %v2781
  %v2783 = vand.u32 %v2782, 4294901760
  %v2784 = vsub.f32 %v2782, %v2783
  %v2785 = vand.u32 %v2784, 4294901760
  %2786 = vmatmul.f32.gmra.mxu0 %v2785
  %v2787 = vpop.f32.mrf.mxu0
  %v2788 = vadd.f32 %v2431, %v2787
  %v2789 = vand.u32 %v222, 4294901760
  %v2790 = vsub.f32 %v222, %v2789
  %v2791 = vand.u32 %v2790, 4294901760
  %v2792 = vsub.f32 %v2790, %v2791
  %v2793 = vand.u32 %v2792, 4294901760
  %2794 = vmatmul.f32.gmra.mxu0 %v2793
  %v2795 = vpop.f32.mrf.mxu0
  %v2796 = vadd.f32 %v2431, %v2795
  %v2797 = vand.u32 %v225, 4294901760
  %v2798 = vsub.f32 %v225, %v2797
  %v2799 = vand.u32 %v2798, 4294901760
  %v2800 = vsub.f32 %v2798, %v2799
  %v2801 = vand.u32 %v2800, 4294901760
  %2802 = vmatmul.f32.gmra.mxu0 %v2801
  %v2803 = vpop.f32.mrf.mxu0
  %v2804 = vadd.f32 %v2431, %v2803
  %v2805 = vand.u32 %v228, 4294901760
  %v2806 = vsub.f32 %v228, %v2805
  %v2807 = vand.u32 %v2806, 4294901760
  %v2808 = vsub.f32 %v2806, %v2807
  %v2809 = vand.u32 %v2808, 4294901760
  %2810 = vmatmul.f32.gmra.mxu0 %v2809
  %v2811 = vpop.f32.mrf.mxu0
  %v2812 = vadd.f32 %v2431, %v2811
  %v2813 = vand.u32 %v231, 4294901760
  %v2814 = vsub.f32 %v231, %v2813
  %v2815 = vand.u32 %v2814, 4294901760
  %v2816 = vsub.f32 %v2814, %v2815
  %v2817 = vand.u32 %v2816, 4294901760
  %2818 = vmatmul.f32.gmra.mxu0 %v2817
  %v2819 = vpop.f32.mrf.mxu0
  %v2820 = vadd.f32 %v2431, %v2819
  %v2821 = vand.u32 %v234, 4294901760
  %v2822 = vsub.f32 %v234, %v2821
  %v2823 = vand.u32 %v2822, 4294901760
  %v2824 = vsub.f32 %v2822, %v2823
  %v2825 = vand.u32 %v2824, 4294901760
  %2826 = vmatmul.f32.gmra.mxu0 %v2825
  %v2827 = vpop.f32.mrf.mxu0
  %v2828 = vadd.f32 %v2431, %v2827
  %v2829 = vand.u32 %v237, 4294901760
  %v2830 = vsub.f32 %v237, %v2829
  %v2831 = vand.u32 %v2830, 4294901760
  %v2832 = vsub.f32 %v2830, %v2831
  %v2833 = vand.u32 %v2832, 4294901760
  %2834 = vmatmul.f32.gmra.mxu0 %v2833
  %v2835 = vpop.f32.mrf.mxu0
  %v2836 = vadd.f32 %v2431, %v2835
  %v2837 = vand.u32 %v240, 4294901760
  %v2838 = vsub.f32 %v240, %v2837
  %v2839 = vand.u32 %v2838, 4294901760
  %v2840 = vsub.f32 %v2838, %v2839
  %v2841 = vand.u32 %v2840, 4294901760
  %2842 = vmatmul.f32.gmra.mxu0 %v2841
  %v2843 = vpop.f32.mrf.mxu0
  %v2844 = vadd.f32 %v2431, %v2843
  %v2845 = vand.u32 %v243, 4294901760
  %v2846 = vsub.f32 %v243, %v2845
  %v2847 = vand.u32 %v2846, 4294901760
  %v2848 = vsub.f32 %v2846, %v2847
  %v2849 = vand.u32 %v2848, 4294901760
  %2850 = vmatmul.f32.gmra.mxu0 %v2849
  %v2851 = vpop.f32.mrf.mxu0
  %v2852 = vadd.f32 %v2431, %v2851
  %v2853 = vand.u32 %v246, 4294901760
  %v2854 = vsub.f32 %v246, %v2853
  %v2855 = vand.u32 %v2854, 4294901760
  %v2856 = vsub.f32 %v2854, %v2855
  %v2857 = vand.u32 %v2856, 4294901760
  %2858 = vmatmul.f32.gmra.mxu0 %v2857
  %v2859 = vpop.f32.mrf.mxu0
  %v2860 = vadd.f32 %v2431, %v2859
  %v2861 = vand.u32 %v249, 4294901760
  %v2862 = vsub.f32 %v249, %v2861
  %v2863 = vand.u32 %v2862, 4294901760
  %v2864 = vsub.f32 %v2862, %v2863
  %v2865 = vand.u32 %v2864, 4294901760
  %2866 = vmatmul.f32.gmra.mxu0 %v2865
  %v2867 = vpop.f32.mrf.mxu0
  %v2868 = vadd.f32 %v2431, %v2867
  %v2869 = vand.u32 %v252, 4294901760
  %v2870 = vsub.f32 %v252, %v2869
  %v2871 = vand.u32 %v2870, 4294901760
  %v2872 = vsub.f32 %v2870, %v2871
  %v2873 = vand.u32 %v2872, 4294901760
  %2874 = vmatmul.f32.gmra.mxu0 %v2873
  %v2875 = vpop.f32.mrf.mxu0
  %v2876 = vadd.f32 %v2431, %v2875
  %v2877 = vand.u32 %v255, 4294901760
  %v2878 = vsub.f32 %v255, %v2877
  %v2879 = vand.u32 %v2878, 4294901760
  %v2880 = vsub.f32 %v2878, %v2879
  %v2881 = vand.u32 %v2880, 4294901760
  %2882 = vmatmul.f32.gmra.mxu0 %v2881
  %v2883 = vpop.f32.mrf.mxu0
  %v2884 = vadd.f32 %v2431, %v2883
  %v2885 = vand.u32 %v258, 4294901760
  %v2886 = vsub.f32 %v258, %v2885
  %v2887 = vand.u32 %v2886, 4294901760
  %v2888 = vsub.f32 %v2886, %v2887
  %v2889 = vand.u32 %v2888, 4294901760
  %2890 = vmatmul.f32.gmra.mxu0 %v2889
  %v2891 = vpop.f32.mrf.mxu0
  %v2892 = vadd.f32 %v2431, %v2891
  %v2893 = vand.u32 %v261, 4294901760
  %v2894 = vsub.f32 %v261, %v2893
  %v2895 = vand.u32 %v2894, 4294901760
  %v2896 = vsub.f32 %v2894, %v2895
  %v2897 = vand.u32 %v2896, 4294901760
  %2898 = vmatmul.f32.gmra.mxu0 %v2897
  %v2899 = vpop.f32.mrf.mxu0
  %v2900 = vadd.f32 %v2431, %v2899
  %v2901 = vand.u32 %v264, 4294901760
  %v2902 = vsub.f32 %v264, %v2901
  %v2903 = vand.u32 %v2902, 4294901760
  %v2904 = vsub.f32 %v2902, %v2903
  %v2905 = vand.u32 %v2904, 4294901760
  %2906 = vmatmul.f32.gmra.mxu0 %v2905
  %v2907 = vpop.f32.mrf.mxu0
  %v2908 = vadd.f32 %v2431, %v2907
  %v2909 = vand.u32 %v267, 4294901760
  %v2910 = vsub.f32 %v267, %v2909
  %v2911 = vand.u32 %v2910, 4294901760
  %v2912 = vsub.f32 %v2910, %v2911
  %v2913 = vand.u32 %v2912, 4294901760
  %2914 = vmatmul.f32.gmra.mxu0 %v2913
  %v2915 = vpop.f32.mrf.mxu0
  %v2916 = vadd.f32 %v2431, %v2915
  %v2917 = vand.u32 %v270, 4294901760
  %v2918 = vsub.f32 %v270, %v2917
  %v2919 = vand.u32 %v2918, 4294901760
  %v2920 = vsub.f32 %v2918, %v2919
  %v2921 = vand.u32 %v2920, 4294901760
  %2922 = vmatmul.f32.gmra.mxu0 %v2921
  %v2923 = vpop.f32.mrf.mxu0
  %v2924 = vadd.f32 %v2431, %v2923
  %v2925 = vand.u32 %v273, 4294901760
  %v2926 = vsub.f32 %v273, %v2925
  %v2927 = vand.u32 %v2926, 4294901760
  %v2928 = vsub.f32 %v2926, %v2927
  %v2929 = vand.u32 %v2928, 4294901760
  %2930 = vmatmul.f32.gmra.mxu0 %v2929
  %v2931 = vpop.f32.mrf.mxu0
  %v2932 = vadd.f32 %v2431, %v2931
  %v2933 = vand.u32 %v276, 4294901760
  %v2934 = vsub.f32 %v276, %v2933
  %v2935 = vand.u32 %v2934, 4294901760
  %v2936 = vsub.f32 %v2934, %v2935
  %v2937 = vand.u32 %v2936, 4294901760
  %2938 = vmatmul.f32.gmra.mxu0 %v2937
  %v2939 = vpop.f32.mrf.mxu0
  %v2940 = vadd.f32 %v2431, %v2939
  %v2941 = vand.u32 %v279, 4294901760
  %v2942 = vsub.f32 %v279, %v2941
  %v2943 = vand.u32 %v2942, 4294901760
  %v2944 = vsub.f32 %v2942, %v2943
  %v2945 = vand.u32 %v2944, 4294901760
  %2946 = vmatmul.f32.gmra.mxu0 %v2945
  %v2947 = vpop.f32.mrf.mxu0
  %v2948 = vadd.f32 %v2431, %v2947
  %v2949 = vand.u32 %v282, 4294901760
  %v2950 = vsub.f32 %v282, %v2949
  %v2951 = vand.u32 %v2950, 4294901760
  %v2952 = vsub.f32 %v2950, %v2951
  %v2953 = vand.u32 %v2952, 4294901760
  %2954 = vmatmul.f32.gmra.mxu0 %v2953
  %v2955 = vpop.f32.mrf.mxu0
  %v2956 = vadd.f32 %v2431, %v2955
  %v2957 = vand.u32 %v285, 4294901760
  %v2958 = vsub.f32 %v285, %v2957
  %v2959 = vand.u32 %v2958, 4294901760
  %v2960 = vsub.f32 %v2958, %v2959
  %v2961 = vand.u32 %v2960, 4294901760
  %2962 = vmatmul.f32.gmra.mxu0 %v2961
  %v2963 = vpop.f32.mrf.mxu0
  %v2964 = vadd.f32 %v2431, %v2963
  %2965 = vdwg.mxu0
  %2966 = vmatpush.msra.mxu0 0.0
  %2967 = vmatpush.msra.mxu0 0.0
  %2968 = vmatpush.msra.mxu0 0.0
  %2969 = vmatpush.msra.mxu0 0.0
  %2970 = vmatpush.msra.mxu0 0.0
  %2971 = vmatpush.msra.mxu0 0.0
  %2972 = vmatpush.msra.mxu0 0.0
  %2973 = vmatpush.msra.mxu0 0.0
  %2974 = vmatpush.msra.mxu0 0.0
  %2975 = vmatpush.msra.mxu0 0.0
  %2976 = vmatpush.msra.mxu0 0.0
  %2977 = vmatpush.msra.mxu0 0.0
  %v2978 = vand.u32 %v2428, 4294901760
  %v2979 = vsub.f32 %v2428, %v2978
  %v2980 = vand.u32 %v2979, 4294901760
  %v2981 = vsub.f32 %v2979, %v2980
  %v2982 = vand.u32 %v2981, 4294901760
  %2983 = vmatpush.msra.mxu0 %v2982
  %v2984 = vand.u32 %v2427, 4294901760
  %v2985 = vsub.f32 %v2427, %v2984
  %v2986 = vand.u32 %v2985, 4294901760
  %v2987 = vsub.f32 %v2985, %v2986
  %v2988 = vand.u32 %v2987, 4294901760
  %2989 = vmatpush.msra.mxu0 %v2988
  %v2990 = vand.u32 %v2426, 4294901760
  %v2991 = vsub.f32 %v2426, %v2990
  %v2992 = vand.u32 %v2991, 4294901760
  %v2993 = vsub.f32 %v2991, %v2992
  %v2994 = vand.u32 %v2993, 4294901760
  %2995 = vmatpush.msra.mxu0 %v2994
  %v2996 = vand.u32 %v2425, 4294901760
  %v2997 = vsub.f32 %v2425, %v2996
  %v2998 = vand.u32 %v2997, 4294901760
  %v2999 = vsub.f32 %v2997, %v2998
  %v3000 = vand.u32 %v2999, 4294901760
  %3001 = vmatpush.msra.mxu0 %v3000
  %v3002 = vand.u32 %v96, 4294901760
  %3003 = vmatmul.f32.gmra.mxu0 %v3002
  %v3004 = vpop.f32.mrf.mxu0
  %v3005 = vadd.f32 %v2460, %v3004
  %v3006 = vand.u32 %v99, 4294901760
  %3007 = vmatmul.f32.gmra.mxu0 %v3006
  %v3008 = vpop.f32.mrf.mxu0
  %v3009 = vadd.f32 %v2468, %v3008
  %v3010 = vand.u32 %v102, 4294901760
  %3011 = vmatmul.f32.gmra.mxu0 %v3010
  %v3012 = vpop.f32.mrf.mxu0
  %v3013 = vadd.f32 %v2476, %v3012
  %v3014 = vand.u32 %v105, 4294901760
  %3015 = vmatmul.f32.gmra.mxu0 %v3014
  %v3016 = vpop.f32.mrf.mxu0
  %v3017 = vadd.f32 %v2484, %v3016
  %v3018 = vand.u32 %v108, 4294901760
  %3019 = vmatmul.f32.gmra.mxu0 %v3018
  %v3020 = vpop.f32.mrf.mxu0
  %v3021 = vadd.f32 %v2492, %v3020
  %v3022 = vand.u32 %v111, 4294901760
  %3023 = vmatmul.f32.gmra.mxu0 %v3022
  %v3024 = vpop.f32.mrf.mxu0
  %v3025 = vadd.f32 %v2500, %v3024
  %v3026 = vand.u32 %v114, 4294901760
  %3027 = vmatmul.f32.gmra.mxu0 %v3026
  %v3028 = vpop.f32.mrf.mxu0
  %v3029 = vadd.f32 %v2508, %v3028
  %v3030 = vand.u32 %v117, 4294901760
  %3031 = vmatmul.f32.gmra.mxu0 %v3030
  %v3032 = vpop.f32.mrf.mxu0
  %v3033 = vadd.f32 %v2516, %v3032
  %v3034 = vand.u32 %v120, 4294901760
  %3035 = vmatmul.f32.gmra.mxu0 %v3034
  %v3036 = vpop.f32.mrf.mxu0
  %v3037 = vadd.f32 %v2524, %v3036
  %v3038 = vand.u32 %v123, 4294901760
  %3039 = vmatmul.f32.gmra.mxu0 %v3038
  %v3040 = vpop.f32.mrf.mxu0
  %v3041 = vadd.f32 %v2532, %v3040
  %v3042 = vand.u32 %v126, 4294901760
  %3043 = vmatmul.f32.gmra.mxu0 %v3042
  %v3044 = vpop.f32.mrf.mxu0
  %v3045 = vadd.f32 %v2540, %v3044
  %v3046 = vand.u32 %v129, 4294901760
  %3047 = vmatmul.f32.gmra.mxu0 %v3046
  %v3048 = vpop.f32.mrf.mxu0
  %v3049 = vadd.f32 %v2548, %v3048
  %v3050 = vand.u32 %v132, 4294901760
  %3051 = vmatmul.f32.gmra.mxu0 %v3050
  %v3052 = vpop.f32.mrf.mxu0
  %v3053 = vadd.f32 %v2556, %v3052
  %v3054 = vand.u32 %v135, 4294901760
  %3055 = vmatmul.f32.gmra.mxu0 %v3054
  %v3056 = vpop.f32.mrf.mxu0
  %v3057 = vadd.f32 %v2564, %v3056
  %v3058 = vand.u32 %v138, 4294901760
  %3059 = vmatmul.f32.gmra.mxu0 %v3058
  %v3060 = vpop.f32.mrf.mxu0
  %v3061 = vadd.f32 %v2572, %v3060
  %v3062 = vand.u32 %v141, 4294901760
  %3063 = vmatmul.f32.gmra.mxu0 %v3062
  %v3064 = vpop.f32.mrf.mxu0
  %v3065 = vadd.f32 %v2580, %v3064
  %v3066 = vand.u32 %v144, 4294901760
  %3067 = vmatmul.f32.gmra.mxu0 %v3066
  %v3068 = vpop.f32.mrf.mxu0
  %v3069 = vadd.f32 %v2588, %v3068
  %v3070 = vand.u32 %v147, 4294901760
  %3071 = vmatmul.f32.gmra.mxu0 %v3070
  %v3072 = vpop.f32.mrf.mxu0
  %v3073 = vadd.f32 %v2596, %v3072
  %v3074 = vand.u32 %v150, 4294901760
  %3075 = vmatmul.f32.gmra.mxu0 %v3074
  %v3076 = vpop.f32.mrf.mxu0
  %v3077 = vadd.f32 %v2604, %v3076
  %v3078 = vand.u32 %v153, 4294901760
  %3079 = vmatmul.f32.gmra.mxu0 %v3078
  %v3080 = vpop.f32.mrf.mxu0
  %v3081 = vadd.f32 %v2612, %v3080
  %v3082 = vand.u32 %v156, 4294901760
  %3083 = vmatmul.f32.gmra.mxu0 %v3082
  %v3084 = vpop.f32.mrf.mxu0
  %v3085 = vadd.f32 %v2620, %v3084
  %v3086 = vand.u32 %v159, 4294901760
  %3087 = vmatmul.f32.gmra.mxu0 %v3086
  %v3088 = vpop.f32.mrf.mxu0
  %v3089 = vadd.f32 %v2628, %v3088
  %v3090 = vand.u32 %v162, 4294901760
  %3091 = vmatmul.f32.gmra.mxu0 %v3090
  %v3092 = vpop.f32.mrf.mxu0
  %v3093 = vadd.f32 %v2636, %v3092
  %v3094 = vand.u32 %v165, 4294901760
  %3095 = vmatmul.f32.gmra.mxu0 %v3094
  %v3096 = vpop.f32.mrf.mxu0
  %v3097 = vadd.f32 %v2644, %v3096
  %v3098 = vand.u32 %v168, 4294901760
  %3099 = vmatmul.f32.gmra.mxu0 %v3098
  %v3100 = vpop.f32.mrf.mxu0
  %v3101 = vadd.f32 %v2652, %v3100
  %v3102 = vand.u32 %v171, 4294901760
  %3103 = vmatmul.f32.gmra.mxu0 %v3102
  %v3104 = vpop.f32.mrf.mxu0
  %v3105 = vadd.f32 %v2660, %v3104
  %v3106 = vand.u32 %v174, 4294901760
  %3107 = vmatmul.f32.gmra.mxu0 %v3106
  %v3108 = vpop.f32.mrf.mxu0
  %v3109 = vadd.f32 %v2668, %v3108
  %v3110 = vand.u32 %v177, 4294901760
  %3111 = vmatmul.f32.gmra.mxu0 %v3110
  %v3112 = vpop.f32.mrf.mxu0
  %v3113 = vadd.f32 %v2676, %v3112
  %v3114 = vand.u32 %v180, 4294901760
  %3115 = vmatmul.f32.gmra.mxu0 %v3114
  %v3116 = vpop.f32.mrf.mxu0
  %v3117 = vadd.f32 %v2684, %v3116
  %v3118 = vand.u32 %v183, 4294901760
  %3119 = vmatmul.f32.gmra.mxu0 %v3118
  %v3120 = vpop.f32.mrf.mxu0
  %v3121 = vadd.f32 %v2692, %v3120
  %v3122 = vand.u32 %v186, 4294901760
  %3123 = vmatmul.f32.gmra.mxu0 %v3122
  %v3124 = vpop.f32.mrf.mxu0
  %v3125 = vadd.f32 %v2700, %v3124
  %v3126 = vand.u32 %v189, 4294901760
  %3127 = vmatmul.f32.gmra.mxu0 %v3126
  %v3128 = vpop.f32.mrf.mxu0
  %v3129 = vadd.f32 %v2708, %v3128
  %v3130 = vand.u32 %v192, 4294901760
  %3131 = vmatmul.f32.gmra.mxu0 %v3130
  %v3132 = vpop.f32.mrf.mxu0
  %v3133 = vadd.f32 %v2716, %v3132
  %v3134 = vand.u32 %v195, 4294901760
  %3135 = vmatmul.f32.gmra.mxu0 %v3134
  %v3136 = vpop.f32.mrf.mxu0
  %v3137 = vadd.f32 %v2724, %v3136
  %v3138 = vand.u32 %v198, 4294901760
  %3139 = vmatmul.f32.gmra.mxu0 %v3138
  %v3140 = vpop.f32.mrf.mxu0
  %v3141 = vadd.f32 %v2732, %v3140
  %v3142 = vand.u32 %v201, 4294901760
  %3143 = vmatmul.f32.gmra.mxu0 %v3142
  %v3144 = vpop.f32.mrf.mxu0
  %v3145 = vadd.f32 %v2740, %v3144
  %v3146 = vand.u32 %v204, 4294901760
  %3147 = vmatmul.f32.gmra.mxu0 %v3146
  %v3148 = vpop.f32.mrf.mxu0
  %v3149 = vadd.f32 %v2748, %v3148
  %v3150 = vand.u32 %v207, 4294901760
  %3151 = vmatmul.f32.gmra.mxu0 %v3150
  %v3152 = vpop.f32.mrf.mxu0
  %v3153 = vadd.f32 %v2756, %v3152
  %v3154 = vand.u32 %v210, 4294901760
  %3155 = vmatmul.f32.gmra.mxu0 %v3154
  %v3156 = vpop.f32.mrf.mxu0
  %v3157 = vadd.f32 %v2764, %v3156
  %v3158 = vand.u32 %v213, 4294901760
  %3159 = vmatmul.f32.gmra.mxu0 %v3158
  %v3160 = vpop.f32.mrf.mxu0
  %v3161 = vadd.f32 %v2772, %v3160
  %v3162 = vand.u32 %v216, 4294901760
  %3163 = vmatmul.f32.gmra.mxu0 %v3162
  %v3164 = vpop.f32.mrf.mxu0
  %v3165 = vadd.f32 %v2780, %v3164
  %v3166 = vand.u32 %v219, 4294901760
  %3167 = vmatmul.f32.gmra.mxu0 %v3166
  %v3168 = vpop.f32.mrf.mxu0
  %v3169 = vadd.f32 %v2788, %v3168
  %v3170 = vand.u32 %v222, 4294901760
  %3171 = vmatmul.f32.gmra.mxu0 %v3170
  %v3172 = vpop.f32.mrf.mxu0
  %v3173 = vadd.f32 %v2796, %v3172
  %v3174 = vand.u32 %v225, 4294901760
  %3175 = vmatmul.f32.gmra.mxu0 %v3174
  %v3176 = vpop.f32.mrf.mxu0
  %v3177 = vadd.f32 %v2804, %v3176
  %v3178 = vand.u32 %v228, 4294901760
  %3179 = vmatmul.f32.gmra.mxu0 %v3178
  %v3180 = vpop.f32.mrf.mxu0
  %v3181 = vadd.f32 %v2812, %v3180
  %v3182 = vand.u32 %v231, 4294901760
  %3183 = vmatmul.f32.gmra.mxu0 %v3182
  %v3184 = vpop.f32.mrf.mxu0
  %v3185 = vadd.f32 %v2820, %v3184
  %v3186 = vand.u32 %v234, 4294901760
  %3187 = vmatmul.f32.gmra.mxu0 %v3186
  %v3188 = vpop.f32.mrf.mxu0
  %v3189 = vadd.f32 %v2828, %v3188
  %v3190 = vand.u32 %v237, 4294901760
  %3191 = vmatmul.f32.gmra.mxu0 %v3190
  %v3192 = vpop.f32.mrf.mxu0
  %v3193 = vadd.f32 %v2836, %v3192
  %v3194 = vand.u32 %v240, 4294901760
  %3195 = vmatmul.f32.gmra.mxu0 %v3194
  %v3196 = vpop.f32.mrf.mxu0
  %v3197 = vadd.f32 %v2844, %v3196
  %v3198 = vand.u32 %v243, 4294901760
  %3199 = vmatmul.f32.gmra.mxu0 %v3198
  %v3200 = vpop.f32.mrf.mxu0
  %v3201 = vadd.f32 %v2852, %v3200
  %v3202 = vand.u32 %v246, 4294901760
  %3203 = vmatmul.f32.gmra.mxu0 %v3202
  %v3204 = vpop.f32.mrf.mxu0
  %v3205 = vadd.f32 %v2860, %v3204
  %v3206 = vand.u32 %v249, 4294901760
  %3207 = vmatmul.f32.gmra.mxu0 %v3206
  %v3208 = vpop.f32.mrf.mxu0
  %v3209 = vadd.f32 %v2868, %v3208
  %v3210 = vand.u32 %v252, 4294901760
  %3211 = vmatmul.f32.gmra.mxu0 %v3210
  %v3212 = vpop.f32.mrf.mxu0
  %v3213 = vadd.f32 %v2876, %v3212
  %v3214 = vand.u32 %v255, 4294901760
  %3215 = vmatmul.f32.gmra.mxu0 %v3214
  %v3216 = vpop.f32.mrf.mxu0
  %v3217 = vadd.f32 %v2884, %v3216
  %v3218 = vand.u32 %v258, 4294901760
  %3219 = vmatmul.f32.gmra.mxu0 %v3218
  %v3220 = vpop.f32.mrf.mxu0
  %v3221 = vadd.f32 %v2892, %v3220
  %v3222 = vand.u32 %v261, 4294901760
  %3223 = vmatmul.f32.gmra.mxu0 %v3222
  %v3224 = vpop.f32.mrf.mxu0
  %v3225 = vadd.f32 %v2900, %v3224
  %v3226 = vand.u32 %v264, 4294901760
  %3227 = vmatmul.f32.gmra.mxu0 %v3226
  %v3228 = vpop.f32.mrf.mxu0
  %v3229 = vadd.f32 %v2908, %v3228
  %v3230 = vand.u32 %v267, 4294901760
  %3231 = vmatmul.f32.gmra.mxu0 %v3230
  %v3232 = vpop.f32.mrf.mxu0
  %v3233 = vadd.f32 %v2916, %v3232
  %v3234 = vand.u32 %v270, 4294901760
  %3235 = vmatmul.f32.gmra.mxu0 %v3234
  %v3236 = vpop.f32.mrf.mxu0
  %v3237 = vadd.f32 %v2924, %v3236
  %v3238 = vand.u32 %v273, 4294901760
  %3239 = vmatmul.f32.gmra.mxu0 %v3238
  %v3240 = vpop.f32.mrf.mxu0
  %v3241 = vadd.f32 %v2932, %v3240
  %v3242 = vand.u32 %v276, 4294901760
  %3243 = vmatmul.f32.gmra.mxu0 %v3242
  %v3244 = vpop.f32.mrf.mxu0
  %v3245 = vadd.f32 %v2940, %v3244
  %v3246 = vand.u32 %v279, 4294901760
  %3247 = vmatmul.f32.gmra.mxu0 %v3246
  %v3248 = vpop.f32.mrf.mxu0
  %v3249 = vadd.f32 %v2948, %v3248
  %v3250 = vand.u32 %v282, 4294901760
  %3251 = vmatmul.f32.gmra.mxu0 %v3250
  %v3252 = vpop.f32.mrf.mxu0
  %v3253 = vadd.f32 %v2956, %v3252
  %v3254 = vand.u32 %v285, 4294901760
  %3255 = vmatmul.f32.gmra.mxu0 %v3254
  %v3256 = vpop.f32.mrf.mxu0
  %v3257 = vadd.f32 %v2964, %v3256
  %3258 = vdwg.mxu0
  %3259 = vmatpush.msra.mxu0 0.0
  %3260 = vmatpush.msra.mxu0 0.0
  %3261 = vmatpush.msra.mxu0 0.0
  %3262 = vmatpush.msra.mxu0 0.0
  %3263 = vmatpush.msra.mxu0 0.0
  %3264 = vmatpush.msra.mxu0 0.0
  %3265 = vmatpush.msra.mxu0 0.0
  %3266 = vmatpush.msra.mxu0 0.0
  %3267 = vmatpush.msra.mxu0 0.0
  %3268 = vmatpush.msra.mxu0 0.0
  %3269 = vmatpush.msra.mxu0 0.0
  %3270 = vmatpush.msra.mxu0 0.0
  %v3271 = vand.u32 %v2428, 4294901760
  %v3272 = vsub.f32 %v2428, %v3271
  %3273 = vmatpush.msra.mxu0 %v3272
  %v3274 = vand.u32 %v2427, 4294901760
  %v3275 = vsub.f32 %v2427, %v3274
  %3276 = vmatpush.msra.mxu0 %v3275
  %v3277 = vand.u32 %v2426, 4294901760
  %v3278 = vsub.f32 %v2426, %v3277
  %3279 = vmatpush.msra.mxu0 %v3278
  %v3280 = vand.u32 %v2425, 4294901760
  %v3281 = vsub.f32 %v2425, %v3280
  %3282 = vmatpush.msra.mxu0 %v3281
  %v3283 = vand.u32 %v96, 4294901760
  %v3284 = vsub.f32 %v96, %v3283
  %3285 = vmatmul.f32.gmra.mxu0 %v3284
  %v3286 = vpop.f32.mrf.mxu0
  %v3287 = vadd.f32 %v3005, %v3286
  %v3288 = vand.u32 %v99, 4294901760
  %v3289 = vsub.f32 %v99, %v3288
  %3290 = vmatmul.f32.gmra.mxu0 %v3289
  %v3291 = vpop.f32.mrf.mxu0
  %v3292 = vadd.f32 %v3009, %v3291
  %v3293 = vand.u32 %v102, 4294901760
  %v3294 = vsub.f32 %v102, %v3293
  %3295 = vmatmul.f32.gmra.mxu0 %v3294
  %v3296 = vpop.f32.mrf.mxu0
  %v3297 = vadd.f32 %v3013, %v3296
  %v3298 = vand.u32 %v105, 4294901760
  %v3299 = vsub.f32 %v105, %v3298
  %3300 = vmatmul.f32.gmra.mxu0 %v3299
  %v3301 = vpop.f32.mrf.mxu0
  %v3302 = vadd.f32 %v3017, %v3301
  %v3303 = vand.u32 %v108, 4294901760
  %v3304 = vsub.f32 %v108, %v3303
  %3305 = vmatmul.f32.gmra.mxu0 %v3304
  %v3306 = vpop.f32.mrf.mxu0
  %v3307 = vadd.f32 %v3021, %v3306
  %v3308 = vand.u32 %v111, 4294901760
  %v3309 = vsub.f32 %v111, %v3308
  %3310 = vmatmul.f32.gmra.mxu0 %v3309
  %v3311 = vpop.f32.mrf.mxu0
  %v3312 = vadd.f32 %v3025, %v3311
  %v3313 = vand.u32 %v114, 4294901760
  %v3314 = vsub.f32 %v114, %v3313
  %3315 = vmatmul.f32.gmra.mxu0 %v3314
  %v3316 = vpop.f32.mrf.mxu0
  %v3317 = vadd.f32 %v3029, %v3316
  %v3318 = vand.u32 %v117, 4294901760
  %v3319 = vsub.f32 %v117, %v3318
  %3320 = vmatmul.f32.gmra.mxu0 %v3319
  %v3321 = vpop.f32.mrf.mxu0
  %v3322 = vadd.f32 %v3033, %v3321
  %v3323 = vand.u32 %v120, 4294901760
  %v3324 = vsub.f32 %v120, %v3323
  %3325 = vmatmul.f32.gmra.mxu0 %v3324
  %v3326 = vpop.f32.mrf.mxu0
  %v3327 = vadd.f32 %v3037, %v3326
  %v3328 = vand.u32 %v123, 4294901760
  %v3329 = vsub.f32 %v123, %v3328
  %3330 = vmatmul.f32.gmra.mxu0 %v3329
  %v3331 = vpop.f32.mrf.mxu0
  %v3332 = vadd.f32 %v3041, %v3331
  %v3333 = vand.u32 %v126, 4294901760
  %v3334 = vsub.f32 %v126, %v3333
  %3335 = vmatmul.f32.gmra.mxu0 %v3334
  %v3336 = vpop.f32.mrf.mxu0
  %v3337 = vadd.f32 %v3045, %v3336
  %v3338 = vand.u32 %v129, 4294901760
  %v3339 = vsub.f32 %v129, %v3338
  %3340 = vmatmul.f32.gmra.mxu0 %v3339
  %v3341 = vpop.f32.mrf.mxu0
  %v3342 = vadd.f32 %v3049, %v3341
  %v3343 = vand.u32 %v132, 4294901760
  %v3344 = vsub.f32 %v132, %v3343
  %3345 = vmatmul.f32.gmra.mxu0 %v3344
  %v3346 = vpop.f32.mrf.mxu0
  %v3347 = vadd.f32 %v3053, %v3346
  %v3348 = vand.u32 %v135, 4294901760
  %v3349 = vsub.f32 %v135, %v3348
  %3350 = vmatmul.f32.gmra.mxu0 %v3349
  %v3351 = vpop.f32.mrf.mxu0
  %v3352 = vadd.f32 %v3057, %v3351
  %v3353 = vand.u32 %v138, 4294901760
  %v3354 = vsub.f32 %v138, %v3353
  %3355 = vmatmul.f32.gmra.mxu0 %v3354
  %v3356 = vpop.f32.mrf.mxu0
  %v3357 = vadd.f32 %v3061, %v3356
  %v3358 = vand.u32 %v141, 4294901760
  %v3359 = vsub.f32 %v141, %v3358
  %3360 = vmatmul.f32.gmra.mxu0 %v3359
  %v3361 = vpop.f32.mrf.mxu0
  %v3362 = vadd.f32 %v3065, %v3361
  %v3363 = vand.u32 %v144, 4294901760
  %v3364 = vsub.f32 %v144, %v3363
  %3365 = vmatmul.f32.gmra.mxu0 %v3364
  %v3366 = vpop.f32.mrf.mxu0
  %v3367 = vadd.f32 %v3069, %v3366
  %v3368 = vand.u32 %v147, 4294901760
  %v3369 = vsub.f32 %v147, %v3368
  %3370 = vmatmul.f32.gmra.mxu0 %v3369
  %v3371 = vpop.f32.mrf.mxu0
  %v3372 = vadd.f32 %v3073, %v3371
  %v3373 = vand.u32 %v150, 4294901760
  %v3374 = vsub.f32 %v150, %v3373
  %3375 = vmatmul.f32.gmra.mxu0 %v3374
  %v3376 = vpop.f32.mrf.mxu0
  %v3377 = vadd.f32 %v3077, %v3376
  %v3378 = vand.u32 %v153, 4294901760
  %v3379 = vsub.f32 %v153, %v3378
  %3380 = vmatmul.f32.gmra.mxu0 %v3379
  %v3381 = vpop.f32.mrf.mxu0
  %v3382 = vadd.f32 %v3081, %v3381
  %v3383 = vand.u32 %v156, 4294901760
  %v3384 = vsub.f32 %v156, %v3383
  %3385 = vmatmul.f32.gmra.mxu0 %v3384
  %v3386 = vpop.f32.mrf.mxu0
  %v3387 = vadd.f32 %v3085, %v3386
  %v3388 = vand.u32 %v159, 4294901760
  %v3389 = vsub.f32 %v159, %v3388
  %3390 = vmatmul.f32.gmra.mxu0 %v3389
  %v3391 = vpop.f32.mrf.mxu0
  %v3392 = vadd.f32 %v3089, %v3391
  %v3393 = vand.u32 %v162, 4294901760
  %v3394 = vsub.f32 %v162, %v3393
  %3395 = vmatmul.f32.gmra.mxu0 %v3394
  %v3396 = vpop.f32.mrf.mxu0
  %v3397 = vadd.f32 %v3093, %v3396
  %v3398 = vand.u32 %v165, 4294901760
  %v3399 = vsub.f32 %v165, %v3398
  %3400 = vmatmul.f32.gmra.mxu0 %v3399
  %v3401 = vpop.f32.mrf.mxu0
  %v3402 = vadd.f32 %v3097, %v3401
  %v3403 = vand.u32 %v168, 4294901760
  %v3404 = vsub.f32 %v168, %v3403
  %3405 = vmatmul.f32.gmra.mxu0 %v3404
  %v3406 = vpop.f32.mrf.mxu0
  %v3407 = vadd.f32 %v3101, %v3406
  %v3408 = vand.u32 %v171, 4294901760
  %v3409 = vsub.f32 %v171, %v3408
  %3410 = vmatmul.f32.gmra.mxu0 %v3409
  %v3411 = vpop.f32.mrf.mxu0
  %v3412 = vadd.f32 %v3105, %v3411
  %v3413 = vand.u32 %v174, 4294901760
  %v3414 = vsub.f32 %v174, %v3413
  %3415 = vmatmul.f32.gmra.mxu0 %v3414
  %v3416 = vpop.f32.mrf.mxu0
  %v3417 = vadd.f32 %v3109, %v3416
  %v3418 = vand.u32 %v177, 4294901760
  %v3419 = vsub.f32 %v177, %v3418
  %3420 = vmatmul.f32.gmra.mxu0 %v3419
  %v3421 = vpop.f32.mrf.mxu0
  %v3422 = vadd.f32 %v3113, %v3421
  %v3423 = vand.u32 %v180, 4294901760
  %v3424 = vsub.f32 %v180, %v3423
  %3425 = vmatmul.f32.gmra.mxu0 %v3424
  %v3426 = vpop.f32.mrf.mxu0
  %v3427 = vadd.f32 %v3117, %v3426
  %v3428 = vand.u32 %v183, 4294901760
  %v3429 = vsub.f32 %v183, %v3428
  %3430 = vmatmul.f32.gmra.mxu0 %v3429
  %v3431 = vpop.f32.mrf.mxu0
  %v3432 = vadd.f32 %v3121, %v3431
  %v3433 = vand.u32 %v186, 4294901760
  %v3434 = vsub.f32 %v186, %v3433
  %3435 = vmatmul.f32.gmra.mxu0 %v3434
  %v3436 = vpop.f32.mrf.mxu0
  %v3437 = vadd.f32 %v3125, %v3436
  %v3438 = vand.u32 %v189, 4294901760
  %v3439 = vsub.f32 %v189, %v3438
  %3440 = vmatmul.f32.gmra.mxu0 %v3439
  %v3441 = vpop.f32.mrf.mxu0
  %v3442 = vadd.f32 %v3129, %v3441
  %v3443 = vand.u32 %v192, 4294901760
  %v3444 = vsub.f32 %v192, %v3443
  %3445 = vmatmul.f32.gmra.mxu0 %v3444
  %v3446 = vpop.f32.mrf.mxu0
  %v3447 = vadd.f32 %v3133, %v3446
  %v3448 = vand.u32 %v195, 4294901760
  %v3449 = vsub.f32 %v195, %v3448
  %3450 = vmatmul.f32.gmra.mxu0 %v3449
  %v3451 = vpop.f32.mrf.mxu0
  %v3452 = vadd.f32 %v3137, %v3451
  %v3453 = vand.u32 %v198, 4294901760
  %v3454 = vsub.f32 %v198, %v3453
  %3455 = vmatmul.f32.gmra.mxu0 %v3454
  %v3456 = vpop.f32.mrf.mxu0
  %v3457 = vadd.f32 %v3141, %v3456
  %v3458 = vand.u32 %v201, 4294901760
  %v3459 = vsub.f32 %v201, %v3458
  %3460 = vmatmul.f32.gmra.mxu0 %v3459
  %v3461 = vpop.f32.mrf.mxu0
  %v3462 = vadd.f32 %v3145, %v3461
  %v3463 = vand.u32 %v204, 4294901760
  %v3464 = vsub.f32 %v204, %v3463
  %3465 = vmatmul.f32.gmra.mxu0 %v3464
  %v3466 = vpop.f32.mrf.mxu0
  %v3467 = vadd.f32 %v3149, %v3466
  %v3468 = vand.u32 %v207, 4294901760
  %v3469 = vsub.f32 %v207, %v3468
  %3470 = vmatmul.f32.gmra.mxu0 %v3469
  %v3471 = vpop.f32.mrf.mxu0
  %v3472 = vadd.f32 %v3153, %v3471
  %v3473 = vand.u32 %v210, 4294901760
  %v3474 = vsub.f32 %v210, %v3473
  %3475 = vmatmul.f32.gmra.mxu0 %v3474
  %v3476 = vpop.f32.mrf.mxu0
  %v3477 = vadd.f32 %v3157, %v3476
  %v3478 = vand.u32 %v213, 4294901760
  %v3479 = vsub.f32 %v213, %v3478
  %3480 = vmatmul.f32.gmra.mxu0 %v3479
  %v3481 = vpop.f32.mrf.mxu0
  %v3482 = vadd.f32 %v3161, %v3481
  %v3483 = vand.u32 %v216, 4294901760
  %v3484 = vsub.f32 %v216, %v3483
  %3485 = vmatmul.f32.gmra.mxu0 %v3484
  %v3486 = vpop.f32.mrf.mxu0
  %v3487 = vadd.f32 %v3165, %v3486
  %v3488 = vand.u32 %v219, 4294901760
  %v3489 = vsub.f32 %v219, %v3488
  %3490 = vmatmul.f32.gmra.mxu0 %v3489
  %v3491 = vpop.f32.mrf.mxu0
  %v3492 = vadd.f32 %v3169, %v3491
  %v3493 = vand.u32 %v222, 4294901760
  %v3494 = vsub.f32 %v222, %v3493
  %3495 = vmatmul.f32.gmra.mxu0 %v3494
  %v3496 = vpop.f32.mrf.mxu0
  %v3497 = vadd.f32 %v3173, %v3496
  %v3498 = vand.u32 %v225, 4294901760
  %v3499 = vsub.f32 %v225, %v3498
  %3500 = vmatmul.f32.gmra.mxu0 %v3499
  %v3501 = vpop.f32.mrf.mxu0
  %v3502 = vadd.f32 %v3177, %v3501
  %v3503 = vand.u32 %v228, 4294901760
  %v3504 = vsub.f32 %v228, %v3503
  %3505 = vmatmul.f32.gmra.mxu0 %v3504
  %v3506 = vpop.f32.mrf.mxu0
  %v3507 = vadd.f32 %v3181, %v3506
  %v3508 = vand.u32 %v231, 4294901760
  %v3509 = vsub.f32 %v231, %v3508
  %3510 = vmatmul.f32.gmra.mxu0 %v3509
  %v3511 = vpop.f32.mrf.mxu0
  %v3512 = vadd.f32 %v3185, %v3511
  %v3513 = vand.u32 %v234, 4294901760
  %v3514 = vsub.f32 %v234, %v3513
  %3515 = vmatmul.f32.gmra.mxu0 %v3514
  %v3516 = vpop.f32.mrf.mxu0
  %v3517 = vadd.f32 %v3189, %v3516
  %v3518 = vand.u32 %v237, 4294901760
  %v3519 = vsub.f32 %v237, %v3518
  %3520 = vmatmul.f32.gmra.mxu0 %v3519
  %v3521 = vpop.f32.mrf.mxu0
  %v3522 = vadd.f32 %v3193, %v3521
  %v3523 = vand.u32 %v240, 4294901760
  %v3524 = vsub.f32 %v240, %v3523
  %3525 = vmatmul.f32.gmra.mxu0 %v3524
  %v3526 = vpop.f32.mrf.mxu0
  %v3527 = vadd.f32 %v3197, %v3526
  %v3528 = vand.u32 %v243, 4294901760
  %v3529 = vsub.f32 %v243, %v3528
  %3530 = vmatmul.f32.gmra.mxu0 %v3529
  %v3531 = vpop.f32.mrf.mxu0
  %v3532 = vadd.f32 %v3201, %v3531
  %v3533 = vand.u32 %v246, 4294901760
  %v3534 = vsub.f32 %v246, %v3533
  %3535 = vmatmul.f32.gmra.mxu0 %v3534
  %v3536 = vpop.f32.mrf.mxu0
  %v3537 = vadd.f32 %v3205, %v3536
  %v3538 = vand.u32 %v249, 4294901760
  %v3539 = vsub.f32 %v249, %v3538
  %3540 = vmatmul.f32.gmra.mxu0 %v3539
  %v3541 = vpop.f32.mrf.mxu0
  %v3542 = vadd.f32 %v3209, %v3541
  %v3543 = vand.u32 %v252, 4294901760
  %v3544 = vsub.f32 %v252, %v3543
  %3545 = vmatmul.f32.gmra.mxu0 %v3544
  %v3546 = vpop.f32.mrf.mxu0
  %v3547 = vadd.f32 %v3213, %v3546
  %v3548 = vand.u32 %v255, 4294901760
  %v3549 = vsub.f32 %v255, %v3548
  %3550 = vmatmul.f32.gmra.mxu0 %v3549
  %v3551 = vpop.f32.mrf.mxu0
  %v3552 = vadd.f32 %v3217, %v3551
  %v3553 = vand.u32 %v258, 4294901760
  %v3554 = vsub.f32 %v258, %v3553
  %3555 = vmatmul.f32.gmra.mxu0 %v3554
  %v3556 = vpop.f32.mrf.mxu0
  %v3557 = vadd.f32 %v3221, %v3556
  %v3558 = vand.u32 %v261, 4294901760
  %v3559 = vsub.f32 %v261, %v3558
  %3560 = vmatmul.f32.gmra.mxu0 %v3559
  %v3561 = vpop.f32.mrf.mxu0
  %v3562 = vadd.f32 %v3225, %v3561
  %v3563 = vand.u32 %v264, 4294901760
  %v3564 = vsub.f32 %v264, %v3563
  %3565 = vmatmul.f32.gmra.mxu0 %v3564
  %v3566 = vpop.f32.mrf.mxu0
  %v3567 = vadd.f32 %v3229, %v3566
  %v3568 = vand.u32 %v267, 4294901760
  %v3569 = vsub.f32 %v267, %v3568
  %3570 = vmatmul.f32.gmra.mxu0 %v3569
  %v3571 = vpop.f32.mrf.mxu0
  %v3572 = vadd.f32 %v3233, %v3571
  %v3573 = vand.u32 %v270, 4294901760
  %v3574 = vsub.f32 %v270, %v3573
  %3575 = vmatmul.f32.gmra.mxu0 %v3574
  %v3576 = vpop.f32.mrf.mxu0
  %v3577 = vadd.f32 %v3237, %v3576
  %v3578 = vand.u32 %v273, 4294901760
  %v3579 = vsub.f32 %v273, %v3578
  %3580 = vmatmul.f32.gmra.mxu0 %v3579
  %v3581 = vpop.f32.mrf.mxu0
  %v3582 = vadd.f32 %v3241, %v3581
  %v3583 = vand.u32 %v276, 4294901760
  %v3584 = vsub.f32 %v276, %v3583
  %3585 = vmatmul.f32.gmra.mxu0 %v3584
  %v3586 = vpop.f32.mrf.mxu0
  %v3587 = vadd.f32 %v3245, %v3586
  %v3588 = vand.u32 %v279, 4294901760
  %v3589 = vsub.f32 %v279, %v3588
  %3590 = vmatmul.f32.gmra.mxu0 %v3589
  %v3591 = vpop.f32.mrf.mxu0
  %v3592 = vadd.f32 %v3249, %v3591
  %v3593 = vand.u32 %v282, 4294901760
  %v3594 = vsub.f32 %v282, %v3593
  %3595 = vmatmul.f32.gmra.mxu0 %v3594
  %v3596 = vpop.f32.mrf.mxu0
  %v3597 = vadd.f32 %v3253, %v3596
  %v3598 = vand.u32 %v285, 4294901760
  %v3599 = vsub.f32 %v285, %v3598
  %3600 = vmatmul.f32.gmra.mxu0 %v3599
  %v3601 = vpop.f32.mrf.mxu0
  %v3602 = vadd.f32 %v3257, %v3601
  %3603 = vdwg.mxu0
  %3604 = vmatpush.msra.mxu0 0.0
  %3605 = vmatpush.msra.mxu0 0.0
  %3606 = vmatpush.msra.mxu0 0.0
  %3607 = vmatpush.msra.mxu0 0.0
  %3608 = vmatpush.msra.mxu0 0.0
  %3609 = vmatpush.msra.mxu0 0.0
  %3610 = vmatpush.msra.mxu0 0.0
  %3611 = vmatpush.msra.mxu0 0.0
  %3612 = vmatpush.msra.mxu0 0.0
  %3613 = vmatpush.msra.mxu0 0.0
  %3614 = vmatpush.msra.mxu0 0.0
  %3615 = vmatpush.msra.mxu0 0.0
  %v3616 = vand.u32 %v2428, 4294901760
  %3617 = vmatpush.msra.mxu0 %v3616
  %v3618 = vand.u32 %v2427, 4294901760
  %3619 = vmatpush.msra.mxu0 %v3618
  %v3620 = vand.u32 %v2426, 4294901760
  %3621 = vmatpush.msra.mxu0 %v3620
  %v3622 = vand.u32 %v2425, 4294901760
  %3623 = vmatpush.msra.mxu0 %v3622
  %v3624 = vand.u32 %v96, 4294901760
  %v3625 = vsub.f32 %v96, %v3624
  %v3626 = vand.u32 %v3625, 4294901760
  %3627 = vmatmul.f32.gmra.mxu0 %v3626
  %v3628 = vpop.f32.mrf.mxu0
  %v3629 = vadd.f32 %v3287, %v3628
  %v3630 = vand.u32 %v99, 4294901760
  %v3631 = vsub.f32 %v99, %v3630
  %v3632 = vand.u32 %v3631, 4294901760
  %3633 = vmatmul.f32.gmra.mxu0 %v3632
  %v3634 = vpop.f32.mrf.mxu0
  %v3635 = vadd.f32 %v3292, %v3634
  %v3636 = vand.u32 %v102, 4294901760
  %v3637 = vsub.f32 %v102, %v3636
  %v3638 = vand.u32 %v3637, 4294901760
  %3639 = vmatmul.f32.gmra.mxu0 %v3638
  %v3640 = vpop.f32.mrf.mxu0
  %v3641 = vadd.f32 %v3297, %v3640
  %v3642 = vand.u32 %v105, 4294901760
  %v3643 = vsub.f32 %v105, %v3642
  %v3644 = vand.u32 %v3643, 4294901760
  %3645 = vmatmul.f32.gmra.mxu0 %v3644
  %v3646 = vpop.f32.mrf.mxu0
  %v3647 = vadd.f32 %v3302, %v3646
  %v3648 = vand.u32 %v108, 4294901760
  %v3649 = vsub.f32 %v108, %v3648
  %v3650 = vand.u32 %v3649, 4294901760
  %3651 = vmatmul.f32.gmra.mxu0 %v3650
  %v3652 = vpop.f32.mrf.mxu0
  %v3653 = vadd.f32 %v3307, %v3652
  %v3654 = vand.u32 %v111, 4294901760
  %v3655 = vsub.f32 %v111, %v3654
  %v3656 = vand.u32 %v3655, 4294901760
  %3657 = vmatmul.f32.gmra.mxu0 %v3656
  %v3658 = vpop.f32.mrf.mxu0
  %v3659 = vadd.f32 %v3312, %v3658
  %v3660 = vand.u32 %v114, 4294901760
  %v3661 = vsub.f32 %v114, %v3660
  %v3662 = vand.u32 %v3661, 4294901760
  %3663 = vmatmul.f32.gmra.mxu0 %v3662
  %v3664 = vpop.f32.mrf.mxu0
  %v3665 = vadd.f32 %v3317, %v3664
  %v3666 = vand.u32 %v117, 4294901760
  %v3667 = vsub.f32 %v117, %v3666
  %v3668 = vand.u32 %v3667, 4294901760
  %3669 = vmatmul.f32.gmra.mxu0 %v3668
  %v3670 = vpop.f32.mrf.mxu0
  %v3671 = vadd.f32 %v3322, %v3670
  %v3672 = vand.u32 %v120, 4294901760
  %v3673 = vsub.f32 %v120, %v3672
  %v3674 = vand.u32 %v3673, 4294901760
  %3675 = vmatmul.f32.gmra.mxu0 %v3674
  %v3676 = vpop.f32.mrf.mxu0
  %v3677 = vadd.f32 %v3327, %v3676
  %v3678 = vand.u32 %v123, 4294901760
  %v3679 = vsub.f32 %v123, %v3678
  %v3680 = vand.u32 %v3679, 4294901760
  %3681 = vmatmul.f32.gmra.mxu0 %v3680
  %v3682 = vpop.f32.mrf.mxu0
  %v3683 = vadd.f32 %v3332, %v3682
  %v3684 = vand.u32 %v126, 4294901760
  %v3685 = vsub.f32 %v126, %v3684
  %v3686 = vand.u32 %v3685, 4294901760
  %3687 = vmatmul.f32.gmra.mxu0 %v3686
  %v3688 = vpop.f32.mrf.mxu0
  %v3689 = vadd.f32 %v3337, %v3688
  %v3690 = vand.u32 %v129, 4294901760
  %v3691 = vsub.f32 %v129, %v3690
  %v3692 = vand.u32 %v3691, 4294901760
  %3693 = vmatmul.f32.gmra.mxu0 %v3692
  %v3694 = vpop.f32.mrf.mxu0
  %v3695 = vadd.f32 %v3342, %v3694
  %v3696 = vand.u32 %v132, 4294901760
  %v3697 = vsub.f32 %v132, %v3696
  %v3698 = vand.u32 %v3697, 4294901760
  %3699 = vmatmul.f32.gmra.mxu0 %v3698
  %v3700 = vpop.f32.mrf.mxu0
  %v3701 = vadd.f32 %v3347, %v3700
  %v3702 = vand.u32 %v135, 4294901760
  %v3703 = vsub.f32 %v135, %v3702
  %v3704 = vand.u32 %v3703, 4294901760
  %3705 = vmatmul.f32.gmra.mxu0 %v3704
  %v3706 = vpop.f32.mrf.mxu0
  %v3707 = vadd.f32 %v3352, %v3706
  %v3708 = vand.u32 %v138, 4294901760
  %v3709 = vsub.f32 %v138, %v3708
  %v3710 = vand.u32 %v3709, 4294901760
  %3711 = vmatmul.f32.gmra.mxu0 %v3710
  %v3712 = vpop.f32.mrf.mxu0
  %v3713 = vadd.f32 %v3357, %v3712
  %v3714 = vand.u32 %v141, 4294901760
  %v3715 = vsub.f32 %v141, %v3714
  %v3716 = vand.u32 %v3715, 4294901760
  %3717 = vmatmul.f32.gmra.mxu0 %v3716
  %v3718 = vpop.f32.mrf.mxu0
  %v3719 = vadd.f32 %v3362, %v3718
  %v3720 = vand.u32 %v144, 4294901760
  %v3721 = vsub.f32 %v144, %v3720
  %v3722 = vand.u32 %v3721, 4294901760
  %3723 = vmatmul.f32.gmra.mxu0 %v3722
  %v3724 = vpop.f32.mrf.mxu0
  %v3725 = vadd.f32 %v3367, %v3724
  %v3726 = vand.u32 %v147, 4294901760
  %v3727 = vsub.f32 %v147, %v3726
  %v3728 = vand.u32 %v3727, 4294901760
  %3729 = vmatmul.f32.gmra.mxu0 %v3728
  %v3730 = vpop.f32.mrf.mxu0
  %v3731 = vadd.f32 %v3372, %v3730
  %v3732 = vand.u32 %v150, 4294901760
  %v3733 = vsub.f32 %v150, %v3732
  %v3734 = vand.u32 %v3733, 4294901760
  %3735 = vmatmul.f32.gmra.mxu0 %v3734
  %v3736 = vpop.f32.mrf.mxu0
  %v3737 = vadd.f32 %v3377, %v3736
  %v3738 = vand.u32 %v153, 4294901760
  %v3739 = vsub.f32 %v153, %v3738
  %v3740 = vand.u32 %v3739, 4294901760
  %3741 = vmatmul.f32.gmra.mxu0 %v3740
  %v3742 = vpop.f32.mrf.mxu0
  %v3743 = vadd.f32 %v3382, %v3742
  %v3744 = vand.u32 %v156, 4294901760
  %v3745 = vsub.f32 %v156, %v3744
  %v3746 = vand.u32 %v3745, 4294901760
  %3747 = vmatmul.f32.gmra.mxu0 %v3746
  %v3748 = vpop.f32.mrf.mxu0
  %v3749 = vadd.f32 %v3387, %v3748
  %v3750 = vand.u32 %v159, 4294901760
  %v3751 = vsub.f32 %v159, %v3750
  %v3752 = vand.u32 %v3751, 4294901760
  %3753 = vmatmul.f32.gmra.mxu0 %v3752
  %v3754 = vpop.f32.mrf.mxu0
  %v3755 = vadd.f32 %v3392, %v3754
  %v3756 = vand.u32 %v162, 4294901760
  %v3757 = vsub.f32 %v162, %v3756
  %v3758 = vand.u32 %v3757, 4294901760
  %3759 = vmatmul.f32.gmra.mxu0 %v3758
  %v3760 = vpop.f32.mrf.mxu0
  %v3761 = vadd.f32 %v3397, %v3760
  %v3762 = vand.u32 %v165, 4294901760
  %v3763 = vsub.f32 %v165, %v3762
  %v3764 = vand.u32 %v3763, 4294901760
  %3765 = vmatmul.f32.gmra.mxu0 %v3764
  %v3766 = vpop.f32.mrf.mxu0
  %v3767 = vadd.f32 %v3402, %v3766
  %v3768 = vand.u32 %v168, 4294901760
  %v3769 = vsub.f32 %v168, %v3768
  %v3770 = vand.u32 %v3769, 4294901760
  %3771 = vmatmul.f32.gmra.mxu0 %v3770
  %v3772 = vpop.f32.mrf.mxu0
  %v3773 = vadd.f32 %v3407, %v3772
  %v3774 = vand.u32 %v171, 4294901760
  %v3775 = vsub.f32 %v171, %v3774
  %v3776 = vand.u32 %v3775, 4294901760
  %3777 = vmatmul.f32.gmra.mxu0 %v3776
  %v3778 = vpop.f32.mrf.mxu0
  %v3779 = vadd.f32 %v3412, %v3778
  %v3780 = vand.u32 %v174, 4294901760
  %v3781 = vsub.f32 %v174, %v3780
  %v3782 = vand.u32 %v3781, 4294901760
  %3783 = vmatmul.f32.gmra.mxu0 %v3782
  %v3784 = vpop.f32.mrf.mxu0
  %v3785 = vadd.f32 %v3417, %v3784
  %v3786 = vand.u32 %v177, 4294901760
  %v3787 = vsub.f32 %v177, %v3786
  %v3788 = vand.u32 %v3787, 4294901760
  %3789 = vmatmul.f32.gmra.mxu0 %v3788
  %v3790 = vpop.f32.mrf.mxu0
  %v3791 = vadd.f32 %v3422, %v3790
  %v3792 = vand.u32 %v180, 4294901760
  %v3793 = vsub.f32 %v180, %v3792
  %v3794 = vand.u32 %v3793, 4294901760
  %3795 = vmatmul.f32.gmra.mxu0 %v3794
  %v3796 = vpop.f32.mrf.mxu0
  %v3797 = vadd.f32 %v3427, %v3796
  %v3798 = vand.u32 %v183, 4294901760
  %v3799 = vsub.f32 %v183, %v3798
  %v3800 = vand.u32 %v3799, 4294901760
  %3801 = vmatmul.f32.gmra.mxu0 %v3800
  %v3802 = vpop.f32.mrf.mxu0
  %v3803 = vadd.f32 %v3432, %v3802
  %v3804 = vand.u32 %v186, 4294901760
  %v3805 = vsub.f32 %v186, %v3804
  %v3806 = vand.u32 %v3805, 4294901760
  %3807 = vmatmul.f32.gmra.mxu0 %v3806
  %v3808 = vpop.f32.mrf.mxu0
  %v3809 = vadd.f32 %v3437, %v3808
  %v3810 = vand.u32 %v189, 4294901760
  %v3811 = vsub.f32 %v189, %v3810
  %v3812 = vand.u32 %v3811, 4294901760
  %3813 = vmatmul.f32.gmra.mxu0 %v3812
  %v3814 = vpop.f32.mrf.mxu0
  %v3815 = vadd.f32 %v3442, %v3814
  %v3816 = vand.u32 %v192, 4294901760
  %v3817 = vsub.f32 %v192, %v3816
  %v3818 = vand.u32 %v3817, 4294901760
  %3819 = vmatmul.f32.gmra.mxu0 %v3818
  %v3820 = vpop.f32.mrf.mxu0
  %v3821 = vadd.f32 %v3447, %v3820
  %v3822 = vand.u32 %v195, 4294901760
  %v3823 = vsub.f32 %v195, %v3822
  %v3824 = vand.u32 %v3823, 4294901760
  %3825 = vmatmul.f32.gmra.mxu0 %v3824
  %v3826 = vpop.f32.mrf.mxu0
  %v3827 = vadd.f32 %v3452, %v3826
  %v3828 = vand.u32 %v198, 4294901760
  %v3829 = vsub.f32 %v198, %v3828
  %v3830 = vand.u32 %v3829, 4294901760
  %3831 = vmatmul.f32.gmra.mxu0 %v3830
  %v3832 = vpop.f32.mrf.mxu0
  %v3833 = vadd.f32 %v3457, %v3832
  %v3834 = vand.u32 %v201, 4294901760
  %v3835 = vsub.f32 %v201, %v3834
  %v3836 = vand.u32 %v3835, 4294901760
  %3837 = vmatmul.f32.gmra.mxu0 %v3836
  %v3838 = vpop.f32.mrf.mxu0
  %v3839 = vadd.f32 %v3462, %v3838
  %v3840 = vand.u32 %v204, 4294901760
  %v3841 = vsub.f32 %v204, %v3840
  %v3842 = vand.u32 %v3841, 4294901760
  %3843 = vmatmul.f32.gmra.mxu0 %v3842
  %v3844 = vpop.f32.mrf.mxu0
  %v3845 = vadd.f32 %v3467, %v3844
  %v3846 = vand.u32 %v207, 4294901760
  %v3847 = vsub.f32 %v207, %v3846
  %v3848 = vand.u32 %v3847, 4294901760
  %3849 = vmatmul.f32.gmra.mxu0 %v3848
  %v3850 = vpop.f32.mrf.mxu0
  %v3851 = vadd.f32 %v3472, %v3850
  %v3852 = vand.u32 %v210, 4294901760
  %v3853 = vsub.f32 %v210, %v3852
  %v3854 = vand.u32 %v3853, 4294901760
  %3855 = vmatmul.f32.gmra.mxu0 %v3854
  %v3856 = vpop.f32.mrf.mxu0
  %v3857 = vadd.f32 %v3477, %v3856
  %v3858 = vand.u32 %v213, 4294901760
  %v3859 = vsub.f32 %v213, %v3858
  %v3860 = vand.u32 %v3859, 4294901760
  %3861 = vmatmul.f32.gmra.mxu0 %v3860
  %v3862 = vpop.f32.mrf.mxu0
  %v3863 = vadd.f32 %v3482, %v3862
  %v3864 = vand.u32 %v216, 4294901760
  %v3865 = vsub.f32 %v216, %v3864
  %v3866 = vand.u32 %v3865, 4294901760
  %3867 = vmatmul.f32.gmra.mxu0 %v3866
  %v3868 = vpop.f32.mrf.mxu0
  %v3869 = vadd.f32 %v3487, %v3868
  %v3870 = vand.u32 %v219, 4294901760
  %v3871 = vsub.f32 %v219, %v3870
  %v3872 = vand.u32 %v3871, 4294901760
  %3873 = vmatmul.f32.gmra.mxu0 %v3872
  %v3874 = vpop.f32.mrf.mxu0
  %v3875 = vadd.f32 %v3492, %v3874
  %v3876 = vand.u32 %v222, 4294901760
  %v3877 = vsub.f32 %v222, %v3876
  %v3878 = vand.u32 %v3877, 4294901760
  %3879 = vmatmul.f32.gmra.mxu0 %v3878
  %v3880 = vpop.f32.mrf.mxu0
  %v3881 = vadd.f32 %v3497, %v3880
  %v3882 = vand.u32 %v225, 4294901760
  %v3883 = vsub.f32 %v225, %v3882
  %v3884 = vand.u32 %v3883, 4294901760
  %3885 = vmatmul.f32.gmra.mxu0 %v3884
  %v3886 = vpop.f32.mrf.mxu0
  %v3887 = vadd.f32 %v3502, %v3886
  %v3888 = vand.u32 %v228, 4294901760
  %v3889 = vsub.f32 %v228, %v3888
  %v3890 = vand.u32 %v3889, 4294901760
  %3891 = vmatmul.f32.gmra.mxu0 %v3890
  %v3892 = vpop.f32.mrf.mxu0
  %v3893 = vadd.f32 %v3507, %v3892
  %v3894 = vand.u32 %v231, 4294901760
  %v3895 = vsub.f32 %v231, %v3894
  %v3896 = vand.u32 %v3895, 4294901760
  %3897 = vmatmul.f32.gmra.mxu0 %v3896
  %v3898 = vpop.f32.mrf.mxu0
  %v3899 = vadd.f32 %v3512, %v3898
  %v3900 = vand.u32 %v234, 4294901760
  %v3901 = vsub.f32 %v234, %v3900
  %v3902 = vand.u32 %v3901, 4294901760
  %3903 = vmatmul.f32.gmra.mxu0 %v3902
  %v3904 = vpop.f32.mrf.mxu0
  %v3905 = vadd.f32 %v3517, %v3904
  %v3906 = vand.u32 %v237, 4294901760
  %v3907 = vsub.f32 %v237, %v3906
  %v3908 = vand.u32 %v3907, 4294901760
  %3909 = vmatmul.f32.gmra.mxu0 %v3908
  %v3910 = vpop.f32.mrf.mxu0
  %v3911 = vadd.f32 %v3522, %v3910
  %v3912 = vand.u32 %v240, 4294901760
  %v3913 = vsub.f32 %v240, %v3912
  %v3914 = vand.u32 %v3913, 4294901760
  %3915 = vmatmul.f32.gmra.mxu0 %v3914
  %v3916 = vpop.f32.mrf.mxu0
  %v3917 = vadd.f32 %v3527, %v3916
  %v3918 = vand.u32 %v243, 4294901760
  %v3919 = vsub.f32 %v243, %v3918
  %v3920 = vand.u32 %v3919, 4294901760
  %3921 = vmatmul.f32.gmra.mxu0 %v3920
  %v3922 = vpop.f32.mrf.mxu0
  %v3923 = vadd.f32 %v3532, %v3922
  %v3924 = vand.u32 %v246, 4294901760
  %v3925 = vsub.f32 %v246, %v3924
  %v3926 = vand.u32 %v3925, 4294901760
  %3927 = vmatmul.f32.gmra.mxu0 %v3926
  %v3928 = vpop.f32.mrf.mxu0
  %v3929 = vadd.f32 %v3537, %v3928
  %v3930 = vand.u32 %v249, 4294901760
  %v3931 = vsub.f32 %v249, %v3930
  %v3932 = vand.u32 %v3931, 4294901760
  %3933 = vmatmul.f32.gmra.mxu0 %v3932
  %v3934 = vpop.f32.mrf.mxu0
  %v3935 = vadd.f32 %v3542, %v3934
  %v3936 = vand.u32 %v252, 4294901760
  %v3937 = vsub.f32 %v252, %v3936
  %v3938 = vand.u32 %v3937, 4294901760
  %3939 = vmatmul.f32.gmra.mxu0 %v3938
  %v3940 = vpop.f32.mrf.mxu0
  %v3941 = vadd.f32 %v3547, %v3940
  %v3942 = vand.u32 %v255, 4294901760
  %v3943 = vsub.f32 %v255, %v3942
  %v3944 = vand.u32 %v3943, 4294901760
  %3945 = vmatmul.f32.gmra.mxu0 %v3944
  %v3946 = vpop.f32.mrf.mxu0
  %v3947 = vadd.f32 %v3552, %v3946
  %v3948 = vand.u32 %v258, 4294901760
  %v3949 = vsub.f32 %v258, %v3948
  %v3950 = vand.u32 %v3949, 4294901760
  %3951 = vmatmul.f32.gmra.mxu0 %v3950
  %v3952 = vpop.f32.mrf.mxu0
  %v3953 = vadd.f32 %v3557, %v3952
  %v3954 = vand.u32 %v261, 4294901760
  %v3955 = vsub.f32 %v261, %v3954
  %v3956 = vand.u32 %v3955, 4294901760
  %3957 = vmatmul.f32.gmra.mxu0 %v3956
  %v3958 = vpop.f32.mrf.mxu0
  %v3959 = vadd.f32 %v3562, %v3958
  %v3960 = vand.u32 %v264, 4294901760
  %v3961 = vsub.f32 %v264, %v3960
  %v3962 = vand.u32 %v3961, 4294901760
  %3963 = vmatmul.f32.gmra.mxu0 %v3962
  %v3964 = vpop.f32.mrf.mxu0
  %v3965 = vadd.f32 %v3567, %v3964
  %v3966 = vand.u32 %v267, 4294901760
  %v3967 = vsub.f32 %v267, %v3966
  %v3968 = vand.u32 %v3967, 4294901760
  %3969 = vmatmul.f32.gmra.mxu0 %v3968
  %v3970 = vpop.f32.mrf.mxu0
  %v3971 = vadd.f32 %v3572, %v3970
  %v3972 = vand.u32 %v270, 4294901760
  %v3973 = vsub.f32 %v270, %v3972
  %v3974 = vand.u32 %v3973, 4294901760
  %3975 = vmatmul.f32.gmra.mxu0 %v3974
  %v3976 = vpop.f32.mrf.mxu0
  %v3977 = vadd.f32 %v3577, %v3976
  %v3978 = vand.u32 %v273, 4294901760
  %v3979 = vsub.f32 %v273, %v3978
  %v3980 = vand.u32 %v3979, 4294901760
  %3981 = vmatmul.f32.gmra.mxu0 %v3980
  %v3982 = vpop.f32.mrf.mxu0
  %v3983 = vadd.f32 %v3582, %v3982
  %v3984 = vand.u32 %v276, 4294901760
  %v3985 = vsub.f32 %v276, %v3984
  %v3986 = vand.u32 %v3985, 4294901760
  %3987 = vmatmul.f32.gmra.mxu0 %v3986
  %v3988 = vpop.f32.mrf.mxu0
  %v3989 = vadd.f32 %v3587, %v3988
  %v3990 = vand.u32 %v279, 4294901760
  %v3991 = vsub.f32 %v279, %v3990
  %v3992 = vand.u32 %v3991, 4294901760
  %3993 = vmatmul.f32.gmra.mxu0 %v3992
  %v3994 = vpop.f32.mrf.mxu0
  %v3995 = vadd.f32 %v3592, %v3994
  %v3996 = vand.u32 %v282, 4294901760
  %v3997 = vsub.f32 %v282, %v3996
  %v3998 = vand.u32 %v3997, 4294901760
  %3999 = vmatmul.f32.gmra.mxu0 %v3998
  %v4000 = vpop.f32.mrf.mxu0
  %v4001 = vadd.f32 %v3597, %v4000
  %v4002 = vand.u32 %v285, 4294901760
  %v4003 = vsub.f32 %v285, %v4002
  %v4004 = vand.u32 %v4003, 4294901760
  %4005 = vmatmul.f32.gmra.mxu0 %v4004
  %v4006 = vpop.f32.mrf.mxu0
  %v4007 = vadd.f32 %v3602, %v4006
  %4008 = vdwg.mxu0
  %4009 = vmatpush.msra.mxu0 0.0
  %4010 = vmatpush.msra.mxu0 0.0
  %4011 = vmatpush.msra.mxu0 0.0
  %4012 = vmatpush.msra.mxu0 0.0
  %4013 = vmatpush.msra.mxu0 0.0
  %4014 = vmatpush.msra.mxu0 0.0
  %4015 = vmatpush.msra.mxu0 0.0
  %4016 = vmatpush.msra.mxu0 0.0
  %4017 = vmatpush.msra.mxu0 0.0
  %4018 = vmatpush.msra.mxu0 0.0
  %4019 = vmatpush.msra.mxu0 0.0
  %4020 = vmatpush.msra.mxu0 0.0
  %v4021 = vand.u32 %v2428, 4294901760
  %v4022 = vsub.f32 %v2428, %v4021
  %v4023 = vand.u32 %v4022, 4294901760
  %4024 = vmatpush.msra.mxu0 %v4023
  %v4025 = vand.u32 %v2427, 4294901760
  %v4026 = vsub.f32 %v2427, %v4025
  %v4027 = vand.u32 %v4026, 4294901760
  %4028 = vmatpush.msra.mxu0 %v4027
  %v4029 = vand.u32 %v2426, 4294901760
  %v4030 = vsub.f32 %v2426, %v4029
  %v4031 = vand.u32 %v4030, 4294901760
  %4032 = vmatpush.msra.mxu0 %v4031
  %v4033 = vand.u32 %v2425, 4294901760
  %v4034 = vsub.f32 %v2425, %v4033
  %v4035 = vand.u32 %v4034, 4294901760
  %4036 = vmatpush.msra.mxu0 %v4035
  %v4037 = vand.u32 %v96, 4294901760
  %4038 = vmatmul.f32.gmra.mxu0 %v4037
  %v4039 = vpop.f32.mrf.mxu0
  %v4040 = vadd.f32 %v3629, %v4039
  %v4041 = vand.u32 %v99, 4294901760
  %4042 = vmatmul.f32.gmra.mxu0 %v4041
  %v4043 = vpop.f32.mrf.mxu0
  %v4044 = vadd.f32 %v3635, %v4043
  %v4045 = vand.u32 %v102, 4294901760
  %4046 = vmatmul.f32.gmra.mxu0 %v4045
  %v4047 = vpop.f32.mrf.mxu0
  %v4048 = vadd.f32 %v3641, %v4047
  %v4049 = vand.u32 %v105, 4294901760
  %4050 = vmatmul.f32.gmra.mxu0 %v4049
  %v4051 = vpop.f32.mrf.mxu0
  %v4052 = vadd.f32 %v3647, %v4051
  %v4053 = vand.u32 %v108, 4294901760
  %4054 = vmatmul.f32.gmra.mxu0 %v4053
  %v4055 = vpop.f32.mrf.mxu0
  %v4056 = vadd.f32 %v3653, %v4055
  %v4057 = vand.u32 %v111, 4294901760
  %4058 = vmatmul.f32.gmra.mxu0 %v4057
  %v4059 = vpop.f32.mrf.mxu0
  %v4060 = vadd.f32 %v3659, %v4059
  %v4061 = vand.u32 %v114, 4294901760
  %4062 = vmatmul.f32.gmra.mxu0 %v4061
  %v4063 = vpop.f32.mrf.mxu0
  %v4064 = vadd.f32 %v3665, %v4063
  %v4065 = vand.u32 %v117, 4294901760
  %4066 = vmatmul.f32.gmra.mxu0 %v4065
  %v4067 = vpop.f32.mrf.mxu0
  %v4068 = vadd.f32 %v3671, %v4067
  %v4069 = vand.u32 %v120, 4294901760
  %4070 = vmatmul.f32.gmra.mxu0 %v4069
  %v4071 = vpop.f32.mrf.mxu0
  %v4072 = vadd.f32 %v3677, %v4071
  %v4073 = vand.u32 %v123, 4294901760
  %4074 = vmatmul.f32.gmra.mxu0 %v4073
  %v4075 = vpop.f32.mrf.mxu0
  %v4076 = vadd.f32 %v3683, %v4075
  %v4077 = vand.u32 %v126, 4294901760
  %4078 = vmatmul.f32.gmra.mxu0 %v4077
  %v4079 = vpop.f32.mrf.mxu0
  %v4080 = vadd.f32 %v3689, %v4079
  %v4081 = vand.u32 %v129, 4294901760
  %4082 = vmatmul.f32.gmra.mxu0 %v4081
  %v4083 = vpop.f32.mrf.mxu0
  %v4084 = vadd.f32 %v3695, %v4083
  %v4085 = vand.u32 %v132, 4294901760
  %4086 = vmatmul.f32.gmra.mxu0 %v4085
  %v4087 = vpop.f32.mrf.mxu0
  %v4088 = vadd.f32 %v3701, %v4087
  %v4089 = vand.u32 %v135, 4294901760
  %4090 = vmatmul.f32.gmra.mxu0 %v4089
  %v4091 = vpop.f32.mrf.mxu0
  %v4092 = vadd.f32 %v3707, %v4091
  %v4093 = vand.u32 %v138, 4294901760
  %4094 = vmatmul.f32.gmra.mxu0 %v4093
  %v4095 = vpop.f32.mrf.mxu0
  %v4096 = vadd.f32 %v3713, %v4095
  %v4097 = vand.u32 %v141, 4294901760
  %4098 = vmatmul.f32.gmra.mxu0 %v4097
  %v4099 = vpop.f32.mrf.mxu0
  %v4100 = vadd.f32 %v3719, %v4099
  %v4101 = vand.u32 %v144, 4294901760
  %4102 = vmatmul.f32.gmra.mxu0 %v4101
  %v4103 = vpop.f32.mrf.mxu0
  %v4104 = vadd.f32 %v3725, %v4103
  %v4105 = vand.u32 %v147, 4294901760
  %4106 = vmatmul.f32.gmra.mxu0 %v4105
  %v4107 = vpop.f32.mrf.mxu0
  %v4108 = vadd.f32 %v3731, %v4107
  %v4109 = vand.u32 %v150, 4294901760
  %4110 = vmatmul.f32.gmra.mxu0 %v4109
  %v4111 = vpop.f32.mrf.mxu0
  %v4112 = vadd.f32 %v3737, %v4111
  %v4113 = vand.u32 %v153, 4294901760
  %4114 = vmatmul.f32.gmra.mxu0 %v4113
  %v4115 = vpop.f32.mrf.mxu0
  %v4116 = vadd.f32 %v3743, %v4115
  %v4117 = vand.u32 %v156, 4294901760
  %4118 = vmatmul.f32.gmra.mxu0 %v4117
  %v4119 = vpop.f32.mrf.mxu0
  %v4120 = vadd.f32 %v3749, %v4119
  %v4121 = vand.u32 %v159, 4294901760
  %4122 = vmatmul.f32.gmra.mxu0 %v4121
  %v4123 = vpop.f32.mrf.mxu0
  %v4124 = vadd.f32 %v3755, %v4123
  %v4125 = vand.u32 %v162, 4294901760
  %4126 = vmatmul.f32.gmra.mxu0 %v4125
  %v4127 = vpop.f32.mrf.mxu0
  %v4128 = vadd.f32 %v3761, %v4127
  %v4129 = vand.u32 %v165, 4294901760
  %4130 = vmatmul.f32.gmra.mxu0 %v4129
  %v4131 = vpop.f32.mrf.mxu0
  %v4132 = vadd.f32 %v3767, %v4131
  %v4133 = vand.u32 %v168, 4294901760
  %4134 = vmatmul.f32.gmra.mxu0 %v4133
  %v4135 = vpop.f32.mrf.mxu0
  %v4136 = vadd.f32 %v3773, %v4135
  %v4137 = vand.u32 %v171, 4294901760
  %4138 = vmatmul.f32.gmra.mxu0 %v4137
  %v4139 = vpop.f32.mrf.mxu0
  %v4140 = vadd.f32 %v3779, %v4139
  %v4141 = vand.u32 %v174, 4294901760
  %4142 = vmatmul.f32.gmra.mxu0 %v4141
  %v4143 = vpop.f32.mrf.mxu0
  %v4144 = vadd.f32 %v3785, %v4143
  %v4145 = vand.u32 %v177, 4294901760
  %4146 = vmatmul.f32.gmra.mxu0 %v4145
  %v4147 = vpop.f32.mrf.mxu0
  %v4148 = vadd.f32 %v3791, %v4147
  %v4149 = vand.u32 %v180, 4294901760
  %4150 = vmatmul.f32.gmra.mxu0 %v4149
  %v4151 = vpop.f32.mrf.mxu0
  %v4152 = vadd.f32 %v3797, %v4151
  %v4153 = vand.u32 %v183, 4294901760
  %4154 = vmatmul.f32.gmra.mxu0 %v4153
  %v4155 = vpop.f32.mrf.mxu0
  %v4156 = vadd.f32 %v3803, %v4155
  %v4157 = vand.u32 %v186, 4294901760
  %4158 = vmatmul.f32.gmra.mxu0 %v4157
  %v4159 = vpop.f32.mrf.mxu0
  %v4160 = vadd.f32 %v3809, %v4159
  %v4161 = vand.u32 %v189, 4294901760
  %4162 = vmatmul.f32.gmra.mxu0 %v4161
  %v4163 = vpop.f32.mrf.mxu0
  %v4164 = vadd.f32 %v3815, %v4163
  %v4165 = vand.u32 %v192, 4294901760
  %4166 = vmatmul.f32.gmra.mxu0 %v4165
  %v4167 = vpop.f32.mrf.mxu0
  %v4168 = vadd.f32 %v3821, %v4167
  %v4169 = vand.u32 %v195, 4294901760
  %4170 = vmatmul.f32.gmra.mxu0 %v4169
  %v4171 = vpop.f32.mrf.mxu0
  %v4172 = vadd.f32 %v3827, %v4171
  %v4173 = vand.u32 %v198, 4294901760
  %4174 = vmatmul.f32.gmra.mxu0 %v4173
  %v4175 = vpop.f32.mrf.mxu0
  %v4176 = vadd.f32 %v3833, %v4175
  %v4177 = vand.u32 %v201, 4294901760
  %4178 = vmatmul.f32.gmra.mxu0 %v4177
  %v4179 = vpop.f32.mrf.mxu0
  %v4180 = vadd.f32 %v3839, %v4179
  %v4181 = vand.u32 %v204, 4294901760
  %4182 = vmatmul.f32.gmra.mxu0 %v4181
  %v4183 = vpop.f32.mrf.mxu0
  %v4184 = vadd.f32 %v3845, %v4183
  %v4185 = vand.u32 %v207, 4294901760
  %4186 = vmatmul.f32.gmra.mxu0 %v4185
  %v4187 = vpop.f32.mrf.mxu0
  %v4188 = vadd.f32 %v3851, %v4187
  %v4189 = vand.u32 %v210, 4294901760
  %4190 = vmatmul.f32.gmra.mxu0 %v4189
  %v4191 = vpop.f32.mrf.mxu0
  %v4192 = vadd.f32 %v3857, %v4191
  %v4193 = vand.u32 %v213, 4294901760
  %4194 = vmatmul.f32.gmra.mxu0 %v4193
  %v4195 = vpop.f32.mrf.mxu0
  %v4196 = vadd.f32 %v3863, %v4195
  %v4197 = vand.u32 %v216, 4294901760
  %4198 = vmatmul.f32.gmra.mxu0 %v4197
  %v4199 = vpop.f32.mrf.mxu0
  %v4200 = vadd.f32 %v3869, %v4199
  %v4201 = vand.u32 %v219, 4294901760
  %4202 = vmatmul.f32.gmra.mxu0 %v4201
  %v4203 = vpop.f32.mrf.mxu0
  %v4204 = vadd.f32 %v3875, %v4203
  %v4205 = vand.u32 %v222, 4294901760
  %4206 = vmatmul.f32.gmra.mxu0 %v4205
  %v4207 = vpop.f32.mrf.mxu0
  %v4208 = vadd.f32 %v3881, %v4207
  %v4209 = vand.u32 %v225, 4294901760
  %4210 = vmatmul.f32.gmra.mxu0 %v4209
  %v4211 = vpop.f32.mrf.mxu0
  %v4212 = vadd.f32 %v3887, %v4211
  %v4213 = vand.u32 %v228, 4294901760
  %4214 = vmatmul.f32.gmra.mxu0 %v4213
  %v4215 = vpop.f32.mrf.mxu0
  %v4216 = vadd.f32 %v3893, %v4215
  %v4217 = vand.u32 %v231, 4294901760
  %4218 = vmatmul.f32.gmra.mxu0 %v4217
  %v4219 = vpop.f32.mrf.mxu0
  %v4220 = vadd.f32 %v3899, %v4219
  %v4221 = vand.u32 %v234, 4294901760
  %4222 = vmatmul.f32.gmra.mxu0 %v4221
  %v4223 = vpop.f32.mrf.mxu0
  %v4224 = vadd.f32 %v3905, %v4223
  %v4225 = vand.u32 %v237, 4294901760
  %4226 = vmatmul.f32.gmra.mxu0 %v4225
  %v4227 = vpop.f32.mrf.mxu0
  %v4228 = vadd.f32 %v3911, %v4227
  %v4229 = vand.u32 %v240, 4294901760
  %4230 = vmatmul.f32.gmra.mxu0 %v4229
  %v4231 = vpop.f32.mrf.mxu0
  %v4232 = vadd.f32 %v3917, %v4231
  %v4233 = vand.u32 %v243, 4294901760
  %4234 = vmatmul.f32.gmra.mxu0 %v4233
  %v4235 = vpop.f32.mrf.mxu0
  %v4236 = vadd.f32 %v3923, %v4235
  %v4237 = vand.u32 %v246, 4294901760
  %4238 = vmatmul.f32.gmra.mxu0 %v4237
  %v4239 = vpop.f32.mrf.mxu0
  %v4240 = vadd.f32 %v3929, %v4239
  %v4241 = vand.u32 %v249, 4294901760
  %4242 = vmatmul.f32.gmra.mxu0 %v4241
  %v4243 = vpop.f32.mrf.mxu0
  %v4244 = vadd.f32 %v3935, %v4243
  %v4245 = vand.u32 %v252, 4294901760
  %4246 = vmatmul.f32.gmra.mxu0 %v4245
  %v4247 = vpop.f32.mrf.mxu0
  %v4248 = vadd.f32 %v3941, %v4247
  %v4249 = vand.u32 %v255, 4294901760
  %4250 = vmatmul.f32.gmra.mxu0 %v4249
  %v4251 = vpop.f32.mrf.mxu0
  %v4252 = vadd.f32 %v3947, %v4251
  %v4253 = vand.u32 %v258, 4294901760
  %4254 = vmatmul.f32.gmra.mxu0 %v4253
  %v4255 = vpop.f32.mrf.mxu0
  %v4256 = vadd.f32 %v3953, %v4255
  %v4257 = vand.u32 %v261, 4294901760
  %4258 = vmatmul.f32.gmra.mxu0 %v4257
  %v4259 = vpop.f32.mrf.mxu0
  %v4260 = vadd.f32 %v3959, %v4259
  %v4261 = vand.u32 %v264, 4294901760
  %4262 = vmatmul.f32.gmra.mxu0 %v4261
  %v4263 = vpop.f32.mrf.mxu0
  %v4264 = vadd.f32 %v3965, %v4263
  %v4265 = vand.u32 %v267, 4294901760
  %4266 = vmatmul.f32.gmra.mxu0 %v4265
  %v4267 = vpop.f32.mrf.mxu0
  %v4268 = vadd.f32 %v3971, %v4267
  %v4269 = vand.u32 %v270, 4294901760
  %4270 = vmatmul.f32.gmra.mxu0 %v4269
  %v4271 = vpop.f32.mrf.mxu0
  %v4272 = vadd.f32 %v3977, %v4271
  %v4273 = vand.u32 %v273, 4294901760
  %4274 = vmatmul.f32.gmra.mxu0 %v4273
  %v4275 = vpop.f32.mrf.mxu0
  %v4276 = vadd.f32 %v3983, %v4275
  %v4277 = vand.u32 %v276, 4294901760
  %4278 = vmatmul.f32.gmra.mxu0 %v4277
  %v4279 = vpop.f32.mrf.mxu0
  %v4280 = vadd.f32 %v3989, %v4279
  %v4281 = vand.u32 %v279, 4294901760
  %4282 = vmatmul.f32.gmra.mxu0 %v4281
  %v4283 = vpop.f32.mrf.mxu0
  %v4284 = vadd.f32 %v3995, %v4283
  %v4285 = vand.u32 %v282, 4294901760
  %4286 = vmatmul.f32.gmra.mxu0 %v4285
  %v4287 = vpop.f32.mrf.mxu0
  %v4288 = vadd.f32 %v4001, %v4287
  %v4289 = vand.u32 %v285, 4294901760
  %4290 = vmatmul.f32.gmra.mxu0 %v4289
  %v4291 = vpop.f32.mrf.mxu0
  %v4292 = vadd.f32 %v4007, %v4291
  %4293 = vdwg.mxu0
  %4294 = vmatpush.msra.mxu0 0.0
  %4295 = vmatpush.msra.mxu0 0.0
  %4296 = vmatpush.msra.mxu0 0.0
  %4297 = vmatpush.msra.mxu0 0.0
  %4298 = vmatpush.msra.mxu0 0.0
  %4299 = vmatpush.msra.mxu0 0.0
  %4300 = vmatpush.msra.mxu0 0.0
  %4301 = vmatpush.msra.mxu0 0.0
  %4302 = vmatpush.msra.mxu0 0.0
  %4303 = vmatpush.msra.mxu0 0.0
  %4304 = vmatpush.msra.mxu0 0.0
  %4305 = vmatpush.msra.mxu0 0.0
  %v4306 = vand.u32 %v2428, 4294901760
  %4307 = vmatpush.msra.mxu0 %v4306
  %v4308 = vand.u32 %v2427, 4294901760
  %4309 = vmatpush.msra.mxu0 %v4308
  %v4310 = vand.u32 %v2426, 4294901760
  %4311 = vmatpush.msra.mxu0 %v4310
  %v4312 = vand.u32 %v2425, 4294901760
  %4313 = vmatpush.msra.mxu0 %v4312
  %v4314 = vand.u32 %v96, 4294901760
  %4315 = vmatmul.f32.gmra.mxu0 %v4314
  %v4316 = vpop.f32.mrf.mxu0
  %v4317 = vadd.f32 %v4040, %v4316
  %v4318 = vand.u32 %v99, 4294901760
  %4319 = vmatmul.f32.gmra.mxu0 %v4318
  %v4320 = vpop.f32.mrf.mxu0
  %v4321 = vadd.f32 %v4044, %v4320
  %v4322 = vand.u32 %v102, 4294901760
  %4323 = vmatmul.f32.gmra.mxu0 %v4322
  %v4324 = vpop.f32.mrf.mxu0
  %v4325 = vadd.f32 %v4048, %v4324
  %v4326 = vand.u32 %v105, 4294901760
  %4327 = vmatmul.f32.gmra.mxu0 %v4326
  %v4328 = vpop.f32.mrf.mxu0
  %v4329 = vadd.f32 %v4052, %v4328
  %v4330 = vand.u32 %v108, 4294901760
  %4331 = vmatmul.f32.gmra.mxu0 %v4330
  %v4332 = vpop.f32.mrf.mxu0
  %v4333 = vadd.f32 %v4056, %v4332
  %v4334 = vand.u32 %v111, 4294901760
  %4335 = vmatmul.f32.gmra.mxu0 %v4334
  %v4336 = vpop.f32.mrf.mxu0
  %v4337 = vadd.f32 %v4060, %v4336
  %v4338 = vand.u32 %v114, 4294901760
  %4339 = vmatmul.f32.gmra.mxu0 %v4338
  %v4340 = vpop.f32.mrf.mxu0
  %v4341 = vadd.f32 %v4064, %v4340
  %v4342 = vand.u32 %v117, 4294901760
  %4343 = vmatmul.f32.gmra.mxu0 %v4342
  %v4344 = vpop.f32.mrf.mxu0
  %v4345 = vadd.f32 %v4068, %v4344
  %v4346 = vand.u32 %v120, 4294901760
  %4347 = vmatmul.f32.gmra.mxu0 %v4346
  %v4348 = vpop.f32.mrf.mxu0
  %v4349 = vadd.f32 %v4072, %v4348
  %v4350 = vand.u32 %v123, 4294901760
  %4351 = vmatmul.f32.gmra.mxu0 %v4350
  %v4352 = vpop.f32.mrf.mxu0
  %v4353 = vadd.f32 %v4076, %v4352
  %v4354 = vand.u32 %v126, 4294901760
  %4355 = vmatmul.f32.gmra.mxu0 %v4354
  %v4356 = vpop.f32.mrf.mxu0
  %v4357 = vadd.f32 %v4080, %v4356
  %v4358 = vand.u32 %v129, 4294901760
  %4359 = vmatmul.f32.gmra.mxu0 %v4358
  %v4360 = vpop.f32.mrf.mxu0
  %v4361 = vadd.f32 %v4084, %v4360
  %v4362 = vand.u32 %v132, 4294901760
  %4363 = vmatmul.f32.gmra.mxu0 %v4362
  %v4364 = vpop.f32.mrf.mxu0
  %v4365 = vadd.f32 %v4088, %v4364
  %v4366 = vand.u32 %v135, 4294901760
  %4367 = vmatmul.f32.gmra.mxu0 %v4366
  %v4368 = vpop.f32.mrf.mxu0
  %v4369 = vadd.f32 %v4092, %v4368
  %v4370 = vand.u32 %v138, 4294901760
  %4371 = vmatmul.f32.gmra.mxu0 %v4370
  %v4372 = vpop.f32.mrf.mxu0
  %v4373 = vadd.f32 %v4096, %v4372
  %v4374 = vand.u32 %v141, 4294901760
  %4375 = vmatmul.f32.gmra.mxu0 %v4374
  %v4376 = vpop.f32.mrf.mxu0
  %v4377 = vadd.f32 %v4100, %v4376
  %v4378 = vand.u32 %v144, 4294901760
  %4379 = vmatmul.f32.gmra.mxu0 %v4378
  %v4380 = vpop.f32.mrf.mxu0
  %v4381 = vadd.f32 %v4104, %v4380
  %v4382 = vand.u32 %v147, 4294901760
  %4383 = vmatmul.f32.gmra.mxu0 %v4382
  %v4384 = vpop.f32.mrf.mxu0
  %v4385 = vadd.f32 %v4108, %v4384
  %v4386 = vand.u32 %v150, 4294901760
  %4387 = vmatmul.f32.gmra.mxu0 %v4386
  %v4388 = vpop.f32.mrf.mxu0
  %v4389 = vadd.f32 %v4112, %v4388
  %v4390 = vand.u32 %v153, 4294901760
  %4391 = vmatmul.f32.gmra.mxu0 %v4390
  %v4392 = vpop.f32.mrf.mxu0
  %v4393 = vadd.f32 %v4116, %v4392
  %v4394 = vand.u32 %v156, 4294901760
  %4395 = vmatmul.f32.gmra.mxu0 %v4394
  %v4396 = vpop.f32.mrf.mxu0
  %v4397 = vadd.f32 %v4120, %v4396
  %v4398 = vand.u32 %v159, 4294901760
  %4399 = vmatmul.f32.gmra.mxu0 %v4398
  %v4400 = vpop.f32.mrf.mxu0
  %v4401 = vadd.f32 %v4124, %v4400
  %v4402 = vand.u32 %v162, 4294901760
  %4403 = vmatmul.f32.gmra.mxu0 %v4402
  %v4404 = vpop.f32.mrf.mxu0
  %v4405 = vadd.f32 %v4128, %v4404
  %v4406 = vand.u32 %v165, 4294901760
  %4407 = vmatmul.f32.gmra.mxu0 %v4406
  %v4408 = vpop.f32.mrf.mxu0
  %v4409 = vadd.f32 %v4132, %v4408
  %v4410 = vand.u32 %v168, 4294901760
  %4411 = vmatmul.f32.gmra.mxu0 %v4410
  %v4412 = vpop.f32.mrf.mxu0
  %v4413 = vadd.f32 %v4136, %v4412
  %v4414 = vand.u32 %v171, 4294901760
  %4415 = vmatmul.f32.gmra.mxu0 %v4414
  %v4416 = vpop.f32.mrf.mxu0
  %v4417 = vadd.f32 %v4140, %v4416
  %v4418 = vand.u32 %v174, 4294901760
  %4419 = vmatmul.f32.gmra.mxu0 %v4418
  %v4420 = vpop.f32.mrf.mxu0
  %v4421 = vadd.f32 %v4144, %v4420
  %v4422 = vand.u32 %v177, 4294901760
  %4423 = vmatmul.f32.gmra.mxu0 %v4422
  %v4424 = vpop.f32.mrf.mxu0
  %v4425 = vadd.f32 %v4148, %v4424
  %v4426 = vand.u32 %v180, 4294901760
  %4427 = vmatmul.f32.gmra.mxu0 %v4426
  %v4428 = vpop.f32.mrf.mxu0
  %v4429 = vadd.f32 %v4152, %v4428
  %v4430 = vand.u32 %v183, 4294901760
  %4431 = vmatmul.f32.gmra.mxu0 %v4430
  %v4432 = vpop.f32.mrf.mxu0
  %v4433 = vadd.f32 %v4156, %v4432
  %v4434 = vand.u32 %v186, 4294901760
  %4435 = vmatmul.f32.gmra.mxu0 %v4434
  %v4436 = vpop.f32.mrf.mxu0
  %v4437 = vadd.f32 %v4160, %v4436
  %v4438 = vand.u32 %v189, 4294901760
  %4439 = vmatmul.f32.gmra.mxu0 %v4438
  %v4440 = vpop.f32.mrf.mxu0
  %v4441 = vadd.f32 %v4164, %v4440
  %v4442 = vand.u32 %v192, 4294901760
  %4443 = vmatmul.f32.gmra.mxu0 %v4442
  %v4444 = vpop.f32.mrf.mxu0
  %v4445 = vadd.f32 %v4168, %v4444
  %v4446 = vand.u32 %v195, 4294901760
  %4447 = vmatmul.f32.gmra.mxu0 %v4446
  %v4448 = vpop.f32.mrf.mxu0
  %v4449 = vadd.f32 %v4172, %v4448
  %v4450 = vand.u32 %v198, 4294901760
  %4451 = vmatmul.f32.gmra.mxu0 %v4450
  %v4452 = vpop.f32.mrf.mxu0
  %v4453 = vadd.f32 %v4176, %v4452
  %v4454 = vand.u32 %v201, 4294901760
  %4455 = vmatmul.f32.gmra.mxu0 %v4454
  %v4456 = vpop.f32.mrf.mxu0
  %v4457 = vadd.f32 %v4180, %v4456
  %v4458 = vand.u32 %v204, 4294901760
  %4459 = vmatmul.f32.gmra.mxu0 %v4458
  %v4460 = vpop.f32.mrf.mxu0
  %v4461 = vadd.f32 %v4184, %v4460
  %v4462 = vand.u32 %v207, 4294901760
  %4463 = vmatmul.f32.gmra.mxu0 %v4462
  %v4464 = vpop.f32.mrf.mxu0
  %v4465 = vadd.f32 %v4188, %v4464
  %v4466 = vand.u32 %v210, 4294901760
  %4467 = vmatmul.f32.gmra.mxu0 %v4466
  %v4468 = vpop.f32.mrf.mxu0
  %v4469 = vadd.f32 %v4192, %v4468
  %v4470 = vand.u32 %v213, 4294901760
  %4471 = vmatmul.f32.gmra.mxu0 %v4470
  %v4472 = vpop.f32.mrf.mxu0
  %v4473 = vadd.f32 %v4196, %v4472
  %v4474 = vand.u32 %v216, 4294901760
  %4475 = vmatmul.f32.gmra.mxu0 %v4474
  %v4476 = vpop.f32.mrf.mxu0
  %v4477 = vadd.f32 %v4200, %v4476
  %v4478 = vand.u32 %v219, 4294901760
  %4479 = vmatmul.f32.gmra.mxu0 %v4478
  %v4480 = vpop.f32.mrf.mxu0
  %v4481 = vadd.f32 %v4204, %v4480
  %v4482 = vand.u32 %v222, 4294901760
  %4483 = vmatmul.f32.gmra.mxu0 %v4482
  %v4484 = vpop.f32.mrf.mxu0
  %v4485 = vadd.f32 %v4208, %v4484
  %v4486 = vand.u32 %v225, 4294901760
  %4487 = vmatmul.f32.gmra.mxu0 %v4486
  %v4488 = vpop.f32.mrf.mxu0
  %v4489 = vadd.f32 %v4212, %v4488
  %v4490 = vand.u32 %v228, 4294901760
  %4491 = vmatmul.f32.gmra.mxu0 %v4490
  %v4492 = vpop.f32.mrf.mxu0
  %v4493 = vadd.f32 %v4216, %v4492
  %v4494 = vand.u32 %v231, 4294901760
  %4495 = vmatmul.f32.gmra.mxu0 %v4494
  %v4496 = vpop.f32.mrf.mxu0
  %v4497 = vadd.f32 %v4220, %v4496
  %v4498 = vand.u32 %v234, 4294901760
  %4499 = vmatmul.f32.gmra.mxu0 %v4498
  %v4500 = vpop.f32.mrf.mxu0
  %v4501 = vadd.f32 %v4224, %v4500
  %v4502 = vand.u32 %v237, 4294901760
  %4503 = vmatmul.f32.gmra.mxu0 %v4502
  %v4504 = vpop.f32.mrf.mxu0
  %v4505 = vadd.f32 %v4228, %v4504
  %v4506 = vand.u32 %v240, 4294901760
  %4507 = vmatmul.f32.gmra.mxu0 %v4506
  %v4508 = vpop.f32.mrf.mxu0
  %v4509 = vadd.f32 %v4232, %v4508
  %v4510 = vand.u32 %v243, 4294901760
  %4511 = vmatmul.f32.gmra.mxu0 %v4510
  %v4512 = vpop.f32.mrf.mxu0
  %v4513 = vadd.f32 %v4236, %v4512
  %v4514 = vand.u32 %v246, 4294901760
  %4515 = vmatmul.f32.gmra.mxu0 %v4514
  %v4516 = vpop.f32.mrf.mxu0
  %v4517 = vadd.f32 %v4240, %v4516
  %v4518 = vand.u32 %v249, 4294901760
  %4519 = vmatmul.f32.gmra.mxu0 %v4518
  %v4520 = vpop.f32.mrf.mxu0
  %v4521 = vadd.f32 %v4244, %v4520
  %v4522 = vand.u32 %v252, 4294901760
  %4523 = vmatmul.f32.gmra.mxu0 %v4522
  %v4524 = vpop.f32.mrf.mxu0
  %v4525 = vadd.f32 %v4248, %v4524
  %v4526 = vand.u32 %v255, 4294901760
  %4527 = vmatmul.f32.gmra.mxu0 %v4526
  %v4528 = vpop.f32.mrf.mxu0
  %v4529 = vadd.f32 %v4252, %v4528
  %v4530 = vand.u32 %v258, 4294901760
  %4531 = vmatmul.f32.gmra.mxu0 %v4530
  %v4532 = vpop.f32.mrf.mxu0
  %v4533 = vadd.f32 %v4256, %v4532
  %v4534 = vand.u32 %v261, 4294901760
  %4535 = vmatmul.f32.gmra.mxu0 %v4534
  %v4536 = vpop.f32.mrf.mxu0
  %v4537 = vadd.f32 %v4260, %v4536
  %v4538 = vand.u32 %v264, 4294901760
  %4539 = vmatmul.f32.gmra.mxu0 %v4538
  %v4540 = vpop.f32.mrf.mxu0
  %v4541 = vadd.f32 %v4264, %v4540
  %v4542 = vand.u32 %v267, 4294901760
  %4543 = vmatmul.f32.gmra.mxu0 %v4542
  %v4544 = vpop.f32.mrf.mxu0
  %v4545 = vadd.f32 %v4268, %v4544
  %v4546 = vand.u32 %v270, 4294901760
  %4547 = vmatmul.f32.gmra.mxu0 %v4546
  %v4548 = vpop.f32.mrf.mxu0
  %v4549 = vadd.f32 %v4272, %v4548
  %v4550 = vand.u32 %v273, 4294901760
  %4551 = vmatmul.f32.gmra.mxu0 %v4550
  %v4552 = vpop.f32.mrf.mxu0
  %v4553 = vadd.f32 %v4276, %v4552
  %v4554 = vand.u32 %v276, 4294901760
  %4555 = vmatmul.f32.gmra.mxu0 %v4554
  %v4556 = vpop.f32.mrf.mxu0
  %v4557 = vadd.f32 %v4280, %v4556
  %v4558 = vand.u32 %v279, 4294901760
  %4559 = vmatmul.f32.gmra.mxu0 %v4558
  %v4560 = vpop.f32.mrf.mxu0
  %v4561 = vadd.f32 %v4284, %v4560
  %v4562 = vand.u32 %v282, 4294901760
  %4563 = vmatmul.f32.gmra.mxu0 %v4562
  %v4564 = vpop.f32.mrf.mxu0
  %v4565 = vadd.f32 %v4288, %v4564
  %v4566 = vand.u32 %v285, 4294901760
  %4567 = vmatmul.f32.gmra.mxu0 %v4566
  %v4568 = vpop.f32.mrf.mxu0
  %v4569 = vadd.f32 %v4292, %v4568
  %4570 = vdwg.mxu0
  %v4571 = vxor.u32 %v2171, 2147483648
  %v4572 = vxor.u32 %v2175, 2147483648
  %v4573 = vxor.u32 %v2179, 2147483648
  %v4574 = vxor.u32 %v2183, 2147483648
  %v4575 = vxor.u32 %v2187, 2147483648
  %v4576 = vxor.u32 %v2191, 2147483648
  %v4577 = vxor.u32 %v2195, 2147483648
  %v4578 = vxor.u32 %v2199, 2147483648
  %v4579 = vxor.u32 %v2203, 2147483648
  %v4580 = vxor.u32 %v2207, 2147483648
  %v4581 = vxor.u32 %v2211, 2147483648
  %v4582 = vxor.u32 %v2215, 2147483648
  %v4583 = vxor.u32 %v2219, 2147483648
  %v4584 = vxor.u32 %v2223, 2147483648
  %v4585 = vxor.u32 %v2227, 2147483648
  %v4586 = vxor.u32 %v2231, 2147483648
  %v4587 = vxor.u32 %v2235, 2147483648
  %v4588 = vxor.u32 %v2239, 2147483648
  %v4589 = vxor.u32 %v2243, 2147483648
  %v4590 = vxor.u32 %v2247, 2147483648
  %v4591 = vxor.u32 %v2251, 2147483648
  %v4592 = vxor.u32 %v2255, 2147483648
  %v4593 = vxor.u32 %v2259, 2147483648
  %v4594 = vxor.u32 %v2263, 2147483648
  %v4595 = vxor.u32 %v2267, 2147483648
  %v4596 = vxor.u32 %v2271, 2147483648
  %v4597 = vxor.u32 %v2275, 2147483648
  %v4598 = vxor.u32 %v2279, 2147483648
  %v4599 = vxor.u32 %v2283, 2147483648
  %v4600 = vxor.u32 %v2287, 2147483648
  %v4601 = vxor.u32 %v2291, 2147483648
  %v4602 = vxor.u32 %v2295, 2147483648
  %v4603 = vxor.u32 %v2299, 2147483648
  %v4604 = vxor.u32 %v2303, 2147483648
  %v4605 = vxor.u32 %v2307, 2147483648
  %v4606 = vxor.u32 %v2311, 2147483648
  %v4607 = vxor.u32 %v2315, 2147483648
  %v4608 = vxor.u32 %v2319, 2147483648
  %v4609 = vxor.u32 %v2323, 2147483648
  %v4610 = vxor.u32 %v2327, 2147483648
  %v4611 = vxor.u32 %v2331, 2147483648
  %v4612 = vxor.u32 %v2335, 2147483648
  %v4613 = vxor.u32 %v2339, 2147483648
  %v4614 = vxor.u32 %v2343, 2147483648
  %v4615 = vxor.u32 %v2347, 2147483648
  %v4616 = vxor.u32 %v2351, 2147483648
  %v4617 = vxor.u32 %v2355, 2147483648
  %v4618 = vxor.u32 %v2359, 2147483648
  %v4619 = vxor.u32 %v2363, 2147483648
  %v4620 = vxor.u32 %v2367, 2147483648
  %v4621 = vxor.u32 %v2371, 2147483648
  %v4622 = vxor.u32 %v2375, 2147483648
  %v4623 = vxor.u32 %v2379, 2147483648
  %v4624 = vxor.u32 %v2383, 2147483648
  %v4625 = vxor.u32 %v2387, 2147483648
  %v4626 = vxor.u32 %v2391, 2147483648
  %v4627 = vxor.u32 %v2395, 2147483648
  %v4628 = vxor.u32 %v2399, 2147483648
  %v4629 = vxor.u32 %v2403, 2147483648
  %v4630 = vxor.u32 %v2407, 2147483648
  %v4631 = vxor.u32 %v2411, 2147483648
  %v4632 = vxor.u32 %v2415, 2147483648
  %v4633 = vxor.u32 %v2419, 2147483648
  %v4634 = vxor.u32 %v2423, 2147483648
  %v4635 = vmul.f32 %v4571, 1.442695
  %v4636 = vpow.pop %v4635
  %v4637 = vmul.f32 %v4572, 1.442695
  %v4638 = vpow.pop %v4637
  %v4639 = vmul.f32 %v4573, 1.442695
  %v4640 = vpow.pop %v4639
  %v4641 = vmul.f32 %v4574, 1.442695
  %v4642 = vpow.pop %v4641
  %v4643 = vmul.f32 %v4575, 1.442695
  %v4644 = vpow.pop %v4643
  %v4645 = vmul.f32 %v4576, 1.442695
  %v4646 = vpow.pop %v4645
  %v4647 = vmul.f32 %v4577, 1.442695
  %v4648 = vpow.pop %v4647
  %v4649 = vmul.f32 %v4578, 1.442695
  %v4650 = vpow.pop %v4649
  %v4651 = vmul.f32 %v4579, 1.442695
  %v4652 = vpow.pop %v4651
  %v4653 = vmul.f32 %v4580, 1.442695
  %v4654 = vpow.pop %v4653
  %v4655 = vmul.f32 %v4581, 1.442695
  %v4656 = vpow.pop %v4655
  %v4657 = vmul.f32 %v4582, 1.442695
  %v4658 = vpow.pop %v4657
  %v4659 = vmul.f32 %v4583, 1.442695
  %v4660 = vpow.pop %v4659
  %v4661 = vmul.f32 %v4584, 1.442695
  %v4662 = vpow.pop %v4661
  %v4663 = vmul.f32 %v4585, 1.442695
  %v4664 = vpow.pop %v4663
  %v4665 = vmul.f32 %v4586, 1.442695
  %v4666 = vpow.pop %v4665
  %v4667 = vmul.f32 %v4587, 1.442695
  %v4668 = vpow.pop %v4667
  %v4669 = vmul.f32 %v4588, 1.442695
  %v4670 = vpow.pop %v4669
  %v4671 = vmul.f32 %v4589, 1.442695
  %v4672 = vpow.pop %v4671
  %v4673 = vmul.f32 %v4590, 1.442695
  %v4674 = vpow.pop %v4673
  %v4675 = vmul.f32 %v4591, 1.442695
  %v4676 = vpow.pop %v4675
  %v4677 = vmul.f32 %v4592, 1.442695
  %v4678 = vpow.pop %v4677
  %v4679 = vmul.f32 %v4593, 1.442695
  %v4680 = vpow.pop %v4679
  %v4681 = vmul.f32 %v4594, 1.442695
  %v4682 = vpow.pop %v4681
  %v4683 = vmul.f32 %v4595, 1.442695
  %v4684 = vpow.pop %v4683
  %v4685 = vmul.f32 %v4596, 1.442695
  %v4686 = vpow.pop %v4685
  %v4687 = vmul.f32 %v4597, 1.442695
  %v4688 = vpow.pop %v4687
  %v4689 = vmul.f32 %v4598, 1.442695
  %v4690 = vpow.pop %v4689
  %v4691 = vmul.f32 %v4599, 1.442695
  %v4692 = vpow.pop %v4691
  %v4693 = vmul.f32 %v4600, 1.442695
  %v4694 = vpow.pop %v4693
  %v4695 = vmul.f32 %v4601, 1.442695
  %v4696 = vpow.pop %v4695
  %v4697 = vmul.f32 %v4602, 1.442695
  %v4698 = vpow.pop %v4697
  %v4699 = vmul.f32 %v4603, 1.442695
  %v4700 = vpow.pop %v4699
  %v4701 = vmul.f32 %v4604, 1.442695
  %v4702 = vpow.pop %v4701
  %v4703 = vmul.f32 %v4605, 1.442695
  %v4704 = vpow.pop %v4703
  %v4705 = vmul.f32 %v4606, 1.442695
  %v4706 = vpow.pop %v4705
  %v4707 = vmul.f32 %v4607, 1.442695
  %v4708 = vpow.pop %v4707
  %v4709 = vmul.f32 %v4608, 1.442695
  %v4710 = vpow.pop %v4709
  %v4711 = vmul.f32 %v4609, 1.442695
  %v4712 = vpow.pop %v4711
  %v4713 = vmul.f32 %v4610, 1.442695
  %v4714 = vpow.pop %v4713
  %v4715 = vmul.f32 %v4611, 1.442695
  %v4716 = vpow.pop %v4715
  %v4717 = vmul.f32 %v4612, 1.442695
  %v4718 = vpow.pop %v4717
  %v4719 = vmul.f32 %v4613, 1.442695
  %v4720 = vpow.pop %v4719
  %v4721 = vmul.f32 %v4614, 1.442695
  %v4722 = vpow.pop %v4721
  %v4723 = vmul.f32 %v4615, 1.442695
  %v4724 = vpow.pop %v4723
  %v4725 = vmul.f32 %v4616, 1.442695
  %v4726 = vpow.pop %v4725
  %v4727 = vmul.f32 %v4617, 1.442695
  %v4728 = vpow.pop %v4727
  %v4729 = vmul.f32 %v4618, 1.442695
  %v4730 = vpow.pop %v4729
  %v4731 = vmul.f32 %v4619, 1.442695
  %v4732 = vpow.pop %v4731
  %v4733 = vmul.f32 %v4620, 1.442695
  %v4734 = vpow.pop %v4733
  %v4735 = vmul.f32 %v4621, 1.442695
  %v4736 = vpow.pop %v4735
  %v4737 = vmul.f32 %v4622, 1.442695
  %v4738 = vpow.pop %v4737
  %v4739 = vmul.f32 %v4623, 1.442695
  %v4740 = vpow.pop %v4739
  %v4741 = vmul.f32 %v4624, 1.442695
  %v4742 = vpow.pop %v4741
  %v4743 = vmul.f32 %v4625, 1.442695
  %v4744 = vpow.pop %v4743
  %v4745 = vmul.f32 %v4626, 1.442695
  %v4746 = vpow.pop %v4745
  %v4747 = vmul.f32 %v4627, 1.442695
  %v4748 = vpow.pop %v4747
  %v4749 = vmul.f32 %v4628, 1.442695
  %v4750 = vpow.pop %v4749
  %v4751 = vmul.f32 %v4629, 1.442695
  %v4752 = vpow.pop %v4751
  %v4753 = vmul.f32 %v4630, 1.442695
  %v4754 = vpow.pop %v4753
  %v4755 = vmul.f32 %v4631, 1.442695
  %v4756 = vpow.pop %v4755
  %v4757 = vmul.f32 %v4632, 1.442695
  %v4758 = vpow.pop %v4757
  %v4759 = vmul.f32 %v4633, 1.442695
  %v4760 = vpow.pop %v4759
  %v4761 = vmul.f32 %v4634, 1.442695
  %v4762 = vpow.pop %v4761
  %v4763 = vadd.f32 %v4636, 1.0
  %v4764 = vadd.f32 %v4638, 1.0
  %v4765 = vadd.f32 %v4640, 1.0
  %v4766 = vadd.f32 %v4642, 1.0
  %v4767 = vadd.f32 %v4644, 1.0
  %v4768 = vadd.f32 %v4646, 1.0
  %v4769 = vadd.f32 %v4648, 1.0
  %v4770 = vadd.f32 %v4650, 1.0
  %v4771 = vadd.f32 %v4652, 1.0
  %v4772 = vadd.f32 %v4654, 1.0
  %v4773 = vadd.f32 %v4656, 1.0
  %v4774 = vadd.f32 %v4658, 1.0
  %v4775 = vadd.f32 %v4660, 1.0
  %v4776 = vadd.f32 %v4662, 1.0
  %v4777 = vadd.f32 %v4664, 1.0
  %v4778 = vadd.f32 %v4666, 1.0
  %v4779 = vadd.f32 %v4668, 1.0
  %v4780 = vadd.f32 %v4670, 1.0
  %v4781 = vadd.f32 %v4672, 1.0
  %v4782 = vadd.f32 %v4674, 1.0
  %v4783 = vadd.f32 %v4676, 1.0
  %v4784 = vadd.f32 %v4678, 1.0
  %v4785 = vadd.f32 %v4680, 1.0
  %v4786 = vadd.f32 %v4682, 1.0
  %v4787 = vadd.f32 %v4684, 1.0
  %v4788 = vadd.f32 %v4686, 1.0
  %v4789 = vadd.f32 %v4688, 1.0
  %v4790 = vadd.f32 %v4690, 1.0
  %v4791 = vadd.f32 %v4692, 1.0
  %v4792 = vadd.f32 %v4694, 1.0
  %v4793 = vadd.f32 %v4696, 1.0
  %v4794 = vadd.f32 %v4698, 1.0
  %v4795 = vadd.f32 %v4700, 1.0
  %v4796 = vadd.f32 %v4702, 1.0
  %v4797 = vadd.f32 %v4704, 1.0
  %v4798 = vadd.f32 %v4706, 1.0
  %v4799 = vadd.f32 %v4708, 1.0
  %v4800 = vadd.f32 %v4710, 1.0
  %v4801 = vadd.f32 %v4712, 1.0
  %v4802 = vadd.f32 %v4714, 1.0
  %v4803 = vadd.f32 %v4716, 1.0
  %v4804 = vadd.f32 %v4718, 1.0
  %v4805 = vadd.f32 %v4720, 1.0
  %v4806 = vadd.f32 %v4722, 1.0
  %v4807 = vadd.f32 %v4724, 1.0
  %v4808 = vadd.f32 %v4726, 1.0
  %v4809 = vadd.f32 %v4728, 1.0
  %v4810 = vadd.f32 %v4730, 1.0
  %v4811 = vadd.f32 %v4732, 1.0
  %v4812 = vadd.f32 %v4734, 1.0
  %v4813 = vadd.f32 %v4736, 1.0
  %v4814 = vadd.f32 %v4738, 1.0
  %v4815 = vadd.f32 %v4740, 1.0
  %v4816 = vadd.f32 %v4742, 1.0
  %v4817 = vadd.f32 %v4744, 1.0
  %v4818 = vadd.f32 %v4746, 1.0
  %v4819 = vadd.f32 %v4748, 1.0
  %v4820 = vadd.f32 %v4750, 1.0
  %v4821 = vadd.f32 %v4752, 1.0
  %v4822 = vadd.f32 %v4754, 1.0
  %v4823 = vadd.f32 %v4756, 1.0
  %v4824 = vadd.f32 %v4758, 1.0
  %v4825 = vadd.f32 %v4760, 1.0
  %v4826 = vadd.f32 %v4762, 1.0
  %v4827 = vrcp.pop %v4763
  %v4828 = vmul.f32 %v4763, %v4827
  %v4829 = vsub.f32 1.0, %v4828
  %v4830 = vmul.f32 %v4827, %v4829
  %v4831 = vadd.f32 %v4827, %v4830
  %vm4832 = vweird.f32 %v4763
  %vm4833 = vweird.f32 %v4827
  %vm4834 = vmor %vm4832, %vm4833
  %v4835 = vsel %vm4834, %v4827, %v4831
  %v4836 = vand.u32 2147483647, %v4763
  %vm4837 = vcmp.eq.f32.partialorder %v4836, 8.507059e+37
  %v4838 = vand.u32 %v4763, 2147483648
  %v4839 = vor.u32 1.1754944e-38, %v4838
  %v4840 = vsel %vm4837, %v4839, %v4835
  %v4841 = vmul.f32 1.0, %v4840
  %v4842 = vrcp.pop %v4764
  %v4843 = vmul.f32 %v4764, %v4842
  %v4844 = vsub.f32 1.0, %v4843
  %v4845 = vmul.f32 %v4842, %v4844
  %v4846 = vadd.f32 %v4842, %v4845
  %vm4847 = vweird.f32 %v4764
  %vm4848 = vweird.f32 %v4842
  %vm4849 = vmor %vm4847, %vm4848
  %v4850 = vsel %vm4849, %v4842, %v4846
  %v4851 = vand.u32 2147483647, %v4764
  %vm4852 = vcmp.eq.f32.partialorder %v4851, 8.507059e+37
  %v4853 = vand.u32 %v4764, 2147483648
  %v4854 = vor.u32 1.1754944e-38, %v4853
  %v4855 = vsel %vm4852, %v4854, %v4850
  %v4856 = vmul.f32 1.0, %v4855
  %v4857 = vrcp.pop %v4765
  %v4858 = vmul.f32 %v4765, %v4857
  %v4859 = vsub.f32 1.0, %v4858
  %v4860 = vmul.f32 %v4857, %v4859
  %v4861 = vadd.f32 %v4857, %v4860
  %vm4862 = vweird.f32 %v4765
  %vm4863 = vweird.f32 %v4857
  %vm4864 = vmor %vm4862, %vm4863
  %v4865 = vsel %vm4864, %v4857, %v4861
  %v4866 = vand.u32 2147483647, %v4765
  %vm4867 = vcmp.eq.f32.partialorder %v4866, 8.507059e+37
  %v4868 = vand.u32 %v4765, 2147483648
  %v4869 = vor.u32 1.1754944e-38, %v4868
  %v4870 = vsel %vm4867, %v4869, %v4865
  %v4871 = vmul.f32 1.0, %v4870
  %v4872 = vrcp.pop %v4766
  %v4873 = vmul.f32 %v4766, %v4872
  %v4874 = vsub.f32 1.0, %v4873
  %v4875 = vmul.f32 %v4872, %v4874
  %v4876 = vadd.f32 %v4872, %v4875
  %vm4877 = vweird.f32 %v4766
  %vm4878 = vweird.f32 %v4872
  %vm4879 = vmor %vm4877, %vm4878
  %v4880 = vsel %vm4879, %v4872, %v4876
  %v4881 = vand.u32 2147483647, %v4766
  %vm4882 = vcmp.eq.f32.partialorder %v4881, 8.507059e+37
  %v4883 = vand.u32 %v4766, 2147483648
  %v4884 = vor.u32 1.1754944e-38, %v4883
  %v4885 = vsel %vm4882, %v4884, %v4880
  %v4886 = vmul.f32 1.0, %v4885
  %v4887 = vrcp.pop %v4767
  %v4888 = vmul.f32 %v4767, %v4887
  %v4889 = vsub.f32 1.0, %v4888
  %v4890 = vmul.f32 %v4887, %v4889
  %v4891 = vadd.f32 %v4887, %v4890
  %vm4892 = vweird.f32 %v4767
  %vm4893 = vweird.f32 %v4887
  %vm4894 = vmor %vm4892, %vm4893
  %v4895 = vsel %vm4894, %v4887, %v4891
  %v4896 = vand.u32 2147483647, %v4767
  %vm4897 = vcmp.eq.f32.partialorder %v4896, 8.507059e+37
  %v4898 = vand.u32 %v4767, 2147483648
  %v4899 = vor.u32 1.1754944e-38, %v4898
  %v4900 = vsel %vm4897, %v4899, %v4895
  %v4901 = vmul.f32 1.0, %v4900
  %v4902 = vrcp.pop %v4768
  %v4903 = vmul.f32 %v4768, %v4902
  %v4904 = vsub.f32 1.0, %v4903
  %v4905 = vmul.f32 %v4902, %v4904
  %v4906 = vadd.f32 %v4902, %v4905
  %vm4907 = vweird.f32 %v4768
  %vm4908 = vweird.f32 %v4902
  %vm4909 = vmor %vm4907, %vm4908
  %v4910 = vsel %vm4909, %v4902, %v4906
  %v4911 = vand.u32 2147483647, %v4768
  %vm4912 = vcmp.eq.f32.partialorder %v4911, 8.507059e+37
  %v4913 = vand.u32 %v4768, 2147483648
  %v4914 = vor.u32 1.1754944e-38, %v4913
  %v4915 = vsel %vm4912, %v4914, %v4910
  %v4916 = vmul.f32 1.0, %v4915
  %v4917 = vrcp.pop %v4769
  %v4918 = vmul.f32 %v4769, %v4917
  %v4919 = vsub.f32 1.0, %v4918
  %v4920 = vmul.f32 %v4917, %v4919
  %v4921 = vadd.f32 %v4917, %v4920
  %vm4922 = vweird.f32 %v4769
  %vm4923 = vweird.f32 %v4917
  %vm4924 = vmor %vm4922, %vm4923
  %v4925 = vsel %vm4924, %v4917, %v4921
  %v4926 = vand.u32 2147483647, %v4769
  %vm4927 = vcmp.eq.f32.partialorder %v4926, 8.507059e+37
  %v4928 = vand.u32 %v4769, 2147483648
  %v4929 = vor.u32 1.1754944e-38, %v4928
  %v4930 = vsel %vm4927, %v4929, %v4925
  %v4931 = vmul.f32 1.0, %v4930
  %v4932 = vrcp.pop %v4770
  %v4933 = vmul.f32 %v4770, %v4932
  %v4934 = vsub.f32 1.0, %v4933
  %v4935 = vmul.f32 %v4932, %v4934
  %v4936 = vadd.f32 %v4932, %v4935
  %vm4937 = vweird.f32 %v4770
  %vm4938 = vweird.f32 %v4932
  %vm4939 = vmor %vm4937, %vm4938
  %v4940 = vsel %vm4939, %v4932, %v4936
  %v4941 = vand.u32 2147483647, %v4770
  %vm4942 = vcmp.eq.f32.partialorder %v4941, 8.507059e+37
  %v4943 = vand.u32 %v4770, 2147483648
  %v4944 = vor.u32 1.1754944e-38, %v4943
  %v4945 = vsel %vm4942, %v4944, %v4940
  %v4946 = vmul.f32 1.0, %v4945
  %v4947 = vrcp.pop %v4771
  %v4948 = vmul.f32 %v4771, %v4947
  %v4949 = vsub.f32 1.0, %v4948
  %v4950 = vmul.f32 %v4947, %v4949
  %v4951 = vadd.f32 %v4947, %v4950
  %vm4952 = vweird.f32 %v4771
  %vm4953 = vweird.f32 %v4947
  %vm4954 = vmor %vm4952, %vm4953
  %v4955 = vsel %vm4954, %v4947, %v4951
  %v4956 = vand.u32 2147483647, %v4771
  %vm4957 = vcmp.eq.f32.partialorder %v4956, 8.507059e+37
  %v4958 = vand.u32 %v4771, 2147483648
  %v4959 = vor.u32 1.1754944e-38, %v4958
  %v4960 = vsel %vm4957, %v4959, %v4955
  %v4961 = vmul.f32 1.0, %v4960
  %v4962 = vrcp.pop %v4772
  %v4963 = vmul.f32 %v4772, %v4962
  %v4964 = vsub.f32 1.0, %v4963
  %v4965 = vmul.f32 %v4962, %v4964
  %v4966 = vadd.f32 %v4962, %v4965
  %vm4967 = vweird.f32 %v4772
  %vm4968 = vweird.f32 %v4962
  %vm4969 = vmor %vm4967, %vm4968
  %v4970 = vsel %vm4969, %v4962, %v4966
  %v4971 = vand.u32 2147483647, %v4772
  %vm4972 = vcmp.eq.f32.partialorder %v4971, 8.507059e+37
  %v4973 = vand.u32 %v4772, 2147483648
  %v4974 = vor.u32 1.1754944e-38, %v4973
  %v4975 = vsel %vm4972, %v4974, %v4970
  %v4976 = vmul.f32 1.0, %v4975
  %v4977 = vrcp.pop %v4773
  %v4978 = vmul.f32 %v4773, %v4977
  %v4979 = vsub.f32 1.0, %v4978
  %v4980 = vmul.f32 %v4977, %v4979
  %v4981 = vadd.f32 %v4977, %v4980
  %vm4982 = vweird.f32 %v4773
  %vm4983 = vweird.f32 %v4977
  %vm4984 = vmor %vm4982, %vm4983
  %v4985 = vsel %vm4984, %v4977, %v4981
  %v4986 = vand.u32 2147483647, %v4773
  %vm4987 = vcmp.eq.f32.partialorder %v4986, 8.507059e+37
  %v4988 = vand.u32 %v4773, 2147483648
  %v4989 = vor.u32 1.1754944e-38, %v4988
  %v4990 = vsel %vm4987, %v4989, %v4985
  %v4991 = vmul.f32 1.0, %v4990
  %v4992 = vrcp.pop %v4774
  %v4993 = vmul.f32 %v4774, %v4992
  %v4994 = vsub.f32 1.0, %v4993
  %v4995 = vmul.f32 %v4992, %v4994
  %v4996 = vadd.f32 %v4992, %v4995
  %vm4997 = vweird.f32 %v4774
  %vm4998 = vweird.f32 %v4992
  %vm4999 = vmor %vm4997, %vm4998
  %v5000 = vsel %vm4999, %v4992, %v4996
  %v5001 = vand.u32 2147483647, %v4774
  %vm5002 = vcmp.eq.f32.partialorder %v5001, 8.507059e+37
  %v5003 = vand.u32 %v4774, 2147483648
  %v5004 = vor.u32 1.1754944e-38, %v5003
  %v5005 = vsel %vm5002, %v5004, %v5000
  %v5006 = vmul.f32 1.0, %v5005
  %v5007 = vrcp.pop %v4775
  %v5008 = vmul.f32 %v4775, %v5007
  %v5009 = vsub.f32 1.0, %v5008
  %v5010 = vmul.f32 %v5007, %v5009
  %v5011 = vadd.f32 %v5007, %v5010
  %vm5012 = vweird.f32 %v4775
  %vm5013 = vweird.f32 %v5007
  %vm5014 = vmor %vm5012, %vm5013
  %v5015 = vsel %vm5014, %v5007, %v5011
  %v5016 = vand.u32 2147483647, %v4775
  %vm5017 = vcmp.eq.f32.partialorder %v5016, 8.507059e+37
  %v5018 = vand.u32 %v4775, 2147483648
  %v5019 = vor.u32 1.1754944e-38, %v5018
  %v5020 = vsel %vm5017, %v5019, %v5015
  %v5021 = vmul.f32 1.0, %v5020
  %v5022 = vrcp.pop %v4776
  %v5023 = vmul.f32 %v4776, %v5022
  %v5024 = vsub.f32 1.0, %v5023
  %v5025 = vmul.f32 %v5022, %v5024
  %v5026 = vadd.f32 %v5022, %v5025
  %vm5027 = vweird.f32 %v4776
  %vm5028 = vweird.f32 %v5022
  %vm5029 = vmor %vm5027, %vm5028
  %v5030 = vsel %vm5029, %v5022, %v5026
  %v5031 = vand.u32 2147483647, %v4776
  %vm5032 = vcmp.eq.f32.partialorder %v5031, 8.507059e+37
  %v5033 = vand.u32 %v4776, 2147483648
  %v5034 = vor.u32 1.1754944e-38, %v5033
  %v5035 = vsel %vm5032, %v5034, %v5030
  %v5036 = vmul.f32 1.0, %v5035
  %v5037 = vrcp.pop %v4777
  %v5038 = vmul.f32 %v4777, %v5037
  %v5039 = vsub.f32 1.0, %v5038
  %v5040 = vmul.f32 %v5037, %v5039
  %v5041 = vadd.f32 %v5037, %v5040
  %vm5042 = vweird.f32 %v4777
  %vm5043 = vweird.f32 %v5037
  %vm5044 = vmor %vm5042, %vm5043
  %v5045 = vsel %vm5044, %v5037, %v5041
  %v5046 = vand.u32 2147483647, %v4777
  %vm5047 = vcmp.eq.f32.partialorder %v5046, 8.507059e+37
  %v5048 = vand.u32 %v4777, 2147483648
  %v5049 = vor.u32 1.1754944e-38, %v5048
  %v5050 = vsel %vm5047, %v5049, %v5045
  %v5051 = vmul.f32 1.0, %v5050
  %v5052 = vrcp.pop %v4778
  %v5053 = vmul.f32 %v4778, %v5052
  %v5054 = vsub.f32 1.0, %v5053
  %v5055 = vmul.f32 %v5052, %v5054
  %v5056 = vadd.f32 %v5052, %v5055
  %vm5057 = vweird.f32 %v4778
  %vm5058 = vweird.f32 %v5052
  %vm5059 = vmor %vm5057, %vm5058
  %v5060 = vsel %vm5059, %v5052, %v5056
  %v5061 = vand.u32 2147483647, %v4778
  %vm5062 = vcmp.eq.f32.partialorder %v5061, 8.507059e+37
  %v5063 = vand.u32 %v4778, 2147483648
  %v5064 = vor.u32 1.1754944e-38, %v5063
  %v5065 = vsel %vm5062, %v5064, %v5060
  %v5066 = vmul.f32 1.0, %v5065
  %v5067 = vrcp.pop %v4779
  %v5068 = vmul.f32 %v4779, %v5067
  %v5069 = vsub.f32 1.0, %v5068
  %v5070 = vmul.f32 %v5067, %v5069
  %v5071 = vadd.f32 %v5067, %v5070
  %vm5072 = vweird.f32 %v4779
  %vm5073 = vweird.f32 %v5067
  %vm5074 = vmor %vm5072, %vm5073
  %v5075 = vsel %vm5074, %v5067, %v5071
  %v5076 = vand.u32 2147483647, %v4779
  %vm5077 = vcmp.eq.f32.partialorder %v5076, 8.507059e+37
  %v5078 = vand.u32 %v4779, 2147483648
  %v5079 = vor.u32 1.1754944e-38, %v5078
  %v5080 = vsel %vm5077, %v5079, %v5075
  %v5081 = vmul.f32 1.0, %v5080
  %v5082 = vrcp.pop %v4780
  %v5083 = vmul.f32 %v4780, %v5082
  %v5084 = vsub.f32 1.0, %v5083
  %v5085 = vmul.f32 %v5082, %v5084
  %v5086 = vadd.f32 %v5082, %v5085
  %vm5087 = vweird.f32 %v4780
  %vm5088 = vweird.f32 %v5082
  %vm5089 = vmor %vm5087, %vm5088
  %v5090 = vsel %vm5089, %v5082, %v5086
  %v5091 = vand.u32 2147483647, %v4780
  %vm5092 = vcmp.eq.f32.partialorder %v5091, 8.507059e+37
  %v5093 = vand.u32 %v4780, 2147483648
  %v5094 = vor.u32 1.1754944e-38, %v5093
  %v5095 = vsel %vm5092, %v5094, %v5090
  %v5096 = vmul.f32 1.0, %v5095
  %v5097 = vrcp.pop %v4781
  %v5098 = vmul.f32 %v4781, %v5097
  %v5099 = vsub.f32 1.0, %v5098
  %v5100 = vmul.f32 %v5097, %v5099
  %v5101 = vadd.f32 %v5097, %v5100
  %vm5102 = vweird.f32 %v4781
  %vm5103 = vweird.f32 %v5097
  %vm5104 = vmor %vm5102, %vm5103
  %v5105 = vsel %vm5104, %v5097, %v5101
  %v5106 = vand.u32 2147483647, %v4781
  %vm5107 = vcmp.eq.f32.partialorder %v5106, 8.507059e+37
  %v5108 = vand.u32 %v4781, 2147483648
  %v5109 = vor.u32 1.1754944e-38, %v5108
  %v5110 = vsel %vm5107, %v5109, %v5105
  %v5111 = vmul.f32 1.0, %v5110
  %v5112 = vrcp.pop %v4782
  %v5113 = vmul.f32 %v4782, %v5112
  %v5114 = vsub.f32 1.0, %v5113
  %v5115 = vmul.f32 %v5112, %v5114
  %v5116 = vadd.f32 %v5112, %v5115
  %vm5117 = vweird.f32 %v4782
  %vm5118 = vweird.f32 %v5112
  %vm5119 = vmor %vm5117, %vm5118
  %v5120 = vsel %vm5119, %v5112, %v5116
  %v5121 = vand.u32 2147483647, %v4782
  %vm5122 = vcmp.eq.f32.partialorder %v5121, 8.507059e+37
  %v5123 = vand.u32 %v4782, 2147483648
  %v5124 = vor.u32 1.1754944e-38, %v5123
  %v5125 = vsel %vm5122, %v5124, %v5120
  %v5126 = vmul.f32 1.0, %v5125
  %v5127 = vrcp.pop %v4783
  %v5128 = vmul.f32 %v4783, %v5127
  %v5129 = vsub.f32 1.0, %v5128
  %v5130 = vmul.f32 %v5127, %v5129
  %v5131 = vadd.f32 %v5127, %v5130
  %vm5132 = vweird.f32 %v4783
  %vm5133 = vweird.f32 %v5127
  %vm5134 = vmor %vm5132, %vm5133
  %v5135 = vsel %vm5134, %v5127, %v5131
  %v5136 = vand.u32 2147483647, %v4783
  %vm5137 = vcmp.eq.f32.partialorder %v5136, 8.507059e+37
  %v5138 = vand.u32 %v4783, 2147483648
  %v5139 = vor.u32 1.1754944e-38, %v5138
  %v5140 = vsel %vm5137, %v5139, %v5135
  %v5141 = vmul.f32 1.0, %v5140
  %v5142 = vrcp.pop %v4784
  %v5143 = vmul.f32 %v4784, %v5142
  %v5144 = vsub.f32 1.0, %v5143
  %v5145 = vmul.f32 %v5142, %v5144
  %v5146 = vadd.f32 %v5142, %v5145
  %vm5147 = vweird.f32 %v4784
  %vm5148 = vweird.f32 %v5142
  %vm5149 = vmor %vm5147, %vm5148
  %v5150 = vsel %vm5149, %v5142, %v5146
  %v5151 = vand.u32 2147483647, %v4784
  %vm5152 = vcmp.eq.f32.partialorder %v5151, 8.507059e+37
  %v5153 = vand.u32 %v4784, 2147483648
  %v5154 = vor.u32 1.1754944e-38, %v5153
  %v5155 = vsel %vm5152, %v5154, %v5150
  %v5156 = vmul.f32 1.0, %v5155
  %v5157 = vrcp.pop %v4785
  %v5158 = vmul.f32 %v4785, %v5157
  %v5159 = vsub.f32 1.0, %v5158
  %v5160 = vmul.f32 %v5157, %v5159
  %v5161 = vadd.f32 %v5157, %v5160
  %vm5162 = vweird.f32 %v4785
  %vm5163 = vweird.f32 %v5157
  %vm5164 = vmor %vm5162, %vm5163
  %v5165 = vsel %vm5164, %v5157, %v5161
  %v5166 = vand.u32 2147483647, %v4785
  %vm5167 = vcmp.eq.f32.partialorder %v5166, 8.507059e+37
  %v5168 = vand.u32 %v4785, 2147483648
  %v5169 = vor.u32 1.1754944e-38, %v5168
  %v5170 = vsel %vm5167, %v5169, %v5165
  %v5171 = vmul.f32 1.0, %v5170
  %v5172 = vrcp.pop %v4786
  %v5173 = vmul.f32 %v4786, %v5172
  %v5174 = vsub.f32 1.0, %v5173
  %v5175 = vmul.f32 %v5172, %v5174
  %v5176 = vadd.f32 %v5172, %v5175
  %vm5177 = vweird.f32 %v4786
  %vm5178 = vweird.f32 %v5172
  %vm5179 = vmor %vm5177, %vm5178
  %v5180 = vsel %vm5179, %v5172, %v5176
  %v5181 = vand.u32 2147483647, %v4786
  %vm5182 = vcmp.eq.f32.partialorder %v5181, 8.507059e+37
  %v5183 = vand.u32 %v4786, 2147483648
  %v5184 = vor.u32 1.1754944e-38, %v5183
  %v5185 = vsel %vm5182, %v5184, %v5180
  %v5186 = vmul.f32 1.0, %v5185
  %v5187 = vrcp.pop %v4787
  %v5188 = vmul.f32 %v4787, %v5187
  %v5189 = vsub.f32 1.0, %v5188
  %v5190 = vmul.f32 %v5187, %v5189
  %v5191 = vadd.f32 %v5187, %v5190
  %vm5192 = vweird.f32 %v4787
  %vm5193 = vweird.f32 %v5187
  %vm5194 = vmor %vm5192, %vm5193
  %v5195 = vsel %vm5194, %v5187, %v5191
  %v5196 = vand.u32 2147483647, %v4787
  %vm5197 = vcmp.eq.f32.partialorder %v5196, 8.507059e+37
  %v5198 = vand.u32 %v4787, 2147483648
  %v5199 = vor.u32 1.1754944e-38, %v5198
  %v5200 = vsel %vm5197, %v5199, %v5195
  %v5201 = vmul.f32 1.0, %v5200
  %v5202 = vrcp.pop %v4788
  %v5203 = vmul.f32 %v4788, %v5202
  %v5204 = vsub.f32 1.0, %v5203
  %v5205 = vmul.f32 %v5202, %v5204
  %v5206 = vadd.f32 %v5202, %v5205
  %vm5207 = vweird.f32 %v4788
  %vm5208 = vweird.f32 %v5202
  %vm5209 = vmor %vm5207, %vm5208
  %v5210 = vsel %vm5209, %v5202, %v5206
  %v5211 = vand.u32 2147483647, %v4788
  %vm5212 = vcmp.eq.f32.partialorder %v5211, 8.507059e+37
  %v5213 = vand.u32 %v4788, 2147483648
  %v5214 = vor.u32 1.1754944e-38, %v5213
  %v5215 = vsel %vm5212, %v5214, %v5210
  %v5216 = vmul.f32 1.0, %v5215
  %v5217 = vrcp.pop %v4789
  %v5218 = vmul.f32 %v4789, %v5217
  %v5219 = vsub.f32 1.0, %v5218
  %v5220 = vmul.f32 %v5217, %v5219
  %v5221 = vadd.f32 %v5217, %v5220
  %vm5222 = vweird.f32 %v4789
  %vm5223 = vweird.f32 %v5217
  %vm5224 = vmor %vm5222, %vm5223
  %v5225 = vsel %vm5224, %v5217, %v5221
  %v5226 = vand.u32 2147483647, %v4789
  %vm5227 = vcmp.eq.f32.partialorder %v5226, 8.507059e+37
  %v5228 = vand.u32 %v4789, 2147483648
  %v5229 = vor.u32 1.1754944e-38, %v5228
  %v5230 = vsel %vm5227, %v5229, %v5225
  %v5231 = vmul.f32 1.0, %v5230
  %v5232 = vrcp.pop %v4790
  %v5233 = vmul.f32 %v4790, %v5232
  %v5234 = vsub.f32 1.0, %v5233
  %v5235 = vmul.f32 %v5232, %v5234
  %v5236 = vadd.f32 %v5232, %v5235
  %vm5237 = vweird.f32 %v4790
  %vm5238 = vweird.f32 %v5232
  %vm5239 = vmor %vm5237, %vm5238
  %v5240 = vsel %vm5239, %v5232, %v5236
  %v5241 = vand.u32 2147483647, %v4790
  %vm5242 = vcmp.eq.f32.partialorder %v5241, 8.507059e+37
  %v5243 = vand.u32 %v4790, 2147483648
  %v5244 = vor.u32 1.1754944e-38, %v5243
  %v5245 = vsel %vm5242, %v5244, %v5240
  %v5246 = vmul.f32 1.0, %v5245
  %v5247 = vrcp.pop %v4791
  %v5248 = vmul.f32 %v4791, %v5247
  %v5249 = vsub.f32 1.0, %v5248
  %v5250 = vmul.f32 %v5247, %v5249
  %v5251 = vadd.f32 %v5247, %v5250
  %vm5252 = vweird.f32 %v4791
  %vm5253 = vweird.f32 %v5247
  %vm5254 = vmor %vm5252, %vm5253
  %v5255 = vsel %vm5254, %v5247, %v5251
  %v5256 = vand.u32 2147483647, %v4791
  %vm5257 = vcmp.eq.f32.partialorder %v5256, 8.507059e+37
  %v5258 = vand.u32 %v4791, 2147483648
  %v5259 = vor.u32 1.1754944e-38, %v5258
  %v5260 = vsel %vm5257, %v5259, %v5255
  %v5261 = vmul.f32 1.0, %v5260
  %v5262 = vrcp.pop %v4792
  %v5263 = vmul.f32 %v4792, %v5262
  %v5264 = vsub.f32 1.0, %v5263
  %v5265 = vmul.f32 %v5262, %v5264
  %v5266 = vadd.f32 %v5262, %v5265
  %vm5267 = vweird.f32 %v4792
  %vm5268 = vweird.f32 %v5262
  %vm5269 = vmor %vm5267, %vm5268
  %v5270 = vsel %vm5269, %v5262, %v5266
  %v5271 = vand.u32 2147483647, %v4792
  %vm5272 = vcmp.eq.f32.partialorder %v5271, 8.507059e+37
  %v5273 = vand.u32 %v4792, 2147483648
  %v5274 = vor.u32 1.1754944e-38, %v5273
  %v5275 = vsel %vm5272, %v5274, %v5270
  %v5276 = vmul.f32 1.0, %v5275
  %v5277 = vrcp.pop %v4793
  %v5278 = vmul.f32 %v4793, %v5277
  %v5279 = vsub.f32 1.0, %v5278
  %v5280 = vmul.f32 %v5277, %v5279
  %v5281 = vadd.f32 %v5277, %v5280
  %vm5282 = vweird.f32 %v4793
  %vm5283 = vweird.f32 %v5277
  %vm5284 = vmor %vm5282, %vm5283
  %v5285 = vsel %vm5284, %v5277, %v5281
  %v5286 = vand.u32 2147483647, %v4793
  %vm5287 = vcmp.eq.f32.partialorder %v5286, 8.507059e+37
  %v5288 = vand.u32 %v4793, 2147483648
  %v5289 = vor.u32 1.1754944e-38, %v5288
  %v5290 = vsel %vm5287, %v5289, %v5285
  %v5291 = vmul.f32 1.0, %v5290
  %v5292 = vrcp.pop %v4794
  %v5293 = vmul.f32 %v4794, %v5292
  %v5294 = vsub.f32 1.0, %v5293
  %v5295 = vmul.f32 %v5292, %v5294
  %v5296 = vadd.f32 %v5292, %v5295
  %vm5297 = vweird.f32 %v4794
  %vm5298 = vweird.f32 %v5292
  %vm5299 = vmor %vm5297, %vm5298
  %v5300 = vsel %vm5299, %v5292, %v5296
  %v5301 = vand.u32 2147483647, %v4794
  %vm5302 = vcmp.eq.f32.partialorder %v5301, 8.507059e+37
  %v5303 = vand.u32 %v4794, 2147483648
  %v5304 = vor.u32 1.1754944e-38, %v5303
  %v5305 = vsel %vm5302, %v5304, %v5300
  %v5306 = vmul.f32 1.0, %v5305
  %v5307 = vrcp.pop %v4795
  %v5308 = vmul.f32 %v4795, %v5307
  %v5309 = vsub.f32 1.0, %v5308
  %v5310 = vmul.f32 %v5307, %v5309
  %v5311 = vadd.f32 %v5307, %v5310
  %vm5312 = vweird.f32 %v4795
  %vm5313 = vweird.f32 %v5307
  %vm5314 = vmor %vm5312, %vm5313
  %v5315 = vsel %vm5314, %v5307, %v5311
  %v5316 = vand.u32 2147483647, %v4795
  %vm5317 = vcmp.eq.f32.partialorder %v5316, 8.507059e+37
  %v5318 = vand.u32 %v4795, 2147483648
  %v5319 = vor.u32 1.1754944e-38, %v5318
  %v5320 = vsel %vm5317, %v5319, %v5315
  %v5321 = vmul.f32 1.0, %v5320
  %v5322 = vrcp.pop %v4796
  %v5323 = vmul.f32 %v4796, %v5322
  %v5324 = vsub.f32 1.0, %v5323
  %v5325 = vmul.f32 %v5322, %v5324
  %v5326 = vadd.f32 %v5322, %v5325
  %vm5327 = vweird.f32 %v4796
  %vm5328 = vweird.f32 %v5322
  %vm5329 = vmor %vm5327, %vm5328
  %v5330 = vsel %vm5329, %v5322, %v5326
  %v5331 = vand.u32 2147483647, %v4796
  %vm5332 = vcmp.eq.f32.partialorder %v5331, 8.507059e+37
  %v5333 = vand.u32 %v4796, 2147483648
  %v5334 = vor.u32 1.1754944e-38, %v5333
  %v5335 = vsel %vm5332, %v5334, %v5330
  %v5336 = vmul.f32 1.0, %v5335
  %v5337 = vrcp.pop %v4797
  %v5338 = vmul.f32 %v4797, %v5337
  %v5339 = vsub.f32 1.0, %v5338
  %v5340 = vmul.f32 %v5337, %v5339
  %v5341 = vadd.f32 %v5337, %v5340
  %vm5342 = vweird.f32 %v4797
  %vm5343 = vweird.f32 %v5337
  %vm5344 = vmor %vm5342, %vm5343
  %v5345 = vsel %vm5344, %v5337, %v5341
  %v5346 = vand.u32 2147483647, %v4797
  %vm5347 = vcmp.eq.f32.partialorder %v5346, 8.507059e+37
  %v5348 = vand.u32 %v4797, 2147483648
  %v5349 = vor.u32 1.1754944e-38, %v5348
  %v5350 = vsel %vm5347, %v5349, %v5345
  %v5351 = vmul.f32 1.0, %v5350
  %v5352 = vrcp.pop %v4798
  %v5353 = vmul.f32 %v4798, %v5352
  %v5354 = vsub.f32 1.0, %v5353
  %v5355 = vmul.f32 %v5352, %v5354
  %v5356 = vadd.f32 %v5352, %v5355
  %vm5357 = vweird.f32 %v4798
  %vm5358 = vweird.f32 %v5352
  %vm5359 = vmor %vm5357, %vm5358
  %v5360 = vsel %vm5359, %v5352, %v5356
  %v5361 = vand.u32 2147483647, %v4798
  %vm5362 = vcmp.eq.f32.partialorder %v5361, 8.507059e+37
  %v5363 = vand.u32 %v4798, 2147483648
  %v5364 = vor.u32 1.1754944e-38, %v5363
  %v5365 = vsel %vm5362, %v5364, %v5360
  %v5366 = vmul.f32 1.0, %v5365
  %v5367 = vrcp.pop %v4799
  %v5368 = vmul.f32 %v4799, %v5367
  %v5369 = vsub.f32 1.0, %v5368
  %v5370 = vmul.f32 %v5367, %v5369
  %v5371 = vadd.f32 %v5367, %v5370
  %vm5372 = vweird.f32 %v4799
  %vm5373 = vweird.f32 %v5367
  %vm5374 = vmor %vm5372, %vm5373
  %v5375 = vsel %vm5374, %v5367, %v5371
  %v5376 = vand.u32 2147483647, %v4799
  %vm5377 = vcmp.eq.f32.partialorder %v5376, 8.507059e+37
  %v5378 = vand.u32 %v4799, 2147483648
  %v5379 = vor.u32 1.1754944e-38, %v5378
  %v5380 = vsel %vm5377, %v5379, %v5375
  %v5381 = vmul.f32 1.0, %v5380
  %v5382 = vrcp.pop %v4800
  %v5383 = vmul.f32 %v4800, %v5382
  %v5384 = vsub.f32 1.0, %v5383
  %v5385 = vmul.f32 %v5382, %v5384
  %v5386 = vadd.f32 %v5382, %v5385
  %vm5387 = vweird.f32 %v4800
  %vm5388 = vweird.f32 %v5382
  %vm5389 = vmor %vm5387, %vm5388
  %v5390 = vsel %vm5389, %v5382, %v5386
  %v5391 = vand.u32 2147483647, %v4800
  %vm5392 = vcmp.eq.f32.partialorder %v5391, 8.507059e+37
  %v5393 = vand.u32 %v4800, 2147483648
  %v5394 = vor.u32 1.1754944e-38, %v5393
  %v5395 = vsel %vm5392, %v5394, %v5390
  %v5396 = vmul.f32 1.0, %v5395
  %v5397 = vrcp.pop %v4801
  %v5398 = vmul.f32 %v4801, %v5397
  %v5399 = vsub.f32 1.0, %v5398
  %v5400 = vmul.f32 %v5397, %v5399
  %v5401 = vadd.f32 %v5397, %v5400
  %vm5402 = vweird.f32 %v4801
  %vm5403 = vweird.f32 %v5397
  %vm5404 = vmor %vm5402, %vm5403
  %v5405 = vsel %vm5404, %v5397, %v5401
  %v5406 = vand.u32 2147483647, %v4801
  %vm5407 = vcmp.eq.f32.partialorder %v5406, 8.507059e+37
  %v5408 = vand.u32 %v4801, 2147483648
  %v5409 = vor.u32 1.1754944e-38, %v5408
  %v5410 = vsel %vm5407, %v5409, %v5405
  %v5411 = vmul.f32 1.0, %v5410
  %v5412 = vrcp.pop %v4802
  %v5413 = vmul.f32 %v4802, %v5412
  %v5414 = vsub.f32 1.0, %v5413
  %v5415 = vmul.f32 %v5412, %v5414
  %v5416 = vadd.f32 %v5412, %v5415
  %vm5417 = vweird.f32 %v4802
  %vm5418 = vweird.f32 %v5412
  %vm5419 = vmor %vm5417, %vm5418
  %v5420 = vsel %vm5419, %v5412, %v5416
  %v5421 = vand.u32 2147483647, %v4802
  %vm5422 = vcmp.eq.f32.partialorder %v5421, 8.507059e+37
  %v5423 = vand.u32 %v4802, 2147483648
  %v5424 = vor.u32 1.1754944e-38, %v5423
  %v5425 = vsel %vm5422, %v5424, %v5420
  %v5426 = vmul.f32 1.0, %v5425
  %v5427 = vrcp.pop %v4803
  %v5428 = vmul.f32 %v4803, %v5427
  %v5429 = vsub.f32 1.0, %v5428
  %v5430 = vmul.f32 %v5427, %v5429
  %v5431 = vadd.f32 %v5427, %v5430
  %vm5432 = vweird.f32 %v4803
  %vm5433 = vweird.f32 %v5427
  %vm5434 = vmor %vm5432, %vm5433
  %v5435 = vsel %vm5434, %v5427, %v5431
  %v5436 = vand.u32 2147483647, %v4803
  %vm5437 = vcmp.eq.f32.partialorder %v5436, 8.507059e+37
  %v5438 = vand.u32 %v4803, 2147483648
  %v5439 = vor.u32 1.1754944e-38, %v5438
  %v5440 = vsel %vm5437, %v5439, %v5435
  %v5441 = vmul.f32 1.0, %v5440
  %v5442 = vrcp.pop %v4804
  %v5443 = vmul.f32 %v4804, %v5442
  %v5444 = vsub.f32 1.0, %v5443
  %v5445 = vmul.f32 %v5442, %v5444
  %v5446 = vadd.f32 %v5442, %v5445
  %vm5447 = vweird.f32 %v4804
  %vm5448 = vweird.f32 %v5442
  %vm5449 = vmor %vm5447, %vm5448
  %v5450 = vsel %vm5449, %v5442, %v5446
  %v5451 = vand.u32 2147483647, %v4804
  %vm5452 = vcmp.eq.f32.partialorder %v5451, 8.507059e+37
  %v5453 = vand.u32 %v4804, 2147483648
  %v5454 = vor.u32 1.1754944e-38, %v5453
  %v5455 = vsel %vm5452, %v5454, %v5450
  %v5456 = vmul.f32 1.0, %v5455
  %v5457 = vrcp.pop %v4805
  %v5458 = vmul.f32 %v4805, %v5457
  %v5459 = vsub.f32 1.0, %v5458
  %v5460 = vmul.f32 %v5457, %v5459
  %v5461 = vadd.f32 %v5457, %v5460
  %vm5462 = vweird.f32 %v4805
  %vm5463 = vweird.f32 %v5457
  %vm5464 = vmor %vm5462, %vm5463
  %v5465 = vsel %vm5464, %v5457, %v5461
  %v5466 = vand.u32 2147483647, %v4805
  %vm5467 = vcmp.eq.f32.partialorder %v5466, 8.507059e+37
  %v5468 = vand.u32 %v4805, 2147483648
  %v5469 = vor.u32 1.1754944e-38, %v5468
  %v5470 = vsel %vm5467, %v5469, %v5465
  %v5471 = vmul.f32 1.0, %v5470
  %v5472 = vrcp.pop %v4806
  %v5473 = vmul.f32 %v4806, %v5472
  %v5474 = vsub.f32 1.0, %v5473
  %v5475 = vmul.f32 %v5472, %v5474
  %v5476 = vadd.f32 %v5472, %v5475
  %vm5477 = vweird.f32 %v4806
  %vm5478 = vweird.f32 %v5472
  %vm5479 = vmor %vm5477, %vm5478
  %v5480 = vsel %vm5479, %v5472, %v5476
  %v5481 = vand.u32 2147483647, %v4806
  %vm5482 = vcmp.eq.f32.partialorder %v5481, 8.507059e+37
  %v5483 = vand.u32 %v4806, 2147483648
  %v5484 = vor.u32 1.1754944e-38, %v5483
  %v5485 = vsel %vm5482, %v5484, %v5480
  %v5486 = vmul.f32 1.0, %v5485
  %v5487 = vrcp.pop %v4807
  %v5488 = vmul.f32 %v4807, %v5487
  %v5489 = vsub.f32 1.0, %v5488
  %v5490 = vmul.f32 %v5487, %v5489
  %v5491 = vadd.f32 %v5487, %v5490
  %vm5492 = vweird.f32 %v4807
  %vm5493 = vweird.f32 %v5487
  %vm5494 = vmor %vm5492, %vm5493
  %v5495 = vsel %vm5494, %v5487, %v5491
  %v5496 = vand.u32 2147483647, %v4807
  %vm5497 = vcmp.eq.f32.partialorder %v5496, 8.507059e+37
  %v5498 = vand.u32 %v4807, 2147483648
  %v5499 = vor.u32 1.1754944e-38, %v5498
  %v5500 = vsel %vm5497, %v5499, %v5495
  %v5501 = vmul.f32 1.0, %v5500
  %v5502 = vrcp.pop %v4808
  %v5503 = vmul.f32 %v4808, %v5502
  %v5504 = vsub.f32 1.0, %v5503
  %v5505 = vmul.f32 %v5502, %v5504
  %v5506 = vadd.f32 %v5502, %v5505
  %vm5507 = vweird.f32 %v4808
  %vm5508 = vweird.f32 %v5502
  %vm5509 = vmor %vm5507, %vm5508
  %v5510 = vsel %vm5509, %v5502, %v5506
  %v5511 = vand.u32 2147483647, %v4808
  %vm5512 = vcmp.eq.f32.partialorder %v5511, 8.507059e+37
  %v5513 = vand.u32 %v4808, 2147483648
  %v5514 = vor.u32 1.1754944e-38, %v5513
  %v5515 = vsel %vm5512, %v5514, %v5510
  %v5516 = vmul.f32 1.0, %v5515
  %v5517 = vrcp.pop %v4809
  %v5518 = vmul.f32 %v4809, %v5517
  %v5519 = vsub.f32 1.0, %v5518
  %v5520 = vmul.f32 %v5517, %v5519
  %v5521 = vadd.f32 %v5517, %v5520
  %vm5522 = vweird.f32 %v4809
  %vm5523 = vweird.f32 %v5517
  %vm5524 = vmor %vm5522, %vm5523
  %v5525 = vsel %vm5524, %v5517, %v5521
  %v5526 = vand.u32 2147483647, %v4809
  %vm5527 = vcmp.eq.f32.partialorder %v5526, 8.507059e+37
  %v5528 = vand.u32 %v4809, 2147483648
  %v5529 = vor.u32 1.1754944e-38, %v5528
  %v5530 = vsel %vm5527, %v5529, %v5525
  %v5531 = vmul.f32 1.0, %v5530
  %v5532 = vrcp.pop %v4810
  %v5533 = vmul.f32 %v4810, %v5532
  %v5534 = vsub.f32 1.0, %v5533
  %v5535 = vmul.f32 %v5532, %v5534
  %v5536 = vadd.f32 %v5532, %v5535
  %vm5537 = vweird.f32 %v4810
  %vm5538 = vweird.f32 %v5532
  %vm5539 = vmor %vm5537, %vm5538
  %v5540 = vsel %vm5539, %v5532, %v5536
  %v5541 = vand.u32 2147483647, %v4810
  %vm5542 = vcmp.eq.f32.partialorder %v5541, 8.507059e+37
  %v5543 = vand.u32 %v4810, 2147483648
  %v5544 = vor.u32 1.1754944e-38, %v5543
  %v5545 = vsel %vm5542, %v5544, %v5540
  %v5546 = vmul.f32 1.0, %v5545
  %v5547 = vrcp.pop %v4811
  %v5548 = vmul.f32 %v4811, %v5547
  %v5549 = vsub.f32 1.0, %v5548
  %v5550 = vmul.f32 %v5547, %v5549
  %v5551 = vadd.f32 %v5547, %v5550
  %vm5552 = vweird.f32 %v4811
  %vm5553 = vweird.f32 %v5547
  %vm5554 = vmor %vm5552, %vm5553
  %v5555 = vsel %vm5554, %v5547, %v5551
  %v5556 = vand.u32 2147483647, %v4811
  %vm5557 = vcmp.eq.f32.partialorder %v5556, 8.507059e+37
  %v5558 = vand.u32 %v4811, 2147483648
  %v5559 = vor.u32 1.1754944e-38, %v5558
  %v5560 = vsel %vm5557, %v5559, %v5555
  %v5561 = vmul.f32 1.0, %v5560
  %v5562 = vrcp.pop %v4812
  %v5563 = vmul.f32 %v4812, %v5562
  %v5564 = vsub.f32 1.0, %v5563
  %v5565 = vmul.f32 %v5562, %v5564
  %v5566 = vadd.f32 %v5562, %v5565
  %vm5567 = vweird.f32 %v4812
  %vm5568 = vweird.f32 %v5562
  %vm5569 = vmor %vm5567, %vm5568
  %v5570 = vsel %vm5569, %v5562, %v5566
  %v5571 = vand.u32 2147483647, %v4812
  %vm5572 = vcmp.eq.f32.partialorder %v5571, 8.507059e+37
  %v5573 = vand.u32 %v4812, 2147483648
  %v5574 = vor.u32 1.1754944e-38, %v5573
  %v5575 = vsel %vm5572, %v5574, %v5570
  %v5576 = vmul.f32 1.0, %v5575
  %v5577 = vrcp.pop %v4813
  %v5578 = vmul.f32 %v4813, %v5577
  %v5579 = vsub.f32 1.0, %v5578
  %v5580 = vmul.f32 %v5577, %v5579
  %v5581 = vadd.f32 %v5577, %v5580
  %vm5582 = vweird.f32 %v4813
  %vm5583 = vweird.f32 %v5577
  %vm5584 = vmor %vm5582, %vm5583
  %v5585 = vsel %vm5584, %v5577, %v5581
  %v5586 = vand.u32 2147483647, %v4813
  %vm5587 = vcmp.eq.f32.partialorder %v5586, 8.507059e+37
  %v5588 = vand.u32 %v4813, 2147483648
  %v5589 = vor.u32 1.1754944e-38, %v5588
  %v5590 = vsel %vm5587, %v5589, %v5585
  %v5591 = vmul.f32 1.0, %v5590
  %v5592 = vrcp.pop %v4814
  %v5593 = vmul.f32 %v4814, %v5592
  %v5594 = vsub.f32 1.0, %v5593
  %v5595 = vmul.f32 %v5592, %v5594
  %v5596 = vadd.f32 %v5592, %v5595
  %vm5597 = vweird.f32 %v4814
  %vm5598 = vweird.f32 %v5592
  %vm5599 = vmor %vm5597, %vm5598
  %v5600 = vsel %vm5599, %v5592, %v5596
  %v5601 = vand.u32 2147483647, %v4814
  %vm5602 = vcmp.eq.f32.partialorder %v5601, 8.507059e+37
  %v5603 = vand.u32 %v4814, 2147483648
  %v5604 = vor.u32 1.1754944e-38, %v5603
  %v5605 = vsel %vm5602, %v5604, %v5600
  %v5606 = vmul.f32 1.0, %v5605
  %v5607 = vrcp.pop %v4815
  %v5608 = vmul.f32 %v4815, %v5607
  %v5609 = vsub.f32 1.0, %v5608
  %v5610 = vmul.f32 %v5607, %v5609
  %v5611 = vadd.f32 %v5607, %v5610
  %vm5612 = vweird.f32 %v4815
  %vm5613 = vweird.f32 %v5607
  %vm5614 = vmor %vm5612, %vm5613
  %v5615 = vsel %vm5614, %v5607, %v5611
  %v5616 = vand.u32 2147483647, %v4815
  %vm5617 = vcmp.eq.f32.partialorder %v5616, 8.507059e+37
  %v5618 = vand.u32 %v4815, 2147483648
  %v5619 = vor.u32 1.1754944e-38, %v5618
  %v5620 = vsel %vm5617, %v5619, %v5615
  %v5621 = vmul.f32 1.0, %v5620
  %v5622 = vrcp.pop %v4816
  %v5623 = vmul.f32 %v4816, %v5622
  %v5624 = vsub.f32 1.0, %v5623
  %v5625 = vmul.f32 %v5622, %v5624
  %v5626 = vadd.f32 %v5622, %v5625
  %vm5627 = vweird.f32 %v4816
  %vm5628 = vweird.f32 %v5622
  %vm5629 = vmor %vm5627, %vm5628
  %v5630 = vsel %vm5629, %v5622, %v5626
  %v5631 = vand.u32 2147483647, %v4816
  %vm5632 = vcmp.eq.f32.partialorder %v5631, 8.507059e+37
  %v5633 = vand.u32 %v4816, 2147483648
  %v5634 = vor.u32 1.1754944e-38, %v5633
  %v5635 = vsel %vm5632, %v5634, %v5630
  %v5636 = vmul.f32 1.0, %v5635
  %v5637 = vrcp.pop %v4817
  %v5638 = vmul.f32 %v4817, %v5637
  %v5639 = vsub.f32 1.0, %v5638
  %v5640 = vmul.f32 %v5637, %v5639
  %v5641 = vadd.f32 %v5637, %v5640
  %vm5642 = vweird.f32 %v4817
  %vm5643 = vweird.f32 %v5637
  %vm5644 = vmor %vm5642, %vm5643
  %v5645 = vsel %vm5644, %v5637, %v5641
  %v5646 = vand.u32 2147483647, %v4817
  %vm5647 = vcmp.eq.f32.partialorder %v5646, 8.507059e+37
  %v5648 = vand.u32 %v4817, 2147483648
  %v5649 = vor.u32 1.1754944e-38, %v5648
  %v5650 = vsel %vm5647, %v5649, %v5645
  %v5651 = vmul.f32 1.0, %v5650
  %v5652 = vrcp.pop %v4818
  %v5653 = vmul.f32 %v4818, %v5652
  %v5654 = vsub.f32 1.0, %v5653
  %v5655 = vmul.f32 %v5652, %v5654
  %v5656 = vadd.f32 %v5652, %v5655
  %vm5657 = vweird.f32 %v4818
  %vm5658 = vweird.f32 %v5652
  %vm5659 = vmor %vm5657, %vm5658
  %v5660 = vsel %vm5659, %v5652, %v5656
  %v5661 = vand.u32 2147483647, %v4818
  %vm5662 = vcmp.eq.f32.partialorder %v5661, 8.507059e+37
  %v5663 = vand.u32 %v4818, 2147483648
  %v5664 = vor.u32 1.1754944e-38, %v5663
  %v5665 = vsel %vm5662, %v5664, %v5660
  %v5666 = vmul.f32 1.0, %v5665
  %v5667 = vrcp.pop %v4819
  %v5668 = vmul.f32 %v4819, %v5667
  %v5669 = vsub.f32 1.0, %v5668
  %v5670 = vmul.f32 %v5667, %v5669
  %v5671 = vadd.f32 %v5667, %v5670
  %vm5672 = vweird.f32 %v4819
  %vm5673 = vweird.f32 %v5667
  %vm5674 = vmor %vm5672, %vm5673
  %v5675 = vsel %vm5674, %v5667, %v5671
  %v5676 = vand.u32 2147483647, %v4819
  %vm5677 = vcmp.eq.f32.partialorder %v5676, 8.507059e+37
  %v5678 = vand.u32 %v4819, 2147483648
  %v5679 = vor.u32 1.1754944e-38, %v5678
  %v5680 = vsel %vm5677, %v5679, %v5675
  %v5681 = vmul.f32 1.0, %v5680
  %v5682 = vrcp.pop %v4820
  %v5683 = vmul.f32 %v4820, %v5682
  %v5684 = vsub.f32 1.0, %v5683
  %v5685 = vmul.f32 %v5682, %v5684
  %v5686 = vadd.f32 %v5682, %v5685
  %vm5687 = vweird.f32 %v4820
  %vm5688 = vweird.f32 %v5682
  %vm5689 = vmor %vm5687, %vm5688
  %v5690 = vsel %vm5689, %v5682, %v5686
  %v5691 = vand.u32 2147483647, %v4820
  %vm5692 = vcmp.eq.f32.partialorder %v5691, 8.507059e+37
  %v5693 = vand.u32 %v4820, 2147483648
  %v5694 = vor.u32 1.1754944e-38, %v5693
  %v5695 = vsel %vm5692, %v5694, %v5690
  %v5696 = vmul.f32 1.0, %v5695
  %v5697 = vrcp.pop %v4821
  %v5698 = vmul.f32 %v4821, %v5697
  %v5699 = vsub.f32 1.0, %v5698
  %v5700 = vmul.f32 %v5697, %v5699
  %v5701 = vadd.f32 %v5697, %v5700
  %vm5702 = vweird.f32 %v4821
  %vm5703 = vweird.f32 %v5697
  %vm5704 = vmor %vm5702, %vm5703
  %v5705 = vsel %vm5704, %v5697, %v5701
  %v5706 = vand.u32 2147483647, %v4821
  %vm5707 = vcmp.eq.f32.partialorder %v5706, 8.507059e+37
  %v5708 = vand.u32 %v4821, 2147483648
  %v5709 = vor.u32 1.1754944e-38, %v5708
  %v5710 = vsel %vm5707, %v5709, %v5705
  %v5711 = vmul.f32 1.0, %v5710
  %v5712 = vrcp.pop %v4822
  %v5713 = vmul.f32 %v4822, %v5712
  %v5714 = vsub.f32 1.0, %v5713
  %v5715 = vmul.f32 %v5712, %v5714
  %v5716 = vadd.f32 %v5712, %v5715
  %vm5717 = vweird.f32 %v4822
  %vm5718 = vweird.f32 %v5712
  %vm5719 = vmor %vm5717, %vm5718
  %v5720 = vsel %vm5719, %v5712, %v5716
  %v5721 = vand.u32 2147483647, %v4822
  %vm5722 = vcmp.eq.f32.partialorder %v5721, 8.507059e+37
  %v5723 = vand.u32 %v4822, 2147483648
  %v5724 = vor.u32 1.1754944e-38, %v5723
  %v5725 = vsel %vm5722, %v5724, %v5720
  %v5726 = vmul.f32 1.0, %v5725
  %v5727 = vrcp.pop %v4823
  %v5728 = vmul.f32 %v4823, %v5727
  %v5729 = vsub.f32 1.0, %v5728
  %v5730 = vmul.f32 %v5727, %v5729
  %v5731 = vadd.f32 %v5727, %v5730
  %vm5732 = vweird.f32 %v4823
  %vm5733 = vweird.f32 %v5727
  %vm5734 = vmor %vm5732, %vm5733
  %v5735 = vsel %vm5734, %v5727, %v5731
  %v5736 = vand.u32 2147483647, %v4823
  %vm5737 = vcmp.eq.f32.partialorder %v5736, 8.507059e+37
  %v5738 = vand.u32 %v4823, 2147483648
  %v5739 = vor.u32 1.1754944e-38, %v5738
  %v5740 = vsel %vm5737, %v5739, %v5735
  %v5741 = vmul.f32 1.0, %v5740
  %v5742 = vrcp.pop %v4824
  %v5743 = vmul.f32 %v4824, %v5742
  %v5744 = vsub.f32 1.0, %v5743
  %v5745 = vmul.f32 %v5742, %v5744
  %v5746 = vadd.f32 %v5742, %v5745
  %vm5747 = vweird.f32 %v4824
  %vm5748 = vweird.f32 %v5742
  %vm5749 = vmor %vm5747, %vm5748
  %v5750 = vsel %vm5749, %v5742, %v5746
  %v5751 = vand.u32 2147483647, %v4824
  %vm5752 = vcmp.eq.f32.partialorder %v5751, 8.507059e+37
  %v5753 = vand.u32 %v4824, 2147483648
  %v5754 = vor.u32 1.1754944e-38, %v5753
  %v5755 = vsel %vm5752, %v5754, %v5750
  %v5756 = vmul.f32 1.0, %v5755
  %v5757 = vrcp.pop %v4825
  %v5758 = vmul.f32 %v4825, %v5757
  %v5759 = vsub.f32 1.0, %v5758
  %v5760 = vmul.f32 %v5757, %v5759
  %v5761 = vadd.f32 %v5757, %v5760
  %vm5762 = vweird.f32 %v4825
  %vm5763 = vweird.f32 %v5757
  %vm5764 = vmor %vm5762, %vm5763
  %v5765 = vsel %vm5764, %v5757, %v5761
  %v5766 = vand.u32 2147483647, %v4825
  %vm5767 = vcmp.eq.f32.partialorder %v5766, 8.507059e+37
  %v5768 = vand.u32 %v4825, 2147483648
  %v5769 = vor.u32 1.1754944e-38, %v5768
  %v5770 = vsel %vm5767, %v5769, %v5765
  %v5771 = vmul.f32 1.0, %v5770
  %v5772 = vrcp.pop %v4826
  %v5773 = vmul.f32 %v4826, %v5772
  %v5774 = vsub.f32 1.0, %v5773
  %v5775 = vmul.f32 %v5772, %v5774
  %v5776 = vadd.f32 %v5772, %v5775
  %vm5777 = vweird.f32 %v4826
  %vm5778 = vweird.f32 %v5772
  %vm5779 = vmor %vm5777, %vm5778
  %v5780 = vsel %vm5779, %v5772, %v5776
  %v5781 = vand.u32 2147483647, %v4826
  %vm5782 = vcmp.eq.f32.partialorder %v5781, 8.507059e+37
  %v5783 = vand.u32 %v4826, 2147483648
  %v5784 = vor.u32 1.1754944e-38, %v5783
  %v5785 = vsel %vm5782, %v5784, %v5780
  %v5786 = vmul.f32 1.0, %v5785
  %v5787 = vmul.f32 %v2171, %v4841
  %v5788 = vmul.f32 %v2175, %v4856
  %v5789 = vmul.f32 %v2179, %v4871
  %v5790 = vmul.f32 %v2183, %v4886
  %v5791 = vmul.f32 %v2187, %v4901
  %v5792 = vmul.f32 %v2191, %v4916
  %v5793 = vmul.f32 %v2195, %v4931
  %v5794 = vmul.f32 %v2199, %v4946
  %v5795 = vmul.f32 %v2203, %v4961
  %v5796 = vmul.f32 %v2207, %v4976
  %v5797 = vmul.f32 %v2211, %v4991
  %v5798 = vmul.f32 %v2215, %v5006
  %v5799 = vmul.f32 %v2219, %v5021
  %v5800 = vmul.f32 %v2223, %v5036
  %v5801 = vmul.f32 %v2227, %v5051
  %v5802 = vmul.f32 %v2231, %v5066
  %v5803 = vmul.f32 %v2235, %v5081
  %v5804 = vmul.f32 %v2239, %v5096
  %v5805 = vmul.f32 %v2243, %v5111
  %v5806 = vmul.f32 %v2247, %v5126
  %v5807 = vmul.f32 %v2251, %v5141
  %v5808 = vmul.f32 %v2255, %v5156
  %v5809 = vmul.f32 %v2259, %v5171
  %v5810 = vmul.f32 %v2263, %v5186
  %v5811 = vmul.f32 %v2267, %v5201
  %v5812 = vmul.f32 %v2271, %v5216
  %v5813 = vmul.f32 %v2275, %v5231
  %v5814 = vmul.f32 %v2279, %v5246
  %v5815 = vmul.f32 %v2283, %v5261
  %v5816 = vmul.f32 %v2287, %v5276
  %v5817 = vmul.f32 %v2291, %v5291
  %v5818 = vmul.f32 %v2295, %v5306
  %v5819 = vmul.f32 %v2299, %v5321
  %v5820 = vmul.f32 %v2303, %v5336
  %v5821 = vmul.f32 %v2307, %v5351
  %v5822 = vmul.f32 %v2311, %v5366
  %v5823 = vmul.f32 %v2315, %v5381
  %v5824 = vmul.f32 %v2319, %v5396
  %v5825 = vmul.f32 %v2323, %v5411
  %v5826 = vmul.f32 %v2327, %v5426
  %v5827 = vmul.f32 %v2331, %v5441
  %v5828 = vmul.f32 %v2335, %v5456
  %v5829 = vmul.f32 %v2339, %v5471
  %v5830 = vmul.f32 %v2343, %v5486
  %v5831 = vmul.f32 %v2347, %v5501
  %v5832 = vmul.f32 %v2351, %v5516
  %v5833 = vmul.f32 %v2355, %v5531
  %v5834 = vmul.f32 %v2359, %v5546
  %v5835 = vmul.f32 %v2363, %v5561
  %v5836 = vmul.f32 %v2367, %v5576
  %v5837 = vmul.f32 %v2371, %v5591
  %v5838 = vmul.f32 %v2375, %v5606
  %v5839 = vmul.f32 %v2379, %v5621
  %v5840 = vmul.f32 %v2383, %v5636
  %v5841 = vmul.f32 %v2387, %v5651
  %v5842 = vmul.f32 %v2391, %v5666
  %v5843 = vmul.f32 %v2395, %v5681
  %v5844 = vmul.f32 %v2399, %v5696
  %v5845 = vmul.f32 %v2403, %v5711
  %v5846 = vmul.f32 %v2407, %v5726
  %v5847 = vmul.f32 %v2411, %v5741
  %v5848 = vmul.f32 %v2415, %v5756
  %v5849 = vmul.f32 %v2419, %v5771
  %v5850 = vmul.f32 %v2423, %v5786
  %vm5851 = vcmask 130048
  %5852 = vst.msk [vmem:[%s5] sm:$0xff] %vm5851, %v5787
  %5853 = vst.msk [vmem:[%s5 + $0x8] sm:$0xff] %vm5851, %v5788
  %5854 = vst.msk [vmem:[%s5 + $0x10] sm:$0xff] %vm5851, %v5789
  %5855 = vst.msk [vmem:[%s5 + $0x18] sm:$0xff] %vm5851, %v5790
  %5856 = vst.msk [vmem:[%s5 + $0x20] sm:$0xff] %vm5851, %v5791
  %5857 = vst.msk [vmem:[%s5 + $0x28] sm:$0xff] %vm5851, %v5792
  %5858 = vst.msk [vmem:[%s5 + $0x30] sm:$0xff] %vm5851, %v5793
  %5859 = vst.msk [vmem:[%s5 + $0x38] sm:$0xff] %vm5851, %v5794
  %5860 = vst.msk [vmem:[%s5 + $0x40] sm:$0xff] %vm5851, %v5795
  %5861 = vst.msk [vmem:[%s5 + $0x48] sm:$0xff] %vm5851, %v5796
  %5862 = vst.msk [vmem:[%s5 + $0x50] sm:$0xff] %vm5851, %v5797
  %5863 = vst.msk [vmem:[%s5 + $0x58] sm:$0xff] %vm5851, %v5798
  %5864 = vst.msk [vmem:[%s5 + $0x60] sm:$0xff] %vm5851, %v5799
  %5865 = vst.msk [vmem:[%s5 + $0x68] sm:$0xff] %vm5851, %v5800
  %5866 = vst.msk [vmem:[%s5 + $0x70] sm:$0xff] %vm5851, %v5801
  %5867 = vst.msk [vmem:[%s5 + $0x78] sm:$0xff] %vm5851, %v5802
  %5868 = vst.msk [vmem:[%s5 + $0x80] sm:$0xff] %vm5851, %v5803
  %5869 = vst.msk [vmem:[%s5 + $0x88] sm:$0xff] %vm5851, %v5804
  %5870 = vst.msk [vmem:[%s5 + $0x90] sm:$0xff] %vm5851, %v5805
  %5871 = vst.msk [vmem:[%s5 + $0x98] sm:$0xff] %vm5851, %v5806
  %5872 = vst.msk [vmem:[%s5 + $0xa0] sm:$0xff] %vm5851, %v5807
  %5873 = vst.msk [vmem:[%s5 + $0xa8] sm:$0xff] %vm5851, %v5808
  %5874 = vst.msk [vmem:[%s5 + $0xb0] sm:$0xff] %vm5851, %v5809
  %5875 = vst.msk [vmem:[%s5 + $0xb8] sm:$0xff] %vm5851, %v5810
  %5876 = vst.msk [vmem:[%s5 + $0xc0] sm:$0xff] %vm5851, %v5811
  %5877 = vst.msk [vmem:[%s5 + $0xc8] sm:$0xff] %vm5851, %v5812
  %5878 = vst.msk [vmem:[%s5 + $0xd0] sm:$0xff] %vm5851, %v5813
  %5879 = vst.msk [vmem:[%s5 + $0xd8] sm:$0xff] %vm5851, %v5814
  %5880 = vst.msk [vmem:[%s5 + $0xe0] sm:$0xff] %vm5851, %v5815
  %5881 = vst.msk [vmem:[%s5 + $0xe8] sm:$0xff] %vm5851, %v5816
  %5882 = vst.msk [vmem:[%s5 + $0xf0] sm:$0xff] %vm5851, %v5817
  %5883 = vst.msk [vmem:[%s5 + $0xf8] sm:$0xff] %vm5851, %v5818
  %5884 = vst.msk [vmem:[%s5 + $0x100] sm:$0xff] %vm5851, %v5819
  %5885 = vst.msk [vmem:[%s5 + $0x108] sm:$0xff] %vm5851, %v5820
  %5886 = vst.msk [vmem:[%s5 + $0x110] sm:$0xff] %vm5851, %v5821
  %5887 = vst.msk [vmem:[%s5 + $0x118] sm:$0xff] %vm5851, %v5822
  %5888 = vst.msk [vmem:[%s5 + $0x120] sm:$0xff] %vm5851, %v5823
  %5889 = vst.msk [vmem:[%s5 + $0x128] sm:$0xff] %vm5851, %v5824
  %5890 = vst.msk [vmem:[%s5 + $0x130] sm:$0xff] %vm5851, %v5825
  %5891 = vst.msk [vmem:[%s5 + $0x138] sm:$0xff] %vm5851, %v5826
  %5892 = vst.msk [vmem:[%s5 + $0x140] sm:$0xff] %vm5851, %v5827
  %5893 = vst.msk [vmem:[%s5 + $0x148] sm:$0xff] %vm5851, %v5828
  %5894 = vst.msk [vmem:[%s5 + $0x150] sm:$0xff] %vm5851, %v5829
  %5895 = vst.msk [vmem:[%s5 + $0x158] sm:$0xff] %vm5851, %v5830
  %5896 = vst.msk [vmem:[%s5 + $0x160] sm:$0xff] %vm5851, %v5831
  %5897 = vst.msk [vmem:[%s5 + $0x168] sm:$0xff] %vm5851, %v5832
  %5898 = vst.msk [vmem:[%s5 + $0x170] sm:$0xff] %vm5851, %v5833
  %5899 = vst.msk [vmem:[%s5 + $0x178] sm:$0xff] %vm5851, %v5834
  %5900 = vst.msk [vmem:[%s5 + $0x180] sm:$0xff] %vm5851, %v5835
  %5901 = vst.msk [vmem:[%s5 + $0x188] sm:$0xff] %vm5851, %v5836
  %5902 = vst.msk [vmem:[%s5 + $0x190] sm:$0xff] %vm5851, %v5837
  %5903 = vst.msk [vmem:[%s5 + $0x198] sm:$0xff] %vm5851, %v5838
  %5904 = vst.msk [vmem:[%s5 + $0x1a0] sm:$0xff] %vm5851, %v5839
  %5905 = vst.msk [vmem:[%s5 + $0x1a8] sm:$0xff] %vm5851, %v5840
  %5906 = vst.msk [vmem:[%s5 + $0x1b0] sm:$0xff] %vm5851, %v5841
  %5907 = vst.msk [vmem:[%s5 + $0x1b8] sm:$0xff] %vm5851, %v5842
  %5908 = vst.msk [vmem:[%s5 + $0x1c0] sm:$0xff] %vm5851, %v5843
  %5909 = vst.msk [vmem:[%s5 + $0x1c8] sm:$0xff] %vm5851, %v5844
  %5910 = vst.msk [vmem:[%s5 + $0x1d0] sm:$0xff] %vm5851, %v5845
  %5911 = vst.msk [vmem:[%s5 + $0x1d8] sm:$0xff] %vm5851, %v5846
  %5912 = vst.msk [vmem:[%s5 + $0x1e0] sm:$0xff] %vm5851, %v5847
  %5913 = vst.msk [vmem:[%s5 + $0x1e8] sm:$0xff] %vm5851, %v5848
  %5914 = vst.msk [vmem:[%s5 + $0x1f0] sm:$0xff] %vm5851, %v5849
  %5915 = vst.msk [vmem:[%s5 + $0x1f8] sm:$0xff] %vm5851, %v5850
  %v5916 = vxor.u32 %v4317, 2147483648
  %v5917 = vxor.u32 %v4321, 2147483648
  %v5918 = vxor.u32 %v4325, 2147483648
  %v5919 = vxor.u32 %v4329, 2147483648
  %v5920 = vxor.u32 %v4333, 2147483648
  %v5921 = vxor.u32 %v4337, 2147483648
  %v5922 = vxor.u32 %v4341, 2147483648
  %v5923 = vxor.u32 %v4345, 2147483648
  %v5924 = vxor.u32 %v4349, 2147483648
  %v5925 = vxor.u32 %v4353, 2147483648
  %v5926 = vxor.u32 %v4357, 2147483648
  %v5927 = vxor.u32 %v4361, 2147483648
  %v5928 = vxor.u32 %v4365, 2147483648
  %v5929 = vxor.u32 %v4369, 2147483648
  %v5930 = vxor.u32 %v4373, 2147483648
  %v5931 = vxor.u32 %v4377, 2147483648
  %v5932 = vxor.u32 %v4381, 2147483648
  %v5933 = vxor.u32 %v4385, 2147483648
  %v5934 = vxor.u32 %v4389, 2147483648
  %v5935 = vxor.u32 %v4393, 2147483648
  %v5936 = vxor.u32 %v4397, 2147483648
  %v5937 = vxor.u32 %v4401, 2147483648
  %v5938 = vxor.u32 %v4405, 2147483648
  %v5939 = vxor.u32 %v4409, 2147483648
  %v5940 = vxor.u32 %v4413, 2147483648
  %v5941 = vxor.u32 %v4417, 2147483648
  %v5942 = vxor.u32 %v4421, 2147483648
  %v5943 = vxor.u32 %v4425, 2147483648
  %v5944 = vxor.u32 %v4429, 2147483648
  %v5945 = vxor.u32 %v4433, 2147483648
  %v5946 = vxor.u32 %v4437, 2147483648
  %v5947 = vxor.u32 %v4441, 2147483648
  %v5948 = vxor.u32 %v4445, 2147483648
  %v5949 = vxor.u32 %v4449, 2147483648
  %v5950 = vxor.u32 %v4453, 2147483648
  %v5951 = vxor.u32 %v4457, 2147483648
  %v5952 = vxor.u32 %v4461, 2147483648
  %v5953 = vxor.u32 %v4465, 2147483648
  %v5954 = vxor.u32 %v4469, 2147483648
  %v5955 = vxor.u32 %v4473, 2147483648
  %v5956 = vxor.u32 %v4477, 2147483648
  %v5957 = vxor.u32 %v4481, 2147483648
  %v5958 = vxor.u32 %v4485, 2147483648
  %v5959 = vxor.u32 %v4489, 2147483648
  %v5960 = vxor.u32 %v4493, 2147483648
  %v5961 = vxor.u32 %v4497, 2147483648
  %v5962 = vxor.u32 %v4501, 2147483648
  %v5963 = vxor.u32 %v4505, 2147483648
  %v5964 = vxor.u32 %v4509, 2147483648
  %v5965 = vxor.u32 %v4513, 2147483648
  %v5966 = vxor.u32 %v4517, 2147483648
  %v5967 = vxor.u32 %v4521, 2147483648
  %v5968 = vxor.u32 %v4525, 2147483648
  %v5969 = vxor.u32 %v4529, 2147483648
  %v5970 = vxor.u32 %v4533, 2147483648
  %v5971 = vxor.u32 %v4537, 2147483648
  %v5972 = vxor.u32 %v4541, 2147483648
  %v5973 = vxor.u32 %v4545, 2147483648
  %v5974 = vxor.u32 %v4549, 2147483648
  %v5975 = vxor.u32 %v4553, 2147483648
  %v5976 = vxor.u32 %v4557, 2147483648
  %v5977 = vxor.u32 %v4561, 2147483648
  %v5978 = vxor.u32 %v4565, 2147483648
  %v5979 = vxor.u32 %v4569, 2147483648
  %v5980 = vmul.f32 %v5916, 1.442695
  %v5981 = vpow.pop %v5980
  %v5982 = vmul.f32 %v5917, 1.442695
  %v5983 = vpow.pop %v5982
  %v5984 = vmul.f32 %v5918, 1.442695
  %v5985 = vpow.pop %v5984
  %v5986 = vmul.f32 %v5919, 1.442695
  %v5987 = vpow.pop %v5986
  %v5988 = vmul.f32 %v5920, 1.442695
  %v5989 = vpow.pop %v5988
  %v5990 = vmul.f32 %v5921, 1.442695
  %v5991 = vpow.pop %v5990
  %v5992 = vmul.f32 %v5922, 1.442695
  %v5993 = vpow.pop %v5992
  %v5994 = vmul.f32 %v5923, 1.442695
  %v5995 = vpow.pop %v5994
  %v5996 = vmul.f32 %v5924, 1.442695
  %v5997 = vpow.pop %v5996
  %v5998 = vmul.f32 %v5925, 1.442695
  %v5999 = vpow.pop %v5998
  %v6000 = vmul.f32 %v5926, 1.442695
  %v6001 = vpow.pop %v6000
  %v6002 = vmul.f32 %v5927, 1.442695
  %v6003 = vpow.pop %v6002
  %v6004 = vmul.f32 %v5928, 1.442695
  %v6005 = vpow.pop %v6004
  %v6006 = vmul.f32 %v5929, 1.442695
  %v6007 = vpow.pop %v6006
  %v6008 = vmul.f32 %v5930, 1.442695
  %v6009 = vpow.pop %v6008
  %v6010 = vmul.f32 %v5931, 1.442695
  %v6011 = vpow.pop %v6010
  %v6012 = vmul.f32 %v5932, 1.442695
  %v6013 = vpow.pop %v6012
  %v6014 = vmul.f32 %v5933, 1.442695
  %v6015 = vpow.pop %v6014
  %v6016 = vmul.f32 %v5934, 1.442695
  %v6017 = vpow.pop %v6016
  %v6018 = vmul.f32 %v5935, 1.442695
  %v6019 = vpow.pop %v6018
  %v6020 = vmul.f32 %v5936, 1.442695
  %v6021 = vpow.pop %v6020
  %v6022 = vmul.f32 %v5937, 1.442695
  %v6023 = vpow.pop %v6022
  %v6024 = vmul.f32 %v5938, 1.442695
  %v6025 = vpow.pop %v6024
  %v6026 = vmul.f32 %v5939, 1.442695
  %v6027 = vpow.pop %v6026
  %v6028 = vmul.f32 %v5940, 1.442695
  %v6029 = vpow.pop %v6028
  %v6030 = vmul.f32 %v5941, 1.442695
  %v6031 = vpow.pop %v6030
  %v6032 = vmul.f32 %v5942, 1.442695
  %v6033 = vpow.pop %v6032
  %v6034 = vmul.f32 %v5943, 1.442695
  %v6035 = vpow.pop %v6034
  %v6036 = vmul.f32 %v5944, 1.442695
  %v6037 = vpow.pop %v6036
  %v6038 = vmul.f32 %v5945, 1.442695
  %v6039 = vpow.pop %v6038
  %v6040 = vmul.f32 %v5946, 1.442695
  %v6041 = vpow.pop %v6040
  %v6042 = vmul.f32 %v5947, 1.442695
  %v6043 = vpow.pop %v6042
  %v6044 = vmul.f32 %v5948, 1.442695
  %v6045 = vpow.pop %v6044
  %v6046 = vmul.f32 %v5949, 1.442695
  %v6047 = vpow.pop %v6046
  %v6048 = vmul.f32 %v5950, 1.442695
  %v6049 = vpow.pop %v6048
  %v6050 = vmul.f32 %v5951, 1.442695
  %v6051 = vpow.pop %v6050
  %v6052 = vmul.f32 %v5952, 1.442695
  %v6053 = vpow.pop %v6052
  %v6054 = vmul.f32 %v5953, 1.442695
  %v6055 = vpow.pop %v6054
  %v6056 = vmul.f32 %v5954, 1.442695
  %v6057 = vpow.pop %v6056
  %v6058 = vmul.f32 %v5955, 1.442695
  %v6059 = vpow.pop %v6058
  %v6060 = vmul.f32 %v5956, 1.442695
  %v6061 = vpow.pop %v6060
  %v6062 = vmul.f32 %v5957, 1.442695
  %v6063 = vpow.pop %v6062
  %v6064 = vmul.f32 %v5958, 1.442695
  %v6065 = vpow.pop %v6064
  %v6066 = vmul.f32 %v5959, 1.442695
  %v6067 = vpow.pop %v6066
  %v6068 = vmul.f32 %v5960, 1.442695
  %v6069 = vpow.pop %v6068
  %v6070 = vmul.f32 %v5961, 1.442695
  %v6071 = vpow.pop %v6070
  %v6072 = vmul.f32 %v5962, 1.442695
  %v6073 = vpow.pop %v6072
  %v6074 = vmul.f32 %v5963, 1.442695
  %v6075 = vpow.pop %v6074
  %v6076 = vmul.f32 %v5964, 1.442695
  %v6077 = vpow.pop %v6076
  %v6078 = vmul.f32 %v5965, 1.442695
  %v6079 = vpow.pop %v6078
  %v6080 = vmul.f32 %v5966, 1.442695
  %v6081 = vpow.pop %v6080
  %v6082 = vmul.f32 %v5967, 1.442695
  %v6083 = vpow.pop %v6082
  %v6084 = vmul.f32 %v5968, 1.442695
  %v6085 = vpow.pop %v6084
  %v6086 = vmul.f32 %v5969, 1.442695
  %v6087 = vpow.pop %v6086
  %v6088 = vmul.f32 %v5970, 1.442695
  %v6089 = vpow.pop %v6088
  %v6090 = vmul.f32 %v5971, 1.442695
  %v6091 = vpow.pop %v6090
  %v6092 = vmul.f32 %v5972, 1.442695
  %v6093 = vpow.pop %v6092
  %v6094 = vmul.f32 %v5973, 1.442695
  %v6095 = vpow.pop %v6094
  %v6096 = vmul.f32 %v5974, 1.442695
  %v6097 = vpow.pop %v6096
  %v6098 = vmul.f32 %v5975, 1.442695
  %v6099 = vpow.pop %v6098
  %v6100 = vmul.f32 %v5976, 1.442695
  %v6101 = vpow.pop %v6100
  %v6102 = vmul.f32 %v5977, 1.442695
  %v6103 = vpow.pop %v6102
  %v6104 = vmul.f32 %v5978, 1.442695
  %v6105 = vpow.pop %v6104
  %v6106 = vmul.f32 %v5979, 1.442695
  %v6107 = vpow.pop %v6106
  %v6108 = vadd.f32 %v5981, 1.0
  %v6109 = vadd.f32 %v5983, 1.0
  %v6110 = vadd.f32 %v5985, 1.0
  %v6111 = vadd.f32 %v5987, 1.0
  %v6112 = vadd.f32 %v5989, 1.0
  %v6113 = vadd.f32 %v5991, 1.0
  %v6114 = vadd.f32 %v5993, 1.0
  %v6115 = vadd.f32 %v5995, 1.0
  %v6116 = vadd.f32 %v5997, 1.0
  %v6117 = vadd.f32 %v5999, 1.0
  %v6118 = vadd.f32 %v6001, 1.0
  %v6119 = vadd.f32 %v6003, 1.0
  %v6120 = vadd.f32 %v6005, 1.0
  %v6121 = vadd.f32 %v6007, 1.0
  %v6122 = vadd.f32 %v6009, 1.0
  %v6123 = vadd.f32 %v6011, 1.0
  %v6124 = vadd.f32 %v6013, 1.0
  %v6125 = vadd.f32 %v6015, 1.0
  %v6126 = vadd.f32 %v6017, 1.0
  %v6127 = vadd.f32 %v6019, 1.0
  %v6128 = vadd.f32 %v6021, 1.0
  %v6129 = vadd.f32 %v6023, 1.0
  %v6130 = vadd.f32 %v6025, 1.0
  %v6131 = vadd.f32 %v6027, 1.0
  %v6132 = vadd.f32 %v6029, 1.0
  %v6133 = vadd.f32 %v6031, 1.0
  %v6134 = vadd.f32 %v6033, 1.0
  %v6135 = vadd.f32 %v6035, 1.0
  %v6136 = vadd.f32 %v6037, 1.0
  %v6137 = vadd.f32 %v6039, 1.0
  %v6138 = vadd.f32 %v6041, 1.0
  %v6139 = vadd.f32 %v6043, 1.0
  %v6140 = vadd.f32 %v6045, 1.0
  %v6141 = vadd.f32 %v6047, 1.0
  %v6142 = vadd.f32 %v6049, 1.0
  %v6143 = vadd.f32 %v6051, 1.0
  %v6144 = vadd.f32 %v6053, 1.0
  %v6145 = vadd.f32 %v6055, 1.0
  %v6146 = vadd.f32 %v6057, 1.0
  %v6147 = vadd.f32 %v6059, 1.0
  %v6148 = vadd.f32 %v6061, 1.0
  %v6149 = vadd.f32 %v6063, 1.0
  %v6150 = vadd.f32 %v6065, 1.0
  %v6151 = vadd.f32 %v6067, 1.0
  %v6152 = vadd.f32 %v6069, 1.0
  %v6153 = vadd.f32 %v6071, 1.0
  %v6154 = vadd.f32 %v6073, 1.0
  %v6155 = vadd.f32 %v6075, 1.0
  %v6156 = vadd.f32 %v6077, 1.0
  %v6157 = vadd.f32 %v6079, 1.0
  %v6158 = vadd.f32 %v6081, 1.0
  %v6159 = vadd.f32 %v6083, 1.0
  %v6160 = vadd.f32 %v6085, 1.0
  %v6161 = vadd.f32 %v6087, 1.0
  %v6162 = vadd.f32 %v6089, 1.0
  %v6163 = vadd.f32 %v6091, 1.0
  %v6164 = vadd.f32 %v6093, 1.0
  %v6165 = vadd.f32 %v6095, 1.0
  %v6166 = vadd.f32 %v6097, 1.0
  %v6167 = vadd.f32 %v6099, 1.0
  %v6168 = vadd.f32 %v6101, 1.0
  %v6169 = vadd.f32 %v6103, 1.0
  %v6170 = vadd.f32 %v6105, 1.0
  %v6171 = vadd.f32 %v6107, 1.0
  %v6172 = vrcp.pop %v6108
  %v6173 = vmul.f32 %v6108, %v6172
  %v6174 = vsub.f32 1.0, %v6173
  %v6175 = vmul.f32 %v6172, %v6174
  %v6176 = vadd.f32 %v6172, %v6175
  %vm6177 = vweird.f32 %v6108
  %vm6178 = vweird.f32 %v6172
  %vm6179 = vmor %vm6177, %vm6178
  %v6180 = vsel %vm6179, %v6172, %v6176
  %v6181 = vand.u32 2147483647, %v6108
  %vm6182 = vcmp.eq.f32.partialorder %v6181, 8.507059e+37
  %v6183 = vand.u32 %v6108, 2147483648
  %v6184 = vor.u32 1.1754944e-38, %v6183
  %v6185 = vsel %vm6182, %v6184, %v6180
  %v6186 = vmul.f32 1.0, %v6185
  %v6187 = vrcp.pop %v6109
  %v6188 = vmul.f32 %v6109, %v6187
  %v6189 = vsub.f32 1.0, %v6188
  %v6190 = vmul.f32 %v6187, %v6189
  %v6191 = vadd.f32 %v6187, %v6190
  %vm6192 = vweird.f32 %v6109
  %vm6193 = vweird.f32 %v6187
  %vm6194 = vmor %vm6192, %vm6193
  %v6195 = vsel %vm6194, %v6187, %v6191
  %v6196 = vand.u32 2147483647, %v6109
  %vm6197 = vcmp.eq.f32.partialorder %v6196, 8.507059e+37
  %v6198 = vand.u32 %v6109, 2147483648
  %v6199 = vor.u32 1.1754944e-38, %v6198
  %v6200 = vsel %vm6197, %v6199, %v6195
  %v6201 = vmul.f32 1.0, %v6200
  %v6202 = vrcp.pop %v6110
  %v6203 = vmul.f32 %v6110, %v6202
  %v6204 = vsub.f32 1.0, %v6203
  %v6205 = vmul.f32 %v6202, %v6204
  %v6206 = vadd.f32 %v6202, %v6205
  %vm6207 = vweird.f32 %v6110
  %vm6208 = vweird.f32 %v6202
  %vm6209 = vmor %vm6207, %vm6208
  %v6210 = vsel %vm6209, %v6202, %v6206
  %v6211 = vand.u32 2147483647, %v6110
  %vm6212 = vcmp.eq.f32.partialorder %v6211, 8.507059e+37
  %v6213 = vand.u32 %v6110, 2147483648
  %v6214 = vor.u32 1.1754944e-38, %v6213
  %v6215 = vsel %vm6212, %v6214, %v6210
  %v6216 = vmul.f32 1.0, %v6215
  %v6217 = vrcp.pop %v6111
  %v6218 = vmul.f32 %v6111, %v6217
  %v6219 = vsub.f32 1.0, %v6218
  %v6220 = vmul.f32 %v6217, %v6219
  %v6221 = vadd.f32 %v6217, %v6220
  %vm6222 = vweird.f32 %v6111
  %vm6223 = vweird.f32 %v6217
  %vm6224 = vmor %vm6222, %vm6223
  %v6225 = vsel %vm6224, %v6217, %v6221
  %v6226 = vand.u32 2147483647, %v6111
  %vm6227 = vcmp.eq.f32.partialorder %v6226, 8.507059e+37
  %v6228 = vand.u32 %v6111, 2147483648
  %v6229 = vor.u32 1.1754944e-38, %v6228
  %v6230 = vsel %vm6227, %v6229, %v6225
  %v6231 = vmul.f32 1.0, %v6230
  %v6232 = vrcp.pop %v6112
  %v6233 = vmul.f32 %v6112, %v6232
  %v6234 = vsub.f32 1.0, %v6233
  %v6235 = vmul.f32 %v6232, %v6234
  %v6236 = vadd.f32 %v6232, %v6235
  %vm6237 = vweird.f32 %v6112
  %vm6238 = vweird.f32 %v6232
  %vm6239 = vmor %vm6237, %vm6238
  %v6240 = vsel %vm6239, %v6232, %v6236
  %v6241 = vand.u32 2147483647, %v6112
  %vm6242 = vcmp.eq.f32.partialorder %v6241, 8.507059e+37
  %v6243 = vand.u32 %v6112, 2147483648
  %v6244 = vor.u32 1.1754944e-38, %v6243
  %v6245 = vsel %vm6242, %v6244, %v6240
  %v6246 = vmul.f32 1.0, %v6245
  %v6247 = vrcp.pop %v6113
  %v6248 = vmul.f32 %v6113, %v6247
  %v6249 = vsub.f32 1.0, %v6248
  %v6250 = vmul.f32 %v6247, %v6249
  %v6251 = vadd.f32 %v6247, %v6250
  %vm6252 = vweird.f32 %v6113
  %vm6253 = vweird.f32 %v6247
  %vm6254 = vmor %vm6252, %vm6253
  %v6255 = vsel %vm6254, %v6247, %v6251
  %v6256 = vand.u32 2147483647, %v6113
  %vm6257 = vcmp.eq.f32.partialorder %v6256, 8.507059e+37
  %v6258 = vand.u32 %v6113, 2147483648
  %v6259 = vor.u32 1.1754944e-38, %v6258
  %v6260 = vsel %vm6257, %v6259, %v6255
  %v6261 = vmul.f32 1.0, %v6260
  %v6262 = vrcp.pop %v6114
  %v6263 = vmul.f32 %v6114, %v6262
  %v6264 = vsub.f32 1.0, %v6263
  %v6265 = vmul.f32 %v6262, %v6264
  %v6266 = vadd.f32 %v6262, %v6265
  %vm6267 = vweird.f32 %v6114
  %vm6268 = vweird.f32 %v6262
  %vm6269 = vmor %vm6267, %vm6268
  %v6270 = vsel %vm6269, %v6262, %v6266
  %v6271 = vand.u32 2147483647, %v6114
  %vm6272 = vcmp.eq.f32.partialorder %v6271, 8.507059e+37
  %v6273 = vand.u32 %v6114, 2147483648
  %v6274 = vor.u32 1.1754944e-38, %v6273
  %v6275 = vsel %vm6272, %v6274, %v6270
  %v6276 = vmul.f32 1.0, %v6275
  %v6277 = vrcp.pop %v6115
  %v6278 = vmul.f32 %v6115, %v6277
  %v6279 = vsub.f32 1.0, %v6278
  %v6280 = vmul.f32 %v6277, %v6279
  %v6281 = vadd.f32 %v6277, %v6280
  %vm6282 = vweird.f32 %v6115
  %vm6283 = vweird.f32 %v6277
  %vm6284 = vmor %vm6282, %vm6283
  %v6285 = vsel %vm6284, %v6277, %v6281
  %v6286 = vand.u32 2147483647, %v6115
  %vm6287 = vcmp.eq.f32.partialorder %v6286, 8.507059e+37
  %v6288 = vand.u32 %v6115, 2147483648
  %v6289 = vor.u32 1.1754944e-38, %v6288
  %v6290 = vsel %vm6287, %v6289, %v6285
  %v6291 = vmul.f32 1.0, %v6290
  %v6292 = vrcp.pop %v6116
  %v6293 = vmul.f32 %v6116, %v6292
  %v6294 = vsub.f32 1.0, %v6293
  %v6295 = vmul.f32 %v6292, %v6294
  %v6296 = vadd.f32 %v6292, %v6295
  %vm6297 = vweird.f32 %v6116
  %vm6298 = vweird.f32 %v6292
  %vm6299 = vmor %vm6297, %vm6298
  %v6300 = vsel %vm6299, %v6292, %v6296
  %v6301 = vand.u32 2147483647, %v6116
  %vm6302 = vcmp.eq.f32.partialorder %v6301, 8.507059e+37
  %v6303 = vand.u32 %v6116, 2147483648
  %v6304 = vor.u32 1.1754944e-38, %v6303
  %v6305 = vsel %vm6302, %v6304, %v6300
  %v6306 = vmul.f32 1.0, %v6305
  %v6307 = vrcp.pop %v6117
  %v6308 = vmul.f32 %v6117, %v6307
  %v6309 = vsub.f32 1.0, %v6308
  %v6310 = vmul.f32 %v6307, %v6309
  %v6311 = vadd.f32 %v6307, %v6310
  %vm6312 = vweird.f32 %v6117
  %vm6313 = vweird.f32 %v6307
  %vm6314 = vmor %vm6312, %vm6313
  %v6315 = vsel %vm6314, %v6307, %v6311
  %v6316 = vand.u32 2147483647, %v6117
  %vm6317 = vcmp.eq.f32.partialorder %v6316, 8.507059e+37
  %v6318 = vand.u32 %v6117, 2147483648
  %v6319 = vor.u32 1.1754944e-38, %v6318
  %v6320 = vsel %vm6317, %v6319, %v6315
  %v6321 = vmul.f32 1.0, %v6320
  %v6322 = vrcp.pop %v6118
  %v6323 = vmul.f32 %v6118, %v6322
  %v6324 = vsub.f32 1.0, %v6323
  %v6325 = vmul.f32 %v6322, %v6324
  %v6326 = vadd.f32 %v6322, %v6325
  %vm6327 = vweird.f32 %v6118
  %vm6328 = vweird.f32 %v6322
  %vm6329 = vmor %vm6327, %vm6328
  %v6330 = vsel %vm6329, %v6322, %v6326
  %v6331 = vand.u32 2147483647, %v6118
  %vm6332 = vcmp.eq.f32.partialorder %v6331, 8.507059e+37
  %v6333 = vand.u32 %v6118, 2147483648
  %v6334 = vor.u32 1.1754944e-38, %v6333
  %v6335 = vsel %vm6332, %v6334, %v6330
  %v6336 = vmul.f32 1.0, %v6335
  %v6337 = vrcp.pop %v6119
  %v6338 = vmul.f32 %v6119, %v6337
  %v6339 = vsub.f32 1.0, %v6338
  %v6340 = vmul.f32 %v6337, %v6339
  %v6341 = vadd.f32 %v6337, %v6340
  %vm6342 = vweird.f32 %v6119
  %vm6343 = vweird.f32 %v6337
  %vm6344 = vmor %vm6342, %vm6343
  %v6345 = vsel %vm6344, %v6337, %v6341
  %v6346 = vand.u32 2147483647, %v6119
  %vm6347 = vcmp.eq.f32.partialorder %v6346, 8.507059e+37
  %v6348 = vand.u32 %v6119, 2147483648
  %v6349 = vor.u32 1.1754944e-38, %v6348
  %v6350 = vsel %vm6347, %v6349, %v6345
  %v6351 = vmul.f32 1.0, %v6350
  %v6352 = vrcp.pop %v6120
  %v6353 = vmul.f32 %v6120, %v6352
  %v6354 = vsub.f32 1.0, %v6353
  %v6355 = vmul.f32 %v6352, %v6354
  %v6356 = vadd.f32 %v6352, %v6355
  %vm6357 = vweird.f32 %v6120
  %vm6358 = vweird.f32 %v6352
  %vm6359 = vmor %vm6357, %vm6358
  %v6360 = vsel %vm6359, %v6352, %v6356
  %v6361 = vand.u32 2147483647, %v6120
  %vm6362 = vcmp.eq.f32.partialorder %v6361, 8.507059e+37
  %v6363 = vand.u32 %v6120, 2147483648
  %v6364 = vor.u32 1.1754944e-38, %v6363
  %v6365 = vsel %vm6362, %v6364, %v6360
  %v6366 = vmul.f32 1.0, %v6365
  %v6367 = vrcp.pop %v6121
  %v6368 = vmul.f32 %v6121, %v6367
  %v6369 = vsub.f32 1.0, %v6368
  %v6370 = vmul.f32 %v6367, %v6369
  %v6371 = vadd.f32 %v6367, %v6370
  %vm6372 = vweird.f32 %v6121
  %vm6373 = vweird.f32 %v6367
  %vm6374 = vmor %vm6372, %vm6373
  %v6375 = vsel %vm6374, %v6367, %v6371
  %v6376 = vand.u32 2147483647, %v6121
  %vm6377 = vcmp.eq.f32.partialorder %v6376, 8.507059e+37
  %v6378 = vand.u32 %v6121, 2147483648
  %v6379 = vor.u32 1.1754944e-38, %v6378
  %v6380 = vsel %vm6377, %v6379, %v6375
  %v6381 = vmul.f32 1.0, %v6380
  %v6382 = vrcp.pop %v6122
  %v6383 = vmul.f32 %v6122, %v6382
  %v6384 = vsub.f32 1.0, %v6383
  %v6385 = vmul.f32 %v6382, %v6384
  %v6386 = vadd.f32 %v6382, %v6385
  %vm6387 = vweird.f32 %v6122
  %vm6388 = vweird.f32 %v6382
  %vm6389 = vmor %vm6387, %vm6388
  %v6390 = vsel %vm6389, %v6382, %v6386
  %v6391 = vand.u32 2147483647, %v6122
  %vm6392 = vcmp.eq.f32.partialorder %v6391, 8.507059e+37
  %v6393 = vand.u32 %v6122, 2147483648
  %v6394 = vor.u32 1.1754944e-38, %v6393
  %v6395 = vsel %vm6392, %v6394, %v6390
  %v6396 = vmul.f32 1.0, %v6395
  %v6397 = vrcp.pop %v6123
  %v6398 = vmul.f32 %v6123, %v6397
  %v6399 = vsub.f32 1.0, %v6398
  %v6400 = vmul.f32 %v6397, %v6399
  %v6401 = vadd.f32 %v6397, %v6400
  %vm6402 = vweird.f32 %v6123
  %vm6403 = vweird.f32 %v6397
  %vm6404 = vmor %vm6402, %vm6403
  %v6405 = vsel %vm6404, %v6397, %v6401
  %v6406 = vand.u32 2147483647, %v6123
  %vm6407 = vcmp.eq.f32.partialorder %v6406, 8.507059e+37
  %v6408 = vand.u32 %v6123, 2147483648
  %v6409 = vor.u32 1.1754944e-38, %v6408
  %v6410 = vsel %vm6407, %v6409, %v6405
  %v6411 = vmul.f32 1.0, %v6410
  %v6412 = vrcp.pop %v6124
  %v6413 = vmul.f32 %v6124, %v6412
  %v6414 = vsub.f32 1.0, %v6413
  %v6415 = vmul.f32 %v6412, %v6414
  %v6416 = vadd.f32 %v6412, %v6415
  %vm6417 = vweird.f32 %v6124
  %vm6418 = vweird.f32 %v6412
  %vm6419 = vmor %vm6417, %vm6418
  %v6420 = vsel %vm6419, %v6412, %v6416
  %v6421 = vand.u32 2147483647, %v6124
  %vm6422 = vcmp.eq.f32.partialorder %v6421, 8.507059e+37
  %v6423 = vand.u32 %v6124, 2147483648
  %v6424 = vor.u32 1.1754944e-38, %v6423
  %v6425 = vsel %vm6422, %v6424, %v6420
  %v6426 = vmul.f32 1.0, %v6425
  %v6427 = vrcp.pop %v6125
  %v6428 = vmul.f32 %v6125, %v6427
  %v6429 = vsub.f32 1.0, %v6428
  %v6430 = vmul.f32 %v6427, %v6429
  %v6431 = vadd.f32 %v6427, %v6430
  %vm6432 = vweird.f32 %v6125
  %vm6433 = vweird.f32 %v6427
  %vm6434 = vmor %vm6432, %vm6433
  %v6435 = vsel %vm6434, %v6427, %v6431
  %v6436 = vand.u32 2147483647, %v6125
  %vm6437 = vcmp.eq.f32.partialorder %v6436, 8.507059e+37
  %v6438 = vand.u32 %v6125, 2147483648
  %v6439 = vor.u32 1.1754944e-38, %v6438
  %v6440 = vsel %vm6437, %v6439, %v6435
  %v6441 = vmul.f32 1.0, %v6440
  %v6442 = vrcp.pop %v6126
  %v6443 = vmul.f32 %v6126, %v6442
  %v6444 = vsub.f32 1.0, %v6443
  %v6445 = vmul.f32 %v6442, %v6444
  %v6446 = vadd.f32 %v6442, %v6445
  %vm6447 = vweird.f32 %v6126
  %vm6448 = vweird.f32 %v6442
  %vm6449 = vmor %vm6447, %vm6448
  %v6450 = vsel %vm6449, %v6442, %v6446
  %v6451 = vand.u32 2147483647, %v6126
  %vm6452 = vcmp.eq.f32.partialorder %v6451, 8.507059e+37
  %v6453 = vand.u32 %v6126, 2147483648
  %v6454 = vor.u32 1.1754944e-38, %v6453
  %v6455 = vsel %vm6452, %v6454, %v6450
  %v6456 = vmul.f32 1.0, %v6455
  %v6457 = vrcp.pop %v6127
  %v6458 = vmul.f32 %v6127, %v6457
  %v6459 = vsub.f32 1.0, %v6458
  %v6460 = vmul.f32 %v6457, %v6459
  %v6461 = vadd.f32 %v6457, %v6460
  %vm6462 = vweird.f32 %v6127
  %vm6463 = vweird.f32 %v6457
  %vm6464 = vmor %vm6462, %vm6463
  %v6465 = vsel %vm6464, %v6457, %v6461
  %v6466 = vand.u32 2147483647, %v6127
  %vm6467 = vcmp.eq.f32.partialorder %v6466, 8.507059e+37
  %v6468 = vand.u32 %v6127, 2147483648
  %v6469 = vor.u32 1.1754944e-38, %v6468
  %v6470 = vsel %vm6467, %v6469, %v6465
  %v6471 = vmul.f32 1.0, %v6470
  %v6472 = vrcp.pop %v6128
  %v6473 = vmul.f32 %v6128, %v6472
  %v6474 = vsub.f32 1.0, %v6473
  %v6475 = vmul.f32 %v6472, %v6474
  %v6476 = vadd.f32 %v6472, %v6475
  %vm6477 = vweird.f32 %v6128
  %vm6478 = vweird.f32 %v6472
  %vm6479 = vmor %vm6477, %vm6478
  %v6480 = vsel %vm6479, %v6472, %v6476
  %v6481 = vand.u32 2147483647, %v6128
  %vm6482 = vcmp.eq.f32.partialorder %v6481, 8.507059e+37
  %v6483 = vand.u32 %v6128, 2147483648
  %v6484 = vor.u32 1.1754944e-38, %v6483
  %v6485 = vsel %vm6482, %v6484, %v6480
  %v6486 = vmul.f32 1.0, %v6485
  %v6487 = vrcp.pop %v6129
  %v6488 = vmul.f32 %v6129, %v6487
  %v6489 = vsub.f32 1.0, %v6488
  %v6490 = vmul.f32 %v6487, %v6489
  %v6491 = vadd.f32 %v6487, %v6490
  %vm6492 = vweird.f32 %v6129
  %vm6493 = vweird.f32 %v6487
  %vm6494 = vmor %vm6492, %vm6493
  %v6495 = vsel %vm6494, %v6487, %v6491
  %v6496 = vand.u32 2147483647, %v6129
  %vm6497 = vcmp.eq.f32.partialorder %v6496, 8.507059e+37
  %v6498 = vand.u32 %v6129, 2147483648
  %v6499 = vor.u32 1.1754944e-38, %v6498
  %v6500 = vsel %vm6497, %v6499, %v6495
  %v6501 = vmul.f32 1.0, %v6500
  %v6502 = vrcp.pop %v6130
  %v6503 = vmul.f32 %v6130, %v6502
  %v6504 = vsub.f32 1.0, %v6503
  %v6505 = vmul.f32 %v6502, %v6504
  %v6506 = vadd.f32 %v6502, %v6505
  %vm6507 = vweird.f32 %v6130
  %vm6508 = vweird.f32 %v6502
  %vm6509 = vmor %vm6507, %vm6508
  %v6510 = vsel %vm6509, %v6502, %v6506
  %v6511 = vand.u32 2147483647, %v6130
  %vm6512 = vcmp.eq.f32.partialorder %v6511, 8.507059e+37
  %v6513 = vand.u32 %v6130, 2147483648
  %v6514 = vor.u32 1.1754944e-38, %v6513
  %v6515 = vsel %vm6512, %v6514, %v6510
  %v6516 = vmul.f32 1.0, %v6515
  %v6517 = vrcp.pop %v6131
  %v6518 = vmul.f32 %v6131, %v6517
  %v6519 = vsub.f32 1.0, %v6518
  %v6520 = vmul.f32 %v6517, %v6519
  %v6521 = vadd.f32 %v6517, %v6520
  %vm6522 = vweird.f32 %v6131
  %vm6523 = vweird.f32 %v6517
  %vm6524 = vmor %vm6522, %vm6523
  %v6525 = vsel %vm6524, %v6517, %v6521
  %v6526 = vand.u32 2147483647, %v6131
  %vm6527 = vcmp.eq.f32.partialorder %v6526, 8.507059e+37
  %v6528 = vand.u32 %v6131, 2147483648
  %v6529 = vor.u32 1.1754944e-38, %v6528
  %v6530 = vsel %vm6527, %v6529, %v6525
  %v6531 = vmul.f32 1.0, %v6530
  %v6532 = vrcp.pop %v6132
  %v6533 = vmul.f32 %v6132, %v6532
  %v6534 = vsub.f32 1.0, %v6533
  %v6535 = vmul.f32 %v6532, %v6534
  %v6536 = vadd.f32 %v6532, %v6535
  %vm6537 = vweird.f32 %v6132
  %vm6538 = vweird.f32 %v6532
  %vm6539 = vmor %vm6537, %vm6538
  %v6540 = vsel %vm6539, %v6532, %v6536
  %v6541 = vand.u32 2147483647, %v6132
  %vm6542 = vcmp.eq.f32.partialorder %v6541, 8.507059e+37
  %v6543 = vand.u32 %v6132, 2147483648
  %v6544 = vor.u32 1.1754944e-38, %v6543
  %v6545 = vsel %vm6542, %v6544, %v6540
  %v6546 = vmul.f32 1.0, %v6545
  %v6547 = vrcp.pop %v6133
  %v6548 = vmul.f32 %v6133, %v6547
  %v6549 = vsub.f32 1.0, %v6548
  %v6550 = vmul.f32 %v6547, %v6549
  %v6551 = vadd.f32 %v6547, %v6550
  %vm6552 = vweird.f32 %v6133
  %vm6553 = vweird.f32 %v6547
  %vm6554 = vmor %vm6552, %vm6553
  %v6555 = vsel %vm6554, %v6547, %v6551
  %v6556 = vand.u32 2147483647, %v6133
  %vm6557 = vcmp.eq.f32.partialorder %v6556, 8.507059e+37
  %v6558 = vand.u32 %v6133, 2147483648
  %v6559 = vor.u32 1.1754944e-38, %v6558
  %v6560 = vsel %vm6557, %v6559, %v6555
  %v6561 = vmul.f32 1.0, %v6560
  %v6562 = vrcp.pop %v6134
  %v6563 = vmul.f32 %v6134, %v6562
  %v6564 = vsub.f32 1.0, %v6563
  %v6565 = vmul.f32 %v6562, %v6564
  %v6566 = vadd.f32 %v6562, %v6565
  %vm6567 = vweird.f32 %v6134
  %vm6568 = vweird.f32 %v6562
  %vm6569 = vmor %vm6567, %vm6568
  %v6570 = vsel %vm6569, %v6562, %v6566
  %v6571 = vand.u32 2147483647, %v6134
  %vm6572 = vcmp.eq.f32.partialorder %v6571, 8.507059e+37
  %v6573 = vand.u32 %v6134, 2147483648
  %v6574 = vor.u32 1.1754944e-38, %v6573
  %v6575 = vsel %vm6572, %v6574, %v6570
  %v6576 = vmul.f32 1.0, %v6575
  %v6577 = vrcp.pop %v6135
  %v6578 = vmul.f32 %v6135, %v6577
  %v6579 = vsub.f32 1.0, %v6578
  %v6580 = vmul.f32 %v6577, %v6579
  %v6581 = vadd.f32 %v6577, %v6580
  %vm6582 = vweird.f32 %v6135
  %vm6583 = vweird.f32 %v6577
  %vm6584 = vmor %vm6582, %vm6583
  %v6585 = vsel %vm6584, %v6577, %v6581
  %v6586 = vand.u32 2147483647, %v6135
  %vm6587 = vcmp.eq.f32.partialorder %v6586, 8.507059e+37
  %v6588 = vand.u32 %v6135, 2147483648
  %v6589 = vor.u32 1.1754944e-38, %v6588
  %v6590 = vsel %vm6587, %v6589, %v6585
  %v6591 = vmul.f32 1.0, %v6590
  %v6592 = vrcp.pop %v6136
  %v6593 = vmul.f32 %v6136, %v6592
  %v6594 = vsub.f32 1.0, %v6593
  %v6595 = vmul.f32 %v6592, %v6594
  %v6596 = vadd.f32 %v6592, %v6595
  %vm6597 = vweird.f32 %v6136
  %vm6598 = vweird.f32 %v6592
  %vm6599 = vmor %vm6597, %vm6598
  %v6600 = vsel %vm6599, %v6592, %v6596
  %v6601 = vand.u32 2147483647, %v6136
  %vm6602 = vcmp.eq.f32.partialorder %v6601, 8.507059e+37
  %v6603 = vand.u32 %v6136, 2147483648
  %v6604 = vor.u32 1.1754944e-38, %v6603
  %v6605 = vsel %vm6602, %v6604, %v6600
  %v6606 = vmul.f32 1.0, %v6605
  %v6607 = vrcp.pop %v6137
  %v6608 = vmul.f32 %v6137, %v6607
  %v6609 = vsub.f32 1.0, %v6608
  %v6610 = vmul.f32 %v6607, %v6609
  %v6611 = vadd.f32 %v6607, %v6610
  %vm6612 = vweird.f32 %v6137
  %vm6613 = vweird.f32 %v6607
  %vm6614 = vmor %vm6612, %vm6613
  %v6615 = vsel %vm6614, %v6607, %v6611
  %v6616 = vand.u32 2147483647, %v6137
  %vm6617 = vcmp.eq.f32.partialorder %v6616, 8.507059e+37
  %v6618 = vand.u32 %v6137, 2147483648
  %v6619 = vor.u32 1.1754944e-38, %v6618
  %v6620 = vsel %vm6617, %v6619, %v6615
  %v6621 = vmul.f32 1.0, %v6620
  %v6622 = vrcp.pop %v6138
  %v6623 = vmul.f32 %v6138, %v6622
  %v6624 = vsub.f32 1.0, %v6623
  %v6625 = vmul.f32 %v6622, %v6624
  %v6626 = vadd.f32 %v6622, %v6625
  %vm6627 = vweird.f32 %v6138
  %vm6628 = vweird.f32 %v6622
  %vm6629 = vmor %vm6627, %vm6628
  %v6630 = vsel %vm6629, %v6622, %v6626
  %v6631 = vand.u32 2147483647, %v6138
  %vm6632 = vcmp.eq.f32.partialorder %v6631, 8.507059e+37
  %v6633 = vand.u32 %v6138, 2147483648
  %v6634 = vor.u32 1.1754944e-38, %v6633
  %v6635 = vsel %vm6632, %v6634, %v6630
  %v6636 = vmul.f32 1.0, %v6635
  %v6637 = vrcp.pop %v6139
  %v6638 = vmul.f32 %v6139, %v6637
  %v6639 = vsub.f32 1.0, %v6638
  %v6640 = vmul.f32 %v6637, %v6639
  %v6641 = vadd.f32 %v6637, %v6640
  %vm6642 = vweird.f32 %v6139
  %vm6643 = vweird.f32 %v6637
  %vm6644 = vmor %vm6642, %vm6643
  %v6645 = vsel %vm6644, %v6637, %v6641
  %v6646 = vand.u32 2147483647, %v6139
  %vm6647 = vcmp.eq.f32.partialorder %v6646, 8.507059e+37
  %v6648 = vand.u32 %v6139, 2147483648
  %v6649 = vor.u32 1.1754944e-38, %v6648
  %v6650 = vsel %vm6647, %v6649, %v6645
  %v6651 = vmul.f32 1.0, %v6650
  %v6652 = vrcp.pop %v6140
  %v6653 = vmul.f32 %v6140, %v6652
  %v6654 = vsub.f32 1.0, %v6653
  %v6655 = vmul.f32 %v6652, %v6654
  %v6656 = vadd.f32 %v6652, %v6655
  %vm6657 = vweird.f32 %v6140
  %vm6658 = vweird.f32 %v6652
  %vm6659 = vmor %vm6657, %vm6658
  %v6660 = vsel %vm6659, %v6652, %v6656
  %v6661 = vand.u32 2147483647, %v6140
  %vm6662 = vcmp.eq.f32.partialorder %v6661, 8.507059e+37
  %v6663 = vand.u32 %v6140, 2147483648
  %v6664 = vor.u32 1.1754944e-38, %v6663
  %v6665 = vsel %vm6662, %v6664, %v6660
  %v6666 = vmul.f32 1.0, %v6665
  %v6667 = vrcp.pop %v6141
  %v6668 = vmul.f32 %v6141, %v6667
  %v6669 = vsub.f32 1.0, %v6668
  %v6670 = vmul.f32 %v6667, %v6669
  %v6671 = vadd.f32 %v6667, %v6670
  %vm6672 = vweird.f32 %v6141
  %vm6673 = vweird.f32 %v6667
  %vm6674 = vmor %vm6672, %vm6673
  %v6675 = vsel %vm6674, %v6667, %v6671
  %v6676 = vand.u32 2147483647, %v6141
  %vm6677 = vcmp.eq.f32.partialorder %v6676, 8.507059e+37
  %v6678 = vand.u32 %v6141, 2147483648
  %v6679 = vor.u32 1.1754944e-38, %v6678
  %v6680 = vsel %vm6677, %v6679, %v6675
  %v6681 = vmul.f32 1.0, %v6680
  %v6682 = vrcp.pop %v6142
  %v6683 = vmul.f32 %v6142, %v6682
  %v6684 = vsub.f32 1.0, %v6683
  %v6685 = vmul.f32 %v6682, %v6684
  %v6686 = vadd.f32 %v6682, %v6685
  %vm6687 = vweird.f32 %v6142
  %vm6688 = vweird.f32 %v6682
  %vm6689 = vmor %vm6687, %vm6688
  %v6690 = vsel %vm6689, %v6682, %v6686
  %v6691 = vand.u32 2147483647, %v6142
  %vm6692 = vcmp.eq.f32.partialorder %v6691, 8.507059e+37
  %v6693 = vand.u32 %v6142, 2147483648
  %v6694 = vor.u32 1.1754944e-38, %v6693
  %v6695 = vsel %vm6692, %v6694, %v6690
  %v6696 = vmul.f32 1.0, %v6695
  %v6697 = vrcp.pop %v6143
  %v6698 = vmul.f32 %v6143, %v6697
  %v6699 = vsub.f32 1.0, %v6698
  %v6700 = vmul.f32 %v6697, %v6699
  %v6701 = vadd.f32 %v6697, %v6700
  %vm6702 = vweird.f32 %v6143
  %vm6703 = vweird.f32 %v6697
  %vm6704 = vmor %vm6702, %vm6703
  %v6705 = vsel %vm6704, %v6697, %v6701
  %v6706 = vand.u32 2147483647, %v6143
  %vm6707 = vcmp.eq.f32.partialorder %v6706, 8.507059e+37
  %v6708 = vand.u32 %v6143, 2147483648
  %v6709 = vor.u32 1.1754944e-38, %v6708
  %v6710 = vsel %vm6707, %v6709, %v6705
  %v6711 = vmul.f32 1.0, %v6710
  %v6712 = vrcp.pop %v6144
  %v6713 = vmul.f32 %v6144, %v6712
  %v6714 = vsub.f32 1.0, %v6713
  %v6715 = vmul.f32 %v6712, %v6714
  %v6716 = vadd.f32 %v6712, %v6715
  %vm6717 = vweird.f32 %v6144
  %vm6718 = vweird.f32 %v6712
  %vm6719 = vmor %vm6717, %vm6718
  %v6720 = vsel %vm6719, %v6712, %v6716
  %v6721 = vand.u32 2147483647, %v6144
  %vm6722 = vcmp.eq.f32.partialorder %v6721, 8.507059e+37
  %v6723 = vand.u32 %v6144, 2147483648
  %v6724 = vor.u32 1.1754944e-38, %v6723
  %v6725 = vsel %vm6722, %v6724, %v6720
  %v6726 = vmul.f32 1.0, %v6725
  %v6727 = vrcp.pop %v6145
  %v6728 = vmul.f32 %v6145, %v6727
  %v6729 = vsub.f32 1.0, %v6728
  %v6730 = vmul.f32 %v6727, %v6729
  %v6731 = vadd.f32 %v6727, %v6730
  %vm6732 = vweird.f32 %v6145
  %vm6733 = vweird.f32 %v6727
  %vm6734 = vmor %vm6732, %vm6733
  %v6735 = vsel %vm6734, %v6727, %v6731
  %v6736 = vand.u32 2147483647, %v6145
  %vm6737 = vcmp.eq.f32.partialorder %v6736, 8.507059e+37
  %v6738 = vand.u32 %v6145, 2147483648
  %v6739 = vor.u32 1.1754944e-38, %v6738
  %v6740 = vsel %vm6737, %v6739, %v6735
  %v6741 = vmul.f32 1.0, %v6740
  %v6742 = vrcp.pop %v6146
  %v6743 = vmul.f32 %v6146, %v6742
  %v6744 = vsub.f32 1.0, %v6743
  %v6745 = vmul.f32 %v6742, %v6744
  %v6746 = vadd.f32 %v6742, %v6745
  %vm6747 = vweird.f32 %v6146
  %vm6748 = vweird.f32 %v6742
  %vm6749 = vmor %vm6747, %vm6748
  %v6750 = vsel %vm6749, %v6742, %v6746
  %v6751 = vand.u32 2147483647, %v6146
  %vm6752 = vcmp.eq.f32.partialorder %v6751, 8.507059e+37
  %v6753 = vand.u32 %v6146, 2147483648
  %v6754 = vor.u32 1.1754944e-38, %v6753
  %v6755 = vsel %vm6752, %v6754, %v6750
  %v6756 = vmul.f32 1.0, %v6755
  %v6757 = vrcp.pop %v6147
  %v6758 = vmul.f32 %v6147, %v6757
  %v6759 = vsub.f32 1.0, %v6758
  %v6760 = vmul.f32 %v6757, %v6759
  %v6761 = vadd.f32 %v6757, %v6760
  %vm6762 = vweird.f32 %v6147
  %vm6763 = vweird.f32 %v6757
  %vm6764 = vmor %vm6762, %vm6763
  %v6765 = vsel %vm6764, %v6757, %v6761
  %v6766 = vand.u32 2147483647, %v6147
  %vm6767 = vcmp.eq.f32.partialorder %v6766, 8.507059e+37
  %v6768 = vand.u32 %v6147, 2147483648
  %v6769 = vor.u32 1.1754944e-38, %v6768
  %v6770 = vsel %vm6767, %v6769, %v6765
  %v6771 = vmul.f32 1.0, %v6770
  %v6772 = vrcp.pop %v6148
  %v6773 = vmul.f32 %v6148, %v6772
  %v6774 = vsub.f32 1.0, %v6773
  %v6775 = vmul.f32 %v6772, %v6774
  %v6776 = vadd.f32 %v6772, %v6775
  %vm6777 = vweird.f32 %v6148
  %vm6778 = vweird.f32 %v6772
  %vm6779 = vmor %vm6777, %vm6778
  %v6780 = vsel %vm6779, %v6772, %v6776
  %v6781 = vand.u32 2147483647, %v6148
  %vm6782 = vcmp.eq.f32.partialorder %v6781, 8.507059e+37
  %v6783 = vand.u32 %v6148, 2147483648
  %v6784 = vor.u32 1.1754944e-38, %v6783
  %v6785 = vsel %vm6782, %v6784, %v6780
  %v6786 = vmul.f32 1.0, %v6785
  %v6787 = vrcp.pop %v6149
  %v6788 = vmul.f32 %v6149, %v6787
  %v6789 = vsub.f32 1.0, %v6788
  %v6790 = vmul.f32 %v6787, %v6789
  %v6791 = vadd.f32 %v6787, %v6790
  %vm6792 = vweird.f32 %v6149
  %vm6793 = vweird.f32 %v6787
  %vm6794 = vmor %vm6792, %vm6793
  %v6795 = vsel %vm6794, %v6787, %v6791
  %v6796 = vand.u32 2147483647, %v6149
  %vm6797 = vcmp.eq.f32.partialorder %v6796, 8.507059e+37
  %v6798 = vand.u32 %v6149, 2147483648
  %v6799 = vor.u32 1.1754944e-38, %v6798
  %v6800 = vsel %vm6797, %v6799, %v6795
  %v6801 = vmul.f32 1.0, %v6800
  %v6802 = vrcp.pop %v6150
  %v6803 = vmul.f32 %v6150, %v6802
  %v6804 = vsub.f32 1.0, %v6803
  %v6805 = vmul.f32 %v6802, %v6804
  %v6806 = vadd.f32 %v6802, %v6805
  %vm6807 = vweird.f32 %v6150
  %vm6808 = vweird.f32 %v6802
  %vm6809 = vmor %vm6807, %vm6808
  %v6810 = vsel %vm6809, %v6802, %v6806
  %v6811 = vand.u32 2147483647, %v6150
  %vm6812 = vcmp.eq.f32.partialorder %v6811, 8.507059e+37
  %v6813 = vand.u32 %v6150, 2147483648
  %v6814 = vor.u32 1.1754944e-38, %v6813
  %v6815 = vsel %vm6812, %v6814, %v6810
  %v6816 = vmul.f32 1.0, %v6815
  %v6817 = vrcp.pop %v6151
  %v6818 = vmul.f32 %v6151, %v6817
  %v6819 = vsub.f32 1.0, %v6818
  %v6820 = vmul.f32 %v6817, %v6819
  %v6821 = vadd.f32 %v6817, %v6820
  %vm6822 = vweird.f32 %v6151
  %vm6823 = vweird.f32 %v6817
  %vm6824 = vmor %vm6822, %vm6823
  %v6825 = vsel %vm6824, %v6817, %v6821
  %v6826 = vand.u32 2147483647, %v6151
  %vm6827 = vcmp.eq.f32.partialorder %v6826, 8.507059e+37
  %v6828 = vand.u32 %v6151, 2147483648
  %v6829 = vor.u32 1.1754944e-38, %v6828
  %v6830 = vsel %vm6827, %v6829, %v6825
  %v6831 = vmul.f32 1.0, %v6830
  %v6832 = vrcp.pop %v6152
  %v6833 = vmul.f32 %v6152, %v6832
  %v6834 = vsub.f32 1.0, %v6833
  %v6835 = vmul.f32 %v6832, %v6834
  %v6836 = vadd.f32 %v6832, %v6835
  %vm6837 = vweird.f32 %v6152
  %vm6838 = vweird.f32 %v6832
  %vm6839 = vmor %vm6837, %vm6838
  %v6840 = vsel %vm6839, %v6832, %v6836
  %v6841 = vand.u32 2147483647, %v6152
  %vm6842 = vcmp.eq.f32.partialorder %v6841, 8.507059e+37
  %v6843 = vand.u32 %v6152, 2147483648
  %v6844 = vor.u32 1.1754944e-38, %v6843
  %v6845 = vsel %vm6842, %v6844, %v6840
  %v6846 = vmul.f32 1.0, %v6845
  %v6847 = vrcp.pop %v6153
  %v6848 = vmul.f32 %v6153, %v6847
  %v6849 = vsub.f32 1.0, %v6848
  %v6850 = vmul.f32 %v6847, %v6849
  %v6851 = vadd.f32 %v6847, %v6850
  %vm6852 = vweird.f32 %v6153
  %vm6853 = vweird.f32 %v6847
  %vm6854 = vmor %vm6852, %vm6853
  %v6855 = vsel %vm6854, %v6847, %v6851
  %v6856 = vand.u32 2147483647, %v6153
  %vm6857 = vcmp.eq.f32.partialorder %v6856, 8.507059e+37
  %v6858 = vand.u32 %v6153, 2147483648
  %v6859 = vor.u32 1.1754944e-38, %v6858
  %v6860 = vsel %vm6857, %v6859, %v6855
  %v6861 = vmul.f32 1.0, %v6860
  %v6862 = vrcp.pop %v6154
  %v6863 = vmul.f32 %v6154, %v6862
  %v6864 = vsub.f32 1.0, %v6863
  %v6865 = vmul.f32 %v6862, %v6864
  %v6866 = vadd.f32 %v6862, %v6865
  %vm6867 = vweird.f32 %v6154
  %vm6868 = vweird.f32 %v6862
  %vm6869 = vmor %vm6867, %vm6868
  %v6870 = vsel %vm6869, %v6862, %v6866
  %v6871 = vand.u32 2147483647, %v6154
  %vm6872 = vcmp.eq.f32.partialorder %v6871, 8.507059e+37
  %v6873 = vand.u32 %v6154, 2147483648
  %v6874 = vor.u32 1.1754944e-38, %v6873
  %v6875 = vsel %vm6872, %v6874, %v6870
  %v6876 = vmul.f32 1.0, %v6875
  %v6877 = vrcp.pop %v6155
  %v6878 = vmul.f32 %v6155, %v6877
  %v6879 = vsub.f32 1.0, %v6878
  %v6880 = vmul.f32 %v6877, %v6879
  %v6881 = vadd.f32 %v6877, %v6880
  %vm6882 = vweird.f32 %v6155
  %vm6883 = vweird.f32 %v6877
  %vm6884 = vmor %vm6882, %vm6883
  %v6885 = vsel %vm6884, %v6877, %v6881
  %v6886 = vand.u32 2147483647, %v6155
  %vm6887 = vcmp.eq.f32.partialorder %v6886, 8.507059e+37
  %v6888 = vand.u32 %v6155, 2147483648
  %v6889 = vor.u32 1.1754944e-38, %v6888
  %v6890 = vsel %vm6887, %v6889, %v6885
  %v6891 = vmul.f32 1.0, %v6890
  %v6892 = vrcp.pop %v6156
  %v6893 = vmul.f32 %v6156, %v6892
  %v6894 = vsub.f32 1.0, %v6893
  %v6895 = vmul.f32 %v6892, %v6894
  %v6896 = vadd.f32 %v6892, %v6895
  %vm6897 = vweird.f32 %v6156
  %vm6898 = vweird.f32 %v6892
  %vm6899 = vmor %vm6897, %vm6898
  %v6900 = vsel %vm6899, %v6892, %v6896
  %v6901 = vand.u32 2147483647, %v6156
  %vm6902 = vcmp.eq.f32.partialorder %v6901, 8.507059e+37
  %v6903 = vand.u32 %v6156, 2147483648
  %v6904 = vor.u32 1.1754944e-38, %v6903
  %v6905 = vsel %vm6902, %v6904, %v6900
  %v6906 = vmul.f32 1.0, %v6905
  %v6907 = vrcp.pop %v6157
  %v6908 = vmul.f32 %v6157, %v6907
  %v6909 = vsub.f32 1.0, %v6908
  %v6910 = vmul.f32 %v6907, %v6909
  %v6911 = vadd.f32 %v6907, %v6910
  %vm6912 = vweird.f32 %v6157
  %vm6913 = vweird.f32 %v6907
  %vm6914 = vmor %vm6912, %vm6913
  %v6915 = vsel %vm6914, %v6907, %v6911
  %v6916 = vand.u32 2147483647, %v6157
  %vm6917 = vcmp.eq.f32.partialorder %v6916, 8.507059e+37
  %v6918 = vand.u32 %v6157, 2147483648
  %v6919 = vor.u32 1.1754944e-38, %v6918
  %v6920 = vsel %vm6917, %v6919, %v6915
  %v6921 = vmul.f32 1.0, %v6920
  %v6922 = vrcp.pop %v6158
  %v6923 = vmul.f32 %v6158, %v6922
  %v6924 = vsub.f32 1.0, %v6923
  %v6925 = vmul.f32 %v6922, %v6924
  %v6926 = vadd.f32 %v6922, %v6925
  %vm6927 = vweird.f32 %v6158
  %vm6928 = vweird.f32 %v6922
  %vm6929 = vmor %vm6927, %vm6928
  %v6930 = vsel %vm6929, %v6922, %v6926
  %v6931 = vand.u32 2147483647, %v6158
  %vm6932 = vcmp.eq.f32.partialorder %v6931, 8.507059e+37
  %v6933 = vand.u32 %v6158, 2147483648
  %v6934 = vor.u32 1.1754944e-38, %v6933
  %v6935 = vsel %vm6932, %v6934, %v6930
  %v6936 = vmul.f32 1.0, %v6935
  %v6937 = vrcp.pop %v6159
  %v6938 = vmul.f32 %v6159, %v6937
  %v6939 = vsub.f32 1.0, %v6938
  %v6940 = vmul.f32 %v6937, %v6939
  %v6941 = vadd.f32 %v6937, %v6940
  %vm6942 = vweird.f32 %v6159
  %vm6943 = vweird.f32 %v6937
  %vm6944 = vmor %vm6942, %vm6943
  %v6945 = vsel %vm6944, %v6937, %v6941
  %v6946 = vand.u32 2147483647, %v6159
  %vm6947 = vcmp.eq.f32.partialorder %v6946, 8.507059e+37
  %v6948 = vand.u32 %v6159, 2147483648
  %v6949 = vor.u32 1.1754944e-38, %v6948
  %v6950 = vsel %vm6947, %v6949, %v6945
  %v6951 = vmul.f32 1.0, %v6950
  %v6952 = vrcp.pop %v6160
  %v6953 = vmul.f32 %v6160, %v6952
  %v6954 = vsub.f32 1.0, %v6953
  %v6955 = vmul.f32 %v6952, %v6954
  %v6956 = vadd.f32 %v6952, %v6955
  %vm6957 = vweird.f32 %v6160
  %vm6958 = vweird.f32 %v6952
  %vm6959 = vmor %vm6957, %vm6958
  %v6960 = vsel %vm6959, %v6952, %v6956
  %v6961 = vand.u32 2147483647, %v6160
  %vm6962 = vcmp.eq.f32.partialorder %v6961, 8.507059e+37
  %v6963 = vand.u32 %v6160, 2147483648
  %v6964 = vor.u32 1.1754944e-38, %v6963
  %v6965 = vsel %vm6962, %v6964, %v6960
  %v6966 = vmul.f32 1.0, %v6965
  %v6967 = vrcp.pop %v6161
  %v6968 = vmul.f32 %v6161, %v6967
  %v6969 = vsub.f32 1.0, %v6968
  %v6970 = vmul.f32 %v6967, %v6969
  %v6971 = vadd.f32 %v6967, %v6970
  %vm6972 = vweird.f32 %v6161
  %vm6973 = vweird.f32 %v6967
  %vm6974 = vmor %vm6972, %vm6973
  %v6975 = vsel %vm6974, %v6967, %v6971
  %v6976 = vand.u32 2147483647, %v6161
  %vm6977 = vcmp.eq.f32.partialorder %v6976, 8.507059e+37
  %v6978 = vand.u32 %v6161, 2147483648
  %v6979 = vor.u32 1.1754944e-38, %v6978
  %v6980 = vsel %vm6977, %v6979, %v6975
  %v6981 = vmul.f32 1.0, %v6980
  %v6982 = vrcp.pop %v6162
  %v6983 = vmul.f32 %v6162, %v6982
  %v6984 = vsub.f32 1.0, %v6983
  %v6985 = vmul.f32 %v6982, %v6984
  %v6986 = vadd.f32 %v6982, %v6985
  %vm6987 = vweird.f32 %v6162
  %vm6988 = vweird.f32 %v6982
  %vm6989 = vmor %vm6987, %vm6988
  %v6990 = vsel %vm6989, %v6982, %v6986
  %v6991 = vand.u32 2147483647, %v6162
  %vm6992 = vcmp.eq.f32.partialorder %v6991, 8.507059e+37
  %v6993 = vand.u32 %v6162, 2147483648
  %v6994 = vor.u32 1.1754944e-38, %v6993
  %v6995 = vsel %vm6992, %v6994, %v6990
  %v6996 = vmul.f32 1.0, %v6995
  %v6997 = vrcp.pop %v6163
  %v6998 = vmul.f32 %v6163, %v6997
  %v6999 = vsub.f32 1.0, %v6998
  %v7000 = vmul.f32 %v6997, %v6999
  %v7001 = vadd.f32 %v6997, %v7000
  %vm7002 = vweird.f32 %v6163
  %vm7003 = vweird.f32 %v6997
  %vm7004 = vmor %vm7002, %vm7003
  %v7005 = vsel %vm7004, %v6997, %v7001
  %v7006 = vand.u32 2147483647, %v6163
  %vm7007 = vcmp.eq.f32.partialorder %v7006, 8.507059e+37
  %v7008 = vand.u32 %v6163, 2147483648
  %v7009 = vor.u32 1.1754944e-38, %v7008
  %v7010 = vsel %vm7007, %v7009, %v7005
  %v7011 = vmul.f32 1.0, %v7010
  %v7012 = vrcp.pop %v6164
  %v7013 = vmul.f32 %v6164, %v7012
  %v7014 = vsub.f32 1.0, %v7013
  %v7015 = vmul.f32 %v7012, %v7014
  %v7016 = vadd.f32 %v7012, %v7015
  %vm7017 = vweird.f32 %v6164
  %vm7018 = vweird.f32 %v7012
  %vm7019 = vmor %vm7017, %vm7018
  %v7020 = vsel %vm7019, %v7012, %v7016
  %v7021 = vand.u32 2147483647, %v6164
  %vm7022 = vcmp.eq.f32.partialorder %v7021, 8.507059e+37
  %v7023 = vand.u32 %v6164, 2147483648
  %v7024 = vor.u32 1.1754944e-38, %v7023
  %v7025 = vsel %vm7022, %v7024, %v7020
  %v7026 = vmul.f32 1.0, %v7025
  %v7027 = vrcp.pop %v6165
  %v7028 = vmul.f32 %v6165, %v7027
  %v7029 = vsub.f32 1.0, %v7028
  %v7030 = vmul.f32 %v7027, %v7029
  %v7031 = vadd.f32 %v7027, %v7030
  %vm7032 = vweird.f32 %v6165
  %vm7033 = vweird.f32 %v7027
  %vm7034 = vmor %vm7032, %vm7033
  %v7035 = vsel %vm7034, %v7027, %v7031
  %v7036 = vand.u32 2147483647, %v6165
  %vm7037 = vcmp.eq.f32.partialorder %v7036, 8.507059e+37
  %v7038 = vand.u32 %v6165, 2147483648
  %v7039 = vor.u32 1.1754944e-38, %v7038
  %v7040 = vsel %vm7037, %v7039, %v7035
  %v7041 = vmul.f32 1.0, %v7040
  %v7042 = vrcp.pop %v6166
  %v7043 = vmul.f32 %v6166, %v7042
  %v7044 = vsub.f32 1.0, %v7043
  %v7045 = vmul.f32 %v7042, %v7044
  %v7046 = vadd.f32 %v7042, %v7045
  %vm7047 = vweird.f32 %v6166
  %vm7048 = vweird.f32 %v7042
  %vm7049 = vmor %vm7047, %vm7048
  %v7050 = vsel %vm7049, %v7042, %v7046
  %v7051 = vand.u32 2147483647, %v6166
  %vm7052 = vcmp.eq.f32.partialorder %v7051, 8.507059e+37
  %v7053 = vand.u32 %v6166, 2147483648
  %v7054 = vor.u32 1.1754944e-38, %v7053
  %v7055 = vsel %vm7052, %v7054, %v7050
  %v7056 = vmul.f32 1.0, %v7055
  %v7057 = vrcp.pop %v6167
  %v7058 = vmul.f32 %v6167, %v7057
  %v7059 = vsub.f32 1.0, %v7058
  %v7060 = vmul.f32 %v7057, %v7059
  %v7061 = vadd.f32 %v7057, %v7060
  %vm7062 = vweird.f32 %v6167
  %vm7063 = vweird.f32 %v7057
  %vm7064 = vmor %vm7062, %vm7063
  %v7065 = vsel %vm7064, %v7057, %v7061
  %v7066 = vand.u32 2147483647, %v6167
  %vm7067 = vcmp.eq.f32.partialorder %v7066, 8.507059e+37
  %v7068 = vand.u32 %v6167, 2147483648
  %v7069 = vor.u32 1.1754944e-38, %v7068
  %v7070 = vsel %vm7067, %v7069, %v7065
  %v7071 = vmul.f32 1.0, %v7070
  %v7072 = vrcp.pop %v6168
  %v7073 = vmul.f32 %v6168, %v7072
  %v7074 = vsub.f32 1.0, %v7073
  %v7075 = vmul.f32 %v7072, %v7074
  %v7076 = vadd.f32 %v7072, %v7075
  %vm7077 = vweird.f32 %v6168
  %vm7078 = vweird.f32 %v7072
  %vm7079 = vmor %vm7077, %vm7078
  %v7080 = vsel %vm7079, %v7072, %v7076
  %v7081 = vand.u32 2147483647, %v6168
  %vm7082 = vcmp.eq.f32.partialorder %v7081, 8.507059e+37
  %v7083 = vand.u32 %v6168, 2147483648
  %v7084 = vor.u32 1.1754944e-38, %v7083
  %v7085 = vsel %vm7082, %v7084, %v7080
  %v7086 = vmul.f32 1.0, %v7085
  %v7087 = vrcp.pop %v6169
  %v7088 = vmul.f32 %v6169, %v7087
  %v7089 = vsub.f32 1.0, %v7088
  %v7090 = vmul.f32 %v7087, %v7089
  %v7091 = vadd.f32 %v7087, %v7090
  %vm7092 = vweird.f32 %v6169
  %vm7093 = vweird.f32 %v7087
  %vm7094 = vmor %vm7092, %vm7093
  %v7095 = vsel %vm7094, %v7087, %v7091
  %v7096 = vand.u32 2147483647, %v6169
  %vm7097 = vcmp.eq.f32.partialorder %v7096, 8.507059e+37
  %v7098 = vand.u32 %v6169, 2147483648
  %v7099 = vor.u32 1.1754944e-38, %v7098
  %v7100 = vsel %vm7097, %v7099, %v7095
  %v7101 = vmul.f32 1.0, %v7100
  %v7102 = vrcp.pop %v6170
  %v7103 = vmul.f32 %v6170, %v7102
  %v7104 = vsub.f32 1.0, %v7103
  %v7105 = vmul.f32 %v7102, %v7104
  %v7106 = vadd.f32 %v7102, %v7105
  %vm7107 = vweird.f32 %v6170
  %vm7108 = vweird.f32 %v7102
  %vm7109 = vmor %vm7107, %vm7108
  %v7110 = vsel %vm7109, %v7102, %v7106
  %v7111 = vand.u32 2147483647, %v6170
  %vm7112 = vcmp.eq.f32.partialorder %v7111, 8.507059e+37
  %v7113 = vand.u32 %v6170, 2147483648
  %v7114 = vor.u32 1.1754944e-38, %v7113
  %v7115 = vsel %vm7112, %v7114, %v7110
  %v7116 = vmul.f32 1.0, %v7115
  %v7117 = vrcp.pop %v6171
  %v7118 = vmul.f32 %v6171, %v7117
  %v7119 = vsub.f32 1.0, %v7118
  %v7120 = vmul.f32 %v7117, %v7119
  %v7121 = vadd.f32 %v7117, %v7120
  %vm7122 = vweird.f32 %v6171
  %vm7123 = vweird.f32 %v7117
  %vm7124 = vmor %vm7122, %vm7123
  %v7125 = vsel %vm7124, %v7117, %v7121
  %v7126 = vand.u32 2147483647, %v6171
  %vm7127 = vcmp.eq.f32.partialorder %v7126, 8.507059e+37
  %v7128 = vand.u32 %v6171, 2147483648
  %v7129 = vor.u32 1.1754944e-38, %v7128
  %v7130 = vsel %vm7127, %v7129, %v7125
  %v7131 = vmul.f32 1.0, %v7130
  %v7132 = vmul.f32 %v4317, %v6186
  %v7133 = vmul.f32 %v4321, %v6201
  %v7134 = vmul.f32 %v4325, %v6216
  %v7135 = vmul.f32 %v4329, %v6231
  %v7136 = vmul.f32 %v4333, %v6246
  %v7137 = vmul.f32 %v4337, %v6261
  %v7138 = vmul.f32 %v4341, %v6276
  %v7139 = vmul.f32 %v4345, %v6291
  %v7140 = vmul.f32 %v4349, %v6306
  %v7141 = vmul.f32 %v4353, %v6321
  %v7142 = vmul.f32 %v4357, %v6336
  %v7143 = vmul.f32 %v4361, %v6351
  %v7144 = vmul.f32 %v4365, %v6366
  %v7145 = vmul.f32 %v4369, %v6381
  %v7146 = vmul.f32 %v4373, %v6396
  %v7147 = vmul.f32 %v4377, %v6411
  %v7148 = vmul.f32 %v4381, %v6426
  %v7149 = vmul.f32 %v4385, %v6441
  %v7150 = vmul.f32 %v4389, %v6456
  %v7151 = vmul.f32 %v4393, %v6471
  %v7152 = vmul.f32 %v4397, %v6486
  %v7153 = vmul.f32 %v4401, %v6501
  %v7154 = vmul.f32 %v4405, %v6516
  %v7155 = vmul.f32 %v4409, %v6531
  %v7156 = vmul.f32 %v4413, %v6546
  %v7157 = vmul.f32 %v4417, %v6561
  %v7158 = vmul.f32 %v4421, %v6576
  %v7159 = vmul.f32 %v4425, %v6591
  %v7160 = vmul.f32 %v4429, %v6606
  %v7161 = vmul.f32 %v4433, %v6621
  %v7162 = vmul.f32 %v4437, %v6636
  %v7163 = vmul.f32 %v4441, %v6651
  %v7164 = vmul.f32 %v4445, %v6666
  %v7165 = vmul.f32 %v4449, %v6681
  %v7166 = vmul.f32 %v4453, %v6696
  %v7167 = vmul.f32 %v4457, %v6711
  %v7168 = vmul.f32 %v4461, %v6726
  %v7169 = vmul.f32 %v4465, %v6741
  %v7170 = vmul.f32 %v4469, %v6756
  %v7171 = vmul.f32 %v4473, %v6771
  %v7172 = vmul.f32 %v4477, %v6786
  %v7173 = vmul.f32 %v4481, %v6801
  %v7174 = vmul.f32 %v4485, %v6816
  %v7175 = vmul.f32 %v4489, %v6831
  %v7176 = vmul.f32 %v4493, %v6846
  %v7177 = vmul.f32 %v4497, %v6861
  %v7178 = vmul.f32 %v4501, %v6876
  %v7179 = vmul.f32 %v4505, %v6891
  %v7180 = vmul.f32 %v4509, %v6906
  %v7181 = vmul.f32 %v4513, %v6921
  %v7182 = vmul.f32 %v4517, %v6936
  %v7183 = vmul.f32 %v4521, %v6951
  %v7184 = vmul.f32 %v4525, %v6966
  %v7185 = vmul.f32 %v4529, %v6981
  %v7186 = vmul.f32 %v4533, %v6996
  %v7187 = vmul.f32 %v4537, %v7011
  %v7188 = vmul.f32 %v4541, %v7026
  %v7189 = vmul.f32 %v4545, %v7041
  %v7190 = vmul.f32 %v4549, %v7056
  %v7191 = vmul.f32 %v4553, %v7071
  %v7192 = vmul.f32 %v4557, %v7086
  %v7193 = vmul.f32 %v4561, %v7101
  %v7194 = vmul.f32 %v4565, %v7116
  %v7195 = vmul.f32 %v4569, %v7131
  %7196 = vst.msk [vmem:[%s6] sm:$0xff] %vm5851, %v7132
  %7197 = vst.msk [vmem:[%s6 + $0x8] sm:$0xff] %vm5851, %v7133
  %7198 = vst.msk [vmem:[%s6 + $0x10] sm:$0xff] %vm5851, %v7134
  %7199 = vst.msk [vmem:[%s6 + $0x18] sm:$0xff] %vm5851, %v7135
  %7200 = vst.msk [vmem:[%s6 + $0x20] sm:$0xff] %vm5851, %v7136
  %7201 = vst.msk [vmem:[%s6 + $0x28] sm:$0xff] %vm5851, %v7137
  %7202 = vst.msk [vmem:[%s6 + $0x30] sm:$0xff] %vm5851, %v7138
  %7203 = vst.msk [vmem:[%s6 + $0x38] sm:$0xff] %vm5851, %v7139
  %7204 = vst.msk [vmem:[%s6 + $0x40] sm:$0xff] %vm5851, %v7140
  %7205 = vst.msk [vmem:[%s6 + $0x48] sm:$0xff] %vm5851, %v7141
  %7206 = vst.msk [vmem:[%s6 + $0x50] sm:$0xff] %vm5851, %v7142
  %7207 = vst.msk [vmem:[%s6 + $0x58] sm:$0xff] %vm5851, %v7143
  %7208 = vst.msk [vmem:[%s6 + $0x60] sm:$0xff] %vm5851, %v7144
  %7209 = vst.msk [vmem:[%s6 + $0x68] sm:$0xff] %vm5851, %v7145
  %7210 = vst.msk [vmem:[%s6 + $0x70] sm:$0xff] %vm5851, %v7146
  %7211 = vst.msk [vmem:[%s6 + $0x78] sm:$0xff] %vm5851, %v7147
  %7212 = vst.msk [vmem:[%s6 + $0x80] sm:$0xff] %vm5851, %v7148
  %7213 = vst.msk [vmem:[%s6 + $0x88] sm:$0xff] %vm5851, %v7149
  %7214 = vst.msk [vmem:[%s6 + $0x90] sm:$0xff] %vm5851, %v7150
  %7215 = vst.msk [vmem:[%s6 + $0x98] sm:$0xff] %vm5851, %v7151
  %7216 = vst.msk [vmem:[%s6 + $0xa0] sm:$0xff] %vm5851, %v7152
  %7217 = vst.msk [vmem:[%s6 + $0xa8] sm:$0xff] %vm5851, %v7153
  %7218 = vst.msk [vmem:[%s6 + $0xb0] sm:$0xff] %vm5851, %v7154
  %7219 = vst.msk [vmem:[%s6 + $0xb8] sm:$0xff] %vm5851, %v7155
  %7220 = vst.msk [vmem:[%s6 + $0xc0] sm:$0xff] %vm5851, %v7156
  %7221 = vst.msk [vmem:[%s6 + $0xc8] sm:$0xff] %vm5851, %v7157
  %7222 = vst.msk [vmem:[%s6 + $0xd0] sm:$0xff] %vm5851, %v7158
  %7223 = vst.msk [vmem:[%s6 + $0xd8] sm:$0xff] %vm5851, %v7159
  %7224 = vst.msk [vmem:[%s6 + $0xe0] sm:$0xff] %vm5851, %v7160
  %7225 = vst.msk [vmem:[%s6 + $0xe8] sm:$0xff] %vm5851, %v7161
  %7226 = vst.msk [vmem:[%s6 + $0xf0] sm:$0xff] %vm5851, %v7162
  %7227 = vst.msk [vmem:[%s6 + $0xf8] sm:$0xff] %vm5851, %v7163
  %7228 = vst.msk [vmem:[%s6 + $0x100] sm:$0xff] %vm5851, %v7164
  %7229 = vst.msk [vmem:[%s6 + $0x108] sm:$0xff] %vm5851, %v7165
  %7230 = vst.msk [vmem:[%s6 + $0x110] sm:$0xff] %vm5851, %v7166
  %7231 = vst.msk [vmem:[%s6 + $0x118] sm:$0xff] %vm5851, %v7167
  %7232 = vst.msk [vmem:[%s6 + $0x120] sm:$0xff] %vm5851, %v7168
  %7233 = vst.msk [vmem:[%s6 + $0x128] sm:$0xff] %vm5851, %v7169
  %7234 = vst.msk [vmem:[%s6 + $0x130] sm:$0xff] %vm5851, %v7170
  %7235 = vst.msk [vmem:[%s6 + $0x138] sm:$0xff] %vm5851, %v7171
  %7236 = vst.msk [vmem:[%s6 + $0x140] sm:$0xff] %vm5851, %v7172
  %7237 = vst.msk [vmem:[%s6 + $0x148] sm:$0xff] %vm5851, %v7173
  %7238 = vst.msk [vmem:[%s6 + $0x150] sm:$0xff] %vm5851, %v7174
  %7239 = vst.msk [vmem:[%s6 + $0x158] sm:$0xff] %vm5851, %v7175
  %7240 = vst.msk [vmem:[%s6 + $0x160] sm:$0xff] %vm5851, %v7176
  %7241 = vst.msk [vmem:[%s6 + $0x168] sm:$0xff] %vm5851, %v7177
  %7242 = vst.msk [vmem:[%s6 + $0x170] sm:$0xff] %vm5851, %v7178
  %7243 = vst.msk [vmem:[%s6 + $0x178] sm:$0xff] %vm5851, %v7179
  %7244 = vst.msk [vmem:[%s6 + $0x180] sm:$0xff] %vm5851, %v7180
  %7245 = vst.msk [vmem:[%s6 + $0x188] sm:$0xff] %vm5851, %v7181
  %7246 = vst.msk [vmem:[%s6 + $0x190] sm:$0xff] %vm5851, %v7182
  %7247 = vst.msk [vmem:[%s6 + $0x198] sm:$0xff] %vm5851, %v7183
  %7248 = vst.msk [vmem:[%s6 + $0x1a0] sm:$0xff] %vm5851, %v7184
  %7249 = vst.msk [vmem:[%s6 + $0x1a8] sm:$0xff] %vm5851, %v7185
  %7250 = vst.msk [vmem:[%s6 + $0x1b0] sm:$0xff] %vm5851, %v7186
  %7251 = vst.msk [vmem:[%s6 + $0x1b8] sm:$0xff] %vm5851, %v7187
  %7252 = vst.msk [vmem:[%s6 + $0x1c0] sm:$0xff] %vm5851, %v7188
  %7253 = vst.msk [vmem:[%s6 + $0x1c8] sm:$0xff] %vm5851, %v7189
  %7254 = vst.msk [vmem:[%s6 + $0x1d0] sm:$0xff] %vm5851, %v7190
  %7255 = vst.msk [vmem:[%s6 + $0x1d8] sm:$0xff] %vm5851, %v7191
  %7256 = vst.msk [vmem:[%s6 + $0x1e0] sm:$0xff] %vm5851, %v7192
  %7257 = vst.msk [vmem:[%s6 + $0x1e8] sm:$0xff] %vm5851, %v7193
  %7258 = vst.msk [vmem:[%s6 + $0x1f0] sm:$0xff] %vm5851, %v7194
  %7259 = vst.msk [vmem:[%s6 + $0x1f8] sm:$0xff] %vm5851, %v7195
  // Predicated region
  $region22: #{tpu_custom_call.1} parent=0 // pred_check
    _
  $region23: #{tpu_custom_call.1} parent=0 // pred_check_branch
    %7261 = sbr.rel (0) target = $region25
  $region24: #{tpu_custom_call.1} parent=0 // pred_region
    _
  $region25: #{tpu_custom_call.1} parent=0 // pred_fallthru
    _
  // Predicated region
  $region26: #{tpu_custom_call.1} parent=0 // pred_check
    _
  $region27: #{tpu_custom_call.1} parent=0 // pred_check_branch
    %7263 = sbr.rel (0) target = $region29
  $region28: #{tpu_custom_call.1} parent=0 // pred_region
    _
  $region29: #{tpu_custom_call.1} parent=0 // pred_fallthru
    _
  // Predicated region
  $region30: #{tpu_custom_call.1} parent=0 // pred_check
    _
  $region31: #{tpu_custom_call.1} parent=0 // pred_check_branch
    %7265 = sbr.rel (0) target = $region33
  $region32: #{tpu_custom_call.1} parent=0 // pred_region
    _
  $region33: #{tpu_custom_call.1} parent=0 // pred_fallthru
    _
  // Predicated region
  $region34: #{tpu_custom_call.1} parent=0 // pred_check
    _
  $region35: #{tpu_custom_call.1} parent=0 // pred_check_branch
    %7267 = sbr.rel (0) target = $region37
  $region36: #{tpu_custom_call.1} parent=0 // pred_region
    _
  $region37: #{tpu_custom_call.1} parent=0 // pred_fallthru
    _

</llo_original>
